<compile_context>
chip_gen: v5e
topology: v5e:2x2
jax: 0.10.0
libtpu: 0.0.40
codegen_flags: <defaults>
</compile_context>

<pallas_src>
import jax
import jax.numpy as jnp
from jax.experimental import pallas as pl
from jax.experimental.pallas import tpu as pltpu


# ----------------------------------------------------------------------------
# Fused Pallas kernel: one grid step == one sample, full network in VMEM.
# ----------------------------------------------------------------------------
def _fused_kernel(xwp_ref, w1_ref, b1_ref, w2_ref, b2_ref, w3_ref, b3_ref,
                  wf1_ref, bf1_ref, wf2_ref, bf2_ref, o_ref):
    f32 = jnp.float32
    bf16 = jnp.bfloat16

    # 4 parity images of the width-expanded input, each (288, 16) bf16.
    # xpar[p][q][r*16 + c, dx*3 + ci] = x[b, 2r+p, 2c+q+dx, ci]  (0 when OOB).
    xpar = [[xwp_ref[0, p, q] for q in range(2)] for p in range(2)]

    # ---- conv1 (5x5, 3->32) + bias + relu + 2x2 max-pool (fused) -----------
    # The 2x2 pool cosets (oy, ox) partition the 28x28 conv grid.  Coset row
    # m = i*16 + j holds conv1 at spatial (2i+oy, 2j+ox); valid for i, j < 14.
    m1 = None
    for oy in range(2):
        for ox in range(2):
            acc = jnp.zeros((240, 32), f32)
            for dy in range(5):
                a = oy + dy
                start = (a // 2) * 16
                lhs = xpar[a % 2][ox][start:start + 240, :]          # (240, 16)
                acc = acc + jnp.dot(lhs, w1_ref[dy],
                                    preferred_element_type=f32)
            m1 = acc if m1 is None else jnp.maximum(m1, acc)
    p1 = jnp.maximum(m1 + b1_ref[...], 0.0).astype(bf16)             # (240, 32)

    # ---- conv2 (5x5, 32->64) + bias + relu at full 10x10 resolution --------
    # Output row m = i*16 + j (valid for i, j < 10); tap (dy, dx) reads the
    # pooled-conv1 grid at a static row shift of dy*16 + dx.
    acc2 = jnp.zeros((160, 64), f32)
    for dy in range(5):
        for dx in range(5):
            s = dy * 16 + dx
            acc2 = acc2 + jnp.dot(p1[s:s + 160, :], w2_ref[dy * 5 + dx],
                                  preferred_element_type=f32)
    c2 = jnp.maximum(acc2 + b2_ref[...], 0.0).astype(bf16)           # (160, 64)

    # ---- 2x2 max-pool of conv2 fused into conv3 (5x5, 64->128, 1x1 out) ----
    acc3 = jnp.zeros((1, 128), f32)
    for r in range(5):
        for c in range(5):
            rows = []
            for oy in range(2):
                for ox in range(2):
                    idx = (2 * r + oy) * 16 + (2 * c + ox)
                    rows.append(c2[idx:idx + 1, :])                  # (1, 64)
            pooled = jnp.maximum(jnp.maximum(rows[0], rows[1]),
                                 jnp.maximum(rows[2], rows[3]))
            acc3 = acc3 + jnp.dot(pooled, w3_ref[r * 5 + c],
                                  preferred_element_type=f32)
    h = jnp.maximum(acc3 + b3_ref[...], 0.0).astype(bf16)            # (1, 128)

    # ---- fc1 + relu, fc2 ----------------------------------------------------
    h = jnp.maximum(jnp.dot(h, wf1_ref[...], preferred_element_type=f32)
                    + bf1_ref[...], 0.0).astype(bf16)                # (1, 64)
    out = jnp.dot(h, wf2_ref[...], preferred_element_type=f32) + bf2_ref[...]
    o_ref[0] = out.astype(o_ref.dtype)                               # (1, 34)


# ----------------------------------------------------------------------------
# Host-side layout prep (pure data movement, no im2col expansion).
# ----------------------------------------------------------------------------
def _prep_inputs(x_nchw):
    """x: (B, 3, 32, 32) f32 -> (B, 2, 2, 288, 16) bf16.
    [b, p, q, r*16+c, dx*3+ci] = x[b, ci, 2r+p, 2c+q+dx] (zero when OOB)."""
    bsz = x_nchw.shape[0]
    x = jnp.transpose(x_nchw, (0, 2, 3, 1))                          # NHWC
    xpad = jnp.pad(x, ((0, 0), (0, 0), (0, 4), (0, 0)))              # (B,32,36,3)
    xw = jnp.stack([xpad[:, :, dx:dx + 32, :] for dx in range(5)], axis=3)
    xw = xw.reshape(bsz, 32, 32, 15)                                 # k = dx*3+ci
    xw = xw.reshape(bsz, 16, 2, 16, 2, 15).transpose(0, 2, 4, 1, 3, 5)
    xw = xw.reshape(bsz, 2, 2, 256, 15)
    xw = jnp.pad(xw, ((0, 0), (0, 0), (0, 0), (0, 32), (0, 1)))      # rows->288, K->16
    return xw.astype(jnp.bfloat16)


def _prep_params(params):
    w1, b1 = params["conv1"]
    w2, b2 = params["conv2"]
    w3, b3 = params["conv3"]
    wf1, bf1 = params["fc1"]
    wf2, bf2 = params["fc2"]
    bf = jnp.bfloat16
    f32 = jnp.float32
    w1p = jnp.transpose(w1, (2, 3, 1, 0)).reshape(5, 15, 32)         # (dy, dx*3+ci, co)
    w1p = jnp.pad(w1p, ((0, 0), (0, 1), (0, 0)))                     # K 15 -> 16
    w2p = jnp.transpose(w2, (2, 3, 1, 0)).reshape(25, 32, 64)        # (dy*5+dx, ci, co)
    w3p = jnp.transpose(w3, (2, 3, 1, 0)).reshape(25, 64, 128)       # (r*5+c, ci, co)
    return (w1p.astype(bf), b1.reshape(1, 32).astype(f32),
            w2p.astype(bf), b2.reshape(1, 64).astype(f32),
            w3p.astype(bf), b3.reshape(1, 128).astype(f32),
            wf1.T.astype(bf), bf1.reshape(1, 64).astype(f32),
            wf2.T.astype(bf), bf2.reshape(1, 34).astype(f32))


# ----------------------------------------------------------------------------
# Forward pass: single pallas_call, grid over batch, parallel semantics.
# ----------------------------------------------------------------------------
@jax.jit
def conv_classifier_forward(x, params):
    bsz = x.shape[0]
    xwp = _prep_inputs(x)
    weights = _prep_params(params)

    def full_spec(a):
        return pl.BlockSpec(a.shape, lambda b: (0,) * a.ndim)

    out = pl.pallas_call(
        _fused_kernel,
        out_shape=jax.ShapeDtypeStruct((bsz, 1, 34), jnp.float32),
        grid=(bsz,),
        in_specs=[pl.BlockSpec((1, 2, 2, 288, 16), lambda b: (b, 0, 0, 0, 0))]
                 + [full_spec(w) for w in weights],
        out_specs=pl.BlockSpec((1, 1, 34), lambda b: (b, 0, 0)),
        compiler_params=pltpu.CompilerParams(
            dimension_semantics=("parallel",)),
    )(xwp, *weights)
    return out.reshape(bsz, 34)


# ----------------------------------------------------------------------------
# Plain-JAX reference (same bf16 storage points as the kernel).
# ----------------------------------------------------------------------------
def reference_forward(x, params):
    f32 = jnp.float32

    def q(t):
        return t.astype(jnp.bfloat16).astype(f32)

    def conv(t, w, b):
        y = jax.lax.conv_general_dilated(
            q(t), q(w), (1, 1), "VALID",
            dimension_numbers=("NCHW", "OIHW", "NCHW"))
        return y + b.reshape(1, -1, 1, 1)

    def pool(t):
        return jax.lax.reduce_window(
            t, -jnp.inf, jax.lax.max, (1, 1, 2, 2), (1, 1, 2, 2), "VALID")

    y = pool(jax.nn.relu(conv(x, *params["conv1"])))
    y = pool(jax.nn.relu(conv(y, *params["conv2"])))
    y = jax.nn.relu(conv(y, *params["conv3"]))
    y = y.reshape(y.shape[0], -1)
    wf1, bf1 = params["fc1"]
    wf2, bf2 = params["fc2"]
    y = jax.nn.relu(q(y) @ q(wf1).T + bf1)
    return q(y) @ q(wf2).T + bf2


# ----------------------------------------------------------------------------
if __name__ == "__main__":
    key = jax.random.PRNGKey(0)
    ks = jax.random.split(key, 11)

    def uni(k, shape, fan_in):
        bound = 1.0 / (fan_in ** 0.5)
        return jax.random.uniform(k, shape, jnp.float32, -bound, bound)

    # Deterministic params, same shapes as the PyTorch module's __init__.
    params = {
        "conv1": (uni(ks[0], (32, 3, 5, 5), 3 * 25),    uni(ks[1], (32,), 3 * 25)),
        "conv2": (uni(ks[2], (64, 32, 5, 5), 32 * 25),  uni(ks[3], (64,), 32 * 25)),
        "conv3": (uni(ks[4], (128, 64, 5, 5), 64 * 25), uni(ks[5], (128,), 64 * 25)),
        "fc1":   (uni(ks[6], (64, 128), 128),           uni(ks[7], (64,), 128)),
        "fc2":   (uni(ks[8], (34, 64), 64),             uni(ks[9], (34,), 64)),
    }
    # 32x32 input is implied by fc1 in_features == 128 (conv3 output is 1x1).
    x = jax.random.normal(ks[10], (2, 3, 32, 32), jnp.float32)

    out = jax.block_until_ready(conv_classifier_forward(x, params))
    assert out.shape == (2, 34) and out.dtype == jnp.float32

    ref = jax.block_until_ready(reference_forward(x, params))
    max_err = float(jnp.max(jnp.abs(out - ref)))
    if max_err > 3e-2:
        raise AssertionError(f"mismatch vs reference, max abs err = {max_err}")

    print("KERNEL_OK")
</pallas_src>

<mosaic_0001>
module attributes {stable_mosaic.version = 11 : i64} {
  func.func @_fused_kernel(%arg0: i32, %arg1: memref<1x2x2x288x16xbf16, #tpu.memory_space<vmem>>, %arg2: memref<5x16x32xbf16, #tpu.memory_space<vmem>>, %arg3: memref<1x32xf32, #tpu.memory_space<vmem>>, %arg4: memref<25x32x64xbf16, #tpu.memory_space<vmem>>, %arg5: memref<1x64xf32, #tpu.memory_space<vmem>>, %arg6: memref<25x64x128xbf16, #tpu.memory_space<vmem>>, %arg7: memref<1x128xf32, #tpu.memory_space<vmem>>, %arg8: memref<128x64xbf16, #tpu.memory_space<vmem>>, %arg9: memref<1x64xf32, #tpu.memory_space<vmem>>, %arg10: memref<64x34xbf16, #tpu.memory_space<vmem>>, %arg11: memref<1x34xf32, #tpu.memory_space<vmem>>, %arg12: memref<1x1x34xf32, #tpu.memory_space<vmem>>) attributes {dimension_semantics = [#tpu.dimension_semantics<parallel>], iteration_bounds = array<i64: 2>, scalar_prefetch = 0 : i64, scratch_operands = 0 : i64, tpu.core_type = #tpu.core_type<tc>, window_params = [{transform_indices = @transform_0, window_bounds = array<i64: 1, 2, 2, 288, 16>}, {pipeline_mode = #tpu.pipeline_mode<synchronous>, transform_indices = @transform_1, window_bounds = array<i64: 5, 16, 32>}, {pipeline_mode = #tpu.pipeline_mode<synchronous>, transform_indices = @transform_2, window_bounds = array<i64: 1, 32>}, {pipeline_mode = #tpu.pipeline_mode<synchronous>, transform_indices = @transform_3, window_bounds = array<i64: 25, 32, 64>}, {pipeline_mode = #tpu.pipeline_mode<synchronous>, transform_indices = @transform_4, window_bounds = array<i64: 1, 64>}, {pipeline_mode = #tpu.pipeline_mode<synchronous>, transform_indices = @transform_5, window_bounds = array<i64: 25, 64, 128>}, {pipeline_mode = #tpu.pipeline_mode<synchronous>, transform_indices = @transform_6, window_bounds = array<i64: 1, 128>}, {pipeline_mode = #tpu.pipeline_mode<synchronous>, transform_indices = @transform_7, window_bounds = array<i64: 128, 64>}, {pipeline_mode = #tpu.pipeline_mode<synchronous>, transform_indices = @transform_8, window_bounds = array<i64: 1, 64>}, {pipeline_mode = #tpu.pipeline_mode<synchronous>, transform_indices = @transform_9, window_bounds = array<i64: 64, 34>}, {pipeline_mode = #tpu.pipeline_mode<synchronous>, transform_indices = @transform_10, window_bounds = array<i64: 1, 34>}, {transform_indices = @transform_11, window_bounds = array<i64: 1, 1, 34>}]} {
    %c0 = arith.constant 0 : index
    %c0_0 = arith.constant 0 : index
    %c0_1 = arith.constant 0 : index
    %c0_2 = arith.constant 0 : index
    %c0_3 = arith.constant 0 : index
    %0 = vector.load %arg1[%c0, %c0_0, %c0_1, %c0_2, %c0_3] : memref<1x2x2x288x16xbf16, #tpu.memory_space<vmem>>, vector<1x1x1x288x16xbf16>
    %1 = vector.shape_cast %0 : vector<1x1x1x288x16xbf16> to vector<288x16xbf16>
    %c0_4 = arith.constant 0 : index
    %c0_5 = arith.constant 0 : index
    %c1 = arith.constant 1 : index
    %c0_6 = arith.constant 0 : index
    %c0_7 = arith.constant 0 : index
    %2 = vector.load %arg1[%c0_4, %c0_5, %c1, %c0_6, %c0_7] : memref<1x2x2x288x16xbf16, #tpu.memory_space<vmem>>, vector<1x1x1x288x16xbf16>
    %3 = vector.shape_cast %2 : vector<1x1x1x288x16xbf16> to vector<288x16xbf16>
    %c0_8 = arith.constant 0 : index
    %c1_9 = arith.constant 1 : index
    %c0_10 = arith.constant 0 : index
    %c0_11 = arith.constant 0 : index
    %c0_12 = arith.constant 0 : index
    %4 = vector.load %arg1[%c0_8, %c1_9, %c0_10, %c0_11, %c0_12] : memref<1x2x2x288x16xbf16, #tpu.memory_space<vmem>>, vector<1x1x1x288x16xbf16>
    %5 = vector.shape_cast %4 : vector<1x1x1x288x16xbf16> to vector<288x16xbf16>
    %c0_13 = arith.constant 0 : index
    %c1_14 = arith.constant 1 : index
    %c1_15 = arith.constant 1 : index
    %c0_16 = arith.constant 0 : index
    %c0_17 = arith.constant 0 : index
    %6 = vector.load %arg1[%c0_13, %c1_14, %c1_15, %c0_16, %c0_17] : memref<1x2x2x288x16xbf16, #tpu.memory_space<vmem>>, vector<1x1x1x288x16xbf16>
    %7 = vector.shape_cast %6 : vector<1x1x1x288x16xbf16> to vector<288x16xbf16>
    %cst = arith.constant 0.000000e+00 : f32
    %8 = vector.broadcast %cst : f32 to vector<240x32xf32>
    %9 = vector.extract_strided_slice %1 {offsets = [0, 0], sizes = [240, 16], strides = [1, 1]} : vector<288x16xbf16> to vector<240x16xbf16>
    %c0_18 = arith.constant 0 : index
    %c0_19 = arith.constant 0 : index
    %c0_20 = arith.constant 0 : index
    %10 = vector.load %arg2[%c0_18, %c0_19, %c0_20] : memref<5x16x32xbf16, #tpu.memory_space<vmem>>, vector<1x16x32xbf16>
    %11 = vector.shape_cast %10 : vector<1x16x32xbf16> to vector<16x32xbf16>
    %cst_21 = arith.constant dense<0.000000e+00> : vector<240x32xf32>
    %12 = tpu.matmul %9, %11, %cst_21 {dimension_numbers = #tpu.dot_dimension_numbers<[1], [0], [0], [1], [0, 0, 1, 1], [], []>} : vector<240x16xbf16>, vector<16x32xbf16>, vector<240x32xf32> -> vector<240x32xf32>
    %13 = arith.addf %8, %12 : vector<240x32xf32>
    %14 = vector.extract_strided_slice %5 {offsets = [0, 0], sizes = [240, 16], strides = [1, 1]} : vector<288x16xbf16> to vector<240x16xbf16>
    %c1_22 = arith.constant 1 : index
    %c0_23 = arith.constant 0 : index
    %c0_24 = arith.constant 0 : index
    %15 = vector.load %arg2[%c1_22, %c0_23, %c0_24] : memref<5x16x32xbf16, #tpu.memory_space<vmem>>, vector<1x16x32xbf16>
    %16 = vector.shape_cast %15 : vector<1x16x32xbf16> to vector<16x32xbf16>
    %cst_25 = arith.constant dense<0.000000e+00> : vector<240x32xf32>
    %17 = tpu.matmul %14, %16, %cst_25 {dimension_numbers = #tpu.dot_dimension_numbers<[1], [0], [0], [1], [0, 0, 1, 1], [], []>} : vector<240x16xbf16>, vector<16x32xbf16>, vector<240x32xf32> -> vector<240x32xf32>
    %18 = arith.addf %13, %17 : vector<240x32xf32>
    %19 = vector.extract_strided_slice %1 {offsets = [16, 0], sizes = [240, 16], strides = [1, 1]} : vector<288x16xbf16> to vector<240x16xbf16>
    %c2 = arith.constant 2 : index
    %c0_26 = arith.constant 0 : index
    %c0_27 = arith.constant 0 : index
    %20 = vector.load %arg2[%c2, %c0_26, %c0_27] : memref<5x16x32xbf16, #tpu.memory_space<vmem>>, vector<1x16x32xbf16>
    %21 = vector.shape_cast %20 : vector<1x16x32xbf16> to vector<16x32xbf16>
    %cst_28 = arith.constant dense<0.000000e+00> : vector<240x32xf32>
    %22 = tpu.matmul %19, %21, %cst_28 {dimension_numbers = #tpu.dot_dimension_numbers<[1], [0], [0], [1], [0, 0, 1, 1], [], []>} : vector<240x16xbf16>, vector<16x32xbf16>, vector<240x32xf32> -> vector<240x32xf32>
    %23 = arith.addf %18, %22 : vector<240x32xf32>
    %24 = vector.extract_strided_slice %5 {offsets = [16, 0], sizes = [240, 16], strides = [1, 1]} : vector<288x16xbf16> to vector<240x16xbf16>
    %c3 = arith.constant 3 : index
    %c0_29 = arith.constant 0 : index
    %c0_30 = arith.constant 0 : index
    %25 = vector.load %arg2[%c3, %c0_29, %c0_30] : memref<5x16x32xbf16, #tpu.memory_space<vmem>>, vector<1x16x32xbf16>
    %26 = vector.shape_cast %25 : vector<1x16x32xbf16> to vector<16x32xbf16>
    %cst_31 = arith.constant dense<0.000000e+00> : vector<240x32xf32>
    %27 = tpu.matmul %24, %26, %cst_31 {dimension_numbers = #tpu.dot_dimension_numbers<[1], [0], [0], [1], [0, 0, 1, 1], [], []>} : vector<240x16xbf16>, vector<16x32xbf16>, vector<240x32xf32> -> vector<240x32xf32>
    %28 = arith.addf %23, %27 : vector<240x32xf32>
    %29 = vector.extract_strided_slice %1 {offsets = [32, 0], sizes = [240, 16], strides = [1, 1]} : vector<288x16xbf16> to vector<240x16xbf16>
    %c4 = arith.constant 4 : index
    %c0_32 = arith.constant 0 : index
    %c0_33 = arith.constant 0 : index
    %30 = vector.load %arg2[%c4, %c0_32, %c0_33] : memref<5x16x32xbf16, #tpu.memory_space<vmem>>, vector<1x16x32xbf16>
    %31 = vector.shape_cast %30 : vector<1x16x32xbf16> to vector<16x32xbf16>
    %cst_34 = arith.constant dense<0.000000e+00> : vector<240x32xf32>
    %32 = tpu.matmul %29, %31, %cst_34 {dimension_numbers = #tpu.dot_dimension_numbers<[1], [0], [0], [1], [0, 0, 1, 1], [], []>} : vector<240x16xbf16>, vector<16x32xbf16>, vector<240x32xf32> -> vector<240x32xf32>
    %33 = arith.addf %28, %32 : vector<240x32xf32>
    %cst_35 = arith.constant 0.000000e+00 : f32
    %34 = vector.broadcast %cst_35 : f32 to vector<240x32xf32>
    %35 = vector.extract_strided_slice %3 {offsets = [0, 0], sizes = [240, 16], strides = [1, 1]} : vector<288x16xbf16> to vector<240x16xbf16>
    %c0_36 = arith.constant 0 : index
    %c0_37 = arith.constant 0 : index
    %c0_38 = arith.constant 0 : index
    %36 = vector.load %arg2[%c0_36, %c0_37, %c0_38] : memref<5x16x32xbf16, #tpu.memory_space<vmem>>, vector<1x16x32xbf16>
    %37 = vector.shape_cast %36 : vector<1x16x32xbf16> to vector<16x32xbf16>
    %cst_39 = arith.constant dense<0.000000e+00> : vector<240x32xf32>
    %38 = tpu.matmul %35, %37, %cst_39 {dimension_numbers = #tpu.dot_dimension_numbers<[1], [0], [0], [1], [0, 0, 1, 1], [], []>} : vector<240x16xbf16>, vector<16x32xbf16>, vector<240x32xf32> -> vector<240x32xf32>
    %39 = arith.addf %34, %38 : vector<240x32xf32>
    %40 = vector.extract_strided_slice %7 {offsets = [0, 0], sizes = [240, 16], strides = [1, 1]} : vector<288x16xbf16> to vector<240x16xbf16>
    %c1_40 = arith.constant 1 : index
    %c0_41 = arith.constant 0 : index
    %c0_42 = arith.constant 0 : index
    %41 = vector.load %arg2[%c1_40, %c0_41, %c0_42] : memref<5x16x32xbf16, #tpu.memory_space<vmem>>, vector<1x16x32xbf16>
    %42 = vector.shape_cast %41 : vector<1x16x32xbf16> to vector<16x32xbf16>
    %cst_43 = arith.constant dense<0.000000e+00> : vector<240x32xf32>
    %43 = tpu.matmul %40, %42, %cst_43 {dimension_numbers = #tpu.dot_dimension_numbers<[1], [0], [0], [1], [0, 0, 1, 1], [], []>} : vector<240x16xbf16>, vector<16x32xbf16>, vector<240x32xf32> -> vector<240x32xf32>
    %44 = arith.addf %39, %43 : vector<240x32xf32>
    %45 = vector.extract_strided_slice %3 {offsets = [16, 0], sizes = [240, 16], strides = [1, 1]} : vector<288x16xbf16> to vector<240x16xbf16>
    %c2_44 = arith.constant 2 : index
    %c0_45 = arith.constant 0 : index
    %c0_46 = arith.constant 0 : index
    %46 = vector.load %arg2[%c2_44, %c0_45, %c0_46] : memref<5x16x32xbf16, #tpu.memory_space<vmem>>, vector<1x16x32xbf16>
    %47 = vector.shape_cast %46 : vector<1x16x32xbf16> to vector<16x32xbf16>
    %cst_47 = arith.constant dense<0.000000e+00> : vector<240x32xf32>
    %48 = tpu.matmul %45, %47, %cst_47 {dimension_numbers = #tpu.dot_dimension_numbers<[1], [0], [0], [1], [0, 0, 1, 1], [], []>} : vector<240x16xbf16>, vector<16x32xbf16>, vector<240x32xf32> -> vector<240x32xf32>
    %49 = arith.addf %44, %48 : vector<240x32xf32>
    %50 = vector.extract_strided_slice %7 {offsets = [16, 0], sizes = [240, 16], strides = [1, 1]} : vector<288x16xbf16> to vector<240x16xbf16>
    %c3_48 = arith.constant 3 : index
    %c0_49 = arith.constant 0 : index
    %c0_50 = arith.constant 0 : index
    %51 = vector.load %arg2[%c3_48, %c0_49, %c0_50] : memref<5x16x32xbf16, #tpu.memory_space<vmem>>, vector<1x16x32xbf16>
    %52 = vector.shape_cast %51 : vector<1x16x32xbf16> to vector<16x32xbf16>
    %cst_51 = arith.constant dense<0.000000e+00> : vector<240x32xf32>
    %53 = tpu.matmul %50, %52, %cst_51 {dimension_numbers = #tpu.dot_dimension_numbers<[1], [0], [0], [1], [0, 0, 1, 1], [], []>} : vector<240x16xbf16>, vector<16x32xbf16>, vector<240x32xf32> -> vector<240x32xf32>
    %54 = arith.addf %49, %53 : vector<240x32xf32>
    %55 = vector.extract_strided_slice %3 {offsets = [32, 0], sizes = [240, 16], strides = [1, 1]} : vector<288x16xbf16> to vector<240x16xbf16>
    %c4_52 = arith.constant 4 : index
    %c0_53 = arith.constant 0 : index
    %c0_54 = arith.constant 0 : index
    %56 = vector.load %arg2[%c4_52, %c0_53, %c0_54] : memref<5x16x32xbf16, #tpu.memory_space<vmem>>, vector<1x16x32xbf16>
    %57 = vector.shape_cast %56 : vector<1x16x32xbf16> to vector<16x32xbf16>
    %cst_55 = arith.constant dense<0.000000e+00> : vector<240x32xf32>
    %58 = tpu.matmul %55, %57, %cst_55 {dimension_numbers = #tpu.dot_dimension_numbers<[1], [0], [0], [1], [0, 0, 1, 1], [], []>} : vector<240x16xbf16>, vector<16x32xbf16>, vector<240x32xf32> -> vector<240x32xf32>
    %59 = arith.addf %54, %58 : vector<240x32xf32>
    %60 = arith.maximumf %33, %59 : vector<240x32xf32>
    %cst_56 = arith.constant 0.000000e+00 : f32
    %61 = vector.broadcast %cst_56 : f32 to vector<240x32xf32>
    %62 = vector.extract_strided_slice %5 {offsets = [0, 0], sizes = [240, 16], strides = [1, 1]} : vector<288x16xbf16> to vector<240x16xbf16>
    %c0_57 = arith.constant 0 : index
    %c0_58 = arith.constant 0 : index
    %c0_59 = arith.constant 0 : index
    %63 = vector.load %arg2[%c0_57, %c0_58, %c0_59] : memref<5x16x32xbf16, #tpu.memory_space<vmem>>, vector<1x16x32xbf16>
    %64 = vector.shape_cast %63 : vector<1x16x32xbf16> to vector<16x32xbf16>
    %cst_60 = arith.constant dense<0.000000e+00> : vector<240x32xf32>
    %65 = tpu.matmul %62, %64, %cst_60 {dimension_numbers = #tpu.dot_dimension_numbers<[1], [0], [0], [1], [0, 0, 1, 1], [], []>} : vector<240x16xbf16>, vector<16x32xbf16>, vector<240x32xf32> -> vector<240x32xf32>
    %66 = arith.addf %61, %65 : vector<240x32xf32>
    %67 = vector.extract_strided_slice %1 {offsets = [16, 0], sizes = [240, 16], strides = [1, 1]} : vector<288x16xbf16> to vector<240x16xbf16>
    %c1_61 = arith.constant 1 : index
    %c0_62 = arith.constant 0 : index
    %c0_63 = arith.constant 0 : index
    %68 = vector.load %arg2[%c1_61, %c0_62, %c0_63] : memref<5x16x32xbf16, #tpu.memory_space<vmem>>, vector<1x16x32xbf16>
    %69 = vector.shape_cast %68 : vector<1x16x32xbf16> to vector<16x32xbf16>
    %cst_64 = arith.constant dense<0.000000e+00> : vector<240x32xf32>
    %70 = tpu.matmul %67, %69, %cst_64 {dimension_numbers = #tpu.dot_dimension_numbers<[1], [0], [0], [1], [0, 0, 1, 1], [], []>} : vector<240x16xbf16>, vector<16x32xbf16>, vector<240x32xf32> -> vector<240x32xf32>
    %71 = arith.addf %66, %70 : vector<240x32xf32>
    %72 = vector.extract_strided_slice %5 {offsets = [16, 0], sizes = [240, 16], strides = [1, 1]} : vector<288x16xbf16> to vector<240x16xbf16>
    %c2_65 = arith.constant 2 : index
    %c0_66 = arith.constant 0 : index
    %c0_67 = arith.constant 0 : index
    %73 = vector.load %arg2[%c2_65, %c0_66, %c0_67] : memref<5x16x32xbf16, #tpu.memory_space<vmem>>, vector<1x16x32xbf16>
    %74 = vector.shape_cast %73 : vector<1x16x32xbf16> to vector<16x32xbf16>
    %cst_68 = arith.constant dense<0.000000e+00> : vector<240x32xf32>
    %75 = tpu.matmul %72, %74, %cst_68 {dimension_numbers = #tpu.dot_dimension_numbers<[1], [0], [0], [1], [0, 0, 1, 1], [], []>} : vector<240x16xbf16>, vector<16x32xbf16>, vector<240x32xf32> -> vector<240x32xf32>
    %76 = arith.addf %71, %75 : vector<240x32xf32>
    %77 = vector.extract_strided_slice %1 {offsets = [32, 0], sizes = [240, 16], strides = [1, 1]} : vector<288x16xbf16> to vector<240x16xbf16>
    %c3_69 = arith.constant 3 : index
    %c0_70 = arith.constant 0 : index
    %c0_71 = arith.constant 0 : index
    %78 = vector.load %arg2[%c3_69, %c0_70, %c0_71] : memref<5x16x32xbf16, #tpu.memory_space<vmem>>, vector<1x16x32xbf16>
    %79 = vector.shape_cast %78 : vector<1x16x32xbf16> to vector<16x32xbf16>
    %cst_72 = arith.constant dense<0.000000e+00> : vector<240x32xf32>
    %80 = tpu.matmul %77, %79, %cst_72 {dimension_numbers = #tpu.dot_dimension_numbers<[1], [0], [0], [1], [0, 0, 1, 1], [], []>} : vector<240x16xbf16>, vector<16x32xbf16>, vector<240x32xf32> -> vector<240x32xf32>
    %81 = arith.addf %76, %80 : vector<240x32xf32>
    %82 = vector.extract_strided_slice %5 {offsets = [32, 0], sizes = [240, 16], strides = [1, 1]} : vector<288x16xbf16> to vector<240x16xbf16>
    %c4_73 = arith.constant 4 : index
    %c0_74 = arith.constant 0 : index
    %c0_75 = arith.constant 0 : index
    %83 = vector.load %arg2[%c4_73, %c0_74, %c0_75] : memref<5x16x32xbf16, #tpu.memory_space<vmem>>, vector<1x16x32xbf16>
    %84 = vector.shape_cast %83 : vector<1x16x32xbf16> to vector<16x32xbf16>
    %cst_76 = arith.constant dense<0.000000e+00> : vector<240x32xf32>
    %85 = tpu.matmul %82, %84, %cst_76 {dimension_numbers = #tpu.dot_dimension_numbers<[1], [0], [0], [1], [0, 0, 1, 1], [], []>} : vector<240x16xbf16>, vector<16x32xbf16>, vector<240x32xf32> -> vector<240x32xf32>
    %86 = arith.addf %81, %85 : vector<240x32xf32>
    %87 = arith.maximumf %60, %86 : vector<240x32xf32>
    %cst_77 = arith.constant 0.000000e+00 : f32
    %88 = vector.broadcast %cst_77 : f32 to vector<240x32xf32>
    %89 = vector.extract_strided_slice %7 {offsets = [0, 0], sizes = [240, 16], strides = [1, 1]} : vector<288x16xbf16> to vector<240x16xbf16>
    %c0_78 = arith.constant 0 : index
    %c0_79 = arith.constant 0 : index
    %c0_80 = arith.constant 0 : index
    %90 = vector.load %arg2[%c0_78, %c0_79, %c0_80] : memref<5x16x32xbf16, #tpu.memory_space<vmem>>, vector<1x16x32xbf16>
    %91 = vector.shape_cast %90 : vector<1x16x32xbf16> to vector<16x32xbf16>
    %cst_81 = arith.constant dense<0.000000e+00> : vector<240x32xf32>
    %92 = tpu.matmul %89, %91, %cst_81 {dimension_numbers = #tpu.dot_dimension_numbers<[1], [0], [0], [1], [0, 0, 1, 1], [], []>} : vector<240x16xbf16>, vector<16x32xbf16>, vector<240x32xf32> -> vector<240x32xf32>
    %93 = arith.addf %88, %92 : vector<240x32xf32>
    %94 = vector.extract_strided_slice %3 {offsets = [16, 0], sizes = [240, 16], strides = [1, 1]} : vector<288x16xbf16> to vector<240x16xbf16>
    %c1_82 = arith.constant 1 : index
    %c0_83 = arith.constant 0 : index
    %c0_84 = arith.constant 0 : index
    %95 = vector.load %arg2[%c1_82, %c0_83, %c0_84] : memref<5x16x32xbf16, #tpu.memory_space<vmem>>, vector<1x16x32xbf16>
    %96 = vector.shape_cast %95 : vector<1x16x32xbf16> to vector<16x32xbf16>
    %cst_85 = arith.constant dense<0.000000e+00> : vector<240x32xf32>
    %97 = tpu.matmul %94, %96, %cst_85 {dimension_numbers = #tpu.dot_dimension_numbers<[1], [0], [0], [1], [0, 0, 1, 1], [], []>} : vector<240x16xbf16>, vector<16x32xbf16>, vector<240x32xf32> -> vector<240x32xf32>
    %98 = arith.addf %93, %97 : vector<240x32xf32>
    %99 = vector.extract_strided_slice %7 {offsets = [16, 0], sizes = [240, 16], strides = [1, 1]} : vector<288x16xbf16> to vector<240x16xbf16>
    %c2_86 = arith.constant 2 : index
    %c0_87 = arith.constant 0 : index
    %c0_88 = arith.constant 0 : index
    %100 = vector.load %arg2[%c2_86, %c0_87, %c0_88] : memref<5x16x32xbf16, #tpu.memory_space<vmem>>, vector<1x16x32xbf16>
    %101 = vector.shape_cast %100 : vector<1x16x32xbf16> to vector<16x32xbf16>
    %cst_89 = arith.constant dense<0.000000e+00> : vector<240x32xf32>
    %102 = tpu.matmul %99, %101, %cst_89 {dimension_numbers = #tpu.dot_dimension_numbers<[1], [0], [0], [1], [0, 0, 1, 1], [], []>} : vector<240x16xbf16>, vector<16x32xbf16>, vector<240x32xf32> -> vector<240x32xf32>
    %103 = arith.addf %98, %102 : vector<240x32xf32>
    %104 = vector.extract_strided_slice %3 {offsets = [32, 0], sizes = [240, 16], strides = [1, 1]} : vector<288x16xbf16> to vector<240x16xbf16>
    %c3_90 = arith.constant 3 : index
    %c0_91 = arith.constant 0 : index
    %c0_92 = arith.constant 0 : index
    %105 = vector.load %arg2[%c3_90, %c0_91, %c0_92] : memref<5x16x32xbf16, #tpu.memory_space<vmem>>, vector<1x16x32xbf16>
    %106 = vector.shape_cast %105 : vector<1x16x32xbf16> to vector<16x32xbf16>
    %cst_93 = arith.constant dense<0.000000e+00> : vector<240x32xf32>
    %107 = tpu.matmul %104, %106, %cst_93 {dimension_numbers = #tpu.dot_dimension_numbers<[1], [0], [0], [1], [0, 0, 1, 1], [], []>} : vector<240x16xbf16>, vector<16x32xbf16>, vector<240x32xf32> -> vector<240x32xf32>
    %108 = arith.addf %103, %107 : vector<240x32xf32>
    %109 = vector.extract_strided_slice %7 {offsets = [32, 0], sizes = [240, 16], strides = [1, 1]} : vector<288x16xbf16> to vector<240x16xbf16>
    %c4_94 = arith.constant 4 : index
    %c0_95 = arith.constant 0 : index
    %c0_96 = arith.constant 0 : index
    %110 = vector.load %arg2[%c4_94, %c0_95, %c0_96] : memref<5x16x32xbf16, #tpu.memory_space<vmem>>, vector<1x16x32xbf16>
    %111 = vector.shape_cast %110 : vector<1x16x32xbf16> to vector<16x32xbf16>
    %cst_97 = arith.constant dense<0.000000e+00> : vector<240x32xf32>
    %112 = tpu.matmul %109, %111, %cst_97 {dimension_numbers = #tpu.dot_dimension_numbers<[1], [0], [0], [1], [0, 0, 1, 1], [], []>} : vector<240x16xbf16>, vector<16x32xbf16>, vector<240x32xf32> -> vector<240x32xf32>
    %113 = arith.addf %108, %112 : vector<240x32xf32>
    %114 = arith.maximumf %87, %113 : vector<240x32xf32>
    %c0_98 = arith.constant 0 : index
    %c0_99 = arith.constant 0 : index
    %115 = vector.load %arg3[%c0_98, %c0_99] : memref<1x32xf32, #tpu.memory_space<vmem>>, vector<1x32xf32>
    %116 = vector.broadcast %115 : vector<1x32xf32> to vector<240x32xf32>
    %117 = arith.addf %114, %116 : vector<240x32xf32>
    %cst_100 = arith.constant 0.000000e+00 : f32
    %118 = vector.broadcast %cst_100 : f32 to vector<240x32xf32>
    %119 = arith.maximumf %117, %118 : vector<240x32xf32>
    %120 = arith.truncf %119 : vector<240x32xf32> to vector<240x32xbf16>
    %cst_101 = arith.constant 0.000000e+00 : f32
    %121 = vector.broadcast %cst_101 : f32 to vector<160x64xf32>
    %122 = vector.extract_strided_slice %120 {offsets = [0, 0], sizes = [160, 32], strides = [1, 1]} : vector<240x32xbf16> to vector<160x32xbf16>
    %c0_102 = arith.constant 0 : index
    %c0_103 = arith.constant 0 : index
    %c0_104 = arith.constant 0 : index
    %123 = vector.load %arg4[%c0_102, %c0_103, %c0_104] : memref<25x32x64xbf16, #tpu.memory_space<vmem>>, vector<1x32x64xbf16>
    %124 = vector.shape_cast %123 : vector<1x32x64xbf16> to vector<32x64xbf16>
    %cst_105 = arith.constant dense<0.000000e+00> : vector<160x64xf32>
    %125 = tpu.matmul %122, %124, %cst_105 {dimension_numbers = #tpu.dot_dimension_numbers<[1], [0], [0], [1], [0, 0, 1, 1], [], []>} : vector<160x32xbf16>, vector<32x64xbf16>, vector<160x64xf32> -> vector<160x64xf32>
    %126 = arith.addf %121, %125 : vector<160x64xf32>
    %127 = vector.extract_strided_slice %120 {offsets = [1, 0], sizes = [160, 32], strides = [1, 1]} : vector<240x32xbf16> to vector<160x32xbf16>
    %c1_106 = arith.constant 1 : index
    %c0_107 = arith.constant 0 : index
    %c0_108 = arith.constant 0 : index
    %128 = vector.load %arg4[%c1_106, %c0_107, %c0_108] : memref<25x32x64xbf16, #tpu.memory_space<vmem>>, vector<1x32x64xbf16>
    %129 = vector.shape_cast %128 : vector<1x32x64xbf16> to vector<32x64xbf16>
    %cst_109 = arith.constant dense<0.000000e+00> : vector<160x64xf32>
    %130 = tpu.matmul %127, %129, %cst_109 {dimension_numbers = #tpu.dot_dimension_numbers<[1], [0], [0], [1], [0, 0, 1, 1], [], []>} : vector<160x32xbf16>, vector<32x64xbf16>, vector<160x64xf32> -> vector<160x64xf32>
    %131 = arith.addf %126, %130 : vector<160x64xf32>
    %132 = vector.extract_strided_slice %120 {offsets = [2, 0], sizes = [160, 32], strides = [1, 1]} : vector<240x32xbf16> to vector<160x32xbf16>
    %c2_110 = arith.constant 2 : index
    %c0_111 = arith.constant 0 : index
    %c0_112 = arith.constant 0 : index
    %133 = vector.load %arg4[%c2_110, %c0_111, %c0_112] : memref<25x32x64xbf16, #tpu.memory_space<vmem>>, vector<1x32x64xbf16>
    %134 = vector.shape_cast %133 : vector<1x32x64xbf16> to vector<32x64xbf16>
    %cst_113 = arith.constant dense<0.000000e+00> : vector<160x64xf32>
    %135 = tpu.matmul %132, %134, %cst_113 {dimension_numbers = #tpu.dot_dimension_numbers<[1], [0], [0], [1], [0, 0, 1, 1], [], []>} : vector<160x32xbf16>, vector<32x64xbf16>, vector<160x64xf32> -> vector<160x64xf32>
    %136 = arith.addf %131, %135 : vector<160x64xf32>
    %137 = vector.extract_strided_slice %120 {offsets = [3, 0], sizes = [160, 32], strides = [1, 1]} : vector<240x32xbf16> to vector<160x32xbf16>
    %c3_114 = arith.constant 3 : index
    %c0_115 = arith.constant 0 : index
    %c0_116 = arith.constant 0 : index
    %138 = vector.load %arg4[%c3_114, %c0_115, %c0_116] : memref<25x32x64xbf16, #tpu.memory_space<vmem>>, vector<1x32x64xbf16>
    %139 = vector.shape_cast %138 : vector<1x32x64xbf16> to vector<32x64xbf16>
    %cst_117 = arith.constant dense<0.000000e+00> : vector<160x64xf32>
    %140 = tpu.matmul %137, %139, %cst_117 {dimension_numbers = #tpu.dot_dimension_numbers<[1], [0], [0], [1], [0, 0, 1, 1], [], []>} : vector<160x32xbf16>, vector<32x64xbf16>, vector<160x64xf32> -> vector<160x64xf32>
    %141 = arith.addf %136, %140 : vector<160x64xf32>
    %142 = vector.extract_strided_slice %120 {offsets = [4, 0], sizes = [160, 32], strides = [1, 1]} : vector<240x32xbf16> to vector<160x32xbf16>
    %c4_118 = arith.constant 4 : index
    %c0_119 = arith.constant 0 : index
    %c0_120 = arith.constant 0 : index
    %143 = vector.load %arg4[%c4_118, %c0_119, %c0_120] : memref<25x32x64xbf16, #tpu.memory_space<vmem>>, vector<1x32x64xbf16>
    %144 = vector.shape_cast %143 : vector<1x32x64xbf16> to vector<32x64xbf16>
    %cst_121 = arith.constant dense<0.000000e+00> : vector<160x64xf32>
    %145 = tpu.matmul %142, %144, %cst_121 {dimension_numbers = #tpu.dot_dimension_numbers<[1], [0], [0], [1], [0, 0, 1, 1], [], []>} : vector<160x32xbf16>, vector<32x64xbf16>, vector<160x64xf32> -> vector<160x64xf32>
    %146 = arith.addf %141, %145 : vector<160x64xf32>
    %147 = vector.extract_strided_slice %120 {offsets = [16, 0], sizes = [160, 32], strides = [1, 1]} : vector<240x32xbf16> to vector<160x32xbf16>
    %c5 = arith.constant 5 : index
    %c0_122 = arith.constant 0 : index
    %c0_123 = arith.constant 0 : index
    %148 = vector.load %arg4[%c5, %c0_122, %c0_123] : memref<25x32x64xbf16, #tpu.memory_space<vmem>>, vector<1x32x64xbf16>
    %149 = vector.shape_cast %148 : vector<1x32x64xbf16> to vector<32x64xbf16>
    %cst_124 = arith.constant dense<0.000000e+00> : vector<160x64xf32>
    %150 = tpu.matmul %147, %149, %cst_124 {dimension_numbers = #tpu.dot_dimension_numbers<[1], [0], [0], [1], [0, 0, 1, 1], [], []>} : vector<160x32xbf16>, vector<32x64xbf16>, vector<160x64xf32> -> vector<160x64xf32>
    %151 = arith.addf %146, %150 : vector<160x64xf32>
    %152 = vector.extract_strided_slice %120 {offsets = [17, 0], sizes = [160, 32], strides = [1, 1]} : vector<240x32xbf16> to vector<160x32xbf16>
    %c6 = arith.constant 6 : index
    %c0_125 = arith.constant 0 : index
    %c0_126 = arith.constant 0 : index
    %153 = vector.load %arg4[%c6, %c0_125, %c0_126] : memref<25x32x64xbf16, #tpu.memory_space<vmem>>, vector<1x32x64xbf16>
    %154 = vector.shape_cast %153 : vector<1x32x64xbf16> to vector<32x64xbf16>
    %cst_127 = arith.constant dense<0.000000e+00> : vector<160x64xf32>
    %155 = tpu.matmul %152, %154, %cst_127 {dimension_numbers = #tpu.dot_dimension_numbers<[1], [0], [0], [1], [0, 0, 1, 1], [], []>} : vector<160x32xbf16>, vector<32x64xbf16>, vector<160x64xf32> -> vector<160x64xf32>
    %156 = arith.addf %151, %155 : vector<160x64xf32>
    %157 = vector.extract_strided_slice %120 {offsets = [18, 0], sizes = [160, 32], strides = [1, 1]} : vector<240x32xbf16> to vector<160x32xbf16>
    %c7 = arith.constant 7 : index
    %c0_128 = arith.constant 0 : index
    %c0_129 = arith.constant 0 : index
    %158 = vector.load %arg4[%c7, %c0_128, %c0_129] : memref<25x32x64xbf16, #tpu.memory_space<vmem>>, vector<1x32x64xbf16>
    %159 = vector.shape_cast %158 : vector<1x32x64xbf16> to vector<32x64xbf16>
    %cst_130 = arith.constant dense<0.000000e+00> : vector<160x64xf32>
    %160 = tpu.matmul %157, %159, %cst_130 {dimension_numbers = #tpu.dot_dimension_numbers<[1], [0], [0], [1], [0, 0, 1, 1], [], []>} : vector<160x32xbf16>, vector<32x64xbf16>, vector<160x64xf32> -> vector<160x64xf32>
    %161 = arith.addf %156, %160 : vector<160x64xf32>
    %162 = vector.extract_strided_slice %120 {offsets = [19, 0], sizes = [160, 32], strides = [1, 1]} : vector<240x32xbf16> to vector<160x32xbf16>
    %c8 = arith.constant 8 : index
    %c0_131 = arith.constant 0 : index
    %c0_132 = arith.constant 0 : index
    %163 = vector.load %arg4[%c8, %c0_131, %c0_132] : memref<25x32x64xbf16, #tpu.memory_space<vmem>>, vector<1x32x64xbf16>
    %164 = vector.shape_cast %163 : vector<1x32x64xbf16> to vector<32x64xbf16>
    %cst_133 = arith.constant dense<0.000000e+00> : vector<160x64xf32>
    %165 = tpu.matmul %162, %164, %cst_133 {dimension_numbers = #tpu.dot_dimension_numbers<[1], [0], [0], [1], [0, 0, 1, 1], [], []>} : vector<160x32xbf16>, vector<32x64xbf16>, vector<160x64xf32> -> vector<160x64xf32>
    %166 = arith.addf %161, %165 : vector<160x64xf32>
    %167 = vector.extract_strided_slice %120 {offsets = [20, 0], sizes = [160, 32], strides = [1, 1]} : vector<240x32xbf16> to vector<160x32xbf16>
    %c9 = arith.constant 9 : index
    %c0_134 = arith.constant 0 : index
    %c0_135 = arith.constant 0 : index
    %168 = vector.load %arg4[%c9, %c0_134, %c0_135] : memref<25x32x64xbf16, #tpu.memory_space<vmem>>, vector<1x32x64xbf16>
    %169 = vector.shape_cast %168 : vector<1x32x64xbf16> to vector<32x64xbf16>
    %cst_136 = arith.constant dense<0.000000e+00> : vector<160x64xf32>
    %170 = tpu.matmul %167, %169, %cst_136 {dimension_numbers = #tpu.dot_dimension_numbers<[1], [0], [0], [1], [0, 0, 1, 1], [], []>} : vector<160x32xbf16>, vector<32x64xbf16>, vector<160x64xf32> -> vector<160x64xf32>
    %171 = arith.addf %166, %170 : vector<160x64xf32>
    %172 = vector.extract_strided_slice %120 {offsets = [32, 0], sizes = [160, 32], strides = [1, 1]} : vector<240x32xbf16> to vector<160x32xbf16>
    %c10 = arith.constant 10 : index
    %c0_137 = arith.constant 0 : index
    %c0_138 = arith.constant 0 : index
    %173 = vector.load %arg4[%c10, %c0_137, %c0_138] : memref<25x32x64xbf16, #tpu.memory_space<vmem>>, vector<1x32x64xbf16>
    %174 = vector.shape_cast %173 : vector<1x32x64xbf16> to vector<32x64xbf16>
    %cst_139 = arith.constant dense<0.000000e+00> : vector<160x64xf32>
    %175 = tpu.matmul %172, %174, %cst_139 {dimension_numbers = #tpu.dot_dimension_numbers<[1], [0], [0], [1], [0, 0, 1, 1], [], []>} : vector<160x32xbf16>, vector<32x64xbf16>, vector<160x64xf32> -> vector<160x64xf32>
    %176 = arith.addf %171, %175 : vector<160x64xf32>
    %177 = vector.extract_strided_slice %120 {offsets = [33, 0], sizes = [160, 32], strides = [1, 1]} : vector<240x32xbf16> to vector<160x32xbf16>
    %c11 = arith.constant 11 : index
    %c0_140 = arith.constant 0 : index
    %c0_141 = arith.constant 0 : index
    %178 = vector.load %arg4[%c11, %c0_140, %c0_141] : memref<25x32x64xbf16, #tpu.memory_space<vmem>>, vector<1x32x64xbf16>
    %179 = vector.shape_cast %178 : vector<1x32x64xbf16> to vector<32x64xbf16>
    %cst_142 = arith.constant dense<0.000000e+00> : vector<160x64xf32>
    %180 = tpu.matmul %177, %179, %cst_142 {dimension_numbers = #tpu.dot_dimension_numbers<[1], [0], [0], [1], [0, 0, 1, 1], [], []>} : vector<160x32xbf16>, vector<32x64xbf16>, vector<160x64xf32> -> vector<160x64xf32>
    %181 = arith.addf %176, %180 : vector<160x64xf32>
    %182 = vector.extract_strided_slice %120 {offsets = [34, 0], sizes = [160, 32], strides = [1, 1]} : vector<240x32xbf16> to vector<160x32xbf16>
    %c12 = arith.constant 12 : index
    %c0_143 = arith.constant 0 : index
    %c0_144 = arith.constant 0 : index
    %183 = vector.load %arg4[%c12, %c0_143, %c0_144] : memref<25x32x64xbf16, #tpu.memory_space<vmem>>, vector<1x32x64xbf16>
    %184 = vector.shape_cast %183 : vector<1x32x64xbf16> to vector<32x64xbf16>
    %cst_145 = arith.constant dense<0.000000e+00> : vector<160x64xf32>
    %185 = tpu.matmul %182, %184, %cst_145 {dimension_numbers = #tpu.dot_dimension_numbers<[1], [0], [0], [1], [0, 0, 1, 1], [], []>} : vector<160x32xbf16>, vector<32x64xbf16>, vector<160x64xf32> -> vector<160x64xf32>
    %186 = arith.addf %181, %185 : vector<160x64xf32>
    %187 = vector.extract_strided_slice %120 {offsets = [35, 0], sizes = [160, 32], strides = [1, 1]} : vector<240x32xbf16> to vector<160x32xbf16>
    %c13 = arith.constant 13 : index
    %c0_146 = arith.constant 0 : index
    %c0_147 = arith.constant 0 : index
    %188 = vector.load %arg4[%c13, %c0_146, %c0_147] : memref<25x32x64xbf16, #tpu.memory_space<vmem>>, vector<1x32x64xbf16>
    %189 = vector.shape_cast %188 : vector<1x32x64xbf16> to vector<32x64xbf16>
    %cst_148 = arith.constant dense<0.000000e+00> : vector<160x64xf32>
    %190 = tpu.matmul %187, %189, %cst_148 {dimension_numbers = #tpu.dot_dimension_numbers<[1], [0], [0], [1], [0, 0, 1, 1], [], []>} : vector<160x32xbf16>, vector<32x64xbf16>, vector<160x64xf32> -> vector<160x64xf32>
    %191 = arith.addf %186, %190 : vector<160x64xf32>
    %192 = vector.extract_strided_slice %120 {offsets = [36, 0], sizes = [160, 32], strides = [1, 1]} : vector<240x32xbf16> to vector<160x32xbf16>
    %c14 = arith.constant 14 : index
    %c0_149 = arith.constant 0 : index
    %c0_150 = arith.constant 0 : index
    %193 = vector.load %arg4[%c14, %c0_149, %c0_150] : memref<25x32x64xbf16, #tpu.memory_space<vmem>>, vector<1x32x64xbf16>
    %194 = vector.shape_cast %193 : vector<1x32x64xbf16> to vector<32x64xbf16>
    %cst_151 = arith.constant dense<0.000000e+00> : vector<160x64xf32>
    %195 = tpu.matmul %192, %194, %cst_151 {dimension_numbers = #tpu.dot_dimension_numbers<[1], [0], [0], [1], [0, 0, 1, 1], [], []>} : vector<160x32xbf16>, vector<32x64xbf16>, vector<160x64xf32> -> vector<160x64xf32>
    %196 = arith.addf %191, %195 : vector<160x64xf32>
    %197 = vector.extract_strided_slice %120 {offsets = [48, 0], sizes = [160, 32], strides = [1, 1]} : vector<240x32xbf16> to vector<160x32xbf16>
    %c15 = arith.constant 15 : index
    %c0_152 = arith.constant 0 : index
    %c0_153 = arith.constant 0 : index
    %198 = vector.load %arg4[%c15, %c0_152, %c0_153] : memref<25x32x64xbf16, #tpu.memory_space<vmem>>, vector<1x32x64xbf16>
    %199 = vector.shape_cast %198 : vector<1x32x64xbf16> to vector<32x64xbf16>
    %cst_154 = arith.constant dense<0.000000e+00> : vector<160x64xf32>
    %200 = tpu.matmul %197, %199, %cst_154 {dimension_numbers = #tpu.dot_dimension_numbers<[1], [0], [0], [1], [0, 0, 1, 1], [], []>} : vector<160x32xbf16>, vector<32x64xbf16>, vector<160x64xf32> -> vector<160x64xf32>
    %201 = arith.addf %196, %200 : vector<160x64xf32>
    %202 = vector.extract_strided_slice %120 {offsets = [49, 0], sizes = [160, 32], strides = [1, 1]} : vector<240x32xbf16> to vector<160x32xbf16>
    %c16 = arith.constant 16 : index
    %c0_155 = arith.constant 0 : index
    %c0_156 = arith.constant 0 : index
    %203 = vector.load %arg4[%c16, %c0_155, %c0_156] : memref<25x32x64xbf16, #tpu.memory_space<vmem>>, vector<1x32x64xbf16>
    %204 = vector.shape_cast %203 : vector<1x32x64xbf16> to vector<32x64xbf16>
    %cst_157 = arith.constant dense<0.000000e+00> : vector<160x64xf32>
    %205 = tpu.matmul %202, %204, %cst_157 {dimension_numbers = #tpu.dot_dimension_numbers<[1], [0], [0], [1], [0, 0, 1, 1], [], []>} : vector<160x32xbf16>, vector<32x64xbf16>, vector<160x64xf32> -> vector<160x64xf32>
    %206 = arith.addf %201, %205 : vector<160x64xf32>
    %207 = vector.extract_strided_slice %120 {offsets = [50, 0], sizes = [160, 32], strides = [1, 1]} : vector<240x32xbf16> to vector<160x32xbf16>
    %c17 = arith.constant 17 : index
    %c0_158 = arith.constant 0 : index
    %c0_159 = arith.constant 0 : index
    %208 = vector.load %arg4[%c17, %c0_158, %c0_159] : memref<25x32x64xbf16, #tpu.memory_space<vmem>>, vector<1x32x64xbf16>
    %209 = vector.shape_cast %208 : vector<1x32x64xbf16> to vector<32x64xbf16>
    %cst_160 = arith.constant dense<0.000000e+00> : vector<160x64xf32>
    %210 = tpu.matmul %207, %209, %cst_160 {dimension_numbers = #tpu.dot_dimension_numbers<[1], [0], [0], [1], [0, 0, 1, 1], [], []>} : vector<160x32xbf16>, vector<32x64xbf16>, vector<160x64xf32> -> vector<160x64xf32>
    %211 = arith.addf %206, %210 : vector<160x64xf32>
    %212 = vector.extract_strided_slice %120 {offsets = [51, 0], sizes = [160, 32], strides = [1, 1]} : vector<240x32xbf16> to vector<160x32xbf16>
    %c18 = arith.constant 18 : index
    %c0_161 = arith.constant 0 : index
    %c0_162 = arith.constant 0 : index
    %213 = vector.load %arg4[%c18, %c0_161, %c0_162] : memref<25x32x64xbf16, #tpu.memory_space<vmem>>, vector<1x32x64xbf16>
    %214 = vector.shape_cast %213 : vector<1x32x64xbf16> to vector<32x64xbf16>
    %cst_163 = arith.constant dense<0.000000e+00> : vector<160x64xf32>
    %215 = tpu.matmul %212, %214, %cst_163 {dimension_numbers = #tpu.dot_dimension_numbers<[1], [0], [0], [1], [0, 0, 1, 1], [], []>} : vector<160x32xbf16>, vector<32x64xbf16>, vector<160x64xf32> -> vector<160x64xf32>
    %216 = arith.addf %211, %215 : vector<160x64xf32>
    %217 = vector.extract_strided_slice %120 {offsets = [52, 0], sizes = [160, 32], strides = [1, 1]} : vector<240x32xbf16> to vector<160x32xbf16>
    %c19 = arith.constant 19 : index
    %c0_164 = arith.constant 0 : index
    %c0_165 = arith.constant 0 : index
    %218 = vector.load %arg4[%c19, %c0_164, %c0_165] : memref<25x32x64xbf16, #tpu.memory_space<vmem>>, vector<1x32x64xbf16>
    %219 = vector.shape_cast %218 : vector<1x32x64xbf16> to vector<32x64xbf16>
    %cst_166 = arith.constant dense<0.000000e+00> : vector<160x64xf32>
    %220 = tpu.matmul %217, %219, %cst_166 {dimension_numbers = #tpu.dot_dimension_numbers<[1], [0], [0], [1], [0, 0, 1, 1], [], []>} : vector<160x32xbf16>, vector<32x64xbf16>, vector<160x64xf32> -> vector<160x64xf32>
    %221 = arith.addf %216, %220 : vector<160x64xf32>
    %222 = vector.extract_strided_slice %120 {offsets = [64, 0], sizes = [160, 32], strides = [1, 1]} : vector<240x32xbf16> to vector<160x32xbf16>
    %c20 = arith.constant 20 : index
    %c0_167 = arith.constant 0 : index
    %c0_168 = arith.constant 0 : index
    %223 = vector.load %arg4[%c20, %c0_167, %c0_168] : memref<25x32x64xbf16, #tpu.memory_space<vmem>>, vector<1x32x64xbf16>
    %224 = vector.shape_cast %223 : vector<1x32x64xbf16> to vector<32x64xbf16>
    %cst_169 = arith.constant dense<0.000000e+00> : vector<160x64xf32>
    %225 = tpu.matmul %222, %224, %cst_169 {dimension_numbers = #tpu.dot_dimension_numbers<[1], [0], [0], [1], [0, 0, 1, 1], [], []>} : vector<160x32xbf16>, vector<32x64xbf16>, vector<160x64xf32> -> vector<160x64xf32>
    %226 = arith.addf %221, %225 : vector<160x64xf32>
    %227 = vector.extract_strided_slice %120 {offsets = [65, 0], sizes = [160, 32], strides = [1, 1]} : vector<240x32xbf16> to vector<160x32xbf16>
    %c21 = arith.constant 21 : index
    %c0_170 = arith.constant 0 : index
    %c0_171 = arith.constant 0 : index
    %228 = vector.load %arg4[%c21, %c0_170, %c0_171] : memref<25x32x64xbf16, #tpu.memory_space<vmem>>, vector<1x32x64xbf16>
    %229 = vector.shape_cast %228 : vector<1x32x64xbf16> to vector<32x64xbf16>
    %cst_172 = arith.constant dense<0.000000e+00> : vector<160x64xf32>
    %230 = tpu.matmul %227, %229, %cst_172 {dimension_numbers = #tpu.dot_dimension_numbers<[1], [0], [0], [1], [0, 0, 1, 1], [], []>} : vector<160x32xbf16>, vector<32x64xbf16>, vector<160x64xf32> -> vector<160x64xf32>
    %231 = arith.addf %226, %230 : vector<160x64xf32>
    %232 = vector.extract_strided_slice %120 {offsets = [66, 0], sizes = [160, 32], strides = [1, 1]} : vector<240x32xbf16> to vector<160x32xbf16>
    %c22 = arith.constant 22 : index
    %c0_173 = arith.constant 0 : index
    %c0_174 = arith.constant 0 : index
    %233 = vector.load %arg4[%c22, %c0_173, %c0_174] : memref<25x32x64xbf16, #tpu.memory_space<vmem>>, vector<1x32x64xbf16>
    %234 = vector.shape_cast %233 : vector<1x32x64xbf16> to vector<32x64xbf16>
    %cst_175 = arith.constant dense<0.000000e+00> : vector<160x64xf32>
    %235 = tpu.matmul %232, %234, %cst_175 {dimension_numbers = #tpu.dot_dimension_numbers<[1], [0], [0], [1], [0, 0, 1, 1], [], []>} : vector<160x32xbf16>, vector<32x64xbf16>, vector<160x64xf32> -> vector<160x64xf32>
    %236 = arith.addf %231, %235 : vector<160x64xf32>
    %237 = vector.extract_strided_slice %120 {offsets = [67, 0], sizes = [160, 32], strides = [1, 1]} : vector<240x32xbf16> to vector<160x32xbf16>
    %c23 = arith.constant 23 : index
    %c0_176 = arith.constant 0 : index
    %c0_177 = arith.constant 0 : index
    %238 = vector.load %arg4[%c23, %c0_176, %c0_177] : memref<25x32x64xbf16, #tpu.memory_space<vmem>>, vector<1x32x64xbf16>
    %239 = vector.shape_cast %238 : vector<1x32x64xbf16> to vector<32x64xbf16>
    %cst_178 = arith.constant dense<0.000000e+00> : vector<160x64xf32>
    %240 = tpu.matmul %237, %239, %cst_178 {dimension_numbers = #tpu.dot_dimension_numbers<[1], [0], [0], [1], [0, 0, 1, 1], [], []>} : vector<160x32xbf16>, vector<32x64xbf16>, vector<160x64xf32> -> vector<160x64xf32>
    %241 = arith.addf %236, %240 : vector<160x64xf32>
    %242 = vector.extract_strided_slice %120 {offsets = [68, 0], sizes = [160, 32], strides = [1, 1]} : vector<240x32xbf16> to vector<160x32xbf16>
    %c24 = arith.constant 24 : index
    %c0_179 = arith.constant 0 : index
    %c0_180 = arith.constant 0 : index
    %243 = vector.load %arg4[%c24, %c0_179, %c0_180] : memref<25x32x64xbf16, #tpu.memory_space<vmem>>, vector<1x32x64xbf16>
    %244 = vector.shape_cast %243 : vector<1x32x64xbf16> to vector<32x64xbf16>
    %cst_181 = arith.constant dense<0.000000e+00> : vector<160x64xf32>
    %245 = tpu.matmul %242, %244, %cst_181 {dimension_numbers = #tpu.dot_dimension_numbers<[1], [0], [0], [1], [0, 0, 1, 1], [], []>} : vector<160x32xbf16>, vector<32x64xbf16>, vector<160x64xf32> -> vector<160x64xf32>
    %246 = arith.addf %241, %245 : vector<160x64xf32>
    %c0_182 = arith.constant 0 : index
    %c0_183 = arith.constant 0 : index
    %247 = vector.load %arg5[%c0_182, %c0_183] : memref<1x64xf32, #tpu.memory_space<vmem>>, vector<1x64xf32>
    %248 = vector.broadcast %247 : vector<1x64xf32> to vector<160x64xf32>
    %249 = arith.addf %246, %248 : vector<160x64xf32>
    %cst_184 = arith.constant 0.000000e+00 : f32
    %250 = vector.broadcast %cst_184 : f32 to vector<160x64xf32>
    %251 = arith.maximumf %249, %250 : vector<160x64xf32>
    %252 = arith.truncf %251 : vector<160x64xf32> to vector<160x64xbf16>
    %cst_185 = arith.constant 0.000000e+00 : f32
    %253 = vector.broadcast %cst_185 : f32 to vector<1x128xf32>
    %254 = vector.extract_strided_slice %252 {offsets = [0, 0], sizes = [1, 64], strides = [1, 1]} : vector<160x64xbf16> to vector<1x64xbf16>
    %255 = vector.extract_strided_slice %252 {offsets = [1, 0], sizes = [1, 64], strides = [1, 1]} : vector<160x64xbf16> to vector<1x64xbf16>
    %256 = vector.extract_strided_slice %252 {offsets = [16, 0], sizes = [1, 64], strides = [1, 1]} : vector<160x64xbf16> to vector<1x64xbf16>
    %257 = vector.extract_strided_slice %252 {offsets = [17, 0], sizes = [1, 64], strides = [1, 1]} : vector<160x64xbf16> to vector<1x64xbf16>
    %258 = arith.maximumf %254, %255 : vector<1x64xbf16>
    %259 = arith.maximumf %256, %257 : vector<1x64xbf16>
    %260 = arith.maximumf %258, %259 : vector<1x64xbf16>
    %c0_186 = arith.constant 0 : index
    %c0_187 = arith.constant 0 : index
    %c0_188 = arith.constant 0 : index
    %261 = vector.load %arg6[%c0_186, %c0_187, %c0_188] : memref<25x64x128xbf16, #tpu.memory_space<vmem>>, vector<1x64x128xbf16>
    %262 = vector.shape_cast %261 : vector<1x64x128xbf16> to vector<64x128xbf16>
    %cst_189 = arith.constant dense<0.000000e+00> : vector<1x128xf32>
    %263 = tpu.matmul %260, %262, %cst_189 {dimension_numbers = #tpu.dot_dimension_numbers<[1], [0], [0], [1], [0, 0, 1, 1], [], []>} : vector<1x64xbf16>, vector<64x128xbf16>, vector<1x128xf32> -> vector<1x128xf32>
    %264 = arith.addf %253, %263 : vector<1x128xf32>
    %265 = vector.extract_strided_slice %252 {offsets = [2, 0], sizes = [1, 64], strides = [1, 1]} : vector<160x64xbf16> to vector<1x64xbf16>
    %266 = vector.extract_strided_slice %252 {offsets = [3, 0], sizes = [1, 64], strides = [1, 1]} : vector<160x64xbf16> to vector<1x64xbf16>
    %267 = vector.extract_strided_slice %252 {offsets = [18, 0], sizes = [1, 64], strides = [1, 1]} : vector<160x64xbf16> to vector<1x64xbf16>
    %268 = vector.extract_strided_slice %252 {offsets = [19, 0], sizes = [1, 64], strides = [1, 1]} : vector<160x64xbf16> to vector<1x64xbf16>
    %269 = arith.maximumf %265, %266 : vector<1x64xbf16>
    %270 = arith.maximumf %267, %268 : vector<1x64xbf16>
    %271 = arith.maximumf %269, %270 : vector<1x64xbf16>
    %c1_190 = arith.constant 1 : index
    %c0_191 = arith.constant 0 : index
    %c0_192 = arith.constant 0 : index
    %272 = vector.load %arg6[%c1_190, %c0_191, %c0_192] : memref<25x64x128xbf16, #tpu.memory_space<vmem>>, vector<1x64x128xbf16>
    %273 = vector.shape_cast %272 : vector<1x64x128xbf16> to vector<64x128xbf16>
    %cst_193 = arith.constant dense<0.000000e+00> : vector<1x128xf32>
    %274 = tpu.matmul %271, %273, %cst_193 {dimension_numbers = #tpu.dot_dimension_numbers<[1], [0], [0], [1], [0, 0, 1, 1], [], []>} : vector<1x64xbf16>, vector<64x128xbf16>, vector<1x128xf32> -> vector<1x128xf32>
    %275 = arith.addf %264, %274 : vector<1x128xf32>
    %276 = vector.extract_strided_slice %252 {offsets = [4, 0], sizes = [1, 64], strides = [1, 1]} : vector<160x64xbf16> to vector<1x64xbf16>
    %277 = vector.extract_strided_slice %252 {offsets = [5, 0], sizes = [1, 64], strides = [1, 1]} : vector<160x64xbf16> to vector<1x64xbf16>
    %278 = vector.extract_strided_slice %252 {offsets = [20, 0], sizes = [1, 64], strides = [1, 1]} : vector<160x64xbf16> to vector<1x64xbf16>
    %279 = vector.extract_strided_slice %252 {offsets = [21, 0], sizes = [1, 64], strides = [1, 1]} : vector<160x64xbf16> to vector<1x64xbf16>
    %280 = arith.maximumf %276, %277 : vector<1x64xbf16>
    %281 = arith.maximumf %278, %279 : vector<1x64xbf16>
    %282 = arith.maximumf %280, %281 : vector<1x64xbf16>
    %c2_194 = arith.constant 2 : index
    %c0_195 = arith.constant 0 : index
    %c0_196 = arith.constant 0 : index
    %283 = vector.load %arg6[%c2_194, %c0_195, %c0_196] : memref<25x64x128xbf16, #tpu.memory_space<vmem>>, vector<1x64x128xbf16>
    %284 = vector.shape_cast %283 : vector<1x64x128xbf16> to vector<64x128xbf16>
    %cst_197 = arith.constant dense<0.000000e+00> : vector<1x128xf32>
    %285 = tpu.matmul %282, %284, %cst_197 {dimension_numbers = #tpu.dot_dimension_numbers<[1], [0], [0], [1], [0, 0, 1, 1], [], []>} : vector<1x64xbf16>, vector<64x128xbf16>, vector<1x128xf32> -> vector<1x128xf32>
    %286 = arith.addf %275, %285 : vector<1x128xf32>
    %287 = vector.extract_strided_slice %252 {offsets = [6, 0], sizes = [1, 64], strides = [1, 1]} : vector<160x64xbf16> to vector<1x64xbf16>
    %288 = vector.extract_strided_slice %252 {offsets = [7, 0], sizes = [1, 64], strides = [1, 1]} : vector<160x64xbf16> to vector<1x64xbf16>
    %289 = vector.extract_strided_slice %252 {offsets = [22, 0], sizes = [1, 64], strides = [1, 1]} : vector<160x64xbf16> to vector<1x64xbf16>
    %290 = vector.extract_strided_slice %252 {offsets = [23, 0], sizes = [1, 64], strides = [1, 1]} : vector<160x64xbf16> to vector<1x64xbf16>
    %291 = arith.maximumf %287, %288 : vector<1x64xbf16>
    %292 = arith.maximumf %289, %290 : vector<1x64xbf16>
    %293 = arith.maximumf %291, %292 : vector<1x64xbf16>
    %c3_198 = arith.constant 3 : index
    %c0_199 = arith.constant 0 : index
    %c0_200 = arith.constant 0 : index
    %294 = vector.load %arg6[%c3_198, %c0_199, %c0_200] : memref<25x64x128xbf16, #tpu.memory_space<vmem>>, vector<1x64x128xbf16>
    %295 = vector.shape_cast %294 : vector<1x64x128xbf16> to vector<64x128xbf16>
    %cst_201 = arith.constant dense<0.000000e+00> : vector<1x128xf32>
    %296 = tpu.matmul %293, %295, %cst_201 {dimension_numbers = #tpu.dot_dimension_numbers<[1], [0], [0], [1], [0, 0, 1, 1], [], []>} : vector<1x64xbf16>, vector<64x128xbf16>, vector<1x128xf32> -> vector<1x128xf32>
    %297 = arith.addf %286, %296 : vector<1x128xf32>
    %298 = vector.extract_strided_slice %252 {offsets = [8, 0], sizes = [1, 64], strides = [1, 1]} : vector<160x64xbf16> to vector<1x64xbf16>
    %299 = vector.extract_strided_slice %252 {offsets = [9, 0], sizes = [1, 64], strides = [1, 1]} : vector<160x64xbf16> to vector<1x64xbf16>
    %300 = vector.extract_strided_slice %252 {offsets = [24, 0], sizes = [1, 64], strides = [1, 1]} : vector<160x64xbf16> to vector<1x64xbf16>
    %301 = vector.extract_strided_slice %252 {offsets = [25, 0], sizes = [1, 64], strides = [1, 1]} : vector<160x64xbf16> to vector<1x64xbf16>
    %302 = arith.maximumf %298, %299 : vector<1x64xbf16>
    %303 = arith.maximumf %300, %301 : vector<1x64xbf16>
    %304 = arith.maximumf %302, %303 : vector<1x64xbf16>
    %c4_202 = arith.constant 4 : index
    %c0_203 = arith.constant 0 : index
    %c0_204 = arith.constant 0 : index
    %305 = vector.load %arg6[%c4_202, %c0_203, %c0_204] : memref<25x64x128xbf16, #tpu.memory_space<vmem>>, vector<1x64x128xbf16>
    %306 = vector.shape_cast %305 : vector<1x64x128xbf16> to vector<64x128xbf16>
    %cst_205 = arith.constant dense<0.000000e+00> : vector<1x128xf32>
    %307 = tpu.matmul %304, %306, %cst_205 {dimension_numbers = #tpu.dot_dimension_numbers<[1], [0], [0], [1], [0, 0, 1, 1], [], []>} : vector<1x64xbf16>, vector<64x128xbf16>, vector<1x128xf32> -> vector<1x128xf32>
    %308 = arith.addf %297, %307 : vector<1x128xf32>
    %309 = vector.extract_strided_slice %252 {offsets = [32, 0], sizes = [1, 64], strides = [1, 1]} : vector<160x64xbf16> to vector<1x64xbf16>
    %310 = vector.extract_strided_slice %252 {offsets = [33, 0], sizes = [1, 64], strides = [1, 1]} : vector<160x64xbf16> to vector<1x64xbf16>
    %311 = vector.extract_strided_slice %252 {offsets = [48, 0], sizes = [1, 64], strides = [1, 1]} : vector<160x64xbf16> to vector<1x64xbf16>
    %312 = vector.extract_strided_slice %252 {offsets = [49, 0], sizes = [1, 64], strides = [1, 1]} : vector<160x64xbf16> to vector<1x64xbf16>
    %313 = arith.maximumf %309, %310 : vector<1x64xbf16>
    %314 = arith.maximumf %311, %312 : vector<1x64xbf16>
    %315 = arith.maximumf %313, %314 : vector<1x64xbf16>
    %c5_206 = arith.constant 5 : index
    %c0_207 = arith.constant 0 : index
    %c0_208 = arith.constant 0 : index
    %316 = vector.load %arg6[%c5_206, %c0_207, %c0_208] : memref<25x64x128xbf16, #tpu.memory_space<vmem>>, vector<1x64x128xbf16>
    %317 = vector.shape_cast %316 : vector<1x64x128xbf16> to vector<64x128xbf16>
    %cst_209 = arith.constant dense<0.000000e+00> : vector<1x128xf32>
    %318 = tpu.matmul %315, %317, %cst_209 {dimension_numbers = #tpu.dot_dimension_numbers<[1], [0], [0], [1], [0, 0, 1, 1], [], []>} : vector<1x64xbf16>, vector<64x128xbf16>, vector<1x128xf32> -> vector<1x128xf32>
    %319 = arith.addf %308, %318 : vector<1x128xf32>
    %320 = vector.extract_strided_slice %252 {offsets = [34, 0], sizes = [1, 64], strides = [1, 1]} : vector<160x64xbf16> to vector<1x64xbf16>
    %321 = vector.extract_strided_slice %252 {offsets = [35, 0], sizes = [1, 64], strides = [1, 1]} : vector<160x64xbf16> to vector<1x64xbf16>
    %322 = vector.extract_strided_slice %252 {offsets = [50, 0], sizes = [1, 64], strides = [1, 1]} : vector<160x64xbf16> to vector<1x64xbf16>
    %323 = vector.extract_strided_slice %252 {offsets = [51, 0], sizes = [1, 64], strides = [1, 1]} : vector<160x64xbf16> to vector<1x64xbf16>
    %324 = arith.maximumf %320, %321 : vector<1x64xbf16>
    %325 = arith.maximumf %322, %323 : vector<1x64xbf16>
    %326 = arith.maximumf %324, %325 : vector<1x64xbf16>
    %c6_210 = arith.constant 6 : index
    %c0_211 = arith.constant 0 : index
    %c0_212 = arith.constant 0 : index
    %327 = vector.load %arg6[%c6_210, %c0_211, %c0_212] : memref<25x64x128xbf16, #tpu.memory_space<vmem>>, vector<1x64x128xbf16>
    %328 = vector.shape_cast %327 : vector<1x64x128xbf16> to vector<64x128xbf16>
    %cst_213 = arith.constant dense<0.000000e+00> : vector<1x128xf32>
    %329 = tpu.matmul %326, %328, %cst_213 {dimension_numbers = #tpu.dot_dimension_numbers<[1], [0], [0], [1], [0, 0, 1, 1], [], []>} : vector<1x64xbf16>, vector<64x128xbf16>, vector<1x128xf32> -> vector<1x128xf32>
    %330 = arith.addf %319, %329 : vector<1x128xf32>
    %331 = vector.extract_strided_slice %252 {offsets = [36, 0], sizes = [1, 64], strides = [1, 1]} : vector<160x64xbf16> to vector<1x64xbf16>
    %332 = vector.extract_strided_slice %252 {offsets = [37, 0], sizes = [1, 64], strides = [1, 1]} : vector<160x64xbf16> to vector<1x64xbf16>
    %333 = vector.extract_strided_slice %252 {offsets = [52, 0], sizes = [1, 64], strides = [1, 1]} : vector<160x64xbf16> to vector<1x64xbf16>
    %334 = vector.extract_strided_slice %252 {offsets = [53, 0], sizes = [1, 64], strides = [1, 1]} : vector<160x64xbf16> to vector<1x64xbf16>
    %335 = arith.maximumf %331, %332 : vector<1x64xbf16>
    %336 = arith.maximumf %333, %334 : vector<1x64xbf16>
    %337 = arith.maximumf %335, %336 : vector<1x64xbf16>
    %c7_214 = arith.constant 7 : index
    %c0_215 = arith.constant 0 : index
    %c0_216 = arith.constant 0 : index
    %338 = vector.load %arg6[%c7_214, %c0_215, %c0_216] : memref<25x64x128xbf16, #tpu.memory_space<vmem>>, vector<1x64x128xbf16>
    %339 = vector.shape_cast %338 : vector<1x64x128xbf16> to vector<64x128xbf16>
    %cst_217 = arith.constant dense<0.000000e+00> : vector<1x128xf32>
    %340 = tpu.matmul %337, %339, %cst_217 {dimension_numbers = #tpu.dot_dimension_numbers<[1], [0], [0], [1], [0, 0, 1, 1], [], []>} : vector<1x64xbf16>, vector<64x128xbf16>, vector<1x128xf32> -> vector<1x128xf32>
    %341 = arith.addf %330, %340 : vector<1x128xf32>
    %342 = vector.extract_strided_slice %252 {offsets = [38, 0], sizes = [1, 64], strides = [1, 1]} : vector<160x64xbf16> to vector<1x64xbf16>
    %343 = vector.extract_strided_slice %252 {offsets = [39, 0], sizes = [1, 64], strides = [1, 1]} : vector<160x64xbf16> to vector<1x64xbf16>
    %344 = vector.extract_strided_slice %252 {offsets = [54, 0], sizes = [1, 64], strides = [1, 1]} : vector<160x64xbf16> to vector<1x64xbf16>
    %345 = vector.extract_strided_slice %252 {offsets = [55, 0], sizes = [1, 64], strides = [1, 1]} : vector<160x64xbf16> to vector<1x64xbf16>
    %346 = arith.maximumf %342, %343 : vector<1x64xbf16>
    %347 = arith.maximumf %344, %345 : vector<1x64xbf16>
    %348 = arith.maximumf %346, %347 : vector<1x64xbf16>
    %c8_218 = arith.constant 8 : index
    %c0_219 = arith.constant 0 : index
    %c0_220 = arith.constant 0 : index
    %349 = vector.load %arg6[%c8_218, %c0_219, %c0_220] : memref<25x64x128xbf16, #tpu.memory_space<vmem>>, vector<1x64x128xbf16>
    %350 = vector.shape_cast %349 : vector<1x64x128xbf16> to vector<64x128xbf16>
    %cst_221 = arith.constant dense<0.000000e+00> : vector<1x128xf32>
    %351 = tpu.matmul %348, %350, %cst_221 {dimension_numbers = #tpu.dot_dimension_numbers<[1], [0], [0], [1], [0, 0, 1, 1], [], []>} : vector<1x64xbf16>, vector<64x128xbf16>, vector<1x128xf32> -> vector<1x128xf32>
    %352 = arith.addf %341, %351 : vector<1x128xf32>
    %353 = vector.extract_strided_slice %252 {offsets = [40, 0], sizes = [1, 64], strides = [1, 1]} : vector<160x64xbf16> to vector<1x64xbf16>
    %354 = vector.extract_strided_slice %252 {offsets = [41, 0], sizes = [1, 64], strides = [1, 1]} : vector<160x64xbf16> to vector<1x64xbf16>
    %355 = vector.extract_strided_slice %252 {offsets = [56, 0], sizes = [1, 64], strides = [1, 1]} : vector<160x64xbf16> to vector<1x64xbf16>
    %356 = vector.extract_strided_slice %252 {offsets = [57, 0], sizes = [1, 64], strides = [1, 1]} : vector<160x64xbf16> to vector<1x64xbf16>
    %357 = arith.maximumf %353, %354 : vector<1x64xbf16>
    %358 = arith.maximumf %355, %356 : vector<1x64xbf16>
    %359 = arith.maximumf %357, %358 : vector<1x64xbf16>
    %c9_222 = arith.constant 9 : index
    %c0_223 = arith.constant 0 : index
    %c0_224 = arith.constant 0 : index
    %360 = vector.load %arg6[%c9_222, %c0_223, %c0_224] : memref<25x64x128xbf16, #tpu.memory_space<vmem>>, vector<1x64x128xbf16>
    %361 = vector.shape_cast %360 : vector<1x64x128xbf16> to vector<64x128xbf16>
    %cst_225 = arith.constant dense<0.000000e+00> : vector<1x128xf32>
    %362 = tpu.matmul %359, %361, %cst_225 {dimension_numbers = #tpu.dot_dimension_numbers<[1], [0], [0], [1], [0, 0, 1, 1], [], []>} : vector<1x64xbf16>, vector<64x128xbf16>, vector<1x128xf32> -> vector<1x128xf32>
    %363 = arith.addf %352, %362 : vector<1x128xf32>
    %364 = vector.extract_strided_slice %252 {offsets = [64, 0], sizes = [1, 64], strides = [1, 1]} : vector<160x64xbf16> to vector<1x64xbf16>
    %365 = vector.extract_strided_slice %252 {offsets = [65, 0], sizes = [1, 64], strides = [1, 1]} : vector<160x64xbf16> to vector<1x64xbf16>
    %366 = vector.extract_strided_slice %252 {offsets = [80, 0], sizes = [1, 64], strides = [1, 1]} : vector<160x64xbf16> to vector<1x64xbf16>
    %367 = vector.extract_strided_slice %252 {offsets = [81, 0], sizes = [1, 64], strides = [1, 1]} : vector<160x64xbf16> to vector<1x64xbf16>
    %368 = arith.maximumf %364, %365 : vector<1x64xbf16>
    %369 = arith.maximumf %366, %367 : vector<1x64xbf16>
    %370 = arith.maximumf %368, %369 : vector<1x64xbf16>
    %c10_226 = arith.constant 10 : index
    %c0_227 = arith.constant 0 : index
    %c0_228 = arith.constant 0 : index
    %371 = vector.load %arg6[%c10_226, %c0_227, %c0_228] : memref<25x64x128xbf16, #tpu.memory_space<vmem>>, vector<1x64x128xbf16>
    %372 = vector.shape_cast %371 : vector<1x64x128xbf16> to vector<64x128xbf16>
    %cst_229 = arith.constant dense<0.000000e+00> : vector<1x128xf32>
    %373 = tpu.matmul %370, %372, %cst_229 {dimension_numbers = #tpu.dot_dimension_numbers<[1], [0], [0], [1], [0, 0, 1, 1], [], []>} : vector<1x64xbf16>, vector<64x128xbf16>, vector<1x128xf32> -> vector<1x128xf32>
    %374 = arith.addf %363, %373 : vector<1x128xf32>
    %375 = vector.extract_strided_slice %252 {offsets = [66, 0], sizes = [1, 64], strides = [1, 1]} : vector<160x64xbf16> to vector<1x64xbf16>
    %376 = vector.extract_strided_slice %252 {offsets = [67, 0], sizes = [1, 64], strides = [1, 1]} : vector<160x64xbf16> to vector<1x64xbf16>
    %377 = vector.extract_strided_slice %252 {offsets = [82, 0], sizes = [1, 64], strides = [1, 1]} : vector<160x64xbf16> to vector<1x64xbf16>
    %378 = vector.extract_strided_slice %252 {offsets = [83, 0], sizes = [1, 64], strides = [1, 1]} : vector<160x64xbf16> to vector<1x64xbf16>
    %379 = arith.maximumf %375, %376 : vector<1x64xbf16>
    %380 = arith.maximumf %377, %378 : vector<1x64xbf16>
    %381 = arith.maximumf %379, %380 : vector<1x64xbf16>
    %c11_230 = arith.constant 11 : index
    %c0_231 = arith.constant 0 : index
    %c0_232 = arith.constant 0 : index
    %382 = vector.load %arg6[%c11_230, %c0_231, %c0_232] : memref<25x64x128xbf16, #tpu.memory_space<vmem>>, vector<1x64x128xbf16>
    %383 = vector.shape_cast %382 : vector<1x64x128xbf16> to vector<64x128xbf16>
    %cst_233 = arith.constant dense<0.000000e+00> : vector<1x128xf32>
    %384 = tpu.matmul %381, %383, %cst_233 {dimension_numbers = #tpu.dot_dimension_numbers<[1], [0], [0], [1], [0, 0, 1, 1], [], []>} : vector<1x64xbf16>, vector<64x128xbf16>, vector<1x128xf32> -> vector<1x128xf32>
    %385 = arith.addf %374, %384 : vector<1x128xf32>
    %386 = vector.extract_strided_slice %252 {offsets = [68, 0], sizes = [1, 64], strides = [1, 1]} : vector<160x64xbf16> to vector<1x64xbf16>
    %387 = vector.extract_strided_slice %252 {offsets = [69, 0], sizes = [1, 64], strides = [1, 1]} : vector<160x64xbf16> to vector<1x64xbf16>
    %388 = vector.extract_strided_slice %252 {offsets = [84, 0], sizes = [1, 64], strides = [1, 1]} : vector<160x64xbf16> to vector<1x64xbf16>
    %389 = vector.extract_strided_slice %252 {offsets = [85, 0], sizes = [1, 64], strides = [1, 1]} : vector<160x64xbf16> to vector<1x64xbf16>
    %390 = arith.maximumf %386, %387 : vector<1x64xbf16>
    %391 = arith.maximumf %388, %389 : vector<1x64xbf16>
    %392 = arith.maximumf %390, %391 : vector<1x64xbf16>
    %c12_234 = arith.constant 12 : index
    %c0_235 = arith.constant 0 : index
    %c0_236 = arith.constant 0 : index
    %393 = vector.load %arg6[%c12_234, %c0_235, %c0_236] : memref<25x64x128xbf16, #tpu.memory_space<vmem>>, vector<1x64x128xbf16>
    %394 = vector.shape_cast %393 : vector<1x64x128xbf16> to vector<64x128xbf16>
    %cst_237 = arith.constant dense<0.000000e+00> : vector<1x128xf32>
    %395 = tpu.matmul %392, %394, %cst_237 {dimension_numbers = #tpu.dot_dimension_numbers<[1], [0], [0], [1], [0, 0, 1, 1], [], []>} : vector<1x64xbf16>, vector<64x128xbf16>, vector<1x128xf32> -> vector<1x128xf32>
    %396 = arith.addf %385, %395 : vector<1x128xf32>
    %397 = vector.extract_strided_slice %252 {offsets = [70, 0], sizes = [1, 64], strides = [1, 1]} : vector<160x64xbf16> to vector<1x64xbf16>
    %398 = vector.extract_strided_slice %252 {offsets = [71, 0], sizes = [1, 64], strides = [1, 1]} : vector<160x64xbf16> to vector<1x64xbf16>
    %399 = vector.extract_strided_slice %252 {offsets = [86, 0], sizes = [1, 64], strides = [1, 1]} : vector<160x64xbf16> to vector<1x64xbf16>
    %400 = vector.extract_strided_slice %252 {offsets = [87, 0], sizes = [1, 64], strides = [1, 1]} : vector<160x64xbf16> to vector<1x64xbf16>
    %401 = arith.maximumf %397, %398 : vector<1x64xbf16>
    %402 = arith.maximumf %399, %400 : vector<1x64xbf16>
    %403 = arith.maximumf %401, %402 : vector<1x64xbf16>
    %c13_238 = arith.constant 13 : index
    %c0_239 = arith.constant 0 : index
    %c0_240 = arith.constant 0 : index
    %404 = vector.load %arg6[%c13_238, %c0_239, %c0_240] : memref<25x64x128xbf16, #tpu.memory_space<vmem>>, vector<1x64x128xbf16>
    %405 = vector.shape_cast %404 : vector<1x64x128xbf16> to vector<64x128xbf16>
    %cst_241 = arith.constant dense<0.000000e+00> : vector<1x128xf32>
    %406 = tpu.matmul %403, %405, %cst_241 {dimension_numbers = #tpu.dot_dimension_numbers<[1], [0], [0], [1], [0, 0, 1, 1], [], []>} : vector<1x64xbf16>, vector<64x128xbf16>, vector<1x128xf32> -> vector<1x128xf32>
    %407 = arith.addf %396, %406 : vector<1x128xf32>
    %408 = vector.extract_strided_slice %252 {offsets = [72, 0], sizes = [1, 64], strides = [1, 1]} : vector<160x64xbf16> to vector<1x64xbf16>
    %409 = vector.extract_strided_slice %252 {offsets = [73, 0], sizes = [1, 64], strides = [1, 1]} : vector<160x64xbf16> to vector<1x64xbf16>
    %410 = vector.extract_strided_slice %252 {offsets = [88, 0], sizes = [1, 64], strides = [1, 1]} : vector<160x64xbf16> to vector<1x64xbf16>
    %411 = vector.extract_strided_slice %252 {offsets = [89, 0], sizes = [1, 64], strides = [1, 1]} : vector<160x64xbf16> to vector<1x64xbf16>
    %412 = arith.maximumf %408, %409 : vector<1x64xbf16>
    %413 = arith.maximumf %410, %411 : vector<1x64xbf16>
    %414 = arith.maximumf %412, %413 : vector<1x64xbf16>
    %c14_242 = arith.constant 14 : index
    %c0_243 = arith.constant 0 : index
    %c0_244 = arith.constant 0 : index
    %415 = vector.load %arg6[%c14_242, %c0_243, %c0_244] : memref<25x64x128xbf16, #tpu.memory_space<vmem>>, vector<1x64x128xbf16>
    %416 = vector.shape_cast %415 : vector<1x64x128xbf16> to vector<64x128xbf16>
    %cst_245 = arith.constant dense<0.000000e+00> : vector<1x128xf32>
    %417 = tpu.matmul %414, %416, %cst_245 {dimension_numbers = #tpu.dot_dimension_numbers<[1], [0], [0], [1], [0, 0, 1, 1], [], []>} : vector<1x64xbf16>, vector<64x128xbf16>, vector<1x128xf32> -> vector<1x128xf32>
    %418 = arith.addf %407, %417 : vector<1x128xf32>
    %419 = vector.extract_strided_slice %252 {offsets = [96, 0], sizes = [1, 64], strides = [1, 1]} : vector<160x64xbf16> to vector<1x64xbf16>
    %420 = vector.extract_strided_slice %252 {offsets = [97, 0], sizes = [1, 64], strides = [1, 1]} : vector<160x64xbf16> to vector<1x64xbf16>
    %421 = vector.extract_strided_slice %252 {offsets = [112, 0], sizes = [1, 64], strides = [1, 1]} : vector<160x64xbf16> to vector<1x64xbf16>
    %422 = vector.extract_strided_slice %252 {offsets = [113, 0], sizes = [1, 64], strides = [1, 1]} : vector<160x64xbf16> to vector<1x64xbf16>
    %423 = arith.maximumf %419, %420 : vector<1x64xbf16>
    %424 = arith.maximumf %421, %422 : vector<1x64xbf16>
    %425 = arith.maximumf %423, %424 : vector<1x64xbf16>
    %c15_246 = arith.constant 15 : index
    %c0_247 = arith.constant 0 : index
    %c0_248 = arith.constant 0 : index
    %426 = vector.load %arg6[%c15_246, %c0_247, %c0_248] : memref<25x64x128xbf16, #tpu.memory_space<vmem>>, vector<1x64x128xbf16>
    %427 = vector.shape_cast %426 : vector<1x64x128xbf16> to vector<64x128xbf16>
    %cst_249 = arith.constant dense<0.000000e+00> : vector<1x128xf32>
    %428 = tpu.matmul %425, %427, %cst_249 {dimension_numbers = #tpu.dot_dimension_numbers<[1], [0], [0], [1], [0, 0, 1, 1], [], []>} : vector<1x64xbf16>, vector<64x128xbf16>, vector<1x128xf32> -> vector<1x128xf32>
    %429 = arith.addf %418, %428 : vector<1x128xf32>
    %430 = vector.extract_strided_slice %252 {offsets = [98, 0], sizes = [1, 64], strides = [1, 1]} : vector<160x64xbf16> to vector<1x64xbf16>
    %431 = vector.extract_strided_slice %252 {offsets = [99, 0], sizes = [1, 64], strides = [1, 1]} : vector<160x64xbf16> to vector<1x64xbf16>
    %432 = vector.extract_strided_slice %252 {offsets = [114, 0], sizes = [1, 64], strides = [1, 1]} : vector<160x64xbf16> to vector<1x64xbf16>
    %433 = vector.extract_strided_slice %252 {offsets = [115, 0], sizes = [1, 64], strides = [1, 1]} : vector<160x64xbf16> to vector<1x64xbf16>
    %434 = arith.maximumf %430, %431 : vector<1x64xbf16>
    %435 = arith.maximumf %432, %433 : vector<1x64xbf16>
    %436 = arith.maximumf %434, %435 : vector<1x64xbf16>
    %c16_250 = arith.constant 16 : index
    %c0_251 = arith.constant 0 : index
    %c0_252 = arith.constant 0 : index
    %437 = vector.load %arg6[%c16_250, %c0_251, %c0_252] : memref<25x64x128xbf16, #tpu.memory_space<vmem>>, vector<1x64x128xbf16>
    %438 = vector.shape_cast %437 : vector<1x64x128xbf16> to vector<64x128xbf16>
    %cst_253 = arith.constant dense<0.000000e+00> : vector<1x128xf32>
    %439 = tpu.matmul %436, %438, %cst_253 {dimension_numbers = #tpu.dot_dimension_numbers<[1], [0], [0], [1], [0, 0, 1, 1], [], []>} : vector<1x64xbf16>, vector<64x128xbf16>, vector<1x128xf32> -> vector<1x128xf32>
    %440 = arith.addf %429, %439 : vector<1x128xf32>
    %441 = vector.extract_strided_slice %252 {offsets = [100, 0], sizes = [1, 64], strides = [1, 1]} : vector<160x64xbf16> to vector<1x64xbf16>
    %442 = vector.extract_strided_slice %252 {offsets = [101, 0], sizes = [1, 64], strides = [1, 1]} : vector<160x64xbf16> to vector<1x64xbf16>
    %443 = vector.extract_strided_slice %252 {offsets = [116, 0], sizes = [1, 64], strides = [1, 1]} : vector<160x64xbf16> to vector<1x64xbf16>
    %444 = vector.extract_strided_slice %252 {offsets = [117, 0], sizes = [1, 64], strides = [1, 1]} : vector<160x64xbf16> to vector<1x64xbf16>
    %445 = arith.maximumf %441, %442 : vector<1x64xbf16>
    %446 = arith.maximumf %443, %444 : vector<1x64xbf16>
    %447 = arith.maximumf %445, %446 : vector<1x64xbf16>
    %c17_254 = arith.constant 17 : index
    %c0_255 = arith.constant 0 : index
    %c0_256 = arith.constant 0 : index
    %448 = vector.load %arg6[%c17_254, %c0_255, %c0_256] : memref<25x64x128xbf16, #tpu.memory_space<vmem>>, vector<1x64x128xbf16>
    %449 = vector.shape_cast %448 : vector<1x64x128xbf16> to vector<64x128xbf16>
    %cst_257 = arith.constant dense<0.000000e+00> : vector<1x128xf32>
    %450 = tpu.matmul %447, %449, %cst_257 {dimension_numbers = #tpu.dot_dimension_numbers<[1], [0], [0], [1], [0, 0, 1, 1], [], []>} : vector<1x64xbf16>, vector<64x128xbf16>, vector<1x128xf32> -> vector<1x128xf32>
    %451 = arith.addf %440, %450 : vector<1x128xf32>
    %452 = vector.extract_strided_slice %252 {offsets = [102, 0], sizes = [1, 64], strides = [1, 1]} : vector<160x64xbf16> to vector<1x64xbf16>
    %453 = vector.extract_strided_slice %252 {offsets = [103, 0], sizes = [1, 64], strides = [1, 1]} : vector<160x64xbf16> to vector<1x64xbf16>
    %454 = vector.extract_strided_slice %252 {offsets = [118, 0], sizes = [1, 64], strides = [1, 1]} : vector<160x64xbf16> to vector<1x64xbf16>
    %455 = vector.extract_strided_slice %252 {offsets = [119, 0], sizes = [1, 64], strides = [1, 1]} : vector<160x64xbf16> to vector<1x64xbf16>
    %456 = arith.maximumf %452, %453 : vector<1x64xbf16>
    %457 = arith.maximumf %454, %455 : vector<1x64xbf16>
    %458 = arith.maximumf %456, %457 : vector<1x64xbf16>
    %c18_258 = arith.constant 18 : index
    %c0_259 = arith.constant 0 : index
    %c0_260 = arith.constant 0 : index
    %459 = vector.load %arg6[%c18_258, %c0_259, %c0_260] : memref<25x64x128xbf16, #tpu.memory_space<vmem>>, vector<1x64x128xbf16>
    %460 = vector.shape_cast %459 : vector<1x64x128xbf16> to vector<64x128xbf16>
    %cst_261 = arith.constant dense<0.000000e+00> : vector<1x128xf32>
    %461 = tpu.matmul %458, %460, %cst_261 {dimension_numbers = #tpu.dot_dimension_numbers<[1], [0], [0], [1], [0, 0, 1, 1], [], []>} : vector<1x64xbf16>, vector<64x128xbf16>, vector<1x128xf32> -> vector<1x128xf32>
    %462 = arith.addf %451, %461 : vector<1x128xf32>
    %463 = vector.extract_strided_slice %252 {offsets = [104, 0], sizes = [1, 64], strides = [1, 1]} : vector<160x64xbf16> to vector<1x64xbf16>
    %464 = vector.extract_strided_slice %252 {offsets = [105, 0], sizes = [1, 64], strides = [1, 1]} : vector<160x64xbf16> to vector<1x64xbf16>
    %465 = vector.extract_strided_slice %252 {offsets = [120, 0], sizes = [1, 64], strides = [1, 1]} : vector<160x64xbf16> to vector<1x64xbf16>
    %466 = vector.extract_strided_slice %252 {offsets = [121, 0], sizes = [1, 64], strides = [1, 1]} : vector<160x64xbf16> to vector<1x64xbf16>
    %467 = arith.maximumf %463, %464 : vector<1x64xbf16>
    %468 = arith.maximumf %465, %466 : vector<1x64xbf16>
    %469 = arith.maximumf %467, %468 : vector<1x64xbf16>
    %c19_262 = arith.constant 19 : index
    %c0_263 = arith.constant 0 : index
    %c0_264 = arith.constant 0 : index
    %470 = vector.load %arg6[%c19_262, %c0_263, %c0_264] : memref<25x64x128xbf16, #tpu.memory_space<vmem>>, vector<1x64x128xbf16>
    %471 = vector.shape_cast %470 : vector<1x64x128xbf16> to vector<64x128xbf16>
    %cst_265 = arith.constant dense<0.000000e+00> : vector<1x128xf32>
    %472 = tpu.matmul %469, %471, %cst_265 {dimension_numbers = #tpu.dot_dimension_numbers<[1], [0], [0], [1], [0, 0, 1, 1], [], []>} : vector<1x64xbf16>, vector<64x128xbf16>, vector<1x128xf32> -> vector<1x128xf32>
    %473 = arith.addf %462, %472 : vector<1x128xf32>
    %474 = vector.extract_strided_slice %252 {offsets = [128, 0], sizes = [1, 64], strides = [1, 1]} : vector<160x64xbf16> to vector<1x64xbf16>
    %475 = vector.extract_strided_slice %252 {offsets = [129, 0], sizes = [1, 64], strides = [1, 1]} : vector<160x64xbf16> to vector<1x64xbf16>
    %476 = vector.extract_strided_slice %252 {offsets = [144, 0], sizes = [1, 64], strides = [1, 1]} : vector<160x64xbf16> to vector<1x64xbf16>
    %477 = vector.extract_strided_slice %252 {offsets = [145, 0], sizes = [1, 64], strides = [1, 1]} : vector<160x64xbf16> to vector<1x64xbf16>
    %478 = arith.maximumf %474, %475 : vector<1x64xbf16>
    %479 = arith.maximumf %476, %477 : vector<1x64xbf16>
    %480 = arith.maximumf %478, %479 : vector<1x64xbf16>
    %c20_266 = arith.constant 20 : index
    %c0_267 = arith.constant 0 : index
    %c0_268 = arith.constant 0 : index
    %481 = vector.load %arg6[%c20_266, %c0_267, %c0_268] : memref<25x64x128xbf16, #tpu.memory_space<vmem>>, vector<1x64x128xbf16>
    %482 = vector.shape_cast %481 : vector<1x64x128xbf16> to vector<64x128xbf16>
    %cst_269 = arith.constant dense<0.000000e+00> : vector<1x128xf32>
    %483 = tpu.matmul %480, %482, %cst_269 {dimension_numbers = #tpu.dot_dimension_numbers<[1], [0], [0], [1], [0, 0, 1, 1], [], []>} : vector<1x64xbf16>, vector<64x128xbf16>, vector<1x128xf32> -> vector<1x128xf32>
    %484 = arith.addf %473, %483 : vector<1x128xf32>
    %485 = vector.extract_strided_slice %252 {offsets = [130, 0], sizes = [1, 64], strides = [1, 1]} : vector<160x64xbf16> to vector<1x64xbf16>
    %486 = vector.extract_strided_slice %252 {offsets = [131, 0], sizes = [1, 64], strides = [1, 1]} : vector<160x64xbf16> to vector<1x64xbf16>
    %487 = vector.extract_strided_slice %252 {offsets = [146, 0], sizes = [1, 64], strides = [1, 1]} : vector<160x64xbf16> to vector<1x64xbf16>
    %488 = vector.extract_strided_slice %252 {offsets = [147, 0], sizes = [1, 64], strides = [1, 1]} : vector<160x64xbf16> to vector<1x64xbf16>
    %489 = arith.maximumf %485, %486 : vector<1x64xbf16>
    %490 = arith.maximumf %487, %488 : vector<1x64xbf16>
    %491 = arith.maximumf %489, %490 : vector<1x64xbf16>
    %c21_270 = arith.constant 21 : index
    %c0_271 = arith.constant 0 : index
    %c0_272 = arith.constant 0 : index
    %492 = vector.load %arg6[%c21_270, %c0_271, %c0_272] : memref<25x64x128xbf16, #tpu.memory_space<vmem>>, vector<1x64x128xbf16>
    %493 = vector.shape_cast %492 : vector<1x64x128xbf16> to vector<64x128xbf16>
    %cst_273 = arith.constant dense<0.000000e+00> : vector<1x128xf32>
    %494 = tpu.matmul %491, %493, %cst_273 {dimension_numbers = #tpu.dot_dimension_numbers<[1], [0], [0], [1], [0, 0, 1, 1], [], []>} : vector<1x64xbf16>, vector<64x128xbf16>, vector<1x128xf32> -> vector<1x128xf32>
    %495 = arith.addf %484, %494 : vector<1x128xf32>
    %496 = vector.extract_strided_slice %252 {offsets = [132, 0], sizes = [1, 64], strides = [1, 1]} : vector<160x64xbf16> to vector<1x64xbf16>
    %497 = vector.extract_strided_slice %252 {offsets = [133, 0], sizes = [1, 64], strides = [1, 1]} : vector<160x64xbf16> to vector<1x64xbf16>
    %498 = vector.extract_strided_slice %252 {offsets = [148, 0], sizes = [1, 64], strides = [1, 1]} : vector<160x64xbf16> to vector<1x64xbf16>
    %499 = vector.extract_strided_slice %252 {offsets = [149, 0], sizes = [1, 64], strides = [1, 1]} : vector<160x64xbf16> to vector<1x64xbf16>
    %500 = arith.maximumf %496, %497 : vector<1x64xbf16>
    %501 = arith.maximumf %498, %499 : vector<1x64xbf16>
    %502 = arith.maximumf %500, %501 : vector<1x64xbf16>
    %c22_274 = arith.constant 22 : index
    %c0_275 = arith.constant 0 : index
    %c0_276 = arith.constant 0 : index
    %503 = vector.load %arg6[%c22_274, %c0_275, %c0_276] : memref<25x64x128xbf16, #tpu.memory_space<vmem>>, vector<1x64x128xbf16>
    %504 = vector.shape_cast %503 : vector<1x64x128xbf16> to vector<64x128xbf16>
    %cst_277 = arith.constant dense<0.000000e+00> : vector<1x128xf32>
    %505 = tpu.matmul %502, %504, %cst_277 {dimension_numbers = #tpu.dot_dimension_numbers<[1], [0], [0], [1], [0, 0, 1, 1], [], []>} : vector<1x64xbf16>, vector<64x128xbf16>, vector<1x128xf32> -> vector<1x128xf32>
    %506 = arith.addf %495, %505 : vector<1x128xf32>
    %507 = vector.extract_strided_slice %252 {offsets = [134, 0], sizes = [1, 64], strides = [1, 1]} : vector<160x64xbf16> to vector<1x64xbf16>
    %508 = vector.extract_strided_slice %252 {offsets = [135, 0], sizes = [1, 64], strides = [1, 1]} : vector<160x64xbf16> to vector<1x64xbf16>
    %509 = vector.extract_strided_slice %252 {offsets = [150, 0], sizes = [1, 64], strides = [1, 1]} : vector<160x64xbf16> to vector<1x64xbf16>
    %510 = vector.extract_strided_slice %252 {offsets = [151, 0], sizes = [1, 64], strides = [1, 1]} : vector<160x64xbf16> to vector<1x64xbf16>
    %511 = arith.maximumf %507, %508 : vector<1x64xbf16>
    %512 = arith.maximumf %509, %510 : vector<1x64xbf16>
    %513 = arith.maximumf %511, %512 : vector<1x64xbf16>
    %c23_278 = arith.constant 23 : index
    %c0_279 = arith.constant 0 : index
    %c0_280 = arith.constant 0 : index
    %514 = vector.load %arg6[%c23_278, %c0_279, %c0_280] : memref<25x64x128xbf16, #tpu.memory_space<vmem>>, vector<1x64x128xbf16>
    %515 = vector.shape_cast %514 : vector<1x64x128xbf16> to vector<64x128xbf16>
    %cst_281 = arith.constant dense<0.000000e+00> : vector<1x128xf32>
    %516 = tpu.matmul %513, %515, %cst_281 {dimension_numbers = #tpu.dot_dimension_numbers<[1], [0], [0], [1], [0, 0, 1, 1], [], []>} : vector<1x64xbf16>, vector<64x128xbf16>, vector<1x128xf32> -> vector<1x128xf32>
    %517 = arith.addf %506, %516 : vector<1x128xf32>
    %518 = vector.extract_strided_slice %252 {offsets = [136, 0], sizes = [1, 64], strides = [1, 1]} : vector<160x64xbf16> to vector<1x64xbf16>
    %519 = vector.extract_strided_slice %252 {offsets = [137, 0], sizes = [1, 64], strides = [1, 1]} : vector<160x64xbf16> to vector<1x64xbf16>
    %520 = vector.extract_strided_slice %252 {offsets = [152, 0], sizes = [1, 64], strides = [1, 1]} : vector<160x64xbf16> to vector<1x64xbf16>
    %521 = vector.extract_strided_slice %252 {offsets = [153, 0], sizes = [1, 64], strides = [1, 1]} : vector<160x64xbf16> to vector<1x64xbf16>
    %522 = arith.maximumf %518, %519 : vector<1x64xbf16>
    %523 = arith.maximumf %520, %521 : vector<1x64xbf16>
    %524 = arith.maximumf %522, %523 : vector<1x64xbf16>
    %c24_282 = arith.constant 24 : index
    %c0_283 = arith.constant 0 : index
    %c0_284 = arith.constant 0 : index
    %525 = vector.load %arg6[%c24_282, %c0_283, %c0_284] : memref<25x64x128xbf16, #tpu.memory_space<vmem>>, vector<1x64x128xbf16>
    %526 = vector.shape_cast %525 : vector<1x64x128xbf16> to vector<64x128xbf16>
    %cst_285 = arith.constant dense<0.000000e+00> : vector<1x128xf32>
    %527 = tpu.matmul %524, %526, %cst_285 {dimension_numbers = #tpu.dot_dimension_numbers<[1], [0], [0], [1], [0, 0, 1, 1], [], []>} : vector<1x64xbf16>, vector<64x128xbf16>, vector<1x128xf32> -> vector<1x128xf32>
    %528 = arith.addf %517, %527 : vector<1x128xf32>
    %c0_286 = arith.constant 0 : index
    %c0_287 = arith.constant 0 : index
    %529 = vector.load %arg7[%c0_286, %c0_287] : memref<1x128xf32, #tpu.memory_space<vmem>>, vector<1x128xf32>
    %530 = arith.addf %528, %529 : vector<1x128xf32>
    %cst_288 = arith.constant 0.000000e+00 : f32
    %531 = vector.broadcast %cst_288 : f32 to vector<1x128xf32>
    %532 = arith.maximumf %530, %531 : vector<1x128xf32>
    %533 = arith.truncf %532 : vector<1x128xf32> to vector<1x128xbf16>
    %c0_289 = arith.constant 0 : index
    %c0_290 = arith.constant 0 : index
    %534 = vector.load %arg8[%c0_289, %c0_290] : memref<128x64xbf16, #tpu.memory_space<vmem>>, vector<128x64xbf16>
    %cst_291 = arith.constant dense<0.000000e+00> : vector<1x64xf32>
    %535 = tpu.matmul %533, %534, %cst_291 {dimension_numbers = #tpu.dot_dimension_numbers<[1], [0], [0], [1], [0, 0, 1, 1], [], []>} : vector<1x128xbf16>, vector<128x64xbf16>, vector<1x64xf32> -> vector<1x64xf32>
    %c0_292 = arith.constant 0 : index
    %c0_293 = arith.constant 0 : index
    %536 = vector.load %arg9[%c0_292, %c0_293] : memref<1x64xf32, #tpu.memory_space<vmem>>, vector<1x64xf32>
    %537 = arith.addf %535, %536 : vector<1x64xf32>
    %cst_294 = arith.constant 0.000000e+00 : f32
    %538 = vector.broadcast %cst_294 : f32 to vector<1x64xf32>
    %539 = arith.maximumf %537, %538 : vector<1x64xf32>
    %540 = arith.truncf %539 : vector<1x64xf32> to vector<1x64xbf16>
    %c0_295 = arith.constant 0 : index
    %c0_296 = arith.constant 0 : index
    %541 = vector.load %arg10[%c0_295, %c0_296] : memref<64x34xbf16, #tpu.memory_space<vmem>>, vector<64x34xbf16>
    %cst_297 = arith.constant dense<0.000000e+00> : vector<1x34xf32>
    %542 = tpu.matmul %540, %541, %cst_297 {dimension_numbers = #tpu.dot_dimension_numbers<[1], [0], [0], [1], [0, 0, 1, 1], [], []>} : vector<1x64xbf16>, vector<64x34xbf16>, vector<1x34xf32> -> vector<1x34xf32>
    %c0_298 = arith.constant 0 : index
    %c0_299 = arith.constant 0 : index
    %543 = vector.load %arg11[%c0_298, %c0_299] : memref<1x34xf32, #tpu.memory_space<vmem>>, vector<1x34xf32>
    %544 = arith.addf %542, %543 : vector<1x34xf32>
    %c0_300 = arith.constant 0 : index
    %c0_301 = arith.constant 0 : index
    %c0_302 = arith.constant 0 : index
    %545 = vector.load %arg12[%c0_300, %c0_301, %c0_302] : memref<1x1x34xf32, #tpu.memory_space<vmem>>, vector<1x1x34xf32>
    %546 = vector.shape_cast %545 : vector<1x1x34xf32> to vector<1x34xf32>
    %547 = vector.shape_cast %544 : vector<1x34xf32> to vector<1x1x34xf32>
    tpu.vector_store %arg12[%c0_300, %c0_301, %c0_302], %547 {strides = array<i32>} : memref<1x1x34xf32, #tpu.memory_space<vmem>>, vector<1x1x34xf32>,
    return
  }
  func.func @transform_0(%arg0: i32) -> (i32, i32, i32, i32, i32) {
    %c0_i32 = arith.constant 0 : i32
    %c0_i32_0 = arith.constant 0 : i32
    %c0_i32_1 = arith.constant 0 : i32
    %c0_i32_2 = arith.constant 0 : i32
    %c0_i32_3 = arith.constant 0 : i32
    return %arg0, %c0_i32, %c0_i32_0, %c0_i32_1, %c0_i32_2 : i32, i32, i32, i32, i32
  }
  func.func @transform_1(%arg0: i32) -> (i32, i32, i32) {
    %c0_i32 = arith.constant 0 : i32
    %c0_i32_0 = arith.constant 0 : i32
    %c0_i32_1 = arith.constant 0 : i32
    %c0_i32_2 = arith.constant 0 : i32
    return %c0_i32, %c0_i32_0, %c0_i32_1 : i32, i32, i32
  }
  func.func @transform_2(%arg0: i32) -> (i32, i32) {
    %c0_i32 = arith.constant 0 : i32
    %c0_i32_0 = arith.constant 0 : i32
    %c0_i32_1 = arith.constant 0 : i32
    return %c0_i32, %c0_i32_0 : i32, i32
  }
  func.func @transform_3(%arg0: i32) -> (i32, i32, i32) {
    %c0_i32 = arith.constant 0 : i32
    %c0_i32_0 = arith.constant 0 : i32
    %c0_i32_1 = arith.constant 0 : i32
    %c0_i32_2 = arith.constant 0 : i32
    return %c0_i32, %c0_i32_0, %c0_i32_1 : i32, i32, i32
  }
  func.func @transform_4(%arg0: i32) -> (i32, i32) {
    %c0_i32 = arith.constant 0 : i32
    %c0_i32_0 = arith.constant 0 : i32
    %c0_i32_1 = arith.constant 0 : i32
    return %c0_i32, %c0_i32_0 : i32, i32
  }
  func.func @transform_5(%arg0: i32) -> (i32, i32, i32) {
    %c0_i32 = arith.constant 0 : i32
    %c0_i32_0 = arith.constant 0 : i32
    %c0_i32_1 = arith.constant 0 : i32
    %c0_i32_2 = arith.constant 0 : i32
    return %c0_i32, %c0_i32_0, %c0_i32_1 : i32, i32, i32
  }
  func.func @transform_6(%arg0: i32) -> (i32, i32) {
    %c0_i32 = arith.constant 0 : i32
    %c0_i32_0 = arith.constant 0 : i32
    %c0_i32_1 = arith.constant 0 : i32
    return %c0_i32, %c0_i32_0 : i32, i32
  }
  func.func @transform_7(%arg0: i32) -> (i32, i32) {
    %c0_i32 = arith.constant 0 : i32
    %c0_i32_0 = arith.constant 0 : i32
    %c0_i32_1 = arith.constant 0 : i32
    return %c0_i32, %c0_i32_0 : i32, i32
  }
  func.func @transform_8(%arg0: i32) -> (i32, i32) {
    %c0_i32 = arith.constant 0 : i32
    %c0_i32_0 = arith.constant 0 : i32
    %c0_i32_1 = arith.constant 0 : i32
    return %c0_i32, %c0_i32_0 : i32, i32
  }
  func.func @transform_9(%arg0: i32) -> (i32, i32) {
    %c0_i32 = arith.constant 0 : i32
    %c0_i32_0 = arith.constant 0 : i32
    %c0_i32_1 = arith.constant 0 : i32
    return %c0_i32, %c0_i32_0 : i32, i32
  }
  func.func @transform_10(%arg0: i32) -> (i32, i32) {
    %c0_i32 = arith.constant 0 : i32
    %c0_i32_0 = arith.constant 0 : i32
    %c0_i32_1 = arith.constant 0 : i32
    return %c0_i32, %c0_i32_0 : i32, i32
  }
  func.func @transform_11(%arg0: i32) -> (i32, i32, i32) {
    %c0_i32 = arith.constant 0 : i32
    %c0_i32_0 = arith.constant 0 : i32
    %c0_i32_1 = arith.constant 0 : i32
    return %arg0, %c0_i32, %c0_i32_0 : i32, i32, i32
  }
}

</mosaic_0001>

<llo_original>
// kernel: conv_classifier_forward.1
$region0: #{conv_classifier_forward.1}
  #allocation0 [shape = 'u32[]', space=smem, size = 0x4, offset = 0x4, fixed_abs, tag = 'smem constant byte address 0x4 - core index']
  #allocation1 [shape = 'u32[72,128]{1,0:T(1,128)}', space=vmem, size = 0x9000, scoped, tag = 'internal scratch']
  %s0 = inlined_call_operand.vmem [shape: bf16[2,2,2,288,16], index: 0, kind: input, shape index: {}]
  %s1 = inlined_call_operand.vmem [shape: bf16[5,16,32], index: 1, kind: input, shape index: {}]
  %s2 = inlined_call_operand.vmem [shape: f32[1,32], index: 2, kind: input, shape index: {}]
  %s3 = inlined_call_operand.vmem [shape: bf16[25,32,64], index: 3, kind: input, shape index: {}]
  %s4 = inlined_call_operand.vmem [shape: f32[1,64], index: 4, kind: input, shape index: {}]
  %s5 = inlined_call_operand.vmem [shape: bf16[25,64,128], index: 5, kind: input, shape index: {}]
  %s6 = inlined_call_operand.vmem [shape: f32[1,128], index: 6, kind: input, shape index: {}]
  %s7 = inlined_call_operand.vmem [shape: bf16[128,64], index: 7, kind: input, shape index: {}]
  %s8 = inlined_call_operand.vmem [shape: f32[1,64], index: 8, kind: input, shape index: {}]
  %s9 = inlined_call_operand.vmem [shape: bf16[64,34], index: 9, kind: input, shape index: {}]
  %s10 = inlined_call_operand.vmem [shape: f32[1,34], index: 10, kind: input, shape index: {}]
  %s11 = inlined_call_operand.hbm [shape: f32[2,1,34], index: 11, kind: output, shape index: {}]
  %s12 = sld [smem:[#allocation0]]
  $region77: #{conv_classifier_forward.1} parent=0
    _
  %s14 = ssub.s32 1, %s12
  %s15 = scalar_select 0, %s14, %s12
  $region1: #{conv_classifier_forward.1} parent=0
    #allocation2 [shape = 'u8[1024]{0}', space=vmem, size = 0x400, scoped, tag = 'output window, operand 0']
    #allocation3 [shape = 's32[2]{0}', space=sflag, size = 0x8, scoped, tag = 'scoped memory for conv_classifier_forward.1']
    %16 = vsyncpa [#allocation3], 0
    %s17 = scalar_lea.sflag [#allocation3], 1
    %18 = vsyncpa %s17, 0
    loop: start=0, step=1, limit=4
    $region2: #{conv_classifier_forward.1} parent=1 // loop_pre_header
      _
    $region3: #{conv_classifier_forward.1} parent=1 // loop_header
      %s20 = sphi 0, %s24
      %p21 = scmp.ge.s32.totalorder %s20, 4
      %s30 = sphi 0, %s32
      %s33 = sphi 0, %s30
      %s34 = sphi 0, %s33
      %s50 = sphi 0, %s34
      %s54 = sphi 0, %s54
      %s56 = sphi 0, %s54
      %s57 = sphi 0, %s56
      %s71 = sphi 0, %s57
      %s75 = sphi 0, %s75
      %s77 = sphi 0, %s75
      %s78 = sphi 0, %s77
      %s92 = sphi 0, %s78
      %s96 = sphi 0, %s96
      %s98 = sphi 0, %s96
      %s99 = sphi 0, %s98
      %s113 = sphi 0, %s99
      %s117 = sphi 0, %s117
      %s119 = sphi 0, %s117
      %s120 = sphi 0, %s119
      %s134 = sphi 0, %s120
      %s138 = sphi 0, %s138
      %s140 = sphi 0, %s138
      %s141 = sphi 0, %s140
      %s155 = sphi 0, %s141
      %s159 = sphi 0, %s159
      %s161 = sphi 0, %s159
      %s162 = sphi 0, %s161
      %s176 = sphi 0, %s162
      %s180 = sphi 0, %s180
      %s182 = sphi 0, %s180
      %s183 = sphi 0, %s182
      %s197 = sphi 0, %s183
      %s201 = sphi 0, %s201
      %s203 = sphi 0, %s201
      %s204 = sphi 0, %s203
      %s218 = sphi 0, %s204
      %s222 = sphi 0, %s222
      %s224 = sphi 0, %s222
      %s225 = sphi 0, %s224
      %s239 = sphi 0, %s225
      %s243 = sphi 0, %s243
      %s245 = sphi 0, %s243
      %s246 = sphi 0, %s245
      %s260 = sphi 0, %s246
      %s266 = sphi 0, %s268
      %s269 = sphi 0, %s266
      %s270 = sphi 0, %s269
      %s286 = sphi 0, %s270
    $region4: #{conv_classifier_forward.1} parent=1 // loop_header_branch
      %23 = sbr.rel (%p21) target = $region8
    $region5: #{conv_classifier_forward.1} parent=1 // loop_body
      %s25 = ssub.s32 %s20, 1
      %s26 = ssub.s32 %s20, 2
      %s27 = sadd.s32 %s20, 1
      %s28 = ssub.s32 %s20, %s27
      %p29 = scmp.eq.s32.totalorder %s28, 0
      %s31 = sadd.s32 %s30, 1
      %s32 = scalar_select %p29, %s30, %s31
      %p35 = pneg %p29
      %p36 = scmp.eq.s32.totalorder %s20, 1
      %p37 = por %p35, %p36
      %p38 = scmp.ne.s32.totalorder %s30, %s33
      %p39 = scmp.eq.s32.totalorder %s20, 0
      %p40 = por %p38, %p39
      %p41 = scmp.ne.s32.totalorder %s30, %s33
      %p42 = scmp.eq.s32.totalorder %s25, 1
      %p43 = por %p41, %p42
      %p44 = scmp.ne.s32.totalorder %s33, %s34
      %p45 = scmp.eq.s32.totalorder %s25, 0
      %p46 = por %p44, %p45
      %p47 = scmp.ne.s32.totalorder %s33, %s34
      %p48 = scmp.eq.s32.totalorder %s26, 1
      %p49 = por %p47, %p48
      %p51 = scmp.ne.s32.totalorder %s34, %s50
      %p52 = scmp.eq.s32.totalorder %s26, 0
      %p53 = por %p51, %p52
      %s55 = sadd.s32 %s54, 1
      %p58 = scmp.eq.s32.totalorder %s20, 1
      %p59 = scmp.ne.s32.totalorder %s54, %s56
      %p60 = scmp.eq.s32.totalorder %s20, 0
      %p61 = por %p59, %p60
      %p62 = scmp.ne.s32.totalorder %s54, %s56
      %p63 = scmp.eq.s32.totalorder %s25, 1
      %p64 = por %p62, %p63
      %p65 = scmp.ne.s32.totalorder %s56, %s57
      %p66 = scmp.eq.s32.totalorder %s25, 0
      %p67 = por %p65, %p66
      %p68 = scmp.ne.s32.totalorder %s56, %s57
      %p69 = scmp.eq.s32.totalorder %s26, 1
      %p70 = por %p68, %p69
      %p72 = scmp.ne.s32.totalorder %s57, %s71
      %p73 = scmp.eq.s32.totalorder %s26, 0
      %p74 = por %p72, %p73
      %s76 = sadd.s32 %s75, 1
      %p79 = scmp.eq.s32.totalorder %s20, 1
      %p80 = scmp.ne.s32.totalorder %s75, %s77
      %p81 = scmp.eq.s32.totalorder %s20, 0
      %p82 = por %p80, %p81
      %p83 = scmp.ne.s32.totalorder %s75, %s77
      %p84 = scmp.eq.s32.totalorder %s25, 1
      %p85 = por %p83, %p84
      %p86 = scmp.ne.s32.totalorder %s77, %s78
      %p87 = scmp.eq.s32.totalorder %s25, 0
      %p88 = por %p86, %p87
      %p89 = scmp.ne.s32.totalorder %s77, %s78
      %p90 = scmp.eq.s32.totalorder %s26, 1
      %p91 = por %p89, %p90
      %p93 = scmp.ne.s32.totalorder %s78, %s92
      %p94 = scmp.eq.s32.totalorder %s26, 0
      %p95 = por %p93, %p94
      %s97 = sadd.s32 %s96, 1
      %p100 = scmp.eq.s32.totalorder %s20, 1
      %p101 = scmp.ne.s32.totalorder %s96, %s98
      %p102 = scmp.eq.s32.totalorder %s20, 0
      %p103 = por %p101, %p102
      %p104 = scmp.ne.s32.totalorder %s96, %s98
      %p105 = scmp.eq.s32.totalorder %s25, 1
      %p106 = por %p104, %p105
      %p107 = scmp.ne.s32.totalorder %s98, %s99
      %p108 = scmp.eq.s32.totalorder %s25, 0
      %p109 = por %p107, %p108
      %p110 = scmp.ne.s32.totalorder %s98, %s99
      %p111 = scmp.eq.s32.totalorder %s26, 1
      %p112 = por %p110, %p111
      %p114 = scmp.ne.s32.totalorder %s99, %s113
      %p115 = scmp.eq.s32.totalorder %s26, 0
      %p116 = por %p114, %p115
      %s118 = sadd.s32 %s117, 1
      %p121 = scmp.eq.s32.totalorder %s20, 1
      %p122 = scmp.ne.s32.totalorder %s117, %s119
      %p123 = scmp.eq.s32.totalorder %s20, 0
      %p124 = por %p122, %p123
      %p125 = scmp.ne.s32.totalorder %s117, %s119
      %p126 = scmp.eq.s32.totalorder %s25, 1
      %p127 = por %p125, %p126
      %p128 = scmp.ne.s32.totalorder %s119, %s120
      %p129 = scmp.eq.s32.totalorder %s25, 0
      %p130 = por %p128, %p129
      %p131 = scmp.ne.s32.totalorder %s119, %s120
      %p132 = scmp.eq.s32.totalorder %s26, 1
      %p133 = por %p131, %p132
      %p135 = scmp.ne.s32.totalorder %s120, %s134
      %p136 = scmp.eq.s32.totalorder %s26, 0
      %p137 = por %p135, %p136
      %s139 = sadd.s32 %s138, 1
      %p142 = scmp.eq.s32.totalorder %s20, 1
      %p143 = scmp.ne.s32.totalorder %s138, %s140
      %p144 = scmp.eq.s32.totalorder %s20, 0
      %p145 = por %p143, %p144
      %p146 = scmp.ne.s32.totalorder %s138, %s140
      %p147 = scmp.eq.s32.totalorder %s25, 1
      %p148 = por %p146, %p147
      %p149 = scmp.ne.s32.totalorder %s140, %s141
      %p150 = scmp.eq.s32.totalorder %s25, 0
      %p151 = por %p149, %p150
      %p152 = scmp.ne.s32.totalorder %s140, %s141
      %p153 = scmp.eq.s32.totalorder %s26, 1
      %p154 = por %p152, %p153
      %p156 = scmp.ne.s32.totalorder %s141, %s155
      %p157 = scmp.eq.s32.totalorder %s26, 0
      %p158 = por %p156, %p157
      %s160 = sadd.s32 %s159, 1
      %p163 = scmp.eq.s32.totalorder %s20, 1
      %p164 = scmp.ne.s32.totalorder %s159, %s161
      %p165 = scmp.eq.s32.totalorder %s20, 0
      %p166 = por %p164, %p165
      %p167 = scmp.ne.s32.totalorder %s159, %s161
      %p168 = scmp.eq.s32.totalorder %s25, 1
      %p169 = por %p167, %p168
      %p170 = scmp.ne.s32.totalorder %s161, %s162
      %p171 = scmp.eq.s32.totalorder %s25, 0
      %p172 = por %p170, %p171
      %p173 = scmp.ne.s32.totalorder %s161, %s162
      %p174 = scmp.eq.s32.totalorder %s26, 1
      %p175 = por %p173, %p174
      %p177 = scmp.ne.s32.totalorder %s162, %s176
      %p178 = scmp.eq.s32.totalorder %s26, 0
      %p179 = por %p177, %p178
      %s181 = sadd.s32 %s180, 1
      %p184 = scmp.eq.s32.totalorder %s20, 1
      %p185 = scmp.ne.s32.totalorder %s180, %s182
      %p186 = scmp.eq.s32.totalorder %s20, 0
      %p187 = por %p185, %p186
      %p188 = scmp.ne.s32.totalorder %s180, %s182
      %p189 = scmp.eq.s32.totalorder %s25, 1
      %p190 = por %p188, %p189
      %p191 = scmp.ne.s32.totalorder %s182, %s183
      %p192 = scmp.eq.s32.totalorder %s25, 0
      %p193 = por %p191, %p192
      %p194 = scmp.ne.s32.totalorder %s182, %s183
      %p195 = scmp.eq.s32.totalorder %s26, 1
      %p196 = por %p194, %p195
      %p198 = scmp.ne.s32.totalorder %s183, %s197
      %p199 = scmp.eq.s32.totalorder %s26, 0
      %p200 = por %p198, %p199
      %s202 = sadd.s32 %s201, 1
      %p205 = scmp.eq.s32.totalorder %s20, 1
      %p206 = scmp.ne.s32.totalorder %s201, %s203
      %p207 = scmp.eq.s32.totalorder %s20, 0
      %p208 = por %p206, %p207
      %p209 = scmp.ne.s32.totalorder %s201, %s203
      %p210 = scmp.eq.s32.totalorder %s25, 1
      %p211 = por %p209, %p210
      %p212 = scmp.ne.s32.totalorder %s203, %s204
      %p213 = scmp.eq.s32.totalorder %s25, 0
      %p214 = por %p212, %p213
      %p215 = scmp.ne.s32.totalorder %s203, %s204
      %p216 = scmp.eq.s32.totalorder %s26, 1
      %p217 = por %p215, %p216
      %p219 = scmp.ne.s32.totalorder %s204, %s218
      %p220 = scmp.eq.s32.totalorder %s26, 0
      %p221 = por %p219, %p220
      %s223 = sadd.s32 %s222, 1
      %p226 = scmp.eq.s32.totalorder %s20, 1
      %p227 = scmp.ne.s32.totalorder %s222, %s224
      %p228 = scmp.eq.s32.totalorder %s20, 0
      %p229 = por %p227, %p228
      %p230 = scmp.ne.s32.totalorder %s222, %s224
      %p231 = scmp.eq.s32.totalorder %s25, 1
      %p232 = por %p230, %p231
      %p233 = scmp.ne.s32.totalorder %s224, %s225
      %p234 = scmp.eq.s32.totalorder %s25, 0
      %p235 = por %p233, %p234
      %p236 = scmp.ne.s32.totalorder %s224, %s225
      %p237 = scmp.eq.s32.totalorder %s26, 1
      %p238 = por %p236, %p237
      %p240 = scmp.ne.s32.totalorder %s225, %s239
      %p241 = scmp.eq.s32.totalorder %s26, 0
      %p242 = por %p240, %p241
      %s244 = sadd.s32 %s243, 1
      %p247 = scmp.eq.s32.totalorder %s20, 1
      %p248 = scmp.ne.s32.totalorder %s243, %s245
      %p249 = scmp.eq.s32.totalorder %s20, 0
      %p250 = por %p248, %p249
      %p251 = scmp.ne.s32.totalorder %s243, %s245
      %p252 = scmp.eq.s32.totalorder %s25, 1
      %p253 = por %p251, %p252
      %p254 = scmp.ne.s32.totalorder %s245, %s246
      %p255 = scmp.eq.s32.totalorder %s25, 0
      %p256 = por %p254, %p255
      %p257 = scmp.ne.s32.totalorder %s245, %s246
      %p258 = scmp.eq.s32.totalorder %s26, 1
      %p259 = por %p257, %p258
      %p261 = scmp.ne.s32.totalorder %s246, %s260
      %p262 = scmp.eq.s32.totalorder %s26, 0
      %p263 = por %p261, %p262
      %s264 = ssub.s32 %s20, %s27
      %p265 = scmp.eq.s32.totalorder %s264, 0
      %s267 = sadd.s32 %s266, 1
      %s268 = scalar_select %p265, %s266, %s267
      %p271 = pneg %p265
      %p272 = scmp.eq.s32.totalorder %s20, 1
      %p273 = por %p271, %p272
      %p274 = scmp.ne.s32.totalorder %s266, %s269
      %p275 = scmp.eq.s32.totalorder %s20, 0
      %p276 = por %p274, %p275
      %p277 = scmp.ne.s32.totalorder %s266, %s269
      %p278 = scmp.eq.s32.totalorder %s25, 1
      %p279 = por %p277, %p278
      %p280 = scmp.ne.s32.totalorder %s269, %s270
      %p281 = scmp.eq.s32.totalorder %s25, 0
      %p282 = por %p280, %p281
      %p283 = scmp.ne.s32.totalorder %s269, %s270
      %p284 = scmp.eq.s32.totalorder %s26, 1
      %p285 = por %p283, %p284
      %p287 = scmp.ne.s32.totalorder %s270, %s286
      %p288 = scmp.eq.s32.totalorder %s26, 0
      %p289 = por %p287, %p288
      %p290 = scmp.le.s32.totalorder 1, %s20
      %p291 = scmp.lt.s32.totalorder %s20, 3
      %p292 = pnand %p290, %p291
      %p293 = pneg %p292
      // Predicated region
      $region9: #{conv_classifier_forward.1} parent=5 // pred_check
        _
      $region10: #{conv_classifier_forward.1} parent=5 // pred_check_branch
        %295 = sbr.rel (%p292) target = $region12
      $region11: #{conv_classifier_forward.1} parent=5 // pred_region
        %s296 = ssub.s32 %s20, 1
        // Predicated region
        $region13: #{conv_classifier_forward.1} parent=11 // pred_check
          %p297 = pneg %p67
        $region14: #{conv_classifier_forward.1} parent=11 // pred_check_branch
          %299 = sbr.rel (%p297) target = $region16
        $region15: #{conv_classifier_forward.1} parent=11 // pred_region
          _
        $region16: #{conv_classifier_forward.1} parent=11 // pred_fallthru
          _
        // Predicated region
        $region17: #{conv_classifier_forward.1} parent=11 // pred_check
          %p300 = pneg %p88
        $region18: #{conv_classifier_forward.1} parent=11 // pred_check_branch
          %302 = sbr.rel (%p300) target = $region20
        $region19: #{conv_classifier_forward.1} parent=11 // pred_region
          _
        $region20: #{conv_classifier_forward.1} parent=11 // pred_fallthru
          _
        // Predicated region
        $region21: #{conv_classifier_forward.1} parent=11 // pred_check
          %p303 = pneg %p109
        $region22: #{conv_classifier_forward.1} parent=11 // pred_check_branch
          %305 = sbr.rel (%p303) target = $region24
        $region23: #{conv_classifier_forward.1} parent=11 // pred_region
          _
        $region24: #{conv_classifier_forward.1} parent=11 // pred_fallthru
          _
        // Predicated region
        $region25: #{conv_classifier_forward.1} parent=11 // pred_check
          %p306 = pneg %p130
        $region26: #{conv_classifier_forward.1} parent=11 // pred_check_branch
          %308 = sbr.rel (%p306) target = $region28
        $region27: #{conv_classifier_forward.1} parent=11 // pred_region
          _
        $region28: #{conv_classifier_forward.1} parent=11 // pred_fallthru
          _
        // Predicated region
        $region29: #{conv_classifier_forward.1} parent=11 // pred_check
          %p309 = pneg %p151
        $region30: #{conv_classifier_forward.1} parent=11 // pred_check_branch
          %311 = sbr.rel (%p309) target = $region32
        $region31: #{conv_classifier_forward.1} parent=11 // pred_region
          _
        $region32: #{conv_classifier_forward.1} parent=11 // pred_fallthru
          _
        // Predicated region
        $region33: #{conv_classifier_forward.1} parent=11 // pred_check
          %p312 = pneg %p172
        $region34: #{conv_classifier_forward.1} parent=11 // pred_check_branch
          %314 = sbr.rel (%p312) target = $region36
        $region35: #{conv_classifier_forward.1} parent=11 // pred_region
          _
        $region36: #{conv_classifier_forward.1} parent=11 // pred_fallthru
          _
        // Predicated region
        $region37: #{conv_classifier_forward.1} parent=11 // pred_check
          %p315 = pneg %p193
        $region38: #{conv_classifier_forward.1} parent=11 // pred_check_branch
          %317 = sbr.rel (%p315) target = $region40
        $region39: #{conv_classifier_forward.1} parent=11 // pred_region
          _
        $region40: #{conv_classifier_forward.1} parent=11 // pred_fallthru
          _
        // Predicated region
        $region41: #{conv_classifier_forward.1} parent=11 // pred_check
          %p318 = pneg %p214
        $region42: #{conv_classifier_forward.1} parent=11 // pred_check_branch
          %320 = sbr.rel (%p318) target = $region44
        $region43: #{conv_classifier_forward.1} parent=11 // pred_region
          _
        $region44: #{conv_classifier_forward.1} parent=11 // pred_fallthru
          _
        // Predicated region
        $region45: #{conv_classifier_forward.1} parent=11 // pred_check
          %p321 = pneg %p235
        $region46: #{conv_classifier_forward.1} parent=11 // pred_check_branch
          %323 = sbr.rel (%p321) target = $region48
        $region47: #{conv_classifier_forward.1} parent=11 // pred_region
          _
        $region48: #{conv_classifier_forward.1} parent=11 // pred_fallthru
          _
        // Predicated region
        $region49: #{conv_classifier_forward.1} parent=11 // pred_check
          %p324 = pneg %p256
        $region50: #{conv_classifier_forward.1} parent=11 // pred_check_branch
          %326 = sbr.rel (%p324) target = $region52
        $region51: #{conv_classifier_forward.1} parent=11 // pred_region
          _
        $region52: #{conv_classifier_forward.1} parent=11 // pred_fallthru
          _
      $region12: #{conv_classifier_forward.1} parent=5 // pred_fallthru
        _
      %p327 = scmp.lt.s32.totalorder %s20, 2
      // Predicated region
      $region53: #{conv_classifier_forward.1} parent=5 // pred_check
        %p328 = pneg %p327
      $region54: #{conv_classifier_forward.1} parent=5 // pred_check_branch
        %330 = sbr.rel (%p328) target = $region56
      $region55: #{conv_classifier_forward.1} parent=5 // pred_region
        // Predicated region
        $region57: #{conv_classifier_forward.1} parent=55 // pred_check
          %p331 = pneg %p40
        $region58: #{conv_classifier_forward.1} parent=55 // pred_check_branch
          %333 = sbr.rel (%p331) target = $region60
        $region59: #{conv_classifier_forward.1} parent=55 // pred_region
          %p334 = scmp.lt.s32.totalorder %s20, 1
          %s335 = scalar_select %p334, %s20, 1
          %s336 = smul.addr %s335, 144
          %s337 = smul.addr %s336, 4
          %s338 = scalar_lea.vmem %s0, %s337
        $region60: #{conv_classifier_forward.1} parent=55 // pred_fallthru
          _
      $region56: #{conv_classifier_forward.1} parent=5 // pred_fallthru
        _
      %p339 = scmp.le.s32.totalorder 1, %s20
      %p340 = scmp.lt.s32.totalorder %s20, 3
      %p341 = pnand %p339, %p340
      %p342 = pneg %p341
      // Predicated region
      $region61: #{conv_classifier_forward.1} parent=5 // pred_check
        _
      $region62: #{conv_classifier_forward.1} parent=5 // pred_check_branch
        %344 = sbr.rel (%p341) target = $region64
      $region63: #{conv_classifier_forward.1} parent=5 // pred_region
        %s345 = ssub.s32 %s20, 1
        %p346 = scmp.lt.s32.totalorder %s25, 1
        %s347 = scalar_select %p346, %s25, 1
        %s348 = smul.addr %s347, 144
        %s349 = smul.addr %s348, 4
        %s350 = scalar_lea.vmem %s0, %s349
        %p351 = pneg %p46
        %p352 = pneg %p43
        %p353 = pneg %p67
        %p354 = pneg %p64
        %p355 = pneg %p88
        %p356 = pneg %p85
        %p357 = pneg %p109
        %p358 = pneg %p106
        %p359 = pneg %p130
        %p360 = pneg %p127
        %p361 = pneg %p151
        %p362 = pneg %p148
        %p363 = pneg %p172
        %p364 = pneg %p169
        %p365 = pneg %p193
        %p366 = pneg %p190
        %p367 = pneg %p214
        %p368 = pneg %p211
        %p369 = pneg %p235
        %p370 = pneg %p232
        %p371 = pneg %p256
        %p372 = pneg %p253
        %p373 = pneg %p282
        %p374 = pneg %p279
        %s375 = sand.u32 %s269, 1
        %s376 = scalar_lea.sflag [#allocation3], %s375
        %s377 = sand.u32 %s269, 1
        %s378 = scalar_lea.vmem [#allocation2], %s377
        %p379 = scmp.lt.s32.totalorder %s25, 1
        %s380 = scalar_select %p379, %s25, 1
        %s381 = smul.addr %s380, 144
        %s382 = smul.addr %s381, 4
        %s383 = scalar_lea.vmem %s0, %s382
        %v385 = vld [vmem:[%s383] sm:$0xf]
        %v386 = vld [vmem:[%s383 + $0x4] sm:$0xf]
        %v387 = vld [vmem:[%s383 + $0x8] sm:$0xf]
        %v388 = vld [vmem:[%s383 + $0xc] sm:$0xf]
        %v389 = vld [vmem:[%s383 + $0x10] sm:$0xf]
        %v390 = vld [vmem:[%s383 + $0x14] sm:$0xf]
        %v391 = vld [vmem:[%s383 + $0x18] sm:$0xf]
        %v392 = vld [vmem:[%s383 + $0x1c] sm:$0xf]
        %v393 = vld [vmem:[%s383 + $0x20] sm:$0xf]
        %v394 = vld [vmem:[%s383 + $0x24] sm:$0xf]
        %v395 = vld [vmem:[%s383 + $0x28] sm:$0xf]
        %v396 = vld [vmem:[%s383 + $0x2c] sm:$0xf]
        %v397 = vld [vmem:[%s383 + $0x30] sm:$0xf]
        %v398 = vld [vmem:[%s383 + $0x34] sm:$0xf]
        %v399 = vld [vmem:[%s383 + $0x38] sm:$0xf]
        %v400 = vld [vmem:[%s383 + $0x3c] sm:$0xf]
        %v401 = vld [vmem:[%s383 + $0x40] sm:$0xf]
        %v402 = vld [vmem:[%s383 + $0x44] sm:$0xf]
        %v403 = vld [vmem:[%s383 + $0x48] sm:$0xf]
        %v404 = vld [vmem:[%s383 + $0x4c] sm:$0xf]
        %v405 = vld [vmem:[%s383 + $0x50] sm:$0xf]
        %v406 = vld [vmem:[%s383 + $0x54] sm:$0xf]
        %v407 = vld [vmem:[%s383 + $0x58] sm:$0xf]
        %v408 = vld [vmem:[%s383 + $0x5c] sm:$0xf]
        %v409 = vld [vmem:[%s383 + $0x60] sm:$0xf]
        %v410 = vld [vmem:[%s383 + $0x64] sm:$0xf]
        %v411 = vld [vmem:[%s383 + $0x68] sm:$0xf]
        %v412 = vld [vmem:[%s383 + $0x6c] sm:$0xf]
        %v413 = vld [vmem:[%s383 + $0x70] sm:$0xf]
        %v414 = vld [vmem:[%s383 + $0x74] sm:$0xf]
        %v415 = vld [vmem:[%s383 + $0x78] sm:$0xf]
        %v416 = vld [vmem:[%s383 + $0x7c] sm:$0xf]
        %v417 = vld [vmem:[%s383 + $0x80] sm:$0xf]
        %v418 = vld [vmem:[%s383 + $0x84] sm:$0xf]
        %s419 = scalar_lea.vmem %s383, 144
        %v420 = vld [vmem:[%s419] sm:$0xf]
        %v421 = vld [vmem:[%s419 + $0x4] sm:$0xf]
        %v422 = vld [vmem:[%s419 + $0x8] sm:$0xf]
        %v423 = vld [vmem:[%s419 + $0xc] sm:$0xf]
        %v424 = vld [vmem:[%s419 + $0x10] sm:$0xf]
        %v425 = vld [vmem:[%s419 + $0x14] sm:$0xf]
        %v426 = vld [vmem:[%s419 + $0x18] sm:$0xf]
        %v427 = vld [vmem:[%s419 + $0x1c] sm:$0xf]
        %v428 = vld [vmem:[%s419 + $0x20] sm:$0xf]
        %v429 = vld [vmem:[%s419 + $0x24] sm:$0xf]
        %v430 = vld [vmem:[%s419 + $0x28] sm:$0xf]
        %v431 = vld [vmem:[%s419 + $0x2c] sm:$0xf]
        %v432 = vld [vmem:[%s419 + $0x30] sm:$0xf]
        %v433 = vld [vmem:[%s419 + $0x34] sm:$0xf]
        %v434 = vld [vmem:[%s419 + $0x38] sm:$0xf]
        %v435 = vld [vmem:[%s419 + $0x3c] sm:$0xf]
        %v436 = vld [vmem:[%s419 + $0x40] sm:$0xf]
        %v437 = vld [vmem:[%s419 + $0x44] sm:$0xf]
        %v438 = vld [vmem:[%s419 + $0x48] sm:$0xf]
        %v439 = vld [vmem:[%s419 + $0x4c] sm:$0xf]
        %v440 = vld [vmem:[%s419 + $0x50] sm:$0xf]
        %v441 = vld [vmem:[%s419 + $0x54] sm:$0xf]
        %v442 = vld [vmem:[%s419 + $0x58] sm:$0xf]
        %v443 = vld [vmem:[%s419 + $0x5c] sm:$0xf]
        %v444 = vld [vmem:[%s419 + $0x60] sm:$0xf]
        %v445 = vld [vmem:[%s419 + $0x64] sm:$0xf]
        %v446 = vld [vmem:[%s419 + $0x68] sm:$0xf]
        %v447 = vld [vmem:[%s419 + $0x6c] sm:$0xf]
        %v448 = vld [vmem:[%s419 + $0x70] sm:$0xf]
        %v449 = vld [vmem:[%s419 + $0x74] sm:$0xf]
        %v450 = vld [vmem:[%s419 + $0x78] sm:$0xf]
        %v451 = vld [vmem:[%s419 + $0x7c] sm:$0xf]
        %v452 = vld [vmem:[%s419 + $0x80] sm:$0xf]
        %v453 = vld [vmem:[%s419 + $0x84] sm:$0xf]
        %s454 = scalar_lea.vmem %s383, 288
        %v455 = vld [vmem:[%s454] sm:$0xf]
        %v456 = vld [vmem:[%s454 + $0x4] sm:$0xf]
        %v457 = vld [vmem:[%s454 + $0x8] sm:$0xf]
        %v458 = vld [vmem:[%s454 + $0xc] sm:$0xf]
        %v459 = vld [vmem:[%s454 + $0x10] sm:$0xf]
        %v460 = vld [vmem:[%s454 + $0x14] sm:$0xf]
        %v461 = vld [vmem:[%s454 + $0x18] sm:$0xf]
        %v462 = vld [vmem:[%s454 + $0x1c] sm:$0xf]
        %v463 = vld [vmem:[%s454 + $0x20] sm:$0xf]
        %v464 = vld [vmem:[%s454 + $0x24] sm:$0xf]
        %v465 = vld [vmem:[%s454 + $0x28] sm:$0xf]
        %v466 = vld [vmem:[%s454 + $0x2c] sm:$0xf]
        %v467 = vld [vmem:[%s454 + $0x30] sm:$0xf]
        %v468 = vld [vmem:[%s454 + $0x34] sm:$0xf]
        %v469 = vld [vmem:[%s454 + $0x38] sm:$0xf]
        %v470 = vld [vmem:[%s454 + $0x3c] sm:$0xf]
        %v471 = vld [vmem:[%s454 + $0x40] sm:$0xf]
        %v472 = vld [vmem:[%s454 + $0x44] sm:$0xf]
        %v473 = vld [vmem:[%s454 + $0x48] sm:$0xf]
        %v474 = vld [vmem:[%s454 + $0x4c] sm:$0xf]
        %v475 = vld [vmem:[%s454 + $0x50] sm:$0xf]
        %v476 = vld [vmem:[%s454 + $0x54] sm:$0xf]
        %v477 = vld [vmem:[%s454 + $0x58] sm:$0xf]
        %v478 = vld [vmem:[%s454 + $0x5c] sm:$0xf]
        %v479 = vld [vmem:[%s454 + $0x60] sm:$0xf]
        %v480 = vld [vmem:[%s454 + $0x64] sm:$0xf]
        %v481 = vld [vmem:[%s454 + $0x68] sm:$0xf]
        %v482 = vld [vmem:[%s454 + $0x6c] sm:$0xf]
        %v483 = vld [vmem:[%s454 + $0x70] sm:$0xf]
        %v484 = vld [vmem:[%s454 + $0x74] sm:$0xf]
        %v485 = vld [vmem:[%s454 + $0x78] sm:$0xf]
        %v486 = vld [vmem:[%s454 + $0x7c] sm:$0xf]
        %v487 = vld [vmem:[%s454 + $0x80] sm:$0xf]
        %v488 = vld [vmem:[%s454 + $0x84] sm:$0xf]
        %s489 = scalar_lea.vmem %s383, 432
        %v490 = vld [vmem:[%s489] sm:$0xf]
        %v491 = vld [vmem:[%s489 + $0x4] sm:$0xf]
        %v492 = vld [vmem:[%s489 + $0x8] sm:$0xf]
        %v493 = vld [vmem:[%s489 + $0xc] sm:$0xf]
        %v494 = vld [vmem:[%s489 + $0x10] sm:$0xf]
        %v495 = vld [vmem:[%s489 + $0x14] sm:$0xf]
        %v496 = vld [vmem:[%s489 + $0x18] sm:$0xf]
        %v497 = vld [vmem:[%s489 + $0x1c] sm:$0xf]
        %v498 = vld [vmem:[%s489 + $0x20] sm:$0xf]
        %v499 = vld [vmem:[%s489 + $0x24] sm:$0xf]
        %v500 = vld [vmem:[%s489 + $0x28] sm:$0xf]
        %v501 = vld [vmem:[%s489 + $0x2c] sm:$0xf]
        %v502 = vld [vmem:[%s489 + $0x30] sm:$0xf]
        %v503 = vld [vmem:[%s489 + $0x34] sm:$0xf]
        %v504 = vld [vmem:[%s489 + $0x38] sm:$0xf]
        %v505 = vld [vmem:[%s489 + $0x3c] sm:$0xf]
        %v506 = vld [vmem:[%s489 + $0x40] sm:$0xf]
        %v507 = vld [vmem:[%s489 + $0x44] sm:$0xf]
        %v508 = vld [vmem:[%s489 + $0x48] sm:$0xf]
        %v509 = vld [vmem:[%s489 + $0x4c] sm:$0xf]
        %v510 = vld [vmem:[%s489 + $0x50] sm:$0xf]
        %v511 = vld [vmem:[%s489 + $0x54] sm:$0xf]
        %v512 = vld [vmem:[%s489 + $0x58] sm:$0xf]
        %v513 = vld [vmem:[%s489 + $0x5c] sm:$0xf]
        %v514 = vld [vmem:[%s489 + $0x60] sm:$0xf]
        %v515 = vld [vmem:[%s489 + $0x64] sm:$0xf]
        %v516 = vld [vmem:[%s489 + $0x68] sm:$0xf]
        %v517 = vld [vmem:[%s489 + $0x6c] sm:$0xf]
        %v518 = vld [vmem:[%s489 + $0x70] sm:$0xf]
        %v519 = vld [vmem:[%s489 + $0x74] sm:$0xf]
        %v520 = vld [vmem:[%s489 + $0x78] sm:$0xf]
        %v521 = vld [vmem:[%s489 + $0x7c] sm:$0xf]
        %v522 = vld [vmem:[%s489 + $0x80] sm:$0xf]
        %v523 = vld [vmem:[%s489 + $0x84] sm:$0xf]
        %v524 = vld [vmem:[%s1] sm:$0xf]
        %v525 = vld [vmem:[%s1 + $0x4] sm:$0xf]
        %s526 = scalar_lea.vmem %s1, 8
        %v527 = vld [vmem:[%s526] sm:$0xf]
        %v528 = vld [vmem:[%s526 + $0x4] sm:$0xf]
        %v559 = vunpack.c.l.b16 %v455
        %v560 = vunpack.c.l.b16 %v456
        %v561 = vunpack.c.l.b16 %v457
        %v562 = vunpack.c.l.b16 %v458
        %v563 = vunpack.c.l.b16 %v459
        %v564 = vunpack.c.l.b16 %v460
        %v565 = vunpack.c.l.b16 %v461
        %v566 = vunpack.c.l.b16 %v462
        %v567 = vunpack.c.l.b16 %v463
        %v568 = vunpack.c.l.b16 %v464
        %v569 = vunpack.c.l.b16 %v465
        %v570 = vunpack.c.l.b16 %v466
        %v571 = vunpack.c.l.b16 %v467
        %v572 = vunpack.c.l.b16 %v468
        %v573 = vunpack.c.l.b16 %v469
        %v574 = vunpack.c.l.b16 %v470
        %v575 = vunpack.c.l.b16 %v471
        %v576 = vunpack.c.l.b16 %v472
        %v577 = vunpack.c.l.b16 %v473
        %v578 = vunpack.c.l.b16 %v474
        %v579 = vunpack.c.l.b16 %v475
        %v580 = vunpack.c.l.b16 %v476
        %v581 = vunpack.c.l.b16 %v477
        %v582 = vunpack.c.l.b16 %v478
        %v583 = vunpack.c.l.b16 %v479
        %v584 = vunpack.c.l.b16 %v480
        %v585 = vunpack.c.l.b16 %v481
        %v586 = vunpack.c.l.b16 %v482
        %v587 = vunpack.c.l.b16 %v483
        %v588 = vunpack.c.l.b16 %v484
        %v589 = vpack.c.b16 %v560, %v559
        %v590 = vpack.c.b16 %v562, %v561
        %v591 = vpack.c.b16 %v564, %v563
        %v592 = vpack.c.b16 %v566, %v565
        %v593 = vpack.c.b16 %v568, %v567
        %v594 = vpack.c.b16 %v570, %v569
        %v595 = vpack.c.b16 %v572, %v571
        %v596 = vpack.c.b16 %v574, %v573
        %v597 = vpack.c.b16 %v576, %v575
        %v598 = vpack.c.b16 %v578, %v577
        %v599 = vpack.c.b16 %v580, %v579
        %v600 = vpack.c.b16 %v582, %v581
        %v601 = vpack.c.b16 %v584, %v583
        %v602 = vpack.c.b16 %v586, %v585
        %v603 = vpack.c.b16 %v588, %v587
        %v606 = vunpack.c.l.b16 %v527
        %v607 = vunpack.c.l.b16 %v528
        %v608 = vpack.c.b16 %v607, %v606
        %vm610 = vcmask 130048
        %v612 = vsel %vm610, %v589, 0
        %v615 = vsel %vm610, %v590, 0
        %v618 = vsel %vm610, %v591, 0
        %v621 = vsel %vm610, %v592, 0
        %v624 = vsel %vm610, %v593, 0
        %v627 = vsel %vm610, %v594, 0
        %v630 = vsel %vm610, %v595, 0
        %v633 = vsel %vm610, %v596, 0
        %v636 = vsel %vm610, %v597, 0
        %v639 = vsel %vm610, %v598, 0
        %v642 = vsel %vm610, %v599, 0
        %v645 = vsel %vm610, %v600, 0
        %v648 = vsel %vm610, %v601, 0
        %v651 = vsel %vm610, %v602, 0
        %v654 = vsel %vm610, %v603, 0
        %656 = vmatpush.bf16.msra.mxu0 0
        %657 = vmatpush.bf16.msra.mxu0 0
        %658 = vmatpush.bf16.msra.mxu0 0
        %659 = vmatpush.bf16.msra.mxu0 0
        %660 = vmatpush.bf16.msra.mxu0 0
        %661 = vmatpush.bf16.msra.mxu0 0
        %662 = vmatpush.bf16.msra.mxu0 0
        %663 = vmatpush.bf16.msra.mxu0 %v608
        %664 = vmatmul.bf16.gmra.mxu0 %v612
        %v665 = vpop.f32.mrf.mxu0
        %v666 = vadd.f32 0.0, %v665
        %v667 = vpop.f32.mrf.mxu0
        %v668 = vadd.f32 0.0, %v667
        %669 = vmatmul.bf16.gmra.mxu0 %v615
        %v670 = vpop.f32.mrf.mxu0
        %v671 = vadd.f32 0.0, %v670
        %v672 = vpop.f32.mrf.mxu0
        %v673 = vadd.f32 0.0, %v672
        %674 = vmatmul.bf16.gmra.mxu0 %v618
        %v675 = vpop.f32.mrf.mxu0
        %v676 = vadd.f32 0.0, %v675
        %v677 = vpop.f32.mrf.mxu0
        %v678 = vadd.f32 0.0, %v677
        %679 = vmatmul.bf16.gmra.mxu0 %v621
        %v680 = vpop.f32.mrf.mxu0
        %v681 = vadd.f32 0.0, %v680
        %v682 = vpop.f32.mrf.mxu0
        %v683 = vadd.f32 0.0, %v682
        %684 = vmatmul.bf16.gmra.mxu0 %v624
        %v685 = vpop.f32.mrf.mxu0
        %v686 = vadd.f32 0.0, %v685
        %v687 = vpop.f32.mrf.mxu0
        %v688 = vadd.f32 0.0, %v687
        %689 = vmatmul.bf16.gmra.mxu0 %v627
        %v690 = vpop.f32.mrf.mxu0
        %v691 = vadd.f32 0.0, %v690
        %v692 = vpop.f32.mrf.mxu0
        %v693 = vadd.f32 0.0, %v692
        %694 = vmatmul.bf16.gmra.mxu0 %v630
        %v695 = vpop.f32.mrf.mxu0
        %v696 = vadd.f32 0.0, %v695
        %v697 = vpop.f32.mrf.mxu0
        %v698 = vadd.f32 0.0, %v697
        %699 = vmatmul.bf16.gmra.mxu0 %v633
        %v700 = vpop.f32.mrf.mxu0
        %v701 = vadd.f32 0.0, %v700
        %v702 = vpop.f32.mrf.mxu0
        %v703 = vadd.f32 0.0, %v702
        %704 = vmatmul.bf16.gmra.mxu0 %v636
        %v705 = vpop.f32.mrf.mxu0
        %v706 = vadd.f32 0.0, %v705
        %v707 = vpop.f32.mrf.mxu0
        %v708 = vadd.f32 0.0, %v707
        %709 = vmatmul.bf16.gmra.mxu0 %v639
        %v710 = vpop.f32.mrf.mxu0
        %v711 = vadd.f32 0.0, %v710
        %v712 = vpop.f32.mrf.mxu0
        %v713 = vadd.f32 0.0, %v712
        %714 = vmatmul.bf16.gmra.mxu0 %v642
        %v715 = vpop.f32.mrf.mxu0
        %v716 = vadd.f32 0.0, %v715
        %v717 = vpop.f32.mrf.mxu0
        %v718 = vadd.f32 0.0, %v717
        %719 = vmatmul.bf16.gmra.mxu0 %v645
        %v720 = vpop.f32.mrf.mxu0
        %v721 = vadd.f32 0.0, %v720
        %v722 = vpop.f32.mrf.mxu0
        %v723 = vadd.f32 0.0, %v722
        %724 = vmatmul.bf16.gmra.mxu0 %v648
        %v725 = vpop.f32.mrf.mxu0
        %v726 = vadd.f32 0.0, %v725
        %v727 = vpop.f32.mrf.mxu0
        %v728 = vadd.f32 0.0, %v727
        %729 = vmatmul.bf16.gmra.mxu0 %v651
        %v730 = vpop.f32.mrf.mxu0
        %v731 = vadd.f32 0.0, %v730
        %v732 = vpop.f32.mrf.mxu0
        %v733 = vadd.f32 0.0, %v732
        %734 = vmatmul.bf16.gmra.mxu0 %v654
        %v735 = vpop.f32.mrf.mxu0
        %v736 = vadd.f32 0.0, %v735
        %v737 = vpop.f32.mrf.mxu0
        %738 = vdwg.mxu0
        %v769 = vunpack.c.l.b16 %v385
        %v770 = vunpack.c.l.b16 %v386
        %v771 = vunpack.c.l.b16 %v387
        %v772 = vunpack.c.l.b16 %v388
        %v773 = vunpack.c.l.b16 %v389
        %v774 = vunpack.c.l.b16 %v390
        %v775 = vunpack.c.l.b16 %v391
        %v776 = vunpack.c.l.b16 %v392
        %v777 = vunpack.c.l.b16 %v393
        %v778 = vunpack.c.l.b16 %v394
        %v779 = vunpack.c.l.b16 %v395
        %v780 = vunpack.c.l.b16 %v396
        %v781 = vunpack.c.l.b16 %v397
        %v782 = vunpack.c.l.b16 %v398
        %v783 = vunpack.c.l.b16 %v399
        %v784 = vunpack.c.l.b16 %v400
        %v785 = vunpack.c.l.b16 %v401
        %v786 = vunpack.c.l.b16 %v402
        %v787 = vunpack.c.l.b16 %v403
        %v788 = vunpack.c.l.b16 %v404
        %v789 = vunpack.c.l.b16 %v405
        %v790 = vunpack.c.l.b16 %v406
        %v791 = vunpack.c.l.b16 %v407
        %v792 = vunpack.c.l.b16 %v408
        %v793 = vunpack.c.l.b16 %v409
        %v794 = vunpack.c.l.b16 %v410
        %v795 = vunpack.c.l.b16 %v411
        %v796 = vunpack.c.l.b16 %v412
        %v797 = vunpack.c.l.b16 %v413
        %v798 = vunpack.c.l.b16 %v414
        %v799 = vpack.c.b16 %v770, %v769
        %v800 = vpack.c.b16 %v772, %v771
        %v801 = vpack.c.b16 %v774, %v773
        %v802 = vpack.c.b16 %v776, %v775
        %v803 = vpack.c.b16 %v778, %v777
        %v804 = vpack.c.b16 %v780, %v779
        %v805 = vpack.c.b16 %v782, %v781
        %v806 = vpack.c.b16 %v784, %v783
        %v807 = vpack.c.b16 %v786, %v785
        %v808 = vpack.c.b16 %v788, %v787
        %v809 = vpack.c.b16 %v790, %v789
        %v810 = vpack.c.b16 %v792, %v791
        %v811 = vpack.c.b16 %v794, %v793
        %v812 = vpack.c.b16 %v796, %v795
        %v813 = vpack.c.b16 %v798, %v797
        %v816 = vunpack.c.l.b16 %v524
        %v817 = vunpack.c.l.b16 %v525
        %v818 = vpack.c.b16 %v817, %v816
        %v821 = vsel %vm610, %v799, 0
        %v824 = vsel %vm610, %v800, 0
        %v827 = vsel %vm610, %v801, 0
        %v830 = vsel %vm610, %v802, 0
        %v833 = vsel %vm610, %v803, 0
        %v836 = vsel %vm610, %v804, 0
        %v839 = vsel %vm610, %v805, 0
        %v842 = vsel %vm610, %v806, 0
        %v845 = vsel %vm610, %v807, 0
        %v848 = vsel %vm610, %v808, 0
        %v851 = vsel %vm610, %v809, 0
        %v854 = vsel %vm610, %v810, 0
        %v857 = vsel %vm610, %v811, 0
        %v860 = vsel %vm610, %v812, 0
        %v863 = vsel %vm610, %v813, 0
        %865 = vmatpush.bf16.msra.mxu0 0
        %866 = vmatpush.bf16.msra.mxu0 0
        %867 = vmatpush.bf16.msra.mxu0 0
        %868 = vmatpush.bf16.msra.mxu0 0
        %869 = vmatpush.bf16.msra.mxu0 0
        %870 = vmatpush.bf16.msra.mxu0 0
        %871 = vmatpush.bf16.msra.mxu0 0
        %872 = vmatpush.bf16.msra.mxu0 %v818
        %873 = vmatmul.bf16.gmra.mxu0 %v821
        %v874 = vpop.f32.mrf.mxu0
        %v875 = vadd.f32 %v666, %v874
        %v876 = vpop.f32.mrf.mxu0
        %v877 = vadd.f32 %v668, %v876
        %878 = vmatmul.bf16.gmra.mxu0 %v824
        %v879 = vpop.f32.mrf.mxu0
        %v880 = vadd.f32 %v671, %v879
        %v881 = vpop.f32.mrf.mxu0
        %v882 = vadd.f32 %v673, %v881
        %883 = vmatmul.bf16.gmra.mxu0 %v827
        %v884 = vpop.f32.mrf.mxu0
        %v885 = vadd.f32 %v676, %v884
        %v886 = vpop.f32.mrf.mxu0
        %v887 = vadd.f32 %v678, %v886
        %888 = vmatmul.bf16.gmra.mxu0 %v830
        %v889 = vpop.f32.mrf.mxu0
        %v890 = vadd.f32 %v681, %v889
        %v891 = vpop.f32.mrf.mxu0
        %v892 = vadd.f32 %v683, %v891
        %893 = vmatmul.bf16.gmra.mxu0 %v833
        %v894 = vpop.f32.mrf.mxu0
        %v895 = vadd.f32 %v686, %v894
        %v896 = vpop.f32.mrf.mxu0
        %v897 = vadd.f32 %v688, %v896
        %898 = vmatmul.bf16.gmra.mxu0 %v836
        %v899 = vpop.f32.mrf.mxu0
        %v900 = vadd.f32 %v691, %v899
        %v901 = vpop.f32.mrf.mxu0
        %v902 = vadd.f32 %v693, %v901
        %903 = vmatmul.bf16.gmra.mxu0 %v839
        %v904 = vpop.f32.mrf.mxu0
        %v905 = vadd.f32 %v696, %v904
        %v906 = vpop.f32.mrf.mxu0
        %v907 = vadd.f32 %v698, %v906
        %908 = vmatmul.bf16.gmra.mxu0 %v842
        %v909 = vpop.f32.mrf.mxu0
        %v910 = vadd.f32 %v701, %v909
        %v911 = vpop.f32.mrf.mxu0
        %v912 = vadd.f32 %v703, %v911
        %913 = vmatmul.bf16.gmra.mxu0 %v845
        %v914 = vpop.f32.mrf.mxu0
        %v915 = vadd.f32 %v706, %v914
        %v916 = vpop.f32.mrf.mxu0
        %v917 = vadd.f32 %v708, %v916
        %918 = vmatmul.bf16.gmra.mxu0 %v848
        %v919 = vpop.f32.mrf.mxu0
        %v920 = vadd.f32 %v711, %v919
        %v921 = vpop.f32.mrf.mxu0
        %v922 = vadd.f32 %v713, %v921
        %923 = vmatmul.bf16.gmra.mxu0 %v851
        %v924 = vpop.f32.mrf.mxu0
        %v925 = vadd.f32 %v716, %v924
        %v926 = vpop.f32.mrf.mxu0
        %v927 = vadd.f32 %v718, %v926
        %928 = vmatmul.bf16.gmra.mxu0 %v854
        %v929 = vpop.f32.mrf.mxu0
        %v930 = vadd.f32 %v721, %v929
        %v931 = vpop.f32.mrf.mxu0
        %v932 = vadd.f32 %v723, %v931
        %933 = vmatmul.bf16.gmra.mxu0 %v857
        %v934 = vpop.f32.mrf.mxu0
        %v935 = vadd.f32 %v726, %v934
        %v936 = vpop.f32.mrf.mxu0
        %v937 = vadd.f32 %v728, %v936
        %938 = vmatmul.bf16.gmra.mxu0 %v860
        %v939 = vpop.f32.mrf.mxu0
        %v940 = vadd.f32 %v731, %v939
        %v941 = vpop.f32.mrf.mxu0
        %v942 = vadd.f32 %v733, %v941
        %943 = vmatmul.bf16.gmra.mxu0 %v863
        %v944 = vpop.f32.mrf.mxu0
        %v945 = vadd.f32 %v736, %v944
        %v946 = vpop.f32.mrf.mxu0
        %947 = vdwg.mxu0
        %s948 = scalar_lea.vmem %s1, 16
        %v949 = vld [vmem:[%s948] sm:$0xf]
        %v950 = vld [vmem:[%s948 + $0x4] sm:$0xf]
        %v953 = vunpack.c.l.b16 %v415
        %v954 = vunpack.c.l.b16 %v416
        %v955 = vpack.c.b16 %v954, %v953
        %v958 = vunpack.c.l.b16 %v949
        %v959 = vunpack.c.l.b16 %v950
        %v960 = vpack.c.b16 %v959, %v958
        %v963 = vsel %vm610, %v955, 0
        %965 = vmatpush.bf16.msra.mxu0 0
        %966 = vmatpush.bf16.msra.mxu0 0
        %967 = vmatpush.bf16.msra.mxu0 0
        %968 = vmatpush.bf16.msra.mxu0 0
        %969 = vmatpush.bf16.msra.mxu0 0
        %970 = vmatpush.bf16.msra.mxu0 0
        %971 = vmatpush.bf16.msra.mxu0 0
        %972 = vmatpush.bf16.msra.mxu0 %v960
        %973 = vmatmul.bf16.gmra.mxu0 %v824
        %v974 = vpop.f32.mrf.mxu0
        %v975 = vadd.f32 0.0, %v974
        %v976 = vpop.f32.mrf.mxu0
        %v977 = vadd.f32 0.0, %v976
        %978 = vmatmul.bf16.gmra.mxu0 %v827
        %v979 = vpop.f32.mrf.mxu0
        %v980 = vadd.f32 0.0, %v979
        %v981 = vpop.f32.mrf.mxu0
        %v982 = vadd.f32 0.0, %v981
        %983 = vmatmul.bf16.gmra.mxu0 %v830
        %v984 = vpop.f32.mrf.mxu0
        %v985 = vadd.f32 0.0, %v984
        %v986 = vpop.f32.mrf.mxu0
        %v987 = vadd.f32 0.0, %v986
        %988 = vmatmul.bf16.gmra.mxu0 %v833
        %v989 = vpop.f32.mrf.mxu0
        %v990 = vadd.f32 0.0, %v989
        %v991 = vpop.f32.mrf.mxu0
        %v992 = vadd.f32 0.0, %v991
        %993 = vmatmul.bf16.gmra.mxu0 %v836
        %v994 = vpop.f32.mrf.mxu0
        %v995 = vadd.f32 0.0, %v994
        %v996 = vpop.f32.mrf.mxu0
        %v997 = vadd.f32 0.0, %v996
        %998 = vmatmul.bf16.gmra.mxu0 %v839
        %v999 = vpop.f32.mrf.mxu0
        %v1000 = vadd.f32 0.0, %v999
        %v1001 = vpop.f32.mrf.mxu0
        %v1002 = vadd.f32 0.0, %v1001
        %1003 = vmatmul.bf16.gmra.mxu0 %v842
        %v1004 = vpop.f32.mrf.mxu0
        %v1005 = vadd.f32 0.0, %v1004
        %v1006 = vpop.f32.mrf.mxu0
        %v1007 = vadd.f32 0.0, %v1006
        %1008 = vmatmul.bf16.gmra.mxu0 %v845
        %v1009 = vpop.f32.mrf.mxu0
        %v1010 = vadd.f32 0.0, %v1009
        %v1011 = vpop.f32.mrf.mxu0
        %v1012 = vadd.f32 0.0, %v1011
        %1013 = vmatmul.bf16.gmra.mxu0 %v848
        %v1014 = vpop.f32.mrf.mxu0
        %v1015 = vadd.f32 0.0, %v1014
        %v1016 = vpop.f32.mrf.mxu0
        %v1017 = vadd.f32 0.0, %v1016
        %1018 = vmatmul.bf16.gmra.mxu0 %v851
        %v1019 = vpop.f32.mrf.mxu0
        %v1020 = vadd.f32 0.0, %v1019
        %v1021 = vpop.f32.mrf.mxu0
        %v1022 = vadd.f32 0.0, %v1021
        %1023 = vmatmul.bf16.gmra.mxu0 %v854
        %v1024 = vpop.f32.mrf.mxu0
        %v1025 = vadd.f32 0.0, %v1024
        %v1026 = vpop.f32.mrf.mxu0
        %v1027 = vadd.f32 0.0, %v1026
        %1028 = vmatmul.bf16.gmra.mxu0 %v857
        %v1029 = vpop.f32.mrf.mxu0
        %v1030 = vadd.f32 0.0, %v1029
        %v1031 = vpop.f32.mrf.mxu0
        %v1032 = vadd.f32 0.0, %v1031
        %1033 = vmatmul.bf16.gmra.mxu0 %v860
        %v1034 = vpop.f32.mrf.mxu0
        %v1035 = vadd.f32 0.0, %v1034
        %v1036 = vpop.f32.mrf.mxu0
        %v1037 = vadd.f32 0.0, %v1036
        %1038 = vmatmul.bf16.gmra.mxu0 %v863
        %v1039 = vpop.f32.mrf.mxu0
        %v1040 = vadd.f32 0.0, %v1039
        %v1041 = vpop.f32.mrf.mxu0
        %v1042 = vadd.f32 0.0, %v1041
        %1043 = vmatmul.bf16.gmra.mxu0 %v963
        %v1044 = vpop.f32.mrf.mxu0
        %v1045 = vadd.f32 0.0, %v1044
        %v1046 = vpop.f32.mrf.mxu0
        %1047 = vdwg.mxu0
        %v1048 = vadd.f32 %v875, %v975
        %v1049 = vadd.f32 %v877, %v977
        %v1050 = vadd.f32 %v880, %v980
        %v1051 = vadd.f32 %v882, %v982
        %v1052 = vadd.f32 %v885, %v985
        %v1053 = vadd.f32 %v887, %v987
        %v1054 = vadd.f32 %v890, %v990
        %v1055 = vadd.f32 %v892, %v992
        %v1056 = vadd.f32 %v895, %v995
        %v1057 = vadd.f32 %v897, %v997
        %v1058 = vadd.f32 %v900, %v1000
        %v1059 = vadd.f32 %v902, %v1002
        %v1060 = vadd.f32 %v905, %v1005
        %v1061 = vadd.f32 %v907, %v1007
        %v1062 = vadd.f32 %v910, %v1010
        %v1063 = vadd.f32 %v912, %v1012
        %v1064 = vadd.f32 %v915, %v1015
        %v1065 = vadd.f32 %v917, %v1017
        %v1066 = vadd.f32 %v920, %v1020
        %v1067 = vadd.f32 %v922, %v1022
        %v1068 = vadd.f32 %v925, %v1025
        %v1069 = vadd.f32 %v927, %v1027
        %v1070 = vadd.f32 %v930, %v1030
        %v1071 = vadd.f32 %v932, %v1032
        %v1072 = vadd.f32 %v935, %v1035
        %v1073 = vadd.f32 %v937, %v1037
        %v1074 = vadd.f32 %v940, %v1040
        %v1075 = vadd.f32 %v942, %v1042
        %v1076 = vadd.f32 %v945, %v1045
        %s1077 = scalar_lea.vmem %s1, 24
        %v1078 = vld [vmem:[%s1077] sm:$0xf]
        %v1079 = vld [vmem:[%s1077 + $0x4] sm:$0xf]
        %v1082 = vunpack.c.l.b16 %v485
        %v1083 = vunpack.c.l.b16 %v486
        %v1084 = vpack.c.b16 %v1083, %v1082
        %v1087 = vunpack.c.l.b16 %v1078
        %v1088 = vunpack.c.l.b16 %v1079
        %v1089 = vpack.c.b16 %v1088, %v1087
        %v1092 = vsel %vm610, %v1084, 0
        %1094 = vmatpush.bf16.msra.mxu0 0
        %1095 = vmatpush.bf16.msra.mxu0 0
        %1096 = vmatpush.bf16.msra.mxu0 0
        %1097 = vmatpush.bf16.msra.mxu0 0
        %1098 = vmatpush.bf16.msra.mxu0 0
        %1099 = vmatpush.bf16.msra.mxu0 0
        %1100 = vmatpush.bf16.msra.mxu0 0
        %1101 = vmatpush.bf16.msra.mxu0 %v1089
        %1102 = vmatmul.bf16.gmra.mxu0 %v615
        %v1103 = vpop.f32.mrf.mxu0
        %v1104 = vadd.f32 0.0, %v1103
        %v1105 = vpop.f32.mrf.mxu0
        %v1106 = vadd.f32 0.0, %v1105
        %1107 = vmatmul.bf16.gmra.mxu0 %v618
        %v1108 = vpop.f32.mrf.mxu0
        %v1109 = vadd.f32 0.0, %v1108
        %v1110 = vpop.f32.mrf.mxu0
        %v1111 = vadd.f32 0.0, %v1110
        %1112 = vmatmul.bf16.gmra.mxu0 %v621
        %v1113 = vpop.f32.mrf.mxu0
        %v1114 = vadd.f32 0.0, %v1113
        %v1115 = vpop.f32.mrf.mxu0
        %v1116 = vadd.f32 0.0, %v1115
        %1117 = vmatmul.bf16.gmra.mxu0 %v624
        %v1118 = vpop.f32.mrf.mxu0
        %v1119 = vadd.f32 0.0, %v1118
        %v1120 = vpop.f32.mrf.mxu0
        %v1121 = vadd.f32 0.0, %v1120
        %1122 = vmatmul.bf16.gmra.mxu0 %v627
        %v1123 = vpop.f32.mrf.mxu0
        %v1124 = vadd.f32 0.0, %v1123
        %v1125 = vpop.f32.mrf.mxu0
        %v1126 = vadd.f32 0.0, %v1125
        %1127 = vmatmul.bf16.gmra.mxu0 %v630
        %v1128 = vpop.f32.mrf.mxu0
        %v1129 = vadd.f32 0.0, %v1128
        %v1130 = vpop.f32.mrf.mxu0
        %v1131 = vadd.f32 0.0, %v1130
        %1132 = vmatmul.bf16.gmra.mxu0 %v633
        %v1133 = vpop.f32.mrf.mxu0
        %v1134 = vadd.f32 0.0, %v1133
        %v1135 = vpop.f32.mrf.mxu0
        %v1136 = vadd.f32 0.0, %v1135
        %1137 = vmatmul.bf16.gmra.mxu0 %v636
        %v1138 = vpop.f32.mrf.mxu0
        %v1139 = vadd.f32 0.0, %v1138
        %v1140 = vpop.f32.mrf.mxu0
        %v1141 = vadd.f32 0.0, %v1140
        %1142 = vmatmul.bf16.gmra.mxu0 %v639
        %v1143 = vpop.f32.mrf.mxu0
        %v1144 = vadd.f32 0.0, %v1143
        %v1145 = vpop.f32.mrf.mxu0
        %v1146 = vadd.f32 0.0, %v1145
        %1147 = vmatmul.bf16.gmra.mxu0 %v642
        %v1148 = vpop.f32.mrf.mxu0
        %v1149 = vadd.f32 0.0, %v1148
        %v1150 = vpop.f32.mrf.mxu0
        %v1151 = vadd.f32 0.0, %v1150
        %1152 = vmatmul.bf16.gmra.mxu0 %v645
        %v1153 = vpop.f32.mrf.mxu0
        %v1154 = vadd.f32 0.0, %v1153
        %v1155 = vpop.f32.mrf.mxu0
        %v1156 = vadd.f32 0.0, %v1155
        %1157 = vmatmul.bf16.gmra.mxu0 %v648
        %v1158 = vpop.f32.mrf.mxu0
        %v1159 = vadd.f32 0.0, %v1158
        %v1160 = vpop.f32.mrf.mxu0
        %v1161 = vadd.f32 0.0, %v1160
        %1162 = vmatmul.bf16.gmra.mxu0 %v651
        %v1163 = vpop.f32.mrf.mxu0
        %v1164 = vadd.f32 0.0, %v1163
        %v1165 = vpop.f32.mrf.mxu0
        %v1166 = vadd.f32 0.0, %v1165
        %1167 = vmatmul.bf16.gmra.mxu0 %v654
        %v1168 = vpop.f32.mrf.mxu0
        %v1169 = vadd.f32 0.0, %v1168
        %v1170 = vpop.f32.mrf.mxu0
        %v1171 = vadd.f32 0.0, %v1170
        %1172 = vmatmul.bf16.gmra.mxu0 %v1092
        %v1173 = vpop.f32.mrf.mxu0
        %v1174 = vadd.f32 0.0, %v1173
        %v1175 = vpop.f32.mrf.mxu0
        %1176 = vdwg.mxu0
        %v1177 = vadd.f32 %v1048, %v1104
        %v1178 = vadd.f32 %v1049, %v1106
        %v1179 = vadd.f32 %v1050, %v1109
        %v1180 = vadd.f32 %v1051, %v1111
        %v1181 = vadd.f32 %v1052, %v1114
        %v1182 = vadd.f32 %v1053, %v1116
        %v1183 = vadd.f32 %v1054, %v1119
        %v1184 = vadd.f32 %v1055, %v1121
        %v1185 = vadd.f32 %v1056, %v1124
        %v1186 = vadd.f32 %v1057, %v1126
        %v1187 = vadd.f32 %v1058, %v1129
        %v1188 = vadd.f32 %v1059, %v1131
        %v1189 = vadd.f32 %v1060, %v1134
        %v1190 = vadd.f32 %v1061, %v1136
        %v1191 = vadd.f32 %v1062, %v1139
        %v1192 = vadd.f32 %v1063, %v1141
        %v1193 = vadd.f32 %v1064, %v1144
        %v1194 = vadd.f32 %v1065, %v1146
        %v1195 = vadd.f32 %v1066, %v1149
        %v1196 = vadd.f32 %v1067, %v1151
        %v1197 = vadd.f32 %v1068, %v1154
        %v1198 = vadd.f32 %v1069, %v1156
        %v1199 = vadd.f32 %v1070, %v1159
        %v1200 = vadd.f32 %v1071, %v1161
        %v1201 = vadd.f32 %v1072, %v1164
        %v1202 = vadd.f32 %v1073, %v1166
        %v1203 = vadd.f32 %v1074, %v1169
        %v1204 = vadd.f32 %v1075, %v1171
        %v1205 = vadd.f32 %v1076, %v1174
        %s1206 = scalar_lea.vmem %s1, 32
        %v1207 = vld [vmem:[%s1206] sm:$0xf]
        %v1208 = vld [vmem:[%s1206 + $0x4] sm:$0xf]
        %v1211 = vunpack.c.l.b16 %v417
        %v1212 = vunpack.c.l.b16 %v418
        %v1213 = vpack.c.b16 %v1212, %v1211
        %v1216 = vunpack.c.l.b16 %v1207
        %v1217 = vunpack.c.l.b16 %v1208
        %v1218 = vpack.c.b16 %v1217, %v1216
        %v1221 = vsel %vm610, %v1213, 0
        %1223 = vmatpush.bf16.msra.mxu0 0
        %1224 = vmatpush.bf16.msra.mxu0 0
        %1225 = vmatpush.bf16.msra.mxu0 0
        %1226 = vmatpush.bf16.msra.mxu0 0
        %1227 = vmatpush.bf16.msra.mxu0 0
        %1228 = vmatpush.bf16.msra.mxu0 0
        %1229 = vmatpush.bf16.msra.mxu0 0
        %1230 = vmatpush.bf16.msra.mxu0 %v1218
        %1231 = vmatmul.bf16.gmra.mxu0 %v827
        %v1232 = vpop.f32.mrf.mxu0
        %v1233 = vadd.f32 0.0, %v1232
        %v1234 = vpop.f32.mrf.mxu0
        %v1235 = vadd.f32 0.0, %v1234
        %1236 = vmatmul.bf16.gmra.mxu0 %v830
        %v1237 = vpop.f32.mrf.mxu0
        %v1238 = vadd.f32 0.0, %v1237
        %v1239 = vpop.f32.mrf.mxu0
        %v1240 = vadd.f32 0.0, %v1239
        %1241 = vmatmul.bf16.gmra.mxu0 %v833
        %v1242 = vpop.f32.mrf.mxu0
        %v1243 = vadd.f32 0.0, %v1242
        %v1244 = vpop.f32.mrf.mxu0
        %v1245 = vadd.f32 0.0, %v1244
        %1246 = vmatmul.bf16.gmra.mxu0 %v836
        %v1247 = vpop.f32.mrf.mxu0
        %v1248 = vadd.f32 0.0, %v1247
        %v1249 = vpop.f32.mrf.mxu0
        %v1250 = vadd.f32 0.0, %v1249
        %1251 = vmatmul.bf16.gmra.mxu0 %v839
        %v1252 = vpop.f32.mrf.mxu0
        %v1253 = vadd.f32 0.0, %v1252
        %v1254 = vpop.f32.mrf.mxu0
        %v1255 = vadd.f32 0.0, %v1254
        %1256 = vmatmul.bf16.gmra.mxu0 %v842
        %v1257 = vpop.f32.mrf.mxu0
        %v1258 = vadd.f32 0.0, %v1257
        %v1259 = vpop.f32.mrf.mxu0
        %v1260 = vadd.f32 0.0, %v1259
        %1261 = vmatmul.bf16.gmra.mxu0 %v845
        %v1262 = vpop.f32.mrf.mxu0
        %v1263 = vadd.f32 0.0, %v1262
        %v1264 = vpop.f32.mrf.mxu0
        %v1265 = vadd.f32 0.0, %v1264
        %1266 = vmatmul.bf16.gmra.mxu0 %v848
        %v1267 = vpop.f32.mrf.mxu0
        %v1268 = vadd.f32 0.0, %v1267
        %v1269 = vpop.f32.mrf.mxu0
        %v1270 = vadd.f32 0.0, %v1269
        %1271 = vmatmul.bf16.gmra.mxu0 %v851
        %v1272 = vpop.f32.mrf.mxu0
        %v1273 = vadd.f32 0.0, %v1272
        %v1274 = vpop.f32.mrf.mxu0
        %v1275 = vadd.f32 0.0, %v1274
        %1276 = vmatmul.bf16.gmra.mxu0 %v854
        %v1277 = vpop.f32.mrf.mxu0
        %v1278 = vadd.f32 0.0, %v1277
        %v1279 = vpop.f32.mrf.mxu0
        %v1280 = vadd.f32 0.0, %v1279
        %1281 = vmatmul.bf16.gmra.mxu0 %v857
        %v1282 = vpop.f32.mrf.mxu0
        %v1283 = vadd.f32 0.0, %v1282
        %v1284 = vpop.f32.mrf.mxu0
        %v1285 = vadd.f32 0.0, %v1284
        %1286 = vmatmul.bf16.gmra.mxu0 %v860
        %v1287 = vpop.f32.mrf.mxu0
        %v1288 = vadd.f32 0.0, %v1287
        %v1289 = vpop.f32.mrf.mxu0
        %v1290 = vadd.f32 0.0, %v1289
        %1291 = vmatmul.bf16.gmra.mxu0 %v863
        %v1292 = vpop.f32.mrf.mxu0
        %v1293 = vadd.f32 0.0, %v1292
        %v1294 = vpop.f32.mrf.mxu0
        %v1295 = vadd.f32 0.0, %v1294
        %1296 = vmatmul.bf16.gmra.mxu0 %v963
        %v1297 = vpop.f32.mrf.mxu0
        %v1298 = vadd.f32 0.0, %v1297
        %v1299 = vpop.f32.mrf.mxu0
        %v1300 = vadd.f32 0.0, %v1299
        %1301 = vmatmul.bf16.gmra.mxu0 %v1221
        %v1302 = vpop.f32.mrf.mxu0
        %v1303 = vadd.f32 0.0, %v1302
        %v1304 = vpop.f32.mrf.mxu0
        %1305 = vdwg.mxu0
        %v1306 = vadd.f32 %v1177, %v1233
        %v1307 = vadd.f32 %v1178, %v1235
        %v1308 = vadd.f32 %v1179, %v1238
        %v1309 = vadd.f32 %v1180, %v1240
        %v1310 = vadd.f32 %v1181, %v1243
        %v1311 = vadd.f32 %v1182, %v1245
        %v1312 = vadd.f32 %v1183, %v1248
        %v1313 = vadd.f32 %v1184, %v1250
        %v1314 = vadd.f32 %v1185, %v1253
        %v1315 = vadd.f32 %v1186, %v1255
        %v1316 = vadd.f32 %v1187, %v1258
        %v1317 = vadd.f32 %v1188, %v1260
        %v1318 = vadd.f32 %v1189, %v1263
        %v1319 = vadd.f32 %v1190, %v1265
        %v1320 = vadd.f32 %v1191, %v1268
        %v1321 = vadd.f32 %v1192, %v1270
        %v1322 = vadd.f32 %v1193, %v1273
        %v1323 = vadd.f32 %v1194, %v1275
        %v1324 = vadd.f32 %v1195, %v1278
        %v1325 = vadd.f32 %v1196, %v1280
        %v1326 = vadd.f32 %v1197, %v1283
        %v1327 = vadd.f32 %v1198, %v1285
        %v1328 = vadd.f32 %v1199, %v1288
        %v1329 = vadd.f32 %v1200, %v1290
        %v1330 = vadd.f32 %v1201, %v1293
        %v1331 = vadd.f32 %v1202, %v1295
        %v1332 = vadd.f32 %v1203, %v1298
        %v1333 = vadd.f32 %v1204, %v1300
        %v1334 = vadd.f32 %v1205, %v1303
        %v1365 = vunpack.c.l.b16 %v490
        %v1366 = vunpack.c.l.b16 %v491
        %v1367 = vunpack.c.l.b16 %v492
        %v1368 = vunpack.c.l.b16 %v493
        %v1369 = vunpack.c.l.b16 %v494
        %v1370 = vunpack.c.l.b16 %v495
        %v1371 = vunpack.c.l.b16 %v496
        %v1372 = vunpack.c.l.b16 %v497
        %v1373 = vunpack.c.l.b16 %v498
        %v1374 = vunpack.c.l.b16 %v499
        %v1375 = vunpack.c.l.b16 %v500
        %v1376 = vunpack.c.l.b16 %v501
        %v1377 = vunpack.c.l.b16 %v502
        %v1378 = vunpack.c.l.b16 %v503
        %v1379 = vunpack.c.l.b16 %v504
        %v1380 = vunpack.c.l.b16 %v505
        %v1381 = vunpack.c.l.b16 %v506
        %v1382 = vunpack.c.l.b16 %v507
        %v1383 = vunpack.c.l.b16 %v508
        %v1384 = vunpack.c.l.b16 %v509
        %v1385 = vunpack.c.l.b16 %v510
        %v1386 = vunpack.c.l.b16 %v511
        %v1387 = vunpack.c.l.b16 %v512
        %v1388 = vunpack.c.l.b16 %v513
        %v1389 = vunpack.c.l.b16 %v514
        %v1390 = vunpack.c.l.b16 %v515
        %v1391 = vunpack.c.l.b16 %v516
        %v1392 = vunpack.c.l.b16 %v517
        %v1393 = vunpack.c.l.b16 %v518
        %v1394 = vunpack.c.l.b16 %v519
        %v1395 = vpack.c.b16 %v1366, %v1365
        %v1396 = vpack.c.b16 %v1368, %v1367
        %v1397 = vpack.c.b16 %v1370, %v1369
        %v1398 = vpack.c.b16 %v1372, %v1371
        %v1399 = vpack.c.b16 %v1374, %v1373
        %v1400 = vpack.c.b16 %v1376, %v1375
        %v1401 = vpack.c.b16 %v1378, %v1377
        %v1402 = vpack.c.b16 %v1380, %v1379
        %v1403 = vpack.c.b16 %v1382, %v1381
        %v1404 = vpack.c.b16 %v1384, %v1383
        %v1405 = vpack.c.b16 %v1386, %v1385
        %v1406 = vpack.c.b16 %v1388, %v1387
        %v1407 = vpack.c.b16 %v1390, %v1389
        %v1408 = vpack.c.b16 %v1392, %v1391
        %v1409 = vpack.c.b16 %v1394, %v1393
        %v1411 = vsel %vm610, %v1395, 0
        %v1414 = vsel %vm610, %v1396, 0
        %v1417 = vsel %vm610, %v1397, 0
        %v1420 = vsel %vm610, %v1398, 0
        %v1423 = vsel %vm610, %v1399, 0
        %v1426 = vsel %vm610, %v1400, 0
        %v1429 = vsel %vm610, %v1401, 0
        %v1432 = vsel %vm610, %v1402, 0
        %v1435 = vsel %vm610, %v1403, 0
        %v1438 = vsel %vm610, %v1404, 0
        %v1441 = vsel %vm610, %v1405, 0
        %v1444 = vsel %vm610, %v1406, 0
        %v1447 = vsel %vm610, %v1407, 0
        %v1450 = vsel %vm610, %v1408, 0
        %v1453 = vsel %vm610, %v1409, 0
        %1455 = vmatpush.bf16.msra.mxu0 0
        %1456 = vmatpush.bf16.msra.mxu0 0
        %1457 = vmatpush.bf16.msra.mxu0 0
        %1458 = vmatpush.bf16.msra.mxu0 0
        %1459 = vmatpush.bf16.msra.mxu0 0
        %1460 = vmatpush.bf16.msra.mxu0 0
        %1461 = vmatpush.bf16.msra.mxu0 0
        %1462 = vmatpush.bf16.msra.mxu0 %v608
        %1463 = vmatmul.bf16.gmra.mxu0 %v1411
        %v1464 = vpop.f32.mrf.mxu0
        %v1465 = vadd.f32 0.0, %v1464
        %v1466 = vpop.f32.mrf.mxu0
        %v1467 = vadd.f32 0.0, %v1466
        %1468 = vmatmul.bf16.gmra.mxu0 %v1414
        %v1469 = vpop.f32.mrf.mxu0
        %v1470 = vadd.f32 0.0, %v1469
        %v1471 = vpop.f32.mrf.mxu0
        %v1472 = vadd.f32 0.0, %v1471
        %1473 = vmatmul.bf16.gmra.mxu0 %v1417
        %v1474 = vpop.f32.mrf.mxu0
        %v1475 = vadd.f32 0.0, %v1474
        %v1476 = vpop.f32.mrf.mxu0
        %v1477 = vadd.f32 0.0, %v1476
        %1478 = vmatmul.bf16.gmra.mxu0 %v1420
        %v1479 = vpop.f32.mrf.mxu0
        %v1480 = vadd.f32 0.0, %v1479
        %v1481 = vpop.f32.mrf.mxu0
        %v1482 = vadd.f32 0.0, %v1481
        %1483 = vmatmul.bf16.gmra.mxu0 %v1423
        %v1484 = vpop.f32.mrf.mxu0
        %v1485 = vadd.f32 0.0, %v1484
        %v1486 = vpop.f32.mrf.mxu0
        %v1487 = vadd.f32 0.0, %v1486
        %1488 = vmatmul.bf16.gmra.mxu0 %v1426
        %v1489 = vpop.f32.mrf.mxu0
        %v1490 = vadd.f32 0.0, %v1489
        %v1491 = vpop.f32.mrf.mxu0
        %v1492 = vadd.f32 0.0, %v1491
        %1493 = vmatmul.bf16.gmra.mxu0 %v1429
        %v1494 = vpop.f32.mrf.mxu0
        %v1495 = vadd.f32 0.0, %v1494
        %v1496 = vpop.f32.mrf.mxu0
        %v1497 = vadd.f32 0.0, %v1496
        %1498 = vmatmul.bf16.gmra.mxu0 %v1432
        %v1499 = vpop.f32.mrf.mxu0
        %v1500 = vadd.f32 0.0, %v1499
        %v1501 = vpop.f32.mrf.mxu0
        %v1502 = vadd.f32 0.0, %v1501
        %1503 = vmatmul.bf16.gmra.mxu0 %v1435
        %v1504 = vpop.f32.mrf.mxu0
        %v1505 = vadd.f32 0.0, %v1504
        %v1506 = vpop.f32.mrf.mxu0
        %v1507 = vadd.f32 0.0, %v1506
        %1508 = vmatmul.bf16.gmra.mxu0 %v1438
        %v1509 = vpop.f32.mrf.mxu0
        %v1510 = vadd.f32 0.0, %v1509
        %v1511 = vpop.f32.mrf.mxu0
        %v1512 = vadd.f32 0.0, %v1511
        %1513 = vmatmul.bf16.gmra.mxu0 %v1441
        %v1514 = vpop.f32.mrf.mxu0
        %v1515 = vadd.f32 0.0, %v1514
        %v1516 = vpop.f32.mrf.mxu0
        %v1517 = vadd.f32 0.0, %v1516
        %1518 = vmatmul.bf16.gmra.mxu0 %v1444
        %v1519 = vpop.f32.mrf.mxu0
        %v1520 = vadd.f32 0.0, %v1519
        %v1521 = vpop.f32.mrf.mxu0
        %v1522 = vadd.f32 0.0, %v1521
        %1523 = vmatmul.bf16.gmra.mxu0 %v1447
        %v1524 = vpop.f32.mrf.mxu0
        %v1525 = vadd.f32 0.0, %v1524
        %v1526 = vpop.f32.mrf.mxu0
        %v1527 = vadd.f32 0.0, %v1526
        %1528 = vmatmul.bf16.gmra.mxu0 %v1450
        %v1529 = vpop.f32.mrf.mxu0
        %v1530 = vadd.f32 0.0, %v1529
        %v1531 = vpop.f32.mrf.mxu0
        %v1532 = vadd.f32 0.0, %v1531
        %1533 = vmatmul.bf16.gmra.mxu0 %v1453
        %v1534 = vpop.f32.mrf.mxu0
        %v1535 = vadd.f32 0.0, %v1534
        %v1536 = vpop.f32.mrf.mxu0
        %1537 = vdwg.mxu0
        %v1568 = vunpack.c.l.b16 %v420
        %v1569 = vunpack.c.l.b16 %v421
        %v1570 = vunpack.c.l.b16 %v422
        %v1571 = vunpack.c.l.b16 %v423
        %v1572 = vunpack.c.l.b16 %v424
        %v1573 = vunpack.c.l.b16 %v425
        %v1574 = vunpack.c.l.b16 %v426
        %v1575 = vunpack.c.l.b16 %v427
        %v1576 = vunpack.c.l.b16 %v428
        %v1577 = vunpack.c.l.b16 %v429
        %v1578 = vunpack.c.l.b16 %v430
        %v1579 = vunpack.c.l.b16 %v431
        %v1580 = vunpack.c.l.b16 %v432
        %v1581 = vunpack.c.l.b16 %v433
        %v1582 = vunpack.c.l.b16 %v434
        %v1583 = vunpack.c.l.b16 %v435
        %v1584 = vunpack.c.l.b16 %v436
        %v1585 = vunpack.c.l.b16 %v437
        %v1586 = vunpack.c.l.b16 %v438
        %v1587 = vunpack.c.l.b16 %v439
        %v1588 = vunpack.c.l.b16 %v440
        %v1589 = vunpack.c.l.b16 %v441
        %v1590 = vunpack.c.l.b16 %v442
        %v1591 = vunpack.c.l.b16 %v443
        %v1592 = vunpack.c.l.b16 %v444
        %v1593 = vunpack.c.l.b16 %v445
        %v1594 = vunpack.c.l.b16 %v446
        %v1595 = vunpack.c.l.b16 %v447
        %v1596 = vunpack.c.l.b16 %v448
        %v1597 = vunpack.c.l.b16 %v449
        %v1598 = vpack.c.b16 %v1569, %v1568
        %v1599 = vpack.c.b16 %v1571, %v1570
        %v1600 = vpack.c.b16 %v1573, %v1572
        %v1601 = vpack.c.b16 %v1575, %v1574
        %v1602 = vpack.c.b16 %v1577, %v1576
        %v1603 = vpack.c.b16 %v1579, %v1578
        %v1604 = vpack.c.b16 %v1581, %v1580
        %v1605 = vpack.c.b16 %v1583, %v1582
        %v1606 = vpack.c.b16 %v1585, %v1584
        %v1607 = vpack.c.b16 %v1587, %v1586
        %v1608 = vpack.c.b16 %v1589, %v1588
        %v1609 = vpack.c.b16 %v1591, %v1590
        %v1610 = vpack.c.b16 %v1593, %v1592
        %v1611 = vpack.c.b16 %v1595, %v1594
        %v1612 = vpack.c.b16 %v1597, %v1596
        %v1614 = vsel %vm610, %v1598, 0
        %v1617 = vsel %vm610, %v1599, 0
        %v1620 = vsel %vm610, %v1600, 0
        %v1623 = vsel %vm610, %v1601, 0
        %v1626 = vsel %vm610, %v1602, 0
        %v1629 = vsel %vm610, %v1603, 0
        %v1632 = vsel %vm610, %v1604, 0
        %v1635 = vsel %vm610, %v1605, 0
        %v1638 = vsel %vm610, %v1606, 0
        %v1641 = vsel %vm610, %v1607, 0
        %v1644 = vsel %vm610, %v1608, 0
        %v1647 = vsel %vm610, %v1609, 0
        %v1650 = vsel %vm610, %v1610, 0
        %v1653 = vsel %vm610, %v1611, 0
        %v1656 = vsel %vm610, %v1612, 0
        %1658 = vmatpush.bf16.msra.mxu0 0
        %1659 = vmatpush.bf16.msra.mxu0 0
        %1660 = vmatpush.bf16.msra.mxu0 0
        %1661 = vmatpush.bf16.msra.mxu0 0
        %1662 = vmatpush.bf16.msra.mxu0 0
        %1663 = vmatpush.bf16.msra.mxu0 0
        %1664 = vmatpush.bf16.msra.mxu0 0
        %1665 = vmatpush.bf16.msra.mxu0 %v818
        %1666 = vmatmul.bf16.gmra.mxu0 %v1614
        %v1667 = vpop.f32.mrf.mxu0
        %v1668 = vadd.f32 %v1465, %v1667
        %v1669 = vpop.f32.mrf.mxu0
        %v1670 = vadd.f32 %v1467, %v1669
        %1671 = vmatmul.bf16.gmra.mxu0 %v1617
        %v1672 = vpop.f32.mrf.mxu0
        %v1673 = vadd.f32 %v1470, %v1672
        %v1674 = vpop.f32.mrf.mxu0
        %v1675 = vadd.f32 %v1472, %v1674
        %1676 = vmatmul.bf16.gmra.mxu0 %v1620
        %v1677 = vpop.f32.mrf.mxu0
        %v1678 = vadd.f32 %v1475, %v1677
        %v1679 = vpop.f32.mrf.mxu0
        %v1680 = vadd.f32 %v1477, %v1679
        %1681 = vmatmul.bf16.gmra.mxu0 %v1623
        %v1682 = vpop.f32.mrf.mxu0
        %v1683 = vadd.f32 %v1480, %v1682
        %v1684 = vpop.f32.mrf.mxu0
        %v1685 = vadd.f32 %v1482, %v1684
        %1686 = vmatmul.bf16.gmra.mxu0 %v1626
        %v1687 = vpop.f32.mrf.mxu0
        %v1688 = vadd.f32 %v1485, %v1687
        %v1689 = vpop.f32.mrf.mxu0
        %v1690 = vadd.f32 %v1487, %v1689
        %1691 = vmatmul.bf16.gmra.mxu0 %v1629
        %v1692 = vpop.f32.mrf.mxu0
        %v1693 = vadd.f32 %v1490, %v1692
        %v1694 = vpop.f32.mrf.mxu0
        %v1695 = vadd.f32 %v1492, %v1694
        %1696 = vmatmul.bf16.gmra.mxu0 %v1632
        %v1697 = vpop.f32.mrf.mxu0
        %v1698 = vadd.f32 %v1495, %v1697
        %v1699 = vpop.f32.mrf.mxu0
        %v1700 = vadd.f32 %v1497, %v1699
        %1701 = vmatmul.bf16.gmra.mxu0 %v1635
        %v1702 = vpop.f32.mrf.mxu0
        %v1703 = vadd.f32 %v1500, %v1702
        %v1704 = vpop.f32.mrf.mxu0
        %v1705 = vadd.f32 %v1502, %v1704
        %1706 = vmatmul.bf16.gmra.mxu0 %v1638
        %v1707 = vpop.f32.mrf.mxu0
        %v1708 = vadd.f32 %v1505, %v1707
        %v1709 = vpop.f32.mrf.mxu0
        %v1710 = vadd.f32 %v1507, %v1709
        %1711 = vmatmul.bf16.gmra.mxu0 %v1641
        %v1712 = vpop.f32.mrf.mxu0
        %v1713 = vadd.f32 %v1510, %v1712
        %v1714 = vpop.f32.mrf.mxu0
        %v1715 = vadd.f32 %v1512, %v1714
        %1716 = vmatmul.bf16.gmra.mxu0 %v1644
        %v1717 = vpop.f32.mrf.mxu0
        %v1718 = vadd.f32 %v1515, %v1717
        %v1719 = vpop.f32.mrf.mxu0
        %v1720 = vadd.f32 %v1517, %v1719
        %1721 = vmatmul.bf16.gmra.mxu0 %v1647
        %v1722 = vpop.f32.mrf.mxu0
        %v1723 = vadd.f32 %v1520, %v1722
        %v1724 = vpop.f32.mrf.mxu0
        %v1725 = vadd.f32 %v1522, %v1724
        %1726 = vmatmul.bf16.gmra.mxu0 %v1650
        %v1727 = vpop.f32.mrf.mxu0
        %v1728 = vadd.f32 %v1525, %v1727
        %v1729 = vpop.f32.mrf.mxu0
        %v1730 = vadd.f32 %v1527, %v1729
        %1731 = vmatmul.bf16.gmra.mxu0 %v1653
        %v1732 = vpop.f32.mrf.mxu0
        %v1733 = vadd.f32 %v1530, %v1732
        %v1734 = vpop.f32.mrf.mxu0
        %v1735 = vadd.f32 %v1532, %v1734
        %1736 = vmatmul.bf16.gmra.mxu0 %v1656
        %v1737 = vpop.f32.mrf.mxu0
        %v1738 = vadd.f32 %v1535, %v1737
        %v1739 = vpop.f32.mrf.mxu0
        %1740 = vdwg.mxu0
        %v1743 = vunpack.c.l.b16 %v450
        %v1744 = vunpack.c.l.b16 %v451
        %v1745 = vpack.c.b16 %v1744, %v1743
        %v1747 = vsel %vm610, %v1745, 0
        %1749 = vmatpush.bf16.msra.mxu0 0
        %1750 = vmatpush.bf16.msra.mxu0 0
        %1751 = vmatpush.bf16.msra.mxu0 0
        %1752 = vmatpush.bf16.msra.mxu0 0
        %1753 = vmatpush.bf16.msra.mxu0 0
        %1754 = vmatpush.bf16.msra.mxu0 0
        %1755 = vmatpush.bf16.msra.mxu0 0
        %1756 = vmatpush.bf16.msra.mxu0 %v960
        %1757 = vmatmul.bf16.gmra.mxu0 %v1617
        %v1758 = vpop.f32.mrf.mxu0
        %v1759 = vadd.f32 0.0, %v1758
        %v1760 = vpop.f32.mrf.mxu0
        %v1761 = vadd.f32 0.0, %v1760
        %1762 = vmatmul.bf16.gmra.mxu0 %v1620
        %v1763 = vpop.f32.mrf.mxu0
        %v1764 = vadd.f32 0.0, %v1763
        %v1765 = vpop.f32.mrf.mxu0
        %v1766 = vadd.f32 0.0, %v1765
        %1767 = vmatmul.bf16.gmra.mxu0 %v1623
        %v1768 = vpop.f32.mrf.mxu0
        %v1769 = vadd.f32 0.0, %v1768
        %v1770 = vpop.f32.mrf.mxu0
        %v1771 = vadd.f32 0.0, %v1770
        %1772 = vmatmul.bf16.gmra.mxu0 %v1626
        %v1773 = vpop.f32.mrf.mxu0
        %v1774 = vadd.f32 0.0, %v1773
        %v1775 = vpop.f32.mrf.mxu0
        %v1776 = vadd.f32 0.0, %v1775
        %1777 = vmatmul.bf16.gmra.mxu0 %v1629
        %v1778 = vpop.f32.mrf.mxu0
        %v1779 = vadd.f32 0.0, %v1778
        %v1780 = vpop.f32.mrf.mxu0
        %v1781 = vadd.f32 0.0, %v1780
        %1782 = vmatmul.bf16.gmra.mxu0 %v1632
        %v1783 = vpop.f32.mrf.mxu0
        %v1784 = vadd.f32 0.0, %v1783
        %v1785 = vpop.f32.mrf.mxu0
        %v1786 = vadd.f32 0.0, %v1785
        %1787 = vmatmul.bf16.gmra.mxu0 %v1635
        %v1788 = vpop.f32.mrf.mxu0
        %v1789 = vadd.f32 0.0, %v1788
        %v1790 = vpop.f32.mrf.mxu0
        %v1791 = vadd.f32 0.0, %v1790
        %1792 = vmatmul.bf16.gmra.mxu0 %v1638
        %v1793 = vpop.f32.mrf.mxu0
        %v1794 = vadd.f32 0.0, %v1793
        %v1795 = vpop.f32.mrf.mxu0
        %v1796 = vadd.f32 0.0, %v1795
        %1797 = vmatmul.bf16.gmra.mxu0 %v1641
        %v1798 = vpop.f32.mrf.mxu0
        %v1799 = vadd.f32 0.0, %v1798
        %v1800 = vpop.f32.mrf.mxu0
        %v1801 = vadd.f32 0.0, %v1800
        %1802 = vmatmul.bf16.gmra.mxu0 %v1644
        %v1803 = vpop.f32.mrf.mxu0
        %v1804 = vadd.f32 0.0, %v1803
        %v1805 = vpop.f32.mrf.mxu0
        %v1806 = vadd.f32 0.0, %v1805
        %1807 = vmatmul.bf16.gmra.mxu0 %v1647
        %v1808 = vpop.f32.mrf.mxu0
        %v1809 = vadd.f32 0.0, %v1808
        %v1810 = vpop.f32.mrf.mxu0
        %v1811 = vadd.f32 0.0, %v1810
        %1812 = vmatmul.bf16.gmra.mxu0 %v1650
        %v1813 = vpop.f32.mrf.mxu0
        %v1814 = vadd.f32 0.0, %v1813
        %v1815 = vpop.f32.mrf.mxu0
        %v1816 = vadd.f32 0.0, %v1815
        %1817 = vmatmul.bf16.gmra.mxu0 %v1653
        %v1818 = vpop.f32.mrf.mxu0
        %v1819 = vadd.f32 0.0, %v1818
        %v1820 = vpop.f32.mrf.mxu0
        %v1821 = vadd.f32 0.0, %v1820
        %1822 = vmatmul.bf16.gmra.mxu0 %v1656
        %v1823 = vpop.f32.mrf.mxu0
        %v1824 = vadd.f32 0.0, %v1823
        %v1825 = vpop.f32.mrf.mxu0
        %v1826 = vadd.f32 0.0, %v1825
        %1827 = vmatmul.bf16.gmra.mxu0 %v1747
        %v1828 = vpop.f32.mrf.mxu0
        %v1829 = vadd.f32 0.0, %v1828
        %v1830 = vpop.f32.mrf.mxu0
        %1831 = vdwg.mxu0
        %v1832 = vadd.f32 %v1668, %v1759
        %v1833 = vadd.f32 %v1670, %v1761
        %v1834 = vadd.f32 %v1673, %v1764
        %v1835 = vadd.f32 %v1675, %v1766
        %v1836 = vadd.f32 %v1678, %v1769
        %v1837 = vadd.f32 %v1680, %v1771
        %v1838 = vadd.f32 %v1683, %v1774
        %v1839 = vadd.f32 %v1685, %v1776
        %v1840 = vadd.f32 %v1688, %v1779
        %v1841 = vadd.f32 %v1690, %v1781
        %v1842 = vadd.f32 %v1693, %v1784
        %v1843 = vadd.f32 %v1695, %v1786
        %v1844 = vadd.f32 %v1698, %v1789
        %v1845 = vadd.f32 %v1700, %v1791
        %v1846 = vadd.f32 %v1703, %v1794
        %v1847 = vadd.f32 %v1705, %v1796
        %v1848 = vadd.f32 %v1708, %v1799
        %v1849 = vadd.f32 %v1710, %v1801
        %v1850 = vadd.f32 %v1713, %v1804
        %v1851 = vadd.f32 %v1715, %v1806
        %v1852 = vadd.f32 %v1718, %v1809
        %v1853 = vadd.f32 %v1720, %v1811
        %v1854 = vadd.f32 %v1723, %v1814
        %v1855 = vadd.f32 %v1725, %v1816
        %v1856 = vadd.f32 %v1728, %v1819
        %v1857 = vadd.f32 %v1730, %v1821
        %v1858 = vadd.f32 %v1733, %v1824
        %v1859 = vadd.f32 %v1735, %v1826
        %v1860 = vadd.f32 %v1738, %v1829
        %v1863 = vunpack.c.l.b16 %v520
        %v1864 = vunpack.c.l.b16 %v521
        %v1865 = vpack.c.b16 %v1864, %v1863
        %v1867 = vsel %vm610, %v1865, 0
        %1869 = vmatpush.bf16.msra.mxu0 0
        %1870 = vmatpush.bf16.msra.mxu0 0
        %1871 = vmatpush.bf16.msra.mxu0 0
        %1872 = vmatpush.bf16.msra.mxu0 0
        %1873 = vmatpush.bf16.msra.mxu0 0
        %1874 = vmatpush.bf16.msra.mxu0 0
        %1875 = vmatpush.bf16.msra.mxu0 0
        %1876 = vmatpush.bf16.msra.mxu0 %v1089
        %1877 = vmatmul.bf16.gmra.mxu0 %v1414
        %v1878 = vpop.f32.mrf.mxu0
        %v1879 = vadd.f32 0.0, %v1878
        %v1880 = vpop.f32.mrf.mxu0
        %v1881 = vadd.f32 0.0, %v1880
        %1882 = vmatmul.bf16.gmra.mxu0 %v1417
        %v1883 = vpop.f32.mrf.mxu0
        %v1884 = vadd.f32 0.0, %v1883
        %v1885 = vpop.f32.mrf.mxu0
        %v1886 = vadd.f32 0.0, %v1885
        %1887 = vmatmul.bf16.gmra.mxu0 %v1420
        %v1888 = vpop.f32.mrf.mxu0
        %v1889 = vadd.f32 0.0, %v1888
        %v1890 = vpop.f32.mrf.mxu0
        %v1891 = vadd.f32 0.0, %v1890
        %1892 = vmatmul.bf16.gmra.mxu0 %v1423
        %v1893 = vpop.f32.mrf.mxu0
        %v1894 = vadd.f32 0.0, %v1893
        %v1895 = vpop.f32.mrf.mxu0
        %v1896 = vadd.f32 0.0, %v1895
        %1897 = vmatmul.bf16.gmra.mxu0 %v1426
        %v1898 = vpop.f32.mrf.mxu0
        %v1899 = vadd.f32 0.0, %v1898
        %v1900 = vpop.f32.mrf.mxu0
        %v1901 = vadd.f32 0.0, %v1900
        %1902 = vmatmul.bf16.gmra.mxu0 %v1429
        %v1903 = vpop.f32.mrf.mxu0
        %v1904 = vadd.f32 0.0, %v1903
        %v1905 = vpop.f32.mrf.mxu0
        %v1906 = vadd.f32 0.0, %v1905
        %1907 = vmatmul.bf16.gmra.mxu0 %v1432
        %v1908 = vpop.f32.mrf.mxu0
        %v1909 = vadd.f32 0.0, %v1908
        %v1910 = vpop.f32.mrf.mxu0
        %v1911 = vadd.f32 0.0, %v1910
        %1912 = vmatmul.bf16.gmra.mxu0 %v1435
        %v1913 = vpop.f32.mrf.mxu0
        %v1914 = vadd.f32 0.0, %v1913
        %v1915 = vpop.f32.mrf.mxu0
        %v1916 = vadd.f32 0.0, %v1915
        %1917 = vmatmul.bf16.gmra.mxu0 %v1438
        %v1918 = vpop.f32.mrf.mxu0
        %v1919 = vadd.f32 0.0, %v1918
        %v1920 = vpop.f32.mrf.mxu0
        %v1921 = vadd.f32 0.0, %v1920
        %1922 = vmatmul.bf16.gmra.mxu0 %v1441
        %v1923 = vpop.f32.mrf.mxu0
        %v1924 = vadd.f32 0.0, %v1923
        %v1925 = vpop.f32.mrf.mxu0
        %v1926 = vadd.f32 0.0, %v1925
        %1927 = vmatmul.bf16.gmra.mxu0 %v1444
        %v1928 = vpop.f32.mrf.mxu0
        %v1929 = vadd.f32 0.0, %v1928
        %v1930 = vpop.f32.mrf.mxu0
        %v1931 = vadd.f32 0.0, %v1930
        %1932 = vmatmul.bf16.gmra.mxu0 %v1447
        %v1933 = vpop.f32.mrf.mxu0
        %v1934 = vadd.f32 0.0, %v1933
        %v1935 = vpop.f32.mrf.mxu0
        %v1936 = vadd.f32 0.0, %v1935
        %1937 = vmatmul.bf16.gmra.mxu0 %v1450
        %v1938 = vpop.f32.mrf.mxu0
        %v1939 = vadd.f32 0.0, %v1938
        %v1940 = vpop.f32.mrf.mxu0
        %v1941 = vadd.f32 0.0, %v1940
        %1942 = vmatmul.bf16.gmra.mxu0 %v1453
        %v1943 = vpop.f32.mrf.mxu0
        %v1944 = vadd.f32 0.0, %v1943
        %v1945 = vpop.f32.mrf.mxu0
        %v1946 = vadd.f32 0.0, %v1945
        %1947 = vmatmul.bf16.gmra.mxu0 %v1867
        %v1948 = vpop.f32.mrf.mxu0
        %v1949 = vadd.f32 0.0, %v1948
        %v1950 = vpop.f32.mrf.mxu0
        %1951 = vdwg.mxu0
        %v1952 = vadd.f32 %v1832, %v1879
        %v1953 = vadd.f32 %v1833, %v1881
        %v1954 = vadd.f32 %v1834, %v1884
        %v1955 = vadd.f32 %v1835, %v1886
        %v1956 = vadd.f32 %v1836, %v1889
        %v1957 = vadd.f32 %v1837, %v1891
        %v1958 = vadd.f32 %v1838, %v1894
        %v1959 = vadd.f32 %v1839, %v1896
        %v1960 = vadd.f32 %v1840, %v1899
        %v1961 = vadd.f32 %v1841, %v1901
        %v1962 = vadd.f32 %v1842, %v1904
        %v1963 = vadd.f32 %v1843, %v1906
        %v1964 = vadd.f32 %v1844, %v1909
        %v1965 = vadd.f32 %v1845, %v1911
        %v1966 = vadd.f32 %v1846, %v1914
        %v1967 = vadd.f32 %v1847, %v1916
        %v1968 = vadd.f32 %v1848, %v1919
        %v1969 = vadd.f32 %v1849, %v1921
        %v1970 = vadd.f32 %v1850, %v1924
        %v1971 = vadd.f32 %v1851, %v1926
        %v1972 = vadd.f32 %v1852, %v1929
        %v1973 = vadd.f32 %v1853, %v1931
        %v1974 = vadd.f32 %v1854, %v1934
        %v1975 = vadd.f32 %v1855, %v1936
        %v1976 = vadd.f32 %v1856, %v1939
        %v1977 = vadd.f32 %v1857, %v1941
        %v1978 = vadd.f32 %v1858, %v1944
        %v1979 = vadd.f32 %v1859, %v1946
        %v1980 = vadd.f32 %v1860, %v1949
        %v1983 = vunpack.c.l.b16 %v452
        %v1984 = vunpack.c.l.b16 %v453
        %v1985 = vpack.c.b16 %v1984, %v1983
        %v1987 = vsel %vm610, %v1985, 0
        %1989 = vmatpush.bf16.msra.mxu0 0
        %1990 = vmatpush.bf16.msra.mxu0 0
        %1991 = vmatpush.bf16.msra.mxu0 0
        %1992 = vmatpush.bf16.msra.mxu0 0
        %1993 = vmatpush.bf16.msra.mxu0 0
        %1994 = vmatpush.bf16.msra.mxu0 0
        %1995 = vmatpush.bf16.msra.mxu0 0
        %1996 = vmatpush.bf16.msra.mxu0 %v1218
        %1997 = vmatmul.bf16.gmra.mxu0 %v1620
        %v1998 = vpop.f32.mrf.mxu0
        %v1999 = vadd.f32 0.0, %v1998
        %v2000 = vpop.f32.mrf.mxu0
        %v2001 = vadd.f32 0.0, %v2000
        %2002 = vmatmul.bf16.gmra.mxu0 %v1623
        %v2003 = vpop.f32.mrf.mxu0
        %v2004 = vadd.f32 0.0, %v2003
        %v2005 = vpop.f32.mrf.mxu0
        %v2006 = vadd.f32 0.0, %v2005
        %2007 = vmatmul.bf16.gmra.mxu0 %v1626
        %v2008 = vpop.f32.mrf.mxu0
        %v2009 = vadd.f32 0.0, %v2008
        %v2010 = vpop.f32.mrf.mxu0
        %v2011 = vadd.f32 0.0, %v2010
        %2012 = vmatmul.bf16.gmra.mxu0 %v1629
        %v2013 = vpop.f32.mrf.mxu0
        %v2014 = vadd.f32 0.0, %v2013
        %v2015 = vpop.f32.mrf.mxu0
        %v2016 = vadd.f32 0.0, %v2015
        %2017 = vmatmul.bf16.gmra.mxu0 %v1632
        %v2018 = vpop.f32.mrf.mxu0
        %v2019 = vadd.f32 0.0, %v2018
        %v2020 = vpop.f32.mrf.mxu0
        %v2021 = vadd.f32 0.0, %v2020
        %2022 = vmatmul.bf16.gmra.mxu0 %v1635
        %v2023 = vpop.f32.mrf.mxu0
        %v2024 = vadd.f32 0.0, %v2023
        %v2025 = vpop.f32.mrf.mxu0
        %v2026 = vadd.f32 0.0, %v2025
        %2027 = vmatmul.bf16.gmra.mxu0 %v1638
        %v2028 = vpop.f32.mrf.mxu0
        %v2029 = vadd.f32 0.0, %v2028
        %v2030 = vpop.f32.mrf.mxu0
        %v2031 = vadd.f32 0.0, %v2030
        %2032 = vmatmul.bf16.gmra.mxu0 %v1641
        %v2033 = vpop.f32.mrf.mxu0
        %v2034 = vadd.f32 0.0, %v2033
        %v2035 = vpop.f32.mrf.mxu0
        %v2036 = vadd.f32 0.0, %v2035
        %2037 = vmatmul.bf16.gmra.mxu0 %v1644
        %v2038 = vpop.f32.mrf.mxu0
        %v2039 = vadd.f32 0.0, %v2038
        %v2040 = vpop.f32.mrf.mxu0
        %v2041 = vadd.f32 0.0, %v2040
        %2042 = vmatmul.bf16.gmra.mxu0 %v1647
        %v2043 = vpop.f32.mrf.mxu0
        %v2044 = vadd.f32 0.0, %v2043
        %v2045 = vpop.f32.mrf.mxu0
        %v2046 = vadd.f32 0.0, %v2045
        %2047 = vmatmul.bf16.gmra.mxu0 %v1650
        %v2048 = vpop.f32.mrf.mxu0
        %v2049 = vadd.f32 0.0, %v2048
        %v2050 = vpop.f32.mrf.mxu0
        %v2051 = vadd.f32 0.0, %v2050
        %2052 = vmatmul.bf16.gmra.mxu0 %v1653
        %v2053 = vpop.f32.mrf.mxu0
        %v2054 = vadd.f32 0.0, %v2053
        %v2055 = vpop.f32.mrf.mxu0
        %v2056 = vadd.f32 0.0, %v2055
        %2057 = vmatmul.bf16.gmra.mxu0 %v1656
        %v2058 = vpop.f32.mrf.mxu0
        %v2059 = vadd.f32 0.0, %v2058
        %v2060 = vpop.f32.mrf.mxu0
        %v2061 = vadd.f32 0.0, %v2060
        %2062 = vmatmul.bf16.gmra.mxu0 %v1747
        %v2063 = vpop.f32.mrf.mxu0
        %v2064 = vadd.f32 0.0, %v2063
        %v2065 = vpop.f32.mrf.mxu0
        %v2066 = vadd.f32 0.0, %v2065
        %2067 = vmatmul.bf16.gmra.mxu0 %v1987
        %v2068 = vpop.f32.mrf.mxu0
        %v2069 = vadd.f32 0.0, %v2068
        %v2070 = vpop.f32.mrf.mxu0
        %2071 = vdwg.mxu0
        %v2072 = vadd.f32 %v1952, %v1999
        %v2073 = vadd.f32 %v1953, %v2001
        %v2074 = vadd.f32 %v1954, %v2004
        %v2075 = vadd.f32 %v1955, %v2006
        %v2076 = vadd.f32 %v1956, %v2009
        %v2077 = vadd.f32 %v1957, %v2011
        %v2078 = vadd.f32 %v1958, %v2014
        %v2079 = vadd.f32 %v1959, %v2016
        %v2080 = vadd.f32 %v1960, %v2019
        %v2081 = vadd.f32 %v1961, %v2021
        %v2082 = vadd.f32 %v1962, %v2024
        %v2083 = vadd.f32 %v1963, %v2026
        %v2084 = vadd.f32 %v1964, %v2029
        %v2085 = vadd.f32 %v1965, %v2031
        %v2086 = vadd.f32 %v1966, %v2034
        %v2087 = vadd.f32 %v1967, %v2036
        %v2088 = vadd.f32 %v1968, %v2039
        %v2089 = vadd.f32 %v1969, %v2041
        %v2090 = vadd.f32 %v1970, %v2044
        %v2091 = vadd.f32 %v1971, %v2046
        %v2092 = vadd.f32 %v1972, %v2049
        %v2093 = vadd.f32 %v1973, %v2051
        %v2094 = vadd.f32 %v1974, %v2054
        %v2095 = vadd.f32 %v1975, %v2056
        %v2096 = vadd.f32 %v1976, %v2059
        %v2097 = vadd.f32 %v1977, %v2061
        %v2098 = vadd.f32 %v1978, %v2064
        %v2099 = vadd.f32 %v1979, %v2066
        %v2100 = vadd.f32 %v1980, %v2069
        %v2101 = vmax.f32 %v1306, %v2072
        %v2102 = vmax.f32 %v1307, %v2073
        %v2103 = vmax.f32 %v1308, %v2074
        %v2104 = vmax.f32 %v1309, %v2075
        %v2105 = vmax.f32 %v1310, %v2076
        %v2106 = vmax.f32 %v1311, %v2077
        %v2107 = vmax.f32 %v1312, %v2078
        %v2108 = vmax.f32 %v1313, %v2079
        %v2109 = vmax.f32 %v1314, %v2080
        %v2110 = vmax.f32 %v1315, %v2081
        %v2111 = vmax.f32 %v1316, %v2082
        %v2112 = vmax.f32 %v1317, %v2083
        %v2113 = vmax.f32 %v1318, %v2084
        %v2114 = vmax.f32 %v1319, %v2085
        %v2115 = vmax.f32 %v1320, %v2086
        %v2116 = vmax.f32 %v1321, %v2087
        %v2117 = vmax.f32 %v1322, %v2088
        %v2118 = vmax.f32 %v1323, %v2089
        %v2119 = vmax.f32 %v1324, %v2090
        %v2120 = vmax.f32 %v1325, %v2091
        %v2121 = vmax.f32 %v1326, %v2092
        %v2122 = vmax.f32 %v1327, %v2093
        %v2123 = vmax.f32 %v1328, %v2094
        %v2124 = vmax.f32 %v1329, %v2095
        %v2125 = vmax.f32 %v1330, %v2096
        %v2126 = vmax.f32 %v1331, %v2097
        %v2127 = vmax.f32 %v1332, %v2098
        %v2128 = vmax.f32 %v1333, %v2099
        %v2129 = vmax.f32 %v1334, %v2100
        %2130 = vmatpush.bf16.msra.mxu0 0
        %2131 = vmatpush.bf16.msra.mxu0 0
        %2132 = vmatpush.bf16.msra.mxu0 0
        %2133 = vmatpush.bf16.msra.mxu0 0
        %2134 = vmatpush.bf16.msra.mxu0 0
        %2135 = vmatpush.bf16.msra.mxu0 0
        %2136 = vmatpush.bf16.msra.mxu0 0
        %2137 = vmatpush.bf16.msra.mxu0 %v608
        %2138 = vmatmul.bf16.gmra.mxu0 %v824
        %v2139 = vpop.f32.mrf.mxu0
        %v2140 = vadd.f32 0.0, %v2139
        %v2141 = vpop.f32.mrf.mxu0
        %v2142 = vadd.f32 0.0, %v2141
        %2143 = vmatmul.bf16.gmra.mxu0 %v827
        %v2144 = vpop.f32.mrf.mxu0
        %v2145 = vadd.f32 0.0, %v2144
        %v2146 = vpop.f32.mrf.mxu0
        %v2147 = vadd.f32 0.0, %v2146
        %2148 = vmatmul.bf16.gmra.mxu0 %v830
        %v2149 = vpop.f32.mrf.mxu0
        %v2150 = vadd.f32 0.0, %v2149
        %v2151 = vpop.f32.mrf.mxu0
        %v2152 = vadd.f32 0.0, %v2151
        %2153 = vmatmul.bf16.gmra.mxu0 %v833
        %v2154 = vpop.f32.mrf.mxu0
        %v2155 = vadd.f32 0.0, %v2154
        %v2156 = vpop.f32.mrf.mxu0
        %v2157 = vadd.f32 0.0, %v2156
        %2158 = vmatmul.bf16.gmra.mxu0 %v836
        %v2159 = vpop.f32.mrf.mxu0
        %v2160 = vadd.f32 0.0, %v2159
        %v2161 = vpop.f32.mrf.mxu0
        %v2162 = vadd.f32 0.0, %v2161
        %2163 = vmatmul.bf16.gmra.mxu0 %v839
        %v2164 = vpop.f32.mrf.mxu0
        %v2165 = vadd.f32 0.0, %v2164
        %v2166 = vpop.f32.mrf.mxu0
        %v2167 = vadd.f32 0.0, %v2166
        %2168 = vmatmul.bf16.gmra.mxu0 %v842
        %v2169 = vpop.f32.mrf.mxu0
        %v2170 = vadd.f32 0.0, %v2169
        %v2171 = vpop.f32.mrf.mxu0
        %v2172 = vadd.f32 0.0, %v2171
        %2173 = vmatmul.bf16.gmra.mxu0 %v845
        %v2174 = vpop.f32.mrf.mxu0
        %v2175 = vadd.f32 0.0, %v2174
        %v2176 = vpop.f32.mrf.mxu0
        %v2177 = vadd.f32 0.0, %v2176
        %2178 = vmatmul.bf16.gmra.mxu0 %v848
        %v2179 = vpop.f32.mrf.mxu0
        %v2180 = vadd.f32 0.0, %v2179
        %v2181 = vpop.f32.mrf.mxu0
        %v2182 = vadd.f32 0.0, %v2181
        %2183 = vmatmul.bf16.gmra.mxu0 %v851
        %v2184 = vpop.f32.mrf.mxu0
        %v2185 = vadd.f32 0.0, %v2184
        %v2186 = vpop.f32.mrf.mxu0
        %v2187 = vadd.f32 0.0, %v2186
        %2188 = vmatmul.bf16.gmra.mxu0 %v854
        %v2189 = vpop.f32.mrf.mxu0
        %v2190 = vadd.f32 0.0, %v2189
        %v2191 = vpop.f32.mrf.mxu0
        %v2192 = vadd.f32 0.0, %v2191
        %2193 = vmatmul.bf16.gmra.mxu0 %v857
        %v2194 = vpop.f32.mrf.mxu0
        %v2195 = vadd.f32 0.0, %v2194
        %v2196 = vpop.f32.mrf.mxu0
        %v2197 = vadd.f32 0.0, %v2196
        %2198 = vmatmul.bf16.gmra.mxu0 %v860
        %v2199 = vpop.f32.mrf.mxu0
        %v2200 = vadd.f32 0.0, %v2199
        %v2201 = vpop.f32.mrf.mxu0
        %v2202 = vadd.f32 0.0, %v2201
        %2203 = vmatmul.bf16.gmra.mxu0 %v863
        %v2204 = vpop.f32.mrf.mxu0
        %v2205 = vadd.f32 0.0, %v2204
        %v2206 = vpop.f32.mrf.mxu0
        %v2207 = vadd.f32 0.0, %v2206
        %2208 = vmatmul.bf16.gmra.mxu0 %v963
        %v2209 = vpop.f32.mrf.mxu0
        %v2210 = vadd.f32 0.0, %v2209
        %v2211 = vpop.f32.mrf.mxu0
        %2212 = vdwg.mxu0
        %2213 = vmatpush.bf16.msra.mxu0 0
        %2214 = vmatpush.bf16.msra.mxu0 0
        %2215 = vmatpush.bf16.msra.mxu0 0
        %2216 = vmatpush.bf16.msra.mxu0 0
        %2217 = vmatpush.bf16.msra.mxu0 0
        %2218 = vmatpush.bf16.msra.mxu0 0
        %2219 = vmatpush.bf16.msra.mxu0 0
        %2220 = vmatpush.bf16.msra.mxu0 %v818
        %2221 = vmatmul.bf16.gmra.mxu0 %v612
        %v2222 = vpop.f32.mrf.mxu0
        %v2223 = vadd.f32 %v2140, %v2222
        %v2224 = vpop.f32.mrf.mxu0
        %v2225 = vadd.f32 %v2142, %v2224
        %2226 = vmatmul.bf16.gmra.mxu0 %v615
        %v2227 = vpop.f32.mrf.mxu0
        %v2228 = vadd.f32 %v2145, %v2227
        %v2229 = vpop.f32.mrf.mxu0
        %v2230 = vadd.f32 %v2147, %v2229
        %2231 = vmatmul.bf16.gmra.mxu0 %v618
        %v2232 = vpop.f32.mrf.mxu0
        %v2233 = vadd.f32 %v2150, %v2232
        %v2234 = vpop.f32.mrf.mxu0
        %v2235 = vadd.f32 %v2152, %v2234
        %2236 = vmatmul.bf16.gmra.mxu0 %v621
        %v2237 = vpop.f32.mrf.mxu0
        %v2238 = vadd.f32 %v2155, %v2237
        %v2239 = vpop.f32.mrf.mxu0
        %v2240 = vadd.f32 %v2157, %v2239
        %2241 = vmatmul.bf16.gmra.mxu0 %v624
        %v2242 = vpop.f32.mrf.mxu0
        %v2243 = vadd.f32 %v2160, %v2242
        %v2244 = vpop.f32.mrf.mxu0
        %v2245 = vadd.f32 %v2162, %v2244
        %2246 = vmatmul.bf16.gmra.mxu0 %v627
        %v2247 = vpop.f32.mrf.mxu0
        %v2248 = vadd.f32 %v2165, %v2247
        %v2249 = vpop.f32.mrf.mxu0
        %v2250 = vadd.f32 %v2167, %v2249
        %2251 = vmatmul.bf16.gmra.mxu0 %v630
        %v2252 = vpop.f32.mrf.mxu0
        %v2253 = vadd.f32 %v2170, %v2252
        %v2254 = vpop.f32.mrf.mxu0
        %v2255 = vadd.f32 %v2172, %v2254
        %2256 = vmatmul.bf16.gmra.mxu0 %v633
        %v2257 = vpop.f32.mrf.mxu0
        %v2258 = vadd.f32 %v2175, %v2257
        %v2259 = vpop.f32.mrf.mxu0
        %v2260 = vadd.f32 %v2177, %v2259
        %2261 = vmatmul.bf16.gmra.mxu0 %v636
        %v2262 = vpop.f32.mrf.mxu0
        %v2263 = vadd.f32 %v2180, %v2262
        %v2264 = vpop.f32.mrf.mxu0
        %v2265 = vadd.f32 %v2182, %v2264
        %2266 = vmatmul.bf16.gmra.mxu0 %v639
        %v2267 = vpop.f32.mrf.mxu0
        %v2268 = vadd.f32 %v2185, %v2267
        %v2269 = vpop.f32.mrf.mxu0
        %v2270 = vadd.f32 %v2187, %v2269
        %2271 = vmatmul.bf16.gmra.mxu0 %v642
        %v2272 = vpop.f32.mrf.mxu0
        %v2273 = vadd.f32 %v2190, %v2272
        %v2274 = vpop.f32.mrf.mxu0
        %v2275 = vadd.f32 %v2192, %v2274
        %2276 = vmatmul.bf16.gmra.mxu0 %v645
        %v2277 = vpop.f32.mrf.mxu0
        %v2278 = vadd.f32 %v2195, %v2277
        %v2279 = vpop.f32.mrf.mxu0
        %v2280 = vadd.f32 %v2197, %v2279
        %2281 = vmatmul.bf16.gmra.mxu0 %v648
        %v2282 = vpop.f32.mrf.mxu0
        %v2283 = vadd.f32 %v2200, %v2282
        %v2284 = vpop.f32.mrf.mxu0
        %v2285 = vadd.f32 %v2202, %v2284
        %2286 = vmatmul.bf16.gmra.mxu0 %v651
        %v2287 = vpop.f32.mrf.mxu0
        %v2288 = vadd.f32 %v2205, %v2287
        %v2289 = vpop.f32.mrf.mxu0
        %v2290 = vadd.f32 %v2207, %v2289
        %2291 = vmatmul.bf16.gmra.mxu0 %v654
        %v2292 = vpop.f32.mrf.mxu0
        %v2293 = vadd.f32 %v2210, %v2292
        %v2294 = vpop.f32.mrf.mxu0
        %2295 = vdwg.mxu0
        %2296 = vmatpush.bf16.msra.mxu0 0
        %2297 = vmatpush.bf16.msra.mxu0 0
        %2298 = vmatpush.bf16.msra.mxu0 0
        %2299 = vmatpush.bf16.msra.mxu0 0
        %2300 = vmatpush.bf16.msra.mxu0 0
        %2301 = vmatpush.bf16.msra.mxu0 0
        %2302 = vmatpush.bf16.msra.mxu0 0
        %2303 = vmatpush.bf16.msra.mxu0 %v960
        %2304 = vmatmul.bf16.gmra.mxu0 %v615
        %v2305 = vpop.f32.mrf.mxu0
        %v2306 = vadd.f32 0.0, %v2305
        %v2307 = vpop.f32.mrf.mxu0
        %v2308 = vadd.f32 0.0, %v2307
        %2309 = vmatmul.bf16.gmra.mxu0 %v618
        %v2310 = vpop.f32.mrf.mxu0
        %v2311 = vadd.f32 0.0, %v2310
        %v2312 = vpop.f32.mrf.mxu0
        %v2313 = vadd.f32 0.0, %v2312
        %2314 = vmatmul.bf16.gmra.mxu0 %v621
        %v2315 = vpop.f32.mrf.mxu0
        %v2316 = vadd.f32 0.0, %v2315
        %v2317 = vpop.f32.mrf.mxu0
        %v2318 = vadd.f32 0.0, %v2317
        %2319 = vmatmul.bf16.gmra.mxu0 %v624
        %v2320 = vpop.f32.mrf.mxu0
        %v2321 = vadd.f32 0.0, %v2320
        %v2322 = vpop.f32.mrf.mxu0
        %v2323 = vadd.f32 0.0, %v2322
        %2324 = vmatmul.bf16.gmra.mxu0 %v627
        %v2325 = vpop.f32.mrf.mxu0
        %v2326 = vadd.f32 0.0, %v2325
        %v2327 = vpop.f32.mrf.mxu0
        %v2328 = vadd.f32 0.0, %v2327
        %2329 = vmatmul.bf16.gmra.mxu0 %v630
        %v2330 = vpop.f32.mrf.mxu0
        %v2331 = vadd.f32 0.0, %v2330
        %v2332 = vpop.f32.mrf.mxu0
        %v2333 = vadd.f32 0.0, %v2332
        %2334 = vmatmul.bf16.gmra.mxu0 %v633
        %v2335 = vpop.f32.mrf.mxu0
        %v2336 = vadd.f32 0.0, %v2335
        %v2337 = vpop.f32.mrf.mxu0
        %v2338 = vadd.f32 0.0, %v2337
        %2339 = vmatmul.bf16.gmra.mxu0 %v636
        %v2340 = vpop.f32.mrf.mxu0
        %v2341 = vadd.f32 0.0, %v2340
        %v2342 = vpop.f32.mrf.mxu0
        %v2343 = vadd.f32 0.0, %v2342
        %2344 = vmatmul.bf16.gmra.mxu0 %v639
        %v2345 = vpop.f32.mrf.mxu0
        %v2346 = vadd.f32 0.0, %v2345
        %v2347 = vpop.f32.mrf.mxu0
        %v2348 = vadd.f32 0.0, %v2347
        %2349 = vmatmul.bf16.gmra.mxu0 %v642
        %v2350 = vpop.f32.mrf.mxu0
        %v2351 = vadd.f32 0.0, %v2350
        %v2352 = vpop.f32.mrf.mxu0
        %v2353 = vadd.f32 0.0, %v2352
        %2354 = vmatmul.bf16.gmra.mxu0 %v645
        %v2355 = vpop.f32.mrf.mxu0
        %v2356 = vadd.f32 0.0, %v2355
        %v2357 = vpop.f32.mrf.mxu0
        %v2358 = vadd.f32 0.0, %v2357
        %2359 = vmatmul.bf16.gmra.mxu0 %v648
        %v2360 = vpop.f32.mrf.mxu0
        %v2361 = vadd.f32 0.0, %v2360
        %v2362 = vpop.f32.mrf.mxu0
        %v2363 = vadd.f32 0.0, %v2362
        %2364 = vmatmul.bf16.gmra.mxu0 %v651
        %v2365 = vpop.f32.mrf.mxu0
        %v2366 = vadd.f32 0.0, %v2365
        %v2367 = vpop.f32.mrf.mxu0
        %v2368 = vadd.f32 0.0, %v2367
        %2369 = vmatmul.bf16.gmra.mxu0 %v654
        %v2370 = vpop.f32.mrf.mxu0
        %v2371 = vadd.f32 0.0, %v2370
        %v2372 = vpop.f32.mrf.mxu0
        %v2373 = vadd.f32 0.0, %v2372
        %2374 = vmatmul.bf16.gmra.mxu0 %v1092
        %v2375 = vpop.f32.mrf.mxu0
        %v2376 = vadd.f32 0.0, %v2375
        %v2377 = vpop.f32.mrf.mxu0
        %2378 = vdwg.mxu0
        %v2379 = vadd.f32 %v2223, %v2306
        %v2380 = vadd.f32 %v2225, %v2308
        %v2381 = vadd.f32 %v2228, %v2311
        %v2382 = vadd.f32 %v2230, %v2313
        %v2383 = vadd.f32 %v2233, %v2316
        %v2384 = vadd.f32 %v2235, %v2318
        %v2385 = vadd.f32 %v2238, %v2321
        %v2386 = vadd.f32 %v2240, %v2323
        %v2387 = vadd.f32 %v2243, %v2326
        %v2388 = vadd.f32 %v2245, %v2328
        %v2389 = vadd.f32 %v2248, %v2331
        %v2390 = vadd.f32 %v2250, %v2333
        %v2391 = vadd.f32 %v2253, %v2336
        %v2392 = vadd.f32 %v2255, %v2338
        %v2393 = vadd.f32 %v2258, %v2341
        %v2394 = vadd.f32 %v2260, %v2343
        %v2395 = vadd.f32 %v2263, %v2346
        %v2396 = vadd.f32 %v2265, %v2348
        %v2397 = vadd.f32 %v2268, %v2351
        %v2398 = vadd.f32 %v2270, %v2353
        %v2399 = vadd.f32 %v2273, %v2356
        %v2400 = vadd.f32 %v2275, %v2358
        %v2401 = vadd.f32 %v2278, %v2361
        %v2402 = vadd.f32 %v2280, %v2363
        %v2403 = vadd.f32 %v2283, %v2366
        %v2404 = vadd.f32 %v2285, %v2368
        %v2405 = vadd.f32 %v2288, %v2371
        %v2406 = vadd.f32 %v2290, %v2373
        %v2407 = vadd.f32 %v2293, %v2376
        %2408 = vmatpush.bf16.msra.mxu0 0
        %2409 = vmatpush.bf16.msra.mxu0 0
        %2410 = vmatpush.bf16.msra.mxu0 0
        %2411 = vmatpush.bf16.msra.mxu0 0
        %2412 = vmatpush.bf16.msra.mxu0 0
        %2413 = vmatpush.bf16.msra.mxu0 0
        %2414 = vmatpush.bf16.msra.mxu0 0
        %2415 = vmatpush.bf16.msra.mxu0 %v1089
        %2416 = vmatmul.bf16.gmra.mxu0 %v827
        %v2417 = vpop.f32.mrf.mxu0
        %v2418 = vadd.f32 0.0, %v2417
        %v2419 = vpop.f32.mrf.mxu0
        %v2420 = vadd.f32 0.0, %v2419
        %2421 = vmatmul.bf16.gmra.mxu0 %v830
        %v2422 = vpop.f32.mrf.mxu0
        %v2423 = vadd.f32 0.0, %v2422
        %v2424 = vpop.f32.mrf.mxu0
        %v2425 = vadd.f32 0.0, %v2424
        %2426 = vmatmul.bf16.gmra.mxu0 %v833
        %v2427 = vpop.f32.mrf.mxu0
        %v2428 = vadd.f32 0.0, %v2427
        %v2429 = vpop.f32.mrf.mxu0
        %v2430 = vadd.f32 0.0, %v2429
        %2431 = vmatmul.bf16.gmra.mxu0 %v836
        %v2432 = vpop.f32.mrf.mxu0
        %v2433 = vadd.f32 0.0, %v2432
        %v2434 = vpop.f32.mrf.mxu0
        %v2435 = vadd.f32 0.0, %v2434
        %2436 = vmatmul.bf16.gmra.mxu0 %v839
        %v2437 = vpop.f32.mrf.mxu0
        %v2438 = vadd.f32 0.0, %v2437
        %v2439 = vpop.f32.mrf.mxu0
        %v2440 = vadd.f32 0.0, %v2439
        %2441 = vmatmul.bf16.gmra.mxu0 %v842
        %v2442 = vpop.f32.mrf.mxu0
        %v2443 = vadd.f32 0.0, %v2442
        %v2444 = vpop.f32.mrf.mxu0
        %v2445 = vadd.f32 0.0, %v2444
        %2446 = vmatmul.bf16.gmra.mxu0 %v845
        %v2447 = vpop.f32.mrf.mxu0
        %v2448 = vadd.f32 0.0, %v2447
        %v2449 = vpop.f32.mrf.mxu0
        %v2450 = vadd.f32 0.0, %v2449
        %2451 = vmatmul.bf16.gmra.mxu0 %v848
        %v2452 = vpop.f32.mrf.mxu0
        %v2453 = vadd.f32 0.0, %v2452
        %v2454 = vpop.f32.mrf.mxu0
        %v2455 = vadd.f32 0.0, %v2454
        %2456 = vmatmul.bf16.gmra.mxu0 %v851
        %v2457 = vpop.f32.mrf.mxu0
        %v2458 = vadd.f32 0.0, %v2457
        %v2459 = vpop.f32.mrf.mxu0
        %v2460 = vadd.f32 0.0, %v2459
        %2461 = vmatmul.bf16.gmra.mxu0 %v854
        %v2462 = vpop.f32.mrf.mxu0
        %v2463 = vadd.f32 0.0, %v2462
        %v2464 = vpop.f32.mrf.mxu0
        %v2465 = vadd.f32 0.0, %v2464
        %2466 = vmatmul.bf16.gmra.mxu0 %v857
        %v2467 = vpop.f32.mrf.mxu0
        %v2468 = vadd.f32 0.0, %v2467
        %v2469 = vpop.f32.mrf.mxu0
        %v2470 = vadd.f32 0.0, %v2469
        %2471 = vmatmul.bf16.gmra.mxu0 %v860
        %v2472 = vpop.f32.mrf.mxu0
        %v2473 = vadd.f32 0.0, %v2472
        %v2474 = vpop.f32.mrf.mxu0
        %v2475 = vadd.f32 0.0, %v2474
        %2476 = vmatmul.bf16.gmra.mxu0 %v863
        %v2477 = vpop.f32.mrf.mxu0
        %v2478 = vadd.f32 0.0, %v2477
        %v2479 = vpop.f32.mrf.mxu0
        %v2480 = vadd.f32 0.0, %v2479
        %2481 = vmatmul.bf16.gmra.mxu0 %v963
        %v2482 = vpop.f32.mrf.mxu0
        %v2483 = vadd.f32 0.0, %v2482
        %v2484 = vpop.f32.mrf.mxu0
        %v2485 = vadd.f32 0.0, %v2484
        %2486 = vmatmul.bf16.gmra.mxu0 %v1221
        %v2487 = vpop.f32.mrf.mxu0
        %v2488 = vadd.f32 0.0, %v2487
        %v2489 = vpop.f32.mrf.mxu0
        %2490 = vdwg.mxu0
        %v2491 = vadd.f32 %v2379, %v2418
        %v2492 = vadd.f32 %v2380, %v2420
        %v2493 = vadd.f32 %v2381, %v2423
        %v2494 = vadd.f32 %v2382, %v2425
        %v2495 = vadd.f32 %v2383, %v2428
        %v2496 = vadd.f32 %v2384, %v2430
        %v2497 = vadd.f32 %v2385, %v2433
        %v2498 = vadd.f32 %v2386, %v2435
        %v2499 = vadd.f32 %v2387, %v2438
        %v2500 = vadd.f32 %v2388, %v2440
        %v2501 = vadd.f32 %v2389, %v2443
        %v2502 = vadd.f32 %v2390, %v2445
        %v2503 = vadd.f32 %v2391, %v2448
        %v2504 = vadd.f32 %v2392, %v2450
        %v2505 = vadd.f32 %v2393, %v2453
        %v2506 = vadd.f32 %v2394, %v2455
        %v2507 = vadd.f32 %v2395, %v2458
        %v2508 = vadd.f32 %v2396, %v2460
        %v2509 = vadd.f32 %v2397, %v2463
        %v2510 = vadd.f32 %v2398, %v2465
        %v2511 = vadd.f32 %v2399, %v2468
        %v2512 = vadd.f32 %v2400, %v2470
        %v2513 = vadd.f32 %v2401, %v2473
        %v2514 = vadd.f32 %v2402, %v2475
        %v2515 = vadd.f32 %v2403, %v2478
        %v2516 = vadd.f32 %v2404, %v2480
        %v2517 = vadd.f32 %v2405, %v2483
        %v2518 = vadd.f32 %v2406, %v2485
        %v2519 = vadd.f32 %v2407, %v2488
        %v2522 = vunpack.c.l.b16 %v487
        %v2523 = vunpack.c.l.b16 %v488
        %v2524 = vpack.c.b16 %v2523, %v2522
        %v2526 = vsel %vm610, %v2524, 0
        %2528 = vmatpush.bf16.msra.mxu0 0
        %2529 = vmatpush.bf16.msra.mxu0 0
        %2530 = vmatpush.bf16.msra.mxu0 0
        %2531 = vmatpush.bf16.msra.mxu0 0
        %2532 = vmatpush.bf16.msra.mxu0 0
        %2533 = vmatpush.bf16.msra.mxu0 0
        %2534 = vmatpush.bf16.msra.mxu0 0
        %2535 = vmatpush.bf16.msra.mxu0 %v1218
        %2536 = vmatmul.bf16.gmra.mxu0 %v618
        %v2537 = vpop.f32.mrf.mxu0
        %v2538 = vadd.f32 0.0, %v2537
        %v2539 = vpop.f32.mrf.mxu0
        %v2540 = vadd.f32 0.0, %v2539
        %2541 = vmatmul.bf16.gmra.mxu0 %v621
        %v2542 = vpop.f32.mrf.mxu0
        %v2543 = vadd.f32 0.0, %v2542
        %v2544 = vpop.f32.mrf.mxu0
        %v2545 = vadd.f32 0.0, %v2544
        %2546 = vmatmul.bf16.gmra.mxu0 %v624
        %v2547 = vpop.f32.mrf.mxu0
        %v2548 = vadd.f32 0.0, %v2547
        %v2549 = vpop.f32.mrf.mxu0
        %v2550 = vadd.f32 0.0, %v2549
        %2551 = vmatmul.bf16.gmra.mxu0 %v627
        %v2552 = vpop.f32.mrf.mxu0
        %v2553 = vadd.f32 0.0, %v2552
        %v2554 = vpop.f32.mrf.mxu0
        %v2555 = vadd.f32 0.0, %v2554
        %2556 = vmatmul.bf16.gmra.mxu0 %v630
        %v2557 = vpop.f32.mrf.mxu0
        %v2558 = vadd.f32 0.0, %v2557
        %v2559 = vpop.f32.mrf.mxu0
        %v2560 = vadd.f32 0.0, %v2559
        %2561 = vmatmul.bf16.gmra.mxu0 %v633
        %v2562 = vpop.f32.mrf.mxu0
        %v2563 = vadd.f32 0.0, %v2562
        %v2564 = vpop.f32.mrf.mxu0
        %v2565 = vadd.f32 0.0, %v2564
        %2566 = vmatmul.bf16.gmra.mxu0 %v636
        %v2567 = vpop.f32.mrf.mxu0
        %v2568 = vadd.f32 0.0, %v2567
        %v2569 = vpop.f32.mrf.mxu0
        %v2570 = vadd.f32 0.0, %v2569
        %2571 = vmatmul.bf16.gmra.mxu0 %v639
        %v2572 = vpop.f32.mrf.mxu0
        %v2573 = vadd.f32 0.0, %v2572
        %v2574 = vpop.f32.mrf.mxu0
        %v2575 = vadd.f32 0.0, %v2574
        %2576 = vmatmul.bf16.gmra.mxu0 %v642
        %v2577 = vpop.f32.mrf.mxu0
        %v2578 = vadd.f32 0.0, %v2577
        %v2579 = vpop.f32.mrf.mxu0
        %v2580 = vadd.f32 0.0, %v2579
        %2581 = vmatmul.bf16.gmra.mxu0 %v645
        %v2582 = vpop.f32.mrf.mxu0
        %v2583 = vadd.f32 0.0, %v2582
        %v2584 = vpop.f32.mrf.mxu0
        %v2585 = vadd.f32 0.0, %v2584
        %2586 = vmatmul.bf16.gmra.mxu0 %v648
        %v2587 = vpop.f32.mrf.mxu0
        %v2588 = vadd.f32 0.0, %v2587
        %v2589 = vpop.f32.mrf.mxu0
        %v2590 = vadd.f32 0.0, %v2589
        %2591 = vmatmul.bf16.gmra.mxu0 %v651
        %v2592 = vpop.f32.mrf.mxu0
        %v2593 = vadd.f32 0.0, %v2592
        %v2594 = vpop.f32.mrf.mxu0
        %v2595 = vadd.f32 0.0, %v2594
        %2596 = vmatmul.bf16.gmra.mxu0 %v654
        %v2597 = vpop.f32.mrf.mxu0
        %v2598 = vadd.f32 0.0, %v2597
        %v2599 = vpop.f32.mrf.mxu0
        %v2600 = vadd.f32 0.0, %v2599
        %2601 = vmatmul.bf16.gmra.mxu0 %v1092
        %v2602 = vpop.f32.mrf.mxu0
        %v2603 = vadd.f32 0.0, %v2602
        %v2604 = vpop.f32.mrf.mxu0
        %v2605 = vadd.f32 0.0, %v2604
        %2606 = vmatmul.bf16.gmra.mxu0 %v2526
        %v2607 = vpop.f32.mrf.mxu0
        %v2608 = vadd.f32 0.0, %v2607
        %v2609 = vpop.f32.mrf.mxu0
        %2610 = vdwg.mxu0
        %v2611 = vadd.f32 %v2491, %v2538
        %v2612 = vadd.f32 %v2492, %v2540
        %v2613 = vadd.f32 %v2493, %v2543
        %v2614 = vadd.f32 %v2494, %v2545
        %v2615 = vadd.f32 %v2495, %v2548
        %v2616 = vadd.f32 %v2496, %v2550
        %v2617 = vadd.f32 %v2497, %v2553
        %v2618 = vadd.f32 %v2498, %v2555
        %v2619 = vadd.f32 %v2499, %v2558
        %v2620 = vadd.f32 %v2500, %v2560
        %v2621 = vadd.f32 %v2501, %v2563
        %v2622 = vadd.f32 %v2502, %v2565
        %v2623 = vadd.f32 %v2503, %v2568
        %v2624 = vadd.f32 %v2504, %v2570
        %v2625 = vadd.f32 %v2505, %v2573
        %v2626 = vadd.f32 %v2506, %v2575
        %v2627 = vadd.f32 %v2507, %v2578
        %v2628 = vadd.f32 %v2508, %v2580
        %v2629 = vadd.f32 %v2509, %v2583
        %v2630 = vadd.f32 %v2510, %v2585
        %v2631 = vadd.f32 %v2511, %v2588
        %v2632 = vadd.f32 %v2512, %v2590
        %v2633 = vadd.f32 %v2513, %v2593
        %v2634 = vadd.f32 %v2514, %v2595
        %v2635 = vadd.f32 %v2515, %v2598
        %v2636 = vadd.f32 %v2516, %v2600
        %v2637 = vadd.f32 %v2517, %v2603
        %v2638 = vadd.f32 %v2518, %v2605
        %v2639 = vadd.f32 %v2519, %v2608
        %v2640 = vmax.f32 %v2101, %v2611
        %v2641 = vmax.f32 %v2102, %v2612
        %v2642 = vmax.f32 %v2103, %v2613
        %v2643 = vmax.f32 %v2104, %v2614
        %v2644 = vmax.f32 %v2105, %v2615
        %v2645 = vmax.f32 %v2106, %v2616
        %v2646 = vmax.f32 %v2107, %v2617
        %v2647 = vmax.f32 %v2108, %v2618
        %v2648 = vmax.f32 %v2109, %v2619
        %v2649 = vmax.f32 %v2110, %v2620
        %v2650 = vmax.f32 %v2111, %v2621
        %v2651 = vmax.f32 %v2112, %v2622
        %v2652 = vmax.f32 %v2113, %v2623
        %v2653 = vmax.f32 %v2114, %v2624
        %v2654 = vmax.f32 %v2115, %v2625
        %v2655 = vmax.f32 %v2116, %v2626
        %v2656 = vmax.f32 %v2117, %v2627
        %v2657 = vmax.f32 %v2118, %v2628
        %v2658 = vmax.f32 %v2119, %v2629
        %v2659 = vmax.f32 %v2120, %v2630
        %v2660 = vmax.f32 %v2121, %v2631
        %v2661 = vmax.f32 %v2122, %v2632
        %v2662 = vmax.f32 %v2123, %v2633
        %v2663 = vmax.f32 %v2124, %v2634
        %v2664 = vmax.f32 %v2125, %v2635
        %v2665 = vmax.f32 %v2126, %v2636
        %v2666 = vmax.f32 %v2127, %v2637
        %v2667 = vmax.f32 %v2128, %v2638
        %v2668 = vmax.f32 %v2129, %v2639
        %2669 = vmatpush.bf16.msra.mxu0 0
        %2670 = vmatpush.bf16.msra.mxu0 0
        %2671 = vmatpush.bf16.msra.mxu0 0
        %2672 = vmatpush.bf16.msra.mxu0 0
        %2673 = vmatpush.bf16.msra.mxu0 0
        %2674 = vmatpush.bf16.msra.mxu0 0
        %2675 = vmatpush.bf16.msra.mxu0 0
        %2676 = vmatpush.bf16.msra.mxu0 %v608
        %2677 = vmatmul.bf16.gmra.mxu0 %v1617
        %v2678 = vpop.f32.mrf.mxu0
        %v2679 = vadd.f32 0.0, %v2678
        %v2680 = vpop.f32.mrf.mxu0
        %v2681 = vadd.f32 0.0, %v2680
        %2682 = vmatmul.bf16.gmra.mxu0 %v1620
        %v2683 = vpop.f32.mrf.mxu0
        %v2684 = vadd.f32 0.0, %v2683
        %v2685 = vpop.f32.mrf.mxu0
        %v2686 = vadd.f32 0.0, %v2685
        %2687 = vmatmul.bf16.gmra.mxu0 %v1623
        %v2688 = vpop.f32.mrf.mxu0
        %v2689 = vadd.f32 0.0, %v2688
        %v2690 = vpop.f32.mrf.mxu0
        %v2691 = vadd.f32 0.0, %v2690
        %2692 = vmatmul.bf16.gmra.mxu0 %v1626
        %v2693 = vpop.f32.mrf.mxu0
        %v2694 = vadd.f32 0.0, %v2693
        %v2695 = vpop.f32.mrf.mxu0
        %v2696 = vadd.f32 0.0, %v2695
        %2697 = vmatmul.bf16.gmra.mxu0 %v1629
        %v2698 = vpop.f32.mrf.mxu0
        %v2699 = vadd.f32 0.0, %v2698
        %v2700 = vpop.f32.mrf.mxu0
        %v2701 = vadd.f32 0.0, %v2700
        %2702 = vmatmul.bf16.gmra.mxu0 %v1632
        %v2703 = vpop.f32.mrf.mxu0
        %v2704 = vadd.f32 0.0, %v2703
        %v2705 = vpop.f32.mrf.mxu0
        %v2706 = vadd.f32 0.0, %v2705
        %2707 = vmatmul.bf16.gmra.mxu0 %v1635
        %v2708 = vpop.f32.mrf.mxu0
        %v2709 = vadd.f32 0.0, %v2708
        %v2710 = vpop.f32.mrf.mxu0
        %v2711 = vadd.f32 0.0, %v2710
        %2712 = vmatmul.bf16.gmra.mxu0 %v1638
        %v2713 = vpop.f32.mrf.mxu0
        %v2714 = vadd.f32 0.0, %v2713
        %v2715 = vpop.f32.mrf.mxu0
        %v2716 = vadd.f32 0.0, %v2715
        %2717 = vmatmul.bf16.gmra.mxu0 %v1641
        %v2718 = vpop.f32.mrf.mxu0
        %v2719 = vadd.f32 0.0, %v2718
        %v2720 = vpop.f32.mrf.mxu0
        %v2721 = vadd.f32 0.0, %v2720
        %2722 = vmatmul.bf16.gmra.mxu0 %v1644
        %v2723 = vpop.f32.mrf.mxu0
        %v2724 = vadd.f32 0.0, %v2723
        %v2725 = vpop.f32.mrf.mxu0
        %v2726 = vadd.f32 0.0, %v2725
        %2727 = vmatmul.bf16.gmra.mxu0 %v1647
        %v2728 = vpop.f32.mrf.mxu0
        %v2729 = vadd.f32 0.0, %v2728
        %v2730 = vpop.f32.mrf.mxu0
        %v2731 = vadd.f32 0.0, %v2730
        %2732 = vmatmul.bf16.gmra.mxu0 %v1650
        %v2733 = vpop.f32.mrf.mxu0
        %v2734 = vadd.f32 0.0, %v2733
        %v2735 = vpop.f32.mrf.mxu0
        %v2736 = vadd.f32 0.0, %v2735
        %2737 = vmatmul.bf16.gmra.mxu0 %v1653
        %v2738 = vpop.f32.mrf.mxu0
        %v2739 = vadd.f32 0.0, %v2738
        %v2740 = vpop.f32.mrf.mxu0
        %v2741 = vadd.f32 0.0, %v2740
        %2742 = vmatmul.bf16.gmra.mxu0 %v1656
        %v2743 = vpop.f32.mrf.mxu0
        %v2744 = vadd.f32 0.0, %v2743
        %v2745 = vpop.f32.mrf.mxu0
        %v2746 = vadd.f32 0.0, %v2745
        %2747 = vmatmul.bf16.gmra.mxu0 %v1747
        %v2748 = vpop.f32.mrf.mxu0
        %v2749 = vadd.f32 0.0, %v2748
        %v2750 = vpop.f32.mrf.mxu0
        %2751 = vdwg.mxu0
        %2752 = vmatpush.bf16.msra.mxu0 0
        %2753 = vmatpush.bf16.msra.mxu0 0
        %2754 = vmatpush.bf16.msra.mxu0 0
        %2755 = vmatpush.bf16.msra.mxu0 0
        %2756 = vmatpush.bf16.msra.mxu0 0
        %2757 = vmatpush.bf16.msra.mxu0 0
        %2758 = vmatpush.bf16.msra.mxu0 0
        %2759 = vmatpush.bf16.msra.mxu0 %v818
        %2760 = vmatmul.bf16.gmra.mxu0 %v1411
        %v2761 = vpop.f32.mrf.mxu0
        %v2762 = vadd.f32 %v2679, %v2761
        %v2763 = vpop.f32.mrf.mxu0
        %v2764 = vadd.f32 %v2681, %v2763
        %2765 = vmatmul.bf16.gmra.mxu0 %v1414
        %v2766 = vpop.f32.mrf.mxu0
        %v2767 = vadd.f32 %v2684, %v2766
        %v2768 = vpop.f32.mrf.mxu0
        %v2769 = vadd.f32 %v2686, %v2768
        %2770 = vmatmul.bf16.gmra.mxu0 %v1417
        %v2771 = vpop.f32.mrf.mxu0
        %v2772 = vadd.f32 %v2689, %v2771
        %v2773 = vpop.f32.mrf.mxu0
        %v2774 = vadd.f32 %v2691, %v2773
        %2775 = vmatmul.bf16.gmra.mxu0 %v1420
        %v2776 = vpop.f32.mrf.mxu0
        %v2777 = vadd.f32 %v2694, %v2776
        %v2778 = vpop.f32.mrf.mxu0
        %v2779 = vadd.f32 %v2696, %v2778
        %2780 = vmatmul.bf16.gmra.mxu0 %v1423
        %v2781 = vpop.f32.mrf.mxu0
        %v2782 = vadd.f32 %v2699, %v2781
        %v2783 = vpop.f32.mrf.mxu0
        %v2784 = vadd.f32 %v2701, %v2783
        %2785 = vmatmul.bf16.gmra.mxu0 %v1426
        %v2786 = vpop.f32.mrf.mxu0
        %v2787 = vadd.f32 %v2704, %v2786
        %v2788 = vpop.f32.mrf.mxu0
        %v2789 = vadd.f32 %v2706, %v2788
        %2790 = vmatmul.bf16.gmra.mxu0 %v1429
        %v2791 = vpop.f32.mrf.mxu0
        %v2792 = vadd.f32 %v2709, %v2791
        %v2793 = vpop.f32.mrf.mxu0
        %v2794 = vadd.f32 %v2711, %v2793
        %2795 = vmatmul.bf16.gmra.mxu0 %v1432
        %v2796 = vpop.f32.mrf.mxu0
        %v2797 = vadd.f32 %v2714, %v2796
        %v2798 = vpop.f32.mrf.mxu0
        %v2799 = vadd.f32 %v2716, %v2798
        %2800 = vmatmul.bf16.gmra.mxu0 %v1435
        %v2801 = vpop.f32.mrf.mxu0
        %v2802 = vadd.f32 %v2719, %v2801
        %v2803 = vpop.f32.mrf.mxu0
        %v2804 = vadd.f32 %v2721, %v2803
        %2805 = vmatmul.bf16.gmra.mxu0 %v1438
        %v2806 = vpop.f32.mrf.mxu0
        %v2807 = vadd.f32 %v2724, %v2806
        %v2808 = vpop.f32.mrf.mxu0
        %v2809 = vadd.f32 %v2726, %v2808
        %2810 = vmatmul.bf16.gmra.mxu0 %v1441
        %v2811 = vpop.f32.mrf.mxu0
        %v2812 = vadd.f32 %v2729, %v2811
        %v2813 = vpop.f32.mrf.mxu0
        %v2814 = vadd.f32 %v2731, %v2813
        %2815 = vmatmul.bf16.gmra.mxu0 %v1444
        %v2816 = vpop.f32.mrf.mxu0
        %v2817 = vadd.f32 %v2734, %v2816
        %v2818 = vpop.f32.mrf.mxu0
        %v2819 = vadd.f32 %v2736, %v2818
        %2820 = vmatmul.bf16.gmra.mxu0 %v1447
        %v2821 = vpop.f32.mrf.mxu0
        %v2822 = vadd.f32 %v2739, %v2821
        %v2823 = vpop.f32.mrf.mxu0
        %v2824 = vadd.f32 %v2741, %v2823
        %2825 = vmatmul.bf16.gmra.mxu0 %v1450
        %v2826 = vpop.f32.mrf.mxu0
        %v2827 = vadd.f32 %v2744, %v2826
        %v2828 = vpop.f32.mrf.mxu0
        %v2829 = vadd.f32 %v2746, %v2828
        %2830 = vmatmul.bf16.gmra.mxu0 %v1453
        %v2831 = vpop.f32.mrf.mxu0
        %v2832 = vadd.f32 %v2749, %v2831
        %v2833 = vpop.f32.mrf.mxu0
        %2834 = vdwg.mxu0
        %2835 = vmatpush.bf16.msra.mxu0 0
        %2836 = vmatpush.bf16.msra.mxu0 0
        %2837 = vmatpush.bf16.msra.mxu0 0
        %2838 = vmatpush.bf16.msra.mxu0 0
        %2839 = vmatpush.bf16.msra.mxu0 0
        %2840 = vmatpush.bf16.msra.mxu0 0
        %2841 = vmatpush.bf16.msra.mxu0 0
        %2842 = vmatpush.bf16.msra.mxu0 %v960
        %2843 = vmatmul.bf16.gmra.mxu0 %v1414
        %v2844 = vpop.f32.mrf.mxu0
        %v2845 = vadd.f32 0.0, %v2844
        %v2846 = vpop.f32.mrf.mxu0
        %v2847 = vadd.f32 0.0, %v2846
        %2848 = vmatmul.bf16.gmra.mxu0 %v1417
        %v2849 = vpop.f32.mrf.mxu0
        %v2850 = vadd.f32 0.0, %v2849
        %v2851 = vpop.f32.mrf.mxu0
        %v2852 = vadd.f32 0.0, %v2851
        %2853 = vmatmul.bf16.gmra.mxu0 %v1420
        %v2854 = vpop.f32.mrf.mxu0
        %v2855 = vadd.f32 0.0, %v2854
        %v2856 = vpop.f32.mrf.mxu0
        %v2857 = vadd.f32 0.0, %v2856
        %2858 = vmatmul.bf16.gmra.mxu0 %v1423
        %v2859 = vpop.f32.mrf.mxu0
        %v2860 = vadd.f32 0.0, %v2859
        %v2861 = vpop.f32.mrf.mxu0
        %v2862 = vadd.f32 0.0, %v2861
        %2863 = vmatmul.bf16.gmra.mxu0 %v1426
        %v2864 = vpop.f32.mrf.mxu0
        %v2865 = vadd.f32 0.0, %v2864
        %v2866 = vpop.f32.mrf.mxu0
        %v2867 = vadd.f32 0.0, %v2866
        %2868 = vmatmul.bf16.gmra.mxu0 %v1429
        %v2869 = vpop.f32.mrf.mxu0
        %v2870 = vadd.f32 0.0, %v2869
        %v2871 = vpop.f32.mrf.mxu0
        %v2872 = vadd.f32 0.0, %v2871
        %2873 = vmatmul.bf16.gmra.mxu0 %v1432
        %v2874 = vpop.f32.mrf.mxu0
        %v2875 = vadd.f32 0.0, %v2874
        %v2876 = vpop.f32.mrf.mxu0
        %v2877 = vadd.f32 0.0, %v2876
        %2878 = vmatmul.bf16.gmra.mxu0 %v1435
        %v2879 = vpop.f32.mrf.mxu0
        %v2880 = vadd.f32 0.0, %v2879
        %v2881 = vpop.f32.mrf.mxu0
        %v2882 = vadd.f32 0.0, %v2881
        %2883 = vmatmul.bf16.gmra.mxu0 %v1438
        %v2884 = vpop.f32.mrf.mxu0
        %v2885 = vadd.f32 0.0, %v2884
        %v2886 = vpop.f32.mrf.mxu0
        %v2887 = vadd.f32 0.0, %v2886
        %2888 = vmatmul.bf16.gmra.mxu0 %v1441
        %v2889 = vpop.f32.mrf.mxu0
        %v2890 = vadd.f32 0.0, %v2889
        %v2891 = vpop.f32.mrf.mxu0
        %v2892 = vadd.f32 0.0, %v2891
        %2893 = vmatmul.bf16.gmra.mxu0 %v1444
        %v2894 = vpop.f32.mrf.mxu0
        %v2895 = vadd.f32 0.0, %v2894
        %v2896 = vpop.f32.mrf.mxu0
        %v2897 = vadd.f32 0.0, %v2896
        %2898 = vmatmul.bf16.gmra.mxu0 %v1447
        %v2899 = vpop.f32.mrf.mxu0
        %v2900 = vadd.f32 0.0, %v2899
        %v2901 = vpop.f32.mrf.mxu0
        %v2902 = vadd.f32 0.0, %v2901
        %2903 = vmatmul.bf16.gmra.mxu0 %v1450
        %v2904 = vpop.f32.mrf.mxu0
        %v2905 = vadd.f32 0.0, %v2904
        %v2906 = vpop.f32.mrf.mxu0
        %v2907 = vadd.f32 0.0, %v2906
        %2908 = vmatmul.bf16.gmra.mxu0 %v1453
        %v2909 = vpop.f32.mrf.mxu0
        %v2910 = vadd.f32 0.0, %v2909
        %v2911 = vpop.f32.mrf.mxu0
        %v2912 = vadd.f32 0.0, %v2911
        %2913 = vmatmul.bf16.gmra.mxu0 %v1867
        %v2914 = vpop.f32.mrf.mxu0
        %v2915 = vadd.f32 0.0, %v2914
        %v2916 = vpop.f32.mrf.mxu0
        %2917 = vdwg.mxu0
        %v2918 = vadd.f32 %v2762, %v2845
        %v2919 = vadd.f32 %v2764, %v2847
        %v2920 = vadd.f32 %v2767, %v2850
        %v2921 = vadd.f32 %v2769, %v2852
        %v2922 = vadd.f32 %v2772, %v2855
        %v2923 = vadd.f32 %v2774, %v2857
        %v2924 = vadd.f32 %v2777, %v2860
        %v2925 = vadd.f32 %v2779, %v2862
        %v2926 = vadd.f32 %v2782, %v2865
        %v2927 = vadd.f32 %v2784, %v2867
        %v2928 = vadd.f32 %v2787, %v2870
        %v2929 = vadd.f32 %v2789, %v2872
        %v2930 = vadd.f32 %v2792, %v2875
        %v2931 = vadd.f32 %v2794, %v2877
        %v2932 = vadd.f32 %v2797, %v2880
        %v2933 = vadd.f32 %v2799, %v2882
        %v2934 = vadd.f32 %v2802, %v2885
        %v2935 = vadd.f32 %v2804, %v2887
        %v2936 = vadd.f32 %v2807, %v2890
        %v2937 = vadd.f32 %v2809, %v2892
        %v2938 = vadd.f32 %v2812, %v2895
        %v2939 = vadd.f32 %v2814, %v2897
        %v2940 = vadd.f32 %v2817, %v2900
        %v2941 = vadd.f32 %v2819, %v2902
        %v2942 = vadd.f32 %v2822, %v2905
        %v2943 = vadd.f32 %v2824, %v2907
        %v2944 = vadd.f32 %v2827, %v2910
        %v2945 = vadd.f32 %v2829, %v2912
        %v2946 = vadd.f32 %v2832, %v2915
        %2947 = vmatpush.bf16.msra.mxu0 0
        %2948 = vmatpush.bf16.msra.mxu0 0
        %2949 = vmatpush.bf16.msra.mxu0 0
        %2950 = vmatpush.bf16.msra.mxu0 0
        %2951 = vmatpush.bf16.msra.mxu0 0
        %2952 = vmatpush.bf16.msra.mxu0 0
        %2953 = vmatpush.bf16.msra.mxu0 0
        %2954 = vmatpush.bf16.msra.mxu0 %v1089
        %2955 = vmatmul.bf16.gmra.mxu0 %v1620
        %v2956 = vpop.f32.mrf.mxu0
        %v2957 = vadd.f32 0.0, %v2956
        %v2958 = vpop.f32.mrf.mxu0
        %v2959 = vadd.f32 0.0, %v2958
        %2960 = vmatmul.bf16.gmra.mxu0 %v1623
        %v2961 = vpop.f32.mrf.mxu0
        %v2962 = vadd.f32 0.0, %v2961
        %v2963 = vpop.f32.mrf.mxu0
        %v2964 = vadd.f32 0.0, %v2963
        %2965 = vmatmul.bf16.gmra.mxu0 %v1626
        %v2966 = vpop.f32.mrf.mxu0
        %v2967 = vadd.f32 0.0, %v2966
        %v2968 = vpop.f32.mrf.mxu0
        %v2969 = vadd.f32 0.0, %v2968
        %2970 = vmatmul.bf16.gmra.mxu0 %v1629
        %v2971 = vpop.f32.mrf.mxu0
        %v2972 = vadd.f32 0.0, %v2971
        %v2973 = vpop.f32.mrf.mxu0
        %v2974 = vadd.f32 0.0, %v2973
        %2975 = vmatmul.bf16.gmra.mxu0 %v1632
        %v2976 = vpop.f32.mrf.mxu0
        %v2977 = vadd.f32 0.0, %v2976
        %v2978 = vpop.f32.mrf.mxu0
        %v2979 = vadd.f32 0.0, %v2978
        %2980 = vmatmul.bf16.gmra.mxu0 %v1635
        %v2981 = vpop.f32.mrf.mxu0
        %v2982 = vadd.f32 0.0, %v2981
        %v2983 = vpop.f32.mrf.mxu0
        %v2984 = vadd.f32 0.0, %v2983
        %2985 = vmatmul.bf16.gmra.mxu0 %v1638
        %v2986 = vpop.f32.mrf.mxu0
        %v2987 = vadd.f32 0.0, %v2986
        %v2988 = vpop.f32.mrf.mxu0
        %v2989 = vadd.f32 0.0, %v2988
        %2990 = vmatmul.bf16.gmra.mxu0 %v1641
        %v2991 = vpop.f32.mrf.mxu0
        %v2992 = vadd.f32 0.0, %v2991
        %v2993 = vpop.f32.mrf.mxu0
        %v2994 = vadd.f32 0.0, %v2993
        %2995 = vmatmul.bf16.gmra.mxu0 %v1644
        %v2996 = vpop.f32.mrf.mxu0
        %v2997 = vadd.f32 0.0, %v2996
        %v2998 = vpop.f32.mrf.mxu0
        %v2999 = vadd.f32 0.0, %v2998
        %3000 = vmatmul.bf16.gmra.mxu0 %v1647
        %v3001 = vpop.f32.mrf.mxu0
        %v3002 = vadd.f32 0.0, %v3001
        %v3003 = vpop.f32.mrf.mxu0
        %v3004 = vadd.f32 0.0, %v3003
        %3005 = vmatmul.bf16.gmra.mxu0 %v1650
        %v3006 = vpop.f32.mrf.mxu0
        %v3007 = vadd.f32 0.0, %v3006
        %v3008 = vpop.f32.mrf.mxu0
        %v3009 = vadd.f32 0.0, %v3008
        %3010 = vmatmul.bf16.gmra.mxu0 %v1653
        %v3011 = vpop.f32.mrf.mxu0
        %v3012 = vadd.f32 0.0, %v3011
        %v3013 = vpop.f32.mrf.mxu0
        %v3014 = vadd.f32 0.0, %v3013
        %3015 = vmatmul.bf16.gmra.mxu0 %v1656
        %v3016 = vpop.f32.mrf.mxu0
        %v3017 = vadd.f32 0.0, %v3016
        %v3018 = vpop.f32.mrf.mxu0
        %v3019 = vadd.f32 0.0, %v3018
        %3020 = vmatmul.bf16.gmra.mxu0 %v1747
        %v3021 = vpop.f32.mrf.mxu0
        %v3022 = vadd.f32 0.0, %v3021
        %v3023 = vpop.f32.mrf.mxu0
        %v3024 = vadd.f32 0.0, %v3023
        %3025 = vmatmul.bf16.gmra.mxu0 %v1987
        %v3026 = vpop.f32.mrf.mxu0
        %v3027 = vadd.f32 0.0, %v3026
        %v3028 = vpop.f32.mrf.mxu0
        %3029 = vdwg.mxu0
        %v3030 = vadd.f32 %v2918, %v2957
        %v3031 = vadd.f32 %v2919, %v2959
        %v3032 = vadd.f32 %v2920, %v2962
        %v3033 = vadd.f32 %v2921, %v2964
        %v3034 = vadd.f32 %v2922, %v2967
        %v3035 = vadd.f32 %v2923, %v2969
        %v3036 = vadd.f32 %v2924, %v2972
        %v3037 = vadd.f32 %v2925, %v2974
        %v3038 = vadd.f32 %v2926, %v2977
        %v3039 = vadd.f32 %v2927, %v2979
        %v3040 = vadd.f32 %v2928, %v2982
        %v3041 = vadd.f32 %v2929, %v2984
        %v3042 = vadd.f32 %v2930, %v2987
        %v3043 = vadd.f32 %v2931, %v2989
        %v3044 = vadd.f32 %v2932, %v2992
        %v3045 = vadd.f32 %v2933, %v2994
        %v3046 = vadd.f32 %v2934, %v2997
        %v3047 = vadd.f32 %v2935, %v2999
        %v3048 = vadd.f32 %v2936, %v3002
        %v3049 = vadd.f32 %v2937, %v3004
        %v3050 = vadd.f32 %v2938, %v3007
        %v3051 = vadd.f32 %v2939, %v3009
        %v3052 = vadd.f32 %v2940, %v3012
        %v3053 = vadd.f32 %v2941, %v3014
        %v3054 = vadd.f32 %v2942, %v3017
        %v3055 = vadd.f32 %v2943, %v3019
        %v3056 = vadd.f32 %v2944, %v3022
        %v3057 = vadd.f32 %v2945, %v3024
        %v3058 = vadd.f32 %v2946, %v3027
        %v3061 = vunpack.c.l.b16 %v522
        %v3062 = vunpack.c.l.b16 %v523
        %v3063 = vpack.c.b16 %v3062, %v3061
        %v3065 = vsel %vm610, %v3063, 0
        %3067 = vmatpush.bf16.msra.mxu0 0
        %3068 = vmatpush.bf16.msra.mxu0 0
        %3069 = vmatpush.bf16.msra.mxu0 0
        %3070 = vmatpush.bf16.msra.mxu0 0
        %3071 = vmatpush.bf16.msra.mxu0 0
        %3072 = vmatpush.bf16.msra.mxu0 0
        %3073 = vmatpush.bf16.msra.mxu0 0
        %3074 = vmatpush.bf16.msra.mxu0 %v1218
        %3075 = vmatmul.bf16.gmra.mxu0 %v1417
        %v3076 = vpop.f32.mrf.mxu0
        %v3077 = vadd.f32 0.0, %v3076
        %v3078 = vpop.f32.mrf.mxu0
        %v3079 = vadd.f32 0.0, %v3078
        %3080 = vmatmul.bf16.gmra.mxu0 %v1420
        %v3081 = vpop.f32.mrf.mxu0
        %v3082 = vadd.f32 0.0, %v3081
        %v3083 = vpop.f32.mrf.mxu0
        %v3084 = vadd.f32 0.0, %v3083
        %3085 = vmatmul.bf16.gmra.mxu0 %v1423
        %v3086 = vpop.f32.mrf.mxu0
        %v3087 = vadd.f32 0.0, %v3086
        %v3088 = vpop.f32.mrf.mxu0
        %v3089 = vadd.f32 0.0, %v3088
        %3090 = vmatmul.bf16.gmra.mxu0 %v1426
        %v3091 = vpop.f32.mrf.mxu0
        %v3092 = vadd.f32 0.0, %v3091
        %v3093 = vpop.f32.mrf.mxu0
        %v3094 = vadd.f32 0.0, %v3093
        %3095 = vmatmul.bf16.gmra.mxu0 %v1429
        %v3096 = vpop.f32.mrf.mxu0
        %v3097 = vadd.f32 0.0, %v3096
        %v3098 = vpop.f32.mrf.mxu0
        %v3099 = vadd.f32 0.0, %v3098
        %3100 = vmatmul.bf16.gmra.mxu0 %v1432
        %v3101 = vpop.f32.mrf.mxu0
        %v3102 = vadd.f32 0.0, %v3101
        %v3103 = vpop.f32.mrf.mxu0
        %v3104 = vadd.f32 0.0, %v3103
        %3105 = vmatmul.bf16.gmra.mxu0 %v1435
        %v3106 = vpop.f32.mrf.mxu0
        %v3107 = vadd.f32 0.0, %v3106
        %v3108 = vpop.f32.mrf.mxu0
        %v3109 = vadd.f32 0.0, %v3108
        %3110 = vmatmul.bf16.gmra.mxu0 %v1438
        %v3111 = vpop.f32.mrf.mxu0
        %v3112 = vadd.f32 0.0, %v3111
        %v3113 = vpop.f32.mrf.mxu0
        %v3114 = vadd.f32 0.0, %v3113
        %3115 = vmatmul.bf16.gmra.mxu0 %v1441
        %v3116 = vpop.f32.mrf.mxu0
        %v3117 = vadd.f32 0.0, %v3116
        %v3118 = vpop.f32.mrf.mxu0
        %v3119 = vadd.f32 0.0, %v3118
        %3120 = vmatmul.bf16.gmra.mxu0 %v1444
        %v3121 = vpop.f32.mrf.mxu0
        %v3122 = vadd.f32 0.0, %v3121
        %v3123 = vpop.f32.mrf.mxu0
        %v3124 = vadd.f32 0.0, %v3123
        %3125 = vmatmul.bf16.gmra.mxu0 %v1447
        %v3126 = vpop.f32.mrf.mxu0
        %v3127 = vadd.f32 0.0, %v3126
        %v3128 = vpop.f32.mrf.mxu0
        %v3129 = vadd.f32 0.0, %v3128
        %3130 = vmatmul.bf16.gmra.mxu0 %v1450
        %v3131 = vpop.f32.mrf.mxu0
        %v3132 = vadd.f32 0.0, %v3131
        %v3133 = vpop.f32.mrf.mxu0
        %v3134 = vadd.f32 0.0, %v3133
        %3135 = vmatmul.bf16.gmra.mxu0 %v1453
        %v3136 = vpop.f32.mrf.mxu0
        %v3137 = vadd.f32 0.0, %v3136
        %v3138 = vpop.f32.mrf.mxu0
        %v3139 = vadd.f32 0.0, %v3138
        %3140 = vmatmul.bf16.gmra.mxu0 %v1867
        %v3141 = vpop.f32.mrf.mxu0
        %v3142 = vadd.f32 0.0, %v3141
        %v3143 = vpop.f32.mrf.mxu0
        %v3144 = vadd.f32 0.0, %v3143
        %3145 = vmatmul.bf16.gmra.mxu0 %v3065
        %v3146 = vpop.f32.mrf.mxu0
        %v3147 = vadd.f32 0.0, %v3146
        %v3148 = vpop.f32.mrf.mxu0
        %3149 = vdwg.mxu0
        %v3150 = vadd.f32 %v3030, %v3077
        %v3151 = vadd.f32 %v3031, %v3079
        %v3152 = vadd.f32 %v3032, %v3082
        %v3153 = vadd.f32 %v3033, %v3084
        %v3154 = vadd.f32 %v3034, %v3087
        %v3155 = vadd.f32 %v3035, %v3089
        %v3156 = vadd.f32 %v3036, %v3092
        %v3157 = vadd.f32 %v3037, %v3094
        %v3158 = vadd.f32 %v3038, %v3097
        %v3159 = vadd.f32 %v3039, %v3099
        %v3160 = vadd.f32 %v3040, %v3102
        %v3161 = vadd.f32 %v3041, %v3104
        %v3162 = vadd.f32 %v3042, %v3107
        %v3163 = vadd.f32 %v3043, %v3109
        %v3164 = vadd.f32 %v3044, %v3112
        %v3165 = vadd.f32 %v3045, %v3114
        %v3166 = vadd.f32 %v3046, %v3117
        %v3167 = vadd.f32 %v3047, %v3119
        %v3168 = vadd.f32 %v3048, %v3122
        %v3169 = vadd.f32 %v3049, %v3124
        %v3170 = vadd.f32 %v3050, %v3127
        %v3171 = vadd.f32 %v3051, %v3129
        %v3172 = vadd.f32 %v3052, %v3132
        %v3173 = vadd.f32 %v3053, %v3134
        %v3174 = vadd.f32 %v3054, %v3137
        %v3175 = vadd.f32 %v3055, %v3139
        %v3176 = vadd.f32 %v3056, %v3142
        %v3177 = vadd.f32 %v3057, %v3144
        %v3178 = vadd.f32 %v3058, %v3147
        %v3179 = vmax.f32 %v2640, %v3150
        %v3180 = vmax.f32 %v2641, %v3151
        %v3181 = vmax.f32 %v2642, %v3152
        %v3182 = vmax.f32 %v2643, %v3153
        %v3183 = vmax.f32 %v2644, %v3154
        %v3184 = vmax.f32 %v2645, %v3155
        %v3185 = vmax.f32 %v2646, %v3156
        %v3186 = vmax.f32 %v2647, %v3157
        %v3187 = vmax.f32 %v2648, %v3158
        %v3188 = vmax.f32 %v2649, %v3159
        %v3189 = vmax.f32 %v2650, %v3160
        %v3190 = vmax.f32 %v2651, %v3161
        %v3191 = vmax.f32 %v2652, %v3162
        %v3192 = vmax.f32 %v2653, %v3163
        %v3193 = vmax.f32 %v2654, %v3164
        %v3194 = vmax.f32 %v2655, %v3165
        %v3195 = vmax.f32 %v2656, %v3166
        %v3196 = vmax.f32 %v2657, %v3167
        %v3197 = vmax.f32 %v2658, %v3168
        %v3198 = vmax.f32 %v2659, %v3169
        %v3199 = vmax.f32 %v2660, %v3170
        %v3200 = vmax.f32 %v2661, %v3171
        %v3201 = vmax.f32 %v2662, %v3172
        %v3202 = vmax.f32 %v2663, %v3173
        %v3203 = vmax.f32 %v2664, %v3174
        %v3204 = vmax.f32 %v2665, %v3175
        %v3205 = vmax.f32 %v2666, %v3176
        %v3206 = vmax.f32 %v2667, %v3177
        %v3207 = vmax.f32 %v2668, %v3178
        %v3208 = vld [vmem:[%s2] sm:$0x1]
        %v3210 = vperm.slane %v3208, 0
        %v3212 = vadd.f32 %v3179, %v3210
        %v3213 = vadd.f32 %v3180, %v3210
        %v3214 = vadd.f32 %v3181, %v3210
        %v3215 = vadd.f32 %v3182, %v3210
        %v3216 = vadd.f32 %v3183, %v3210
        %v3217 = vadd.f32 %v3184, %v3210
        %v3218 = vadd.f32 %v3185, %v3210
        %v3219 = vadd.f32 %v3186, %v3210
        %v3220 = vadd.f32 %v3187, %v3210
        %v3221 = vadd.f32 %v3188, %v3210
        %v3222 = vadd.f32 %v3189, %v3210
        %v3223 = vadd.f32 %v3190, %v3210
        %v3224 = vadd.f32 %v3191, %v3210
        %v3225 = vadd.f32 %v3192, %v3210
        %v3226 = vadd.f32 %v3193, %v3210
        %v3227 = vadd.f32 %v3194, %v3210
        %v3228 = vadd.f32 %v3195, %v3210
        %v3229 = vadd.f32 %v3196, %v3210
        %v3230 = vadd.f32 %v3197, %v3210
        %v3231 = vadd.f32 %v3198, %v3210
        %v3232 = vadd.f32 %v3199, %v3210
        %v3233 = vadd.f32 %v3200, %v3210
        %v3234 = vadd.f32 %v3201, %v3210
        %v3235 = vadd.f32 %v3202, %v3210
        %v3236 = vadd.f32 %v3203, %v3210
        %v3237 = vadd.f32 %v3204, %v3210
        %v3238 = vadd.f32 %v3205, %v3210
        %v3239 = vadd.f32 %v3206, %v3210
        %v3240 = vadd.f32 %v3207, %v3210
        %v3241 = vmax.f32 %v3212, 0.0
        %v3242 = vmax.f32 %v3213, 0.0
        %v3243 = vmax.f32 %v3214, 0.0
        %v3244 = vmax.f32 %v3215, 0.0
        %v3245 = vmax.f32 %v3216, 0.0
        %v3246 = vmax.f32 %v3217, 0.0
        %v3247 = vmax.f32 %v3218, 0.0
        %v3248 = vmax.f32 %v3219, 0.0
        %v3249 = vmax.f32 %v3220, 0.0
        %v3250 = vmax.f32 %v3221, 0.0
        %v3251 = vmax.f32 %v3222, 0.0
        %v3252 = vmax.f32 %v3223, 0.0
        %v3253 = vmax.f32 %v3224, 0.0
        %v3254 = vmax.f32 %v3225, 0.0
        %v3255 = vmax.f32 %v3226, 0.0
        %v3256 = vmax.f32 %v3227, 0.0
        %v3257 = vmax.f32 %v3228, 0.0
        %v3258 = vmax.f32 %v3229, 0.0
        %v3259 = vmax.f32 %v3230, 0.0
        %v3260 = vmax.f32 %v3231, 0.0
        %v3261 = vmax.f32 %v3232, 0.0
        %v3262 = vmax.f32 %v3233, 0.0
        %v3263 = vmax.f32 %v3234, 0.0
        %v3264 = vmax.f32 %v3235, 0.0
        %v3265 = vmax.f32 %v3236, 0.0
        %v3266 = vmax.f32 %v3237, 0.0
        %v3267 = vmax.f32 %v3238, 0.0
        %v3268 = vmax.f32 %v3239, 0.0
        %v3269 = vmax.f32 %v3240, 0.0
        %v3270 = vpack.c.bf16 %v3241, %v3241
        %v3271 = vpack.c.bf16 %v3242, %v3242
        %v3272 = vpack.c.bf16 %v3243, %v3243
        %v3273 = vpack.c.bf16 %v3244, %v3244
        %v3274 = vpack.c.bf16 %v3245, %v3245
        %v3275 = vpack.c.bf16 %v3246, %v3246
        %v3276 = vpack.c.bf16 %v3247, %v3247
        %v3277 = vpack.c.bf16 %v3248, %v3248
        %v3278 = vpack.c.bf16 %v3249, %v3249
        %v3279 = vpack.c.bf16 %v3250, %v3250
        %v3280 = vpack.c.bf16 %v3251, %v3251
        %v3281 = vpack.c.bf16 %v3252, %v3252
        %v3282 = vpack.c.bf16 %v3253, %v3253
        %v3283 = vpack.c.bf16 %v3254, %v3254
        %v3284 = vpack.c.bf16 %v3255, %v3255
        %v3285 = vpack.c.bf16 %v3256, %v3256
        %v3286 = vpack.c.bf16 %v3257, %v3257
        %v3287 = vpack.c.bf16 %v3258, %v3258
        %v3288 = vpack.c.bf16 %v3259, %v3259
        %v3289 = vpack.c.bf16 %v3260, %v3260
        %v3290 = vpack.c.bf16 %v3261, %v3261
        %v3291 = vpack.c.bf16 %v3262, %v3262
        %v3292 = vpack.c.bf16 %v3263, %v3263
        %v3293 = vpack.c.bf16 %v3264, %v3264
        %v3294 = vpack.c.bf16 %v3265, %v3265
        %v3295 = vpack.c.bf16 %v3266, %v3266
        %v3296 = vpack.c.bf16 %v3267, %v3267
        %v3297 = vpack.c.bf16 %v3268, %v3268
        %v3298 = vpack.c.bf16 %v3269, %v3269
        %v3299 = vld [vmem:[%s3] sm:$0xf]
        %v3300 = vld [vmem:[%s3 + $0x4] sm:$0xf]
        %v3301 = vld [vmem:[%s3 + $0x8] sm:$0xf]
        %v3302 = vld [vmem:[%s3 + $0xc] sm:$0xf]
        %s3303 = scalar_lea.vmem %s3, 16
        %v3304 = vld [vmem:[%s3303] sm:$0xf]
        %v3305 = vld [vmem:[%s3303 + $0x4] sm:$0xf]
        %v3306 = vld [vmem:[%s3303 + $0x8] sm:$0xf]
        %v3307 = vld [vmem:[%s3303 + $0xc] sm:$0xf]
        %v3329 = vunpack.c.l.b16 %v3270
        %v3330 = vunpack.c.l.b16 %v3271
        %v3331 = vunpack.c.l.b16 %v3272
        %v3332 = vunpack.c.l.b16 %v3273
        %v3333 = vunpack.c.l.b16 %v3274
        %v3334 = vunpack.c.l.b16 %v3275
        %v3335 = vunpack.c.l.b16 %v3276
        %v3336 = vunpack.c.l.b16 %v3277
        %v3337 = vunpack.c.l.b16 %v3278
        %v3338 = vunpack.c.l.b16 %v3279
        %v3339 = vunpack.c.l.b16 %v3280
        %v3340 = vunpack.c.l.b16 %v3281
        %v3341 = vunpack.c.l.b16 %v3282
        %v3342 = vunpack.c.l.b16 %v3283
        %v3343 = vunpack.c.l.b16 %v3284
        %v3344 = vunpack.c.l.b16 %v3285
        %v3345 = vunpack.c.l.b16 %v3286
        %v3346 = vunpack.c.l.b16 %v3287
        %v3347 = vunpack.c.l.b16 %v3288
        %v3348 = vunpack.c.l.b16 %v3289
        %v3349 = vunpack.c.l.b16 %v3290
        %v3350 = vpack.c.b16 %v3330, %v3329
        %v3351 = vpack.c.b16 %v3332, %v3331
        %v3352 = vpack.c.b16 %v3334, %v3333
        %v3353 = vpack.c.b16 %v3336, %v3335
        %v3354 = vpack.c.b16 %v3338, %v3337
        %v3355 = vpack.c.b16 %v3340, %v3339
        %v3356 = vpack.c.b16 %v3342, %v3341
        %v3357 = vpack.c.b16 %v3344, %v3343
        %v3358 = vpack.c.b16 %v3346, %v3345
        %v3359 = vpack.c.b16 %v3348, %v3347
        %v3360 = vpack.c.b16 %v3349, %v3349
        %vm3361 = vsmask.f32 7424
        %v3363 = vshrl.u32 %v3350, 16
        %v3365 = vshll.u32 %v3350, 16
        %v3367 = vrot.slane %v3365, 1
        %v3368 = vor.u32 %v3363, %v3367
        %v3370 = vshll.u32 %v3351, 16
        %v3372 = vrot.slane %v3370, 1
        %v3373 = vsel %vm3361, %v3368, %v3372
        %v3374 = vshrl.u32 %v3351, 16
        %v3376 = vor.u32 %v3374, %v3372
        %v3378 = vshll.u32 %v3352, 16
        %v3380 = vrot.slane %v3378, 1
        %v3381 = vsel %vm3361, %v3376, %v3380
        %v3382 = vshrl.u32 %v3352, 16
        %v3384 = vor.u32 %v3382, %v3380
        %v3386 = vshll.u32 %v3353, 16
        %v3388 = vrot.slane %v3386, 1
        %v3389 = vsel %vm3361, %v3384, %v3388
        %v3390 = vshrl.u32 %v3353, 16
        %v3392 = vor.u32 %v3390, %v3388
        %v3394 = vshll.u32 %v3354, 16
        %v3396 = vrot.slane %v3394, 1
        %v3397 = vsel %vm3361, %v3392, %v3396
        %v3398 = vshrl.u32 %v3354, 16
        %v3400 = vor.u32 %v3398, %v3396
        %v3402 = vshll.u32 %v3355, 16
        %v3404 = vrot.slane %v3402, 1
        %v3405 = vsel %vm3361, %v3400, %v3404
        %v3406 = vshrl.u32 %v3355, 16
        %v3408 = vor.u32 %v3406, %v3404
        %v3410 = vshll.u32 %v3356, 16
        %v3412 = vrot.slane %v3410, 1
        %v3413 = vsel %vm3361, %v3408, %v3412
        %v3414 = vshrl.u32 %v3356, 16
        %v3416 = vor.u32 %v3414, %v3412
        %v3418 = vshll.u32 %v3357, 16
        %v3420 = vrot.slane %v3418, 1
        %v3421 = vsel %vm3361, %v3416, %v3420
        %v3422 = vshrl.u32 %v3357, 16
        %v3424 = vor.u32 %v3422, %v3420
        %v3426 = vshll.u32 %v3358, 16
        %v3428 = vrot.slane %v3426, 1
        %v3429 = vsel %vm3361, %v3424, %v3428
        %v3430 = vshrl.u32 %v3358, 16
        %v3432 = vor.u32 %v3430, %v3428
        %v3434 = vshll.u32 %v3359, 16
        %v3436 = vrot.slane %v3434, 1
        %v3437 = vsel %vm3361, %v3432, %v3436
        %v3438 = vshrl.u32 %v3359, 16
        %v3440 = vor.u32 %v3438, %v3436
        %v3442 = vshll.u32 %v3360, 16
        %v3444 = vrot.slane %v3442, 1
        %v3445 = vsel %vm3361, %v3440, %v3444
        %v3450 = vunpack.c.l.b16 %v3304
        %v3451 = vunpack.c.l.b16 %v3305
        %v3452 = vunpack.c.l.b16 %v3306
        %v3453 = vunpack.c.l.b16 %v3307
        %v3454 = vpack.c.b16 %v3451, %v3450
        %v3455 = vpack.c.b16 %v3453, %v3452
        %vm3458 = vcmask 261120
        %v3460 = vsel %vm3458, %v3373, 0
        %v3463 = vsel %vm3458, %v3381, 0
        %v3466 = vsel %vm3458, %v3389, 0
        %v3469 = vsel %vm3458, %v3397, 0
        %v3472 = vsel %vm3458, %v3405, 0
        %v3475 = vsel %vm3458, %v3413, 0
        %v3478 = vsel %vm3458, %v3421, 0
        %v3481 = vsel %vm3458, %v3429, 0
        %v3484 = vsel %vm3458, %v3437, 0
        %v3487 = vsel %vm3458, %v3445, 0
        %3489 = vmatpush.bf16.msra.mxu0 0
        %3490 = vmatpush.bf16.msra.mxu0 0
        %3491 = vmatpush.bf16.msra.mxu0 0
        %3492 = vmatpush.bf16.msra.mxu0 0
        %3493 = vmatpush.bf16.msra.mxu0 0
        %3494 = vmatpush.bf16.msra.mxu0 0
        %3495 = vmatpush.bf16.msra.mxu0 %v3455
        %3496 = vmatpush.bf16.msra.mxu0 %v3454
        %3497 = vmatmul.bf16.gmra.mxu0 %v3460
        %v3498 = vpop.f32.mrf.mxu0
        %v3499 = vadd.f32 0.0, %v3498
        %v3500 = vpop.f32.mrf.mxu0
        %v3501 = vadd.f32 0.0, %v3500
        %3502 = vmatmul.bf16.gmra.mxu0 %v3463
        %v3503 = vpop.f32.mrf.mxu0
        %v3504 = vadd.f32 0.0, %v3503
        %v3505 = vpop.f32.mrf.mxu0
        %v3506 = vadd.f32 0.0, %v3505
        %3507 = vmatmul.bf16.gmra.mxu0 %v3466
        %v3508 = vpop.f32.mrf.mxu0
        %v3509 = vadd.f32 0.0, %v3508
        %v3510 = vpop.f32.mrf.mxu0
        %v3511 = vadd.f32 0.0, %v3510
        %3512 = vmatmul.bf16.gmra.mxu0 %v3469
        %v3513 = vpop.f32.mrf.mxu0
        %v3514 = vadd.f32 0.0, %v3513
        %v3515 = vpop.f32.mrf.mxu0
        %v3516 = vadd.f32 0.0, %v3515
        %3517 = vmatmul.bf16.gmra.mxu0 %v3472
        %v3518 = vpop.f32.mrf.mxu0
        %v3519 = vadd.f32 0.0, %v3518
        %v3520 = vpop.f32.mrf.mxu0
        %v3521 = vadd.f32 0.0, %v3520
        %3522 = vmatmul.bf16.gmra.mxu0 %v3475
        %v3523 = vpop.f32.mrf.mxu0
        %v3524 = vadd.f32 0.0, %v3523
        %v3525 = vpop.f32.mrf.mxu0
        %v3526 = vadd.f32 0.0, %v3525
        %3527 = vmatmul.bf16.gmra.mxu0 %v3478
        %v3528 = vpop.f32.mrf.mxu0
        %v3529 = vadd.f32 0.0, %v3528
        %v3530 = vpop.f32.mrf.mxu0
        %v3531 = vadd.f32 0.0, %v3530
        %3532 = vmatmul.bf16.gmra.mxu0 %v3481
        %v3533 = vpop.f32.mrf.mxu0
        %v3534 = vadd.f32 0.0, %v3533
        %v3535 = vpop.f32.mrf.mxu0
        %v3536 = vadd.f32 0.0, %v3535
        %3537 = vmatmul.bf16.gmra.mxu0 %v3484
        %v3538 = vpop.f32.mrf.mxu0
        %v3539 = vadd.f32 0.0, %v3538
        %v3540 = vpop.f32.mrf.mxu0
        %v3541 = vadd.f32 0.0, %v3540
        %3542 = vmatmul.bf16.gmra.mxu0 %v3487
        %v3543 = vpop.f32.mrf.mxu0
        %v3544 = vadd.f32 0.0, %v3543
        %v3545 = vpop.f32.mrf.mxu0
        %v3546 = vadd.f32 0.0, %v3545
        %3547 = vdwg.mxu0
        %v3552 = vunpack.c.l.b16 %v3299
        %v3553 = vunpack.c.l.b16 %v3300
        %v3554 = vunpack.c.l.b16 %v3301
        %v3555 = vunpack.c.l.b16 %v3302
        %v3556 = vpack.c.b16 %v3553, %v3552
        %v3557 = vpack.c.b16 %v3555, %v3554
        %v3560 = vsel %vm3458, %v3350, 0
        %v3562 = vsel %vm3458, %v3351, 0
        %v3564 = vsel %vm3458, %v3352, 0
        %v3566 = vsel %vm3458, %v3353, 0
        %v3568 = vsel %vm3458, %v3354, 0
        %v3570 = vsel %vm3458, %v3355, 0
        %v3572 = vsel %vm3458, %v3356, 0
        %v3574 = vsel %vm3458, %v3357, 0
        %v3576 = vsel %vm3458, %v3358, 0
        %v3578 = vsel %vm3458, %v3359, 0
        %3580 = vmatpush.bf16.msra.mxu0 0
        %3581 = vmatpush.bf16.msra.mxu0 0
        %3582 = vmatpush.bf16.msra.mxu0 0
        %3583 = vmatpush.bf16.msra.mxu0 0
        %3584 = vmatpush.bf16.msra.mxu0 0
        %3585 = vmatpush.bf16.msra.mxu0 0
        %3586 = vmatpush.bf16.msra.mxu0 %v3557
        %3587 = vmatpush.bf16.msra.mxu0 %v3556
        %3588 = vmatmul.bf16.gmra.mxu0 %v3560
        %v3589 = vpop.f32.mrf.mxu0
        %v3590 = vadd.f32 %v3499, %v3589
        %v3591 = vpop.f32.mrf.mxu0
        %v3592 = vadd.f32 %v3501, %v3591
        %3593 = vmatmul.bf16.gmra.mxu0 %v3562
        %v3594 = vpop.f32.mrf.mxu0
        %v3595 = vadd.f32 %v3504, %v3594
        %v3596 = vpop.f32.mrf.mxu0
        %v3597 = vadd.f32 %v3506, %v3596
        %3598 = vmatmul.bf16.gmra.mxu0 %v3564
        %v3599 = vpop.f32.mrf.mxu0
        %v3600 = vadd.f32 %v3509, %v3599
        %v3601 = vpop.f32.mrf.mxu0
        %v3602 = vadd.f32 %v3511, %v3601
        %3603 = vmatmul.bf16.gmra.mxu0 %v3566
        %v3604 = vpop.f32.mrf.mxu0
        %v3605 = vadd.f32 %v3514, %v3604
        %v3606 = vpop.f32.mrf.mxu0
        %v3607 = vadd.f32 %v3516, %v3606
        %3608 = vmatmul.bf16.gmra.mxu0 %v3568
        %v3609 = vpop.f32.mrf.mxu0
        %v3610 = vadd.f32 %v3519, %v3609
        %v3611 = vpop.f32.mrf.mxu0
        %v3612 = vadd.f32 %v3521, %v3611
        %3613 = vmatmul.bf16.gmra.mxu0 %v3570
        %v3614 = vpop.f32.mrf.mxu0
        %v3615 = vadd.f32 %v3524, %v3614
        %v3616 = vpop.f32.mrf.mxu0
        %v3617 = vadd.f32 %v3526, %v3616
        %3618 = vmatmul.bf16.gmra.mxu0 %v3572
        %v3619 = vpop.f32.mrf.mxu0
        %v3620 = vadd.f32 %v3529, %v3619
        %v3621 = vpop.f32.mrf.mxu0
        %v3622 = vadd.f32 %v3531, %v3621
        %3623 = vmatmul.bf16.gmra.mxu0 %v3574
        %v3624 = vpop.f32.mrf.mxu0
        %v3625 = vadd.f32 %v3534, %v3624
        %v3626 = vpop.f32.mrf.mxu0
        %v3627 = vadd.f32 %v3536, %v3626
        %3628 = vmatmul.bf16.gmra.mxu0 %v3576
        %v3629 = vpop.f32.mrf.mxu0
        %v3630 = vadd.f32 %v3539, %v3629
        %v3631 = vpop.f32.mrf.mxu0
        %v3632 = vadd.f32 %v3541, %v3631
        %3633 = vmatmul.bf16.gmra.mxu0 %v3578
        %v3634 = vpop.f32.mrf.mxu0
        %v3635 = vadd.f32 %v3544, %v3634
        %v3636 = vpop.f32.mrf.mxu0
        %v3637 = vadd.f32 %v3546, %v3636
        %3638 = vdwg.mxu0
        %s3639 = scalar_lea.vmem %s3, 32
        %v3640 = vld [vmem:[%s3639] sm:$0xf]
        %v3641 = vld [vmem:[%s3639 + $0x4] sm:$0xf]
        %v3642 = vld [vmem:[%s3639 + $0x8] sm:$0xf]
        %v3643 = vld [vmem:[%s3639 + $0xc] sm:$0xf]
        %vm3644 = vcmask 1046528
        %v3645 = vrot.slane %v3350, 1
        %v3646 = vrot.slane %v3351, 1
        %v3647 = vsel %vm3644, %v3645, %v3646
        %v3648 = vrot.slane %v3352, 1
        %v3649 = vsel %vm3644, %v3646, %v3648
        %v3650 = vrot.slane %v3353, 1
        %v3651 = vsel %vm3644, %v3648, %v3650
        %v3652 = vrot.slane %v3354, 1
        %v3653 = vsel %vm3644, %v3650, %v3652
        %v3654 = vrot.slane %v3355, 1
        %v3655 = vsel %vm3644, %v3652, %v3654
        %v3656 = vrot.slane %v3356, 1
        %v3657 = vsel %vm3644, %v3654, %v3656
        %v3658 = vrot.slane %v3357, 1
        %v3659 = vsel %vm3644, %v3656, %v3658
        %v3660 = vrot.slane %v3358, 1
        %v3661 = vsel %vm3644, %v3658, %v3660
        %v3662 = vrot.slane %v3359, 1
        %v3663 = vsel %vm3644, %v3660, %v3662
        %v3664 = vrot.slane %v3360, 1
        %v3665 = vsel %vm3644, %v3662, %v3664
        %v3670 = vunpack.c.l.b16 %v3640
        %v3671 = vunpack.c.l.b16 %v3641
        %v3672 = vunpack.c.l.b16 %v3642
        %v3673 = vunpack.c.l.b16 %v3643
        %v3674 = vpack.c.b16 %v3671, %v3670
        %v3675 = vpack.c.b16 %v3673, %v3672
        %v3679 = vsel %vm3458, %v3647, 0
        %v3682 = vsel %vm3458, %v3649, 0
        %v3685 = vsel %vm3458, %v3651, 0
        %v3688 = vsel %vm3458, %v3653, 0
        %v3691 = vsel %vm3458, %v3655, 0
        %v3694 = vsel %vm3458, %v3657, 0
        %v3697 = vsel %vm3458, %v3659, 0
        %v3700 = vsel %vm3458, %v3661, 0
        %v3703 = vsel %vm3458, %v3663, 0
        %v3706 = vsel %vm3458, %v3665, 0
        %3708 = vmatpush.bf16.msra.mxu0 0
        %3709 = vmatpush.bf16.msra.mxu0 0
        %3710 = vmatpush.bf16.msra.mxu0 0
        %3711 = vmatpush.bf16.msra.mxu0 0
        %3712 = vmatpush.bf16.msra.mxu0 0
        %3713 = vmatpush.bf16.msra.mxu0 0
        %3714 = vmatpush.bf16.msra.mxu0 %v3675
        %3715 = vmatpush.bf16.msra.mxu0 %v3674
        %3716 = vmatmul.bf16.gmra.mxu0 %v3679
        %v3717 = vpop.f32.mrf.mxu0
        %v3718 = vadd.f32 0.0, %v3717
        %v3719 = vpop.f32.mrf.mxu0
        %v3720 = vadd.f32 0.0, %v3719
        %3721 = vmatmul.bf16.gmra.mxu0 %v3682
        %v3722 = vpop.f32.mrf.mxu0
        %v3723 = vadd.f32 0.0, %v3722
        %v3724 = vpop.f32.mrf.mxu0
        %v3725 = vadd.f32 0.0, %v3724
        %3726 = vmatmul.bf16.gmra.mxu0 %v3685
        %v3727 = vpop.f32.mrf.mxu0
        %v3728 = vadd.f32 0.0, %v3727
        %v3729 = vpop.f32.mrf.mxu0
        %v3730 = vadd.f32 0.0, %v3729
        %3731 = vmatmul.bf16.gmra.mxu0 %v3688
        %v3732 = vpop.f32.mrf.mxu0
        %v3733 = vadd.f32 0.0, %v3732
        %v3734 = vpop.f32.mrf.mxu0
        %v3735 = vadd.f32 0.0, %v3734
        %3736 = vmatmul.bf16.gmra.mxu0 %v3691
        %v3737 = vpop.f32.mrf.mxu0
        %v3738 = vadd.f32 0.0, %v3737
        %v3739 = vpop.f32.mrf.mxu0
        %v3740 = vadd.f32 0.0, %v3739
        %3741 = vmatmul.bf16.gmra.mxu0 %v3694
        %v3742 = vpop.f32.mrf.mxu0
        %v3743 = vadd.f32 0.0, %v3742
        %v3744 = vpop.f32.mrf.mxu0
        %v3745 = vadd.f32 0.0, %v3744
        %3746 = vmatmul.bf16.gmra.mxu0 %v3697
        %v3747 = vpop.f32.mrf.mxu0
        %v3748 = vadd.f32 0.0, %v3747
        %v3749 = vpop.f32.mrf.mxu0
        %v3750 = vadd.f32 0.0, %v3749
        %3751 = vmatmul.bf16.gmra.mxu0 %v3700
        %v3752 = vpop.f32.mrf.mxu0
        %v3753 = vadd.f32 0.0, %v3752
        %v3754 = vpop.f32.mrf.mxu0
        %v3755 = vadd.f32 0.0, %v3754
        %3756 = vmatmul.bf16.gmra.mxu0 %v3703
        %v3757 = vpop.f32.mrf.mxu0
        %v3758 = vadd.f32 0.0, %v3757
        %v3759 = vpop.f32.mrf.mxu0
        %v3760 = vadd.f32 0.0, %v3759
        %3761 = vmatmul.bf16.gmra.mxu0 %v3706
        %v3762 = vpop.f32.mrf.mxu0
        %v3763 = vadd.f32 0.0, %v3762
        %v3764 = vpop.f32.mrf.mxu0
        %v3765 = vadd.f32 0.0, %v3764
        %3766 = vdwg.mxu0
        %v3767 = vadd.f32 %v3590, %v3718
        %v3768 = vadd.f32 %v3592, %v3720
        %v3769 = vadd.f32 %v3595, %v3723
        %v3770 = vadd.f32 %v3597, %v3725
        %v3771 = vadd.f32 %v3600, %v3728
        %v3772 = vadd.f32 %v3602, %v3730
        %v3773 = vadd.f32 %v3605, %v3733
        %v3774 = vadd.f32 %v3607, %v3735
        %v3775 = vadd.f32 %v3610, %v3738
        %v3776 = vadd.f32 %v3612, %v3740
        %v3777 = vadd.f32 %v3615, %v3743
        %v3778 = vadd.f32 %v3617, %v3745
        %v3779 = vadd.f32 %v3620, %v3748
        %v3780 = vadd.f32 %v3622, %v3750
        %v3781 = vadd.f32 %v3625, %v3753
        %v3782 = vadd.f32 %v3627, %v3755
        %v3783 = vadd.f32 %v3630, %v3758
        %v3784 = vadd.f32 %v3632, %v3760
        %v3785 = vadd.f32 %v3635, %v3763
        %v3786 = vadd.f32 %v3637, %v3765
        %s3787 = scalar_lea.vmem %s3, 48
        %v3788 = vld [vmem:[%s3787] sm:$0xf]
        %v3789 = vld [vmem:[%s3787 + $0x4] sm:$0xf]
        %v3790 = vld [vmem:[%s3787 + $0x8] sm:$0xf]
        %v3791 = vld [vmem:[%s3787 + $0xc] sm:$0xf]
        %vm3792 = vsmask.f32 6400
        %v3793 = vrot.slane %v3363, 1
        %v3794 = vrot.slane %v3365, 2
        %v3795 = vor.u32 %v3793, %v3794
        %v3796 = vrot.slane %v3374, 1
        %v3797 = vrot.slane %v3370, 2
        %v3798 = vor.u32 %v3796, %v3797
        %v3799 = vsel %vm3792, %v3795, %v3798
        %v3800 = vrot.slane %v3382, 1
        %v3801 = vrot.slane %v3378, 2
        %v3802 = vor.u32 %v3800, %v3801
        %v3803 = vsel %vm3792, %v3798, %v3802
        %v3804 = vrot.slane %v3390, 1
        %v3805 = vrot.slane %v3386, 2
        %v3806 = vor.u32 %v3804, %v3805
        %v3807 = vsel %vm3792, %v3802, %v3806
        %v3808 = vrot.slane %v3398, 1
        %v3809 = vrot.slane %v3394, 2
        %v3810 = vor.u32 %v3808, %v3809
        %v3811 = vsel %vm3792, %v3806, %v3810
        %v3812 = vrot.slane %v3406, 1
        %v3813 = vrot.slane %v3402, 2
        %v3814 = vor.u32 %v3812, %v3813
        %v3815 = vsel %vm3792, %v3810, %v3814
        %v3816 = vrot.slane %v3414, 1
        %v3817 = vrot.slane %v3410, 2
        %v3818 = vor.u32 %v3816, %v3817
        %v3819 = vsel %vm3792, %v3814, %v3818
        %v3820 = vrot.slane %v3422, 1
        %v3821 = vrot.slane %v3418, 2
        %v3822 = vor.u32 %v3820, %v3821
        %v3823 = vsel %vm3792, %v3818, %v3822
        %v3824 = vrot.slane %v3430, 1
        %v3825 = vrot.slane %v3426, 2
        %v3826 = vor.u32 %v3824, %v3825
        %v3827 = vsel %vm3792, %v3822, %v3826
        %v3828 = vrot.slane %v3438, 1
        %v3829 = vrot.slane %v3434, 2
        %v3830 = vor.u32 %v3828, %v3829
        %v3831 = vsel %vm3792, %v3826, %v3830
        %v3832 = vshrl.u32 %v3360, 16
        %v3834 = vrot.slane %v3832, 1
        %v3835 = vrot.slane %v3442, 2
        %v3836 = vor.u32 %v3834, %v3835
        %v3837 = vsel %vm3792, %v3830, %v3836
        %v3842 = vunpack.c.l.b16 %v3788
        %v3843 = vunpack.c.l.b16 %v3789
        %v3844 = vunpack.c.l.b16 %v3790
        %v3845 = vunpack.c.l.b16 %v3791
        %v3846 = vpack.c.b16 %v3843, %v3842
        %v3847 = vpack.c.b16 %v3845, %v3844
        %v3851 = vsel %vm3458, %v3799, 0
        %v3854 = vsel %vm3458, %v3803, 0
        %v3857 = vsel %vm3458, %v3807, 0
        %v3860 = vsel %vm3458, %v3811, 0
        %v3863 = vsel %vm3458, %v3815, 0
        %v3866 = vsel %vm3458, %v3819, 0
        %v3869 = vsel %vm3458, %v3823, 0
        %v3872 = vsel %vm3458, %v3827, 0
        %v3875 = vsel %vm3458, %v3831, 0
        %v3878 = vsel %vm3458, %v3837, 0
        %3880 = vmatpush.bf16.msra.mxu0 0
        %3881 = vmatpush.bf16.msra.mxu0 0
        %3882 = vmatpush.bf16.msra.mxu0 0
        %3883 = vmatpush.bf16.msra.mxu0 0
        %3884 = vmatpush.bf16.msra.mxu0 0
        %3885 = vmatpush.bf16.msra.mxu0 0
        %3886 = vmatpush.bf16.msra.mxu0 %v3847
        %3887 = vmatpush.bf16.msra.mxu0 %v3846
        %3888 = vmatmul.bf16.gmra.mxu0 %v3851
        %v3889 = vpop.f32.mrf.mxu0
        %v3890 = vadd.f32 0.0, %v3889
        %v3891 = vpop.f32.mrf.mxu0
        %v3892 = vadd.f32 0.0, %v3891
        %3893 = vmatmul.bf16.gmra.mxu0 %v3854
        %v3894 = vpop.f32.mrf.mxu0
        %v3895 = vadd.f32 0.0, %v3894
        %v3896 = vpop.f32.mrf.mxu0
        %v3897 = vadd.f32 0.0, %v3896
        %3898 = vmatmul.bf16.gmra.mxu0 %v3857
        %v3899 = vpop.f32.mrf.mxu0
        %v3900 = vadd.f32 0.0, %v3899
        %v3901 = vpop.f32.mrf.mxu0
        %v3902 = vadd.f32 0.0, %v3901
        %3903 = vmatmul.bf16.gmra.mxu0 %v3860
        %v3904 = vpop.f32.mrf.mxu0
        %v3905 = vadd.f32 0.0, %v3904
        %v3906 = vpop.f32.mrf.mxu0
        %v3907 = vadd.f32 0.0, %v3906
        %3908 = vmatmul.bf16.gmra.mxu0 %v3863
        %v3909 = vpop.f32.mrf.mxu0
        %v3910 = vadd.f32 0.0, %v3909
        %v3911 = vpop.f32.mrf.mxu0
        %v3912 = vadd.f32 0.0, %v3911
        %3913 = vmatmul.bf16.gmra.mxu0 %v3866
        %v3914 = vpop.f32.mrf.mxu0
        %v3915 = vadd.f32 0.0, %v3914
        %v3916 = vpop.f32.mrf.mxu0
        %v3917 = vadd.f32 0.0, %v3916
        %3918 = vmatmul.bf16.gmra.mxu0 %v3869
        %v3919 = vpop.f32.mrf.mxu0
        %v3920 = vadd.f32 0.0, %v3919
        %v3921 = vpop.f32.mrf.mxu0
        %v3922 = vadd.f32 0.0, %v3921
        %3923 = vmatmul.bf16.gmra.mxu0 %v3872
        %v3924 = vpop.f32.mrf.mxu0
        %v3925 = vadd.f32 0.0, %v3924
        %v3926 = vpop.f32.mrf.mxu0
        %v3927 = vadd.f32 0.0, %v3926
        %3928 = vmatmul.bf16.gmra.mxu0 %v3875
        %v3929 = vpop.f32.mrf.mxu0
        %v3930 = vadd.f32 0.0, %v3929
        %v3931 = vpop.f32.mrf.mxu0
        %v3932 = vadd.f32 0.0, %v3931
        %3933 = vmatmul.bf16.gmra.mxu0 %v3878
        %v3934 = vpop.f32.mrf.mxu0
        %v3935 = vadd.f32 0.0, %v3934
        %v3936 = vpop.f32.mrf.mxu0
        %v3937 = vadd.f32 0.0, %v3936
        %3938 = vdwg.mxu0
        %v3939 = vadd.f32 %v3767, %v3890
        %v3940 = vadd.f32 %v3768, %v3892
        %v3941 = vadd.f32 %v3769, %v3895
        %v3942 = vadd.f32 %v3770, %v3897
        %v3943 = vadd.f32 %v3771, %v3900
        %v3944 = vadd.f32 %v3772, %v3902
        %v3945 = vadd.f32 %v3773, %v3905
        %v3946 = vadd.f32 %v3774, %v3907
        %v3947 = vadd.f32 %v3775, %v3910
        %v3948 = vadd.f32 %v3776, %v3912
        %v3949 = vadd.f32 %v3777, %v3915
        %v3950 = vadd.f32 %v3778, %v3917
        %v3951 = vadd.f32 %v3779, %v3920
        %v3952 = vadd.f32 %v3780, %v3922
        %v3953 = vadd.f32 %v3781, %v3925
        %v3954 = vadd.f32 %v3782, %v3927
        %v3955 = vadd.f32 %v3783, %v3930
        %v3956 = vadd.f32 %v3784, %v3932
        %v3957 = vadd.f32 %v3785, %v3935
        %v3958 = vadd.f32 %v3786, %v3937
        %s3959 = scalar_lea.vmem %s3, 64
        %v3960 = vld [vmem:[%s3959] sm:$0xf]
        %v3961 = vld [vmem:[%s3959 + $0x4] sm:$0xf]
        %v3962 = vld [vmem:[%s3959 + $0x8] sm:$0xf]
        %v3963 = vld [vmem:[%s3959 + $0xc] sm:$0xf]
        %vm3964 = vcmask 1045504
        %v3965 = vrot.slane %v3350, 2
        %v3966 = vrot.slane %v3351, 2
        %v3967 = vsel %vm3964, %v3965, %v3966
        %v3968 = vrot.slane %v3352, 2
        %v3969 = vsel %vm3964, %v3966, %v3968
        %v3970 = vrot.slane %v3353, 2
        %v3971 = vsel %vm3964, %v3968, %v3970
        %v3972 = vrot.slane %v3354, 2
        %v3973 = vsel %vm3964, %v3970, %v3972
        %v3974 = vrot.slane %v3355, 2
        %v3975 = vsel %vm3964, %v3972, %v3974
        %v3976 = vrot.slane %v3356, 2
        %v3977 = vsel %vm3964, %v3974, %v3976
        %v3978 = vrot.slane %v3357, 2
        %v3979 = vsel %vm3964, %v3976, %v3978
        %v3980 = vrot.slane %v3358, 2
        %v3981 = vsel %vm3964, %v3978, %v3980
        %v3982 = vrot.slane %v3359, 2
        %v3983 = vsel %vm3964, %v3980, %v3982
        %v3984 = vrot.slane %v3360, 2
        %v3985 = vsel %vm3964, %v3982, %v3984
        %v3990 = vunpack.c.l.b16 %v3960
        %v3991 = vunpack.c.l.b16 %v3961
        %v3992 = vunpack.c.l.b16 %v3962
        %v3993 = vunpack.c.l.b16 %v3963
        %v3994 = vpack.c.b16 %v3991, %v3990
        %v3995 = vpack.c.b16 %v3993, %v3992
        %v3999 = vsel %vm3458, %v3967, 0
        %v4002 = vsel %vm3458, %v3969, 0
        %v4005 = vsel %vm3458, %v3971, 0
        %v4008 = vsel %vm3458, %v3973, 0
        %v4011 = vsel %vm3458, %v3975, 0
        %v4014 = vsel %vm3458, %v3977, 0
        %v4017 = vsel %vm3458, %v3979, 0
        %v4020 = vsel %vm3458, %v3981, 0
        %v4023 = vsel %vm3458, %v3983, 0
        %v4026 = vsel %vm3458, %v3985, 0
        %4028 = vmatpush.bf16.msra.mxu0 0
        %4029 = vmatpush.bf16.msra.mxu0 0
        %4030 = vmatpush.bf16.msra.mxu0 0
        %4031 = vmatpush.bf16.msra.mxu0 0
        %4032 = vmatpush.bf16.msra.mxu0 0
        %4033 = vmatpush.bf16.msra.mxu0 0
        %4034 = vmatpush.bf16.msra.mxu0 %v3995
        %4035 = vmatpush.bf16.msra.mxu0 %v3994
        %4036 = vmatmul.bf16.gmra.mxu0 %v3999
        %v4037 = vpop.f32.mrf.mxu0
        %v4038 = vadd.f32 0.0, %v4037
        %v4039 = vpop.f32.mrf.mxu0
        %v4040 = vadd.f32 0.0, %v4039
        %4041 = vmatmul.bf16.gmra.mxu0 %v4002
        %v4042 = vpop.f32.mrf.mxu0
        %v4043 = vadd.f32 0.0, %v4042
        %v4044 = vpop.f32.mrf.mxu0
        %v4045 = vadd.f32 0.0, %v4044
        %4046 = vmatmul.bf16.gmra.mxu0 %v4005
        %v4047 = vpop.f32.mrf.mxu0
        %v4048 = vadd.f32 0.0, %v4047
        %v4049 = vpop.f32.mrf.mxu0
        %v4050 = vadd.f32 0.0, %v4049
        %4051 = vmatmul.bf16.gmra.mxu0 %v4008
        %v4052 = vpop.f32.mrf.mxu0
        %v4053 = vadd.f32 0.0, %v4052
        %v4054 = vpop.f32.mrf.mxu0
        %v4055 = vadd.f32 0.0, %v4054
        %4056 = vmatmul.bf16.gmra.mxu0 %v4011
        %v4057 = vpop.f32.mrf.mxu0
        %v4058 = vadd.f32 0.0, %v4057
        %v4059 = vpop.f32.mrf.mxu0
        %v4060 = vadd.f32 0.0, %v4059
        %4061 = vmatmul.bf16.gmra.mxu0 %v4014
        %v4062 = vpop.f32.mrf.mxu0
        %v4063 = vadd.f32 0.0, %v4062
        %v4064 = vpop.f32.mrf.mxu0
        %v4065 = vadd.f32 0.0, %v4064
        %4066 = vmatmul.bf16.gmra.mxu0 %v4017
        %v4067 = vpop.f32.mrf.mxu0
        %v4068 = vadd.f32 0.0, %v4067
        %v4069 = vpop.f32.mrf.mxu0
        %v4070 = vadd.f32 0.0, %v4069
        %4071 = vmatmul.bf16.gmra.mxu0 %v4020
        %v4072 = vpop.f32.mrf.mxu0
        %v4073 = vadd.f32 0.0, %v4072
        %v4074 = vpop.f32.mrf.mxu0
        %v4075 = vadd.f32 0.0, %v4074
        %4076 = vmatmul.bf16.gmra.mxu0 %v4023
        %v4077 = vpop.f32.mrf.mxu0
        %v4078 = vadd.f32 0.0, %v4077
        %v4079 = vpop.f32.mrf.mxu0
        %v4080 = vadd.f32 0.0, %v4079
        %4081 = vmatmul.bf16.gmra.mxu0 %v4026
        %v4082 = vpop.f32.mrf.mxu0
        %v4083 = vadd.f32 0.0, %v4082
        %v4084 = vpop.f32.mrf.mxu0
        %v4085 = vadd.f32 0.0, %v4084
        %4086 = vdwg.mxu0
        %v4087 = vadd.f32 %v3939, %v4038
        %v4088 = vadd.f32 %v3940, %v4040
        %v4089 = vadd.f32 %v3941, %v4043
        %v4090 = vadd.f32 %v3942, %v4045
        %v4091 = vadd.f32 %v3943, %v4048
        %v4092 = vadd.f32 %v3944, %v4050
        %v4093 = vadd.f32 %v3945, %v4053
        %v4094 = vadd.f32 %v3946, %v4055
        %v4095 = vadd.f32 %v3947, %v4058
        %v4096 = vadd.f32 %v3948, %v4060
        %v4097 = vadd.f32 %v3949, %v4063
        %v4098 = vadd.f32 %v3950, %v4065
        %v4099 = vadd.f32 %v3951, %v4068
        %v4100 = vadd.f32 %v3952, %v4070
        %v4101 = vadd.f32 %v3953, %v4073
        %v4102 = vadd.f32 %v3954, %v4075
        %v4103 = vadd.f32 %v3955, %v4078
        %v4104 = vadd.f32 %v3956, %v4080
        %v4105 = vadd.f32 %v3957, %v4083
        %v4106 = vadd.f32 %v3958, %v4085
        %s4107 = scalar_lea.vmem %s3, 80
        %v4108 = vld [vmem:[%s4107] sm:$0xf]
        %v4109 = vld [vmem:[%s4107 + $0x4] sm:$0xf]
        %v4110 = vld [vmem:[%s4107 + $0x8] sm:$0xf]
        %v4111 = vld [vmem:[%s4107 + $0xc] sm:$0xf]
        %v4113 = vunpack.c.l.b16 %v3291
        %v4114 = vpack.c.b16 %v4113, %v3349
        %v4119 = vunpack.c.l.b16 %v4108
        %v4120 = vunpack.c.l.b16 %v4109
        %v4121 = vunpack.c.l.b16 %v4110
        %v4122 = vunpack.c.l.b16 %v4111
        %v4123 = vpack.c.b16 %v4120, %v4119
        %v4124 = vpack.c.b16 %v4122, %v4121
        %v4128 = vsel %vm3458, %v4114, 0
        %4130 = vmatpush.bf16.msra.mxu0 0
        %4131 = vmatpush.bf16.msra.mxu0 0
        %4132 = vmatpush.bf16.msra.mxu0 0
        %4133 = vmatpush.bf16.msra.mxu0 0
        %4134 = vmatpush.bf16.msra.mxu0 0
        %4135 = vmatpush.bf16.msra.mxu0 0
        %4136 = vmatpush.bf16.msra.mxu0 %v4124
        %4137 = vmatpush.bf16.msra.mxu0 %v4123
        %4138 = vmatmul.bf16.gmra.mxu0 %v3562
        %v4139 = vpop.f32.mrf.mxu0
        %v4140 = vadd.f32 0.0, %v4139
        %v4141 = vpop.f32.mrf.mxu0
        %v4142 = vadd.f32 0.0, %v4141
        %4143 = vmatmul.bf16.gmra.mxu0 %v3564
        %v4144 = vpop.f32.mrf.mxu0
        %v4145 = vadd.f32 0.0, %v4144
        %v4146 = vpop.f32.mrf.mxu0
        %v4147 = vadd.f32 0.0, %v4146
        %4148 = vmatmul.bf16.gmra.mxu0 %v3566
        %v4149 = vpop.f32.mrf.mxu0
        %v4150 = vadd.f32 0.0, %v4149
        %v4151 = vpop.f32.mrf.mxu0
        %v4152 = vadd.f32 0.0, %v4151
        %4153 = vmatmul.bf16.gmra.mxu0 %v3568
        %v4154 = vpop.f32.mrf.mxu0
        %v4155 = vadd.f32 0.0, %v4154
        %v4156 = vpop.f32.mrf.mxu0
        %v4157 = vadd.f32 0.0, %v4156
        %4158 = vmatmul.bf16.gmra.mxu0 %v3570
        %v4159 = vpop.f32.mrf.mxu0
        %v4160 = vadd.f32 0.0, %v4159
        %v4161 = vpop.f32.mrf.mxu0
        %v4162 = vadd.f32 0.0, %v4161
        %4163 = vmatmul.bf16.gmra.mxu0 %v3572
        %v4164 = vpop.f32.mrf.mxu0
        %v4165 = vadd.f32 0.0, %v4164
        %v4166 = vpop.f32.mrf.mxu0
        %v4167 = vadd.f32 0.0, %v4166
        %4168 = vmatmul.bf16.gmra.mxu0 %v3574
        %v4169 = vpop.f32.mrf.mxu0
        %v4170 = vadd.f32 0.0, %v4169
        %v4171 = vpop.f32.mrf.mxu0
        %v4172 = vadd.f32 0.0, %v4171
        %4173 = vmatmul.bf16.gmra.mxu0 %v3576
        %v4174 = vpop.f32.mrf.mxu0
        %v4175 = vadd.f32 0.0, %v4174
        %v4176 = vpop.f32.mrf.mxu0
        %v4177 = vadd.f32 0.0, %v4176
        %4178 = vmatmul.bf16.gmra.mxu0 %v3578
        %v4179 = vpop.f32.mrf.mxu0
        %v4180 = vadd.f32 0.0, %v4179
        %v4181 = vpop.f32.mrf.mxu0
        %v4182 = vadd.f32 0.0, %v4181
        %4183 = vmatmul.bf16.gmra.mxu0 %v4128
        %v4184 = vpop.f32.mrf.mxu0
        %v4185 = vadd.f32 0.0, %v4184
        %v4186 = vpop.f32.mrf.mxu0
        %v4187 = vadd.f32 0.0, %v4186
        %4188 = vdwg.mxu0
        %v4189 = vadd.f32 %v4087, %v4140
        %v4190 = vadd.f32 %v4088, %v4142
        %v4191 = vadd.f32 %v4089, %v4145
        %v4192 = vadd.f32 %v4090, %v4147
        %v4193 = vadd.f32 %v4091, %v4150
        %v4194 = vadd.f32 %v4092, %v4152
        %v4195 = vadd.f32 %v4093, %v4155
        %v4196 = vadd.f32 %v4094, %v4157
        %v4197 = vadd.f32 %v4095, %v4160
        %v4198 = vadd.f32 %v4096, %v4162
        %v4199 = vadd.f32 %v4097, %v4165
        %v4200 = vadd.f32 %v4098, %v4167
        %v4201 = vadd.f32 %v4099, %v4170
        %v4202 = vadd.f32 %v4100, %v4172
        %v4203 = vadd.f32 %v4101, %v4175
        %v4204 = vadd.f32 %v4102, %v4177
        %v4205 = vadd.f32 %v4103, %v4180
        %v4206 = vadd.f32 %v4104, %v4182
        %v4207 = vadd.f32 %v4105, %v4185
        %v4208 = vadd.f32 %v4106, %v4187
        %s4209 = scalar_lea.vmem %s3, 96
        %v4210 = vld [vmem:[%s4209] sm:$0xf]
        %v4211 = vld [vmem:[%s4209 + $0x4] sm:$0xf]
        %v4212 = vld [vmem:[%s4209 + $0x8] sm:$0xf]
        %v4213 = vld [vmem:[%s4209 + $0xc] sm:$0xf]
        %v4215 = vunpack.c.l.b16 %v3292
        %v4216 = vpack.c.b16 %v4215, %v4215
        %v4217 = vshll.u32 %v4114, 16
        %v4219 = vrot.slane %v4217, 1
        %v4220 = vsel %vm3361, %v3440, %v4219
        %v4221 = vshrl.u32 %v4114, 16
        %v4223 = vor.u32 %v4221, %v4219
        %v4225 = vshll.u32 %v4216, 16
        %v4227 = vrot.slane %v4225, 1
        %v4228 = vsel %vm3361, %v4223, %v4227
        %v4233 = vunpack.c.l.b16 %v4210
        %v4234 = vunpack.c.l.b16 %v4211
        %v4235 = vunpack.c.l.b16 %v4212
        %v4236 = vunpack.c.l.b16 %v4213
        %v4237 = vpack.c.b16 %v4234, %v4233
        %v4238 = vpack.c.b16 %v4236, %v4235
        %v4242 = vsel %vm3458, %v4220, 0
        %v4245 = vsel %vm3458, %v4228, 0
        %4247 = vmatpush.bf16.msra.mxu0 0
        %4248 = vmatpush.bf16.msra.mxu0 0
        %4249 = vmatpush.bf16.msra.mxu0 0
        %4250 = vmatpush.bf16.msra.mxu0 0
        %4251 = vmatpush.bf16.msra.mxu0 0
        %4252 = vmatpush.bf16.msra.mxu0 0
        %4253 = vmatpush.bf16.msra.mxu0 %v4238
        %4254 = vmatpush.bf16.msra.mxu0 %v4237
        %4255 = vmatmul.bf16.gmra.mxu0 %v3463
        %v4256 = vpop.f32.mrf.mxu0
        %v4257 = vadd.f32 0.0, %v4256
        %v4258 = vpop.f32.mrf.mxu0
        %v4259 = vadd.f32 0.0, %v4258
        %4260 = vmatmul.bf16.gmra.mxu0 %v3466
        %v4261 = vpop.f32.mrf.mxu0
        %v4262 = vadd.f32 0.0, %v4261
        %v4263 = vpop.f32.mrf.mxu0
        %v4264 = vadd.f32 0.0, %v4263
        %4265 = vmatmul.bf16.gmra.mxu0 %v3469
        %v4266 = vpop.f32.mrf.mxu0
        %v4267 = vadd.f32 0.0, %v4266
        %v4268 = vpop.f32.mrf.mxu0
        %v4269 = vadd.f32 0.0, %v4268
        %4270 = vmatmul.bf16.gmra.mxu0 %v3472
        %v4271 = vpop.f32.mrf.mxu0
        %v4272 = vadd.f32 0.0, %v4271
        %v4273 = vpop.f32.mrf.mxu0
        %v4274 = vadd.f32 0.0, %v4273
        %4275 = vmatmul.bf16.gmra.mxu0 %v3475
        %v4276 = vpop.f32.mrf.mxu0
        %v4277 = vadd.f32 0.0, %v4276
        %v4278 = vpop.f32.mrf.mxu0
        %v4279 = vadd.f32 0.0, %v4278
        %4280 = vmatmul.bf16.gmra.mxu0 %v3478
        %v4281 = vpop.f32.mrf.mxu0
        %v4282 = vadd.f32 0.0, %v4281
        %v4283 = vpop.f32.mrf.mxu0
        %v4284 = vadd.f32 0.0, %v4283
        %4285 = vmatmul.bf16.gmra.mxu0 %v3481
        %v4286 = vpop.f32.mrf.mxu0
        %v4287 = vadd.f32 0.0, %v4286
        %v4288 = vpop.f32.mrf.mxu0
        %v4289 = vadd.f32 0.0, %v4288
        %4290 = vmatmul.bf16.gmra.mxu0 %v3484
        %v4291 = vpop.f32.mrf.mxu0
        %v4292 = vadd.f32 0.0, %v4291
        %v4293 = vpop.f32.mrf.mxu0
        %v4294 = vadd.f32 0.0, %v4293
        %4295 = vmatmul.bf16.gmra.mxu0 %v4242
        %v4296 = vpop.f32.mrf.mxu0
        %v4297 = vadd.f32 0.0, %v4296
        %v4298 = vpop.f32.mrf.mxu0
        %v4299 = vadd.f32 0.0, %v4298
        %4300 = vmatmul.bf16.gmra.mxu0 %v4245
        %v4301 = vpop.f32.mrf.mxu0
        %v4302 = vadd.f32 0.0, %v4301
        %v4303 = vpop.f32.mrf.mxu0
        %v4304 = vadd.f32 0.0, %v4303
        %4305 = vdwg.mxu0
        %v4306 = vadd.f32 %v4189, %v4257
        %v4307 = vadd.f32 %v4190, %v4259
        %v4308 = vadd.f32 %v4191, %v4262
        %v4309 = vadd.f32 %v4192, %v4264
        %v4310 = vadd.f32 %v4193, %v4267
        %v4311 = vadd.f32 %v4194, %v4269
        %v4312 = vadd.f32 %v4195, %v4272
        %v4313 = vadd.f32 %v4196, %v4274
        %v4314 = vadd.f32 %v4197, %v4277
        %v4315 = vadd.f32 %v4198, %v4279
        %v4316 = vadd.f32 %v4199, %v4282
        %v4317 = vadd.f32 %v4200, %v4284
        %v4318 = vadd.f32 %v4201, %v4287
        %v4319 = vadd.f32 %v4202, %v4289
        %v4320 = vadd.f32 %v4203, %v4292
        %v4321 = vadd.f32 %v4204, %v4294
        %v4322 = vadd.f32 %v4205, %v4297
        %v4323 = vadd.f32 %v4206, %v4299
        %v4324 = vadd.f32 %v4207, %v4302
        %v4325 = vadd.f32 %v4208, %v4304
        %s4326 = scalar_lea.vmem %s3, 112
        %v4327 = vld [vmem:[%s4326] sm:$0xf]
        %v4328 = vld [vmem:[%s4326 + $0x4] sm:$0xf]
        %v4329 = vld [vmem:[%s4326 + $0x8] sm:$0xf]
        %v4330 = vld [vmem:[%s4326 + $0xc] sm:$0xf]
        %v4331 = vrot.slane %v4114, 1
        %v4332 = vsel %vm3644, %v3662, %v4331
        %v4333 = vrot.slane %v4216, 1
        %v4334 = vsel %vm3644, %v4331, %v4333
        %v4339 = vunpack.c.l.b16 %v4327
        %v4340 = vunpack.c.l.b16 %v4328
        %v4341 = vunpack.c.l.b16 %v4329
        %v4342 = vunpack.c.l.b16 %v4330
        %v4343 = vpack.c.b16 %v4340, %v4339
        %v4344 = vpack.c.b16 %v4342, %v4341
        %v4348 = vsel %vm3458, %v4332, 0
        %v4351 = vsel %vm3458, %v4334, 0
        %4353 = vmatpush.bf16.msra.mxu0 0
        %4354 = vmatpush.bf16.msra.mxu0 0
        %4355 = vmatpush.bf16.msra.mxu0 0
        %4356 = vmatpush.bf16.msra.mxu0 0
        %4357 = vmatpush.bf16.msra.mxu0 0
        %4358 = vmatpush.bf16.msra.mxu0 0
        %4359 = vmatpush.bf16.msra.mxu0 %v4344
        %4360 = vmatpush.bf16.msra.mxu0 %v4343
        %4361 = vmatmul.bf16.gmra.mxu0 %v3682
        %v4362 = vpop.f32.mrf.mxu0
        %v4363 = vadd.f32 0.0, %v4362
        %v4364 = vpop.f32.mrf.mxu0
        %v4365 = vadd.f32 0.0, %v4364
        %4366 = vmatmul.bf16.gmra.mxu0 %v3685
        %v4367 = vpop.f32.mrf.mxu0
        %v4368 = vadd.f32 0.0, %v4367
        %v4369 = vpop.f32.mrf.mxu0
        %v4370 = vadd.f32 0.0, %v4369
        %4371 = vmatmul.bf16.gmra.mxu0 %v3688
        %v4372 = vpop.f32.mrf.mxu0
        %v4373 = vadd.f32 0.0, %v4372
        %v4374 = vpop.f32.mrf.mxu0
        %v4375 = vadd.f32 0.0, %v4374
        %4376 = vmatmul.bf16.gmra.mxu0 %v3691
        %v4377 = vpop.f32.mrf.mxu0
        %v4378 = vadd.f32 0.0, %v4377
        %v4379 = vpop.f32.mrf.mxu0
        %v4380 = vadd.f32 0.0, %v4379
        %4381 = vmatmul.bf16.gmra.mxu0 %v3694
        %v4382 = vpop.f32.mrf.mxu0
        %v4383 = vadd.f32 0.0, %v4382
        %v4384 = vpop.f32.mrf.mxu0
        %v4385 = vadd.f32 0.0, %v4384
        %4386 = vmatmul.bf16.gmra.mxu0 %v3697
        %v4387 = vpop.f32.mrf.mxu0
        %v4388 = vadd.f32 0.0, %v4387
        %v4389 = vpop.f32.mrf.mxu0
        %v4390 = vadd.f32 0.0, %v4389
        %4391 = vmatmul.bf16.gmra.mxu0 %v3700
        %v4392 = vpop.f32.mrf.mxu0
        %v4393 = vadd.f32 0.0, %v4392
        %v4394 = vpop.f32.mrf.mxu0
        %v4395 = vadd.f32 0.0, %v4394
        %4396 = vmatmul.bf16.gmra.mxu0 %v3703
        %v4397 = vpop.f32.mrf.mxu0
        %v4398 = vadd.f32 0.0, %v4397
        %v4399 = vpop.f32.mrf.mxu0
        %v4400 = vadd.f32 0.0, %v4399
        %4401 = vmatmul.bf16.gmra.mxu0 %v4348
        %v4402 = vpop.f32.mrf.mxu0
        %v4403 = vadd.f32 0.0, %v4402
        %v4404 = vpop.f32.mrf.mxu0
        %v4405 = vadd.f32 0.0, %v4404
        %4406 = vmatmul.bf16.gmra.mxu0 %v4351
        %v4407 = vpop.f32.mrf.mxu0
        %v4408 = vadd.f32 0.0, %v4407
        %v4409 = vpop.f32.mrf.mxu0
        %v4410 = vadd.f32 0.0, %v4409
        %4411 = vdwg.mxu0
        %v4412 = vadd.f32 %v4306, %v4363
        %v4413 = vadd.f32 %v4307, %v4365
        %v4414 = vadd.f32 %v4308, %v4368
        %v4415 = vadd.f32 %v4309, %v4370
        %v4416 = vadd.f32 %v4310, %v4373
        %v4417 = vadd.f32 %v4311, %v4375
        %v4418 = vadd.f32 %v4312, %v4378
        %v4419 = vadd.f32 %v4313, %v4380
        %v4420 = vadd.f32 %v4314, %v4383
        %v4421 = vadd.f32 %v4315, %v4385
        %v4422 = vadd.f32 %v4316, %v4388
        %v4423 = vadd.f32 %v4317, %v4390
        %v4424 = vadd.f32 %v4318, %v4393
        %v4425 = vadd.f32 %v4319, %v4395
        %v4426 = vadd.f32 %v4320, %v4398
        %v4427 = vadd.f32 %v4321, %v4400
        %v4428 = vadd.f32 %v4322, %v4403
        %v4429 = vadd.f32 %v4323, %v4405
        %v4430 = vadd.f32 %v4324, %v4408
        %v4431 = vadd.f32 %v4325, %v4410
        %s4432 = scalar_lea.vmem %s3, 128
        %v4433 = vld [vmem:[%s4432] sm:$0xf]
        %v4434 = vld [vmem:[%s4432 + $0x4] sm:$0xf]
        %v4435 = vld [vmem:[%s4432 + $0x8] sm:$0xf]
        %v4436 = vld [vmem:[%s4432 + $0xc] sm:$0xf]
        %v4437 = vrot.slane %v4221, 1
        %v4438 = vrot.slane %v4217, 2
        %v4439 = vor.u32 %v4437, %v4438
        %v4440 = vsel %vm3792, %v3830, %v4439
        %v4441 = vshrl.u32 %v4216, 16
        %v4443 = vrot.slane %v4441, 1
        %v4444 = vrot.slane %v4225, 2
        %v4445 = vor.u32 %v4443, %v4444
        %v4446 = vsel %vm3792, %v4439, %v4445
        %v4451 = vunpack.c.l.b16 %v4433
        %v4452 = vunpack.c.l.b16 %v4434
        %v4453 = vunpack.c.l.b16 %v4435
        %v4454 = vunpack.c.l.b16 %v4436
        %v4455 = vpack.c.b16 %v4452, %v4451
        %v4456 = vpack.c.b16 %v4454, %v4453
        %v4460 = vsel %vm3458, %v4440, 0
        %v4463 = vsel %vm3458, %v4446, 0
        %4465 = vmatpush.bf16.msra.mxu0 0
        %4466 = vmatpush.bf16.msra.mxu0 0
        %4467 = vmatpush.bf16.msra.mxu0 0
        %4468 = vmatpush.bf16.msra.mxu0 0
        %4469 = vmatpush.bf16.msra.mxu0 0
        %4470 = vmatpush.bf16.msra.mxu0 0
        %4471 = vmatpush.bf16.msra.mxu0 %v4456
        %4472 = vmatpush.bf16.msra.mxu0 %v4455
        %4473 = vmatmul.bf16.gmra.mxu0 %v3854
        %v4474 = vpop.f32.mrf.mxu0
        %v4475 = vadd.f32 0.0, %v4474
        %v4476 = vpop.f32.mrf.mxu0
        %v4477 = vadd.f32 0.0, %v4476
        %4478 = vmatmul.bf16.gmra.mxu0 %v3857
        %v4479 = vpop.f32.mrf.mxu0
        %v4480 = vadd.f32 0.0, %v4479
        %v4481 = vpop.f32.mrf.mxu0
        %v4482 = vadd.f32 0.0, %v4481
        %4483 = vmatmul.bf16.gmra.mxu0 %v3860
        %v4484 = vpop.f32.mrf.mxu0
        %v4485 = vadd.f32 0.0, %v4484
        %v4486 = vpop.f32.mrf.mxu0
        %v4487 = vadd.f32 0.0, %v4486
        %4488 = vmatmul.bf16.gmra.mxu0 %v3863
        %v4489 = vpop.f32.mrf.mxu0
        %v4490 = vadd.f32 0.0, %v4489
        %v4491 = vpop.f32.mrf.mxu0
        %v4492 = vadd.f32 0.0, %v4491
        %4493 = vmatmul.bf16.gmra.mxu0 %v3866
        %v4494 = vpop.f32.mrf.mxu0
        %v4495 = vadd.f32 0.0, %v4494
        %v4496 = vpop.f32.mrf.mxu0
        %v4497 = vadd.f32 0.0, %v4496
        %4498 = vmatmul.bf16.gmra.mxu0 %v3869
        %v4499 = vpop.f32.mrf.mxu0
        %v4500 = vadd.f32 0.0, %v4499
        %v4501 = vpop.f32.mrf.mxu0
        %v4502 = vadd.f32 0.0, %v4501
        %4503 = vmatmul.bf16.gmra.mxu0 %v3872
        %v4504 = vpop.f32.mrf.mxu0
        %v4505 = vadd.f32 0.0, %v4504
        %v4506 = vpop.f32.mrf.mxu0
        %v4507 = vadd.f32 0.0, %v4506
        %4508 = vmatmul.bf16.gmra.mxu0 %v3875
        %v4509 = vpop.f32.mrf.mxu0
        %v4510 = vadd.f32 0.0, %v4509
        %v4511 = vpop.f32.mrf.mxu0
        %v4512 = vadd.f32 0.0, %v4511
        %4513 = vmatmul.bf16.gmra.mxu0 %v4460
        %v4514 = vpop.f32.mrf.mxu0
        %v4515 = vadd.f32 0.0, %v4514
        %v4516 = vpop.f32.mrf.mxu0
        %v4517 = vadd.f32 0.0, %v4516
        %4518 = vmatmul.bf16.gmra.mxu0 %v4463
        %v4519 = vpop.f32.mrf.mxu0
        %v4520 = vadd.f32 0.0, %v4519
        %v4521 = vpop.f32.mrf.mxu0
        %v4522 = vadd.f32 0.0, %v4521
        %4523 = vdwg.mxu0
        %v4524 = vadd.f32 %v4412, %v4475
        %v4525 = vadd.f32 %v4413, %v4477
        %v4526 = vadd.f32 %v4414, %v4480
        %v4527 = vadd.f32 %v4415, %v4482
        %v4528 = vadd.f32 %v4416, %v4485
        %v4529 = vadd.f32 %v4417, %v4487
        %v4530 = vadd.f32 %v4418, %v4490
        %v4531 = vadd.f32 %v4419, %v4492
        %v4532 = vadd.f32 %v4420, %v4495
        %v4533 = vadd.f32 %v4421, %v4497
        %v4534 = vadd.f32 %v4422, %v4500
        %v4535 = vadd.f32 %v4423, %v4502
        %v4536 = vadd.f32 %v4424, %v4505
        %v4537 = vadd.f32 %v4425, %v4507
        %v4538 = vadd.f32 %v4426, %v4510
        %v4539 = vadd.f32 %v4427, %v4512
        %v4540 = vadd.f32 %v4428, %v4515
        %v4541 = vadd.f32 %v4429, %v4517
        %v4542 = vadd.f32 %v4430, %v4520
        %v4543 = vadd.f32 %v4431, %v4522
        %s4544 = scalar_lea.vmem %s3, 144
        %v4545 = vld [vmem:[%s4544] sm:$0xf]
        %v4546 = vld [vmem:[%s4544 + $0x4] sm:$0xf]
        %v4547 = vld [vmem:[%s4544 + $0x8] sm:$0xf]
        %v4548 = vld [vmem:[%s4544 + $0xc] sm:$0xf]
        %v4549 = vrot.slane %v4114, 2
        %v4550 = vsel %vm3964, %v3982, %v4549
        %v4551 = vrot.slane %v4216, 2
        %v4552 = vsel %vm3964, %v4549, %v4551
        %v4557 = vunpack.c.l.b16 %v4545
        %v4558 = vunpack.c.l.b16 %v4546
        %v4559 = vunpack.c.l.b16 %v4547
        %v4560 = vunpack.c.l.b16 %v4548
        %v4561 = vpack.c.b16 %v4558, %v4557
        %v4562 = vpack.c.b16 %v4560, %v4559
        %v4566 = vsel %vm3458, %v4550, 0
        %v4569 = vsel %vm3458, %v4552, 0
        %4571 = vmatpush.bf16.msra.mxu0 0
        %4572 = vmatpush.bf16.msra.mxu0 0
        %4573 = vmatpush.bf16.msra.mxu0 0
        %4574 = vmatpush.bf16.msra.mxu0 0
        %4575 = vmatpush.bf16.msra.mxu0 0
        %4576 = vmatpush.bf16.msra.mxu0 0
        %4577 = vmatpush.bf16.msra.mxu0 %v4562
        %4578 = vmatpush.bf16.msra.mxu0 %v4561
        %4579 = vmatmul.bf16.gmra.mxu0 %v4002
        %v4580 = vpop.f32.mrf.mxu0
        %v4581 = vadd.f32 0.0, %v4580
        %v4582 = vpop.f32.mrf.mxu0
        %v4583 = vadd.f32 0.0, %v4582
        %4584 = vmatmul.bf16.gmra.mxu0 %v4005
        %v4585 = vpop.f32.mrf.mxu0
        %v4586 = vadd.f32 0.0, %v4585
        %v4587 = vpop.f32.mrf.mxu0
        %v4588 = vadd.f32 0.0, %v4587
        %4589 = vmatmul.bf16.gmra.mxu0 %v4008
        %v4590 = vpop.f32.mrf.mxu0
        %v4591 = vadd.f32 0.0, %v4590
        %v4592 = vpop.f32.mrf.mxu0
        %v4593 = vadd.f32 0.0, %v4592
        %4594 = vmatmul.bf16.gmra.mxu0 %v4011
        %v4595 = vpop.f32.mrf.mxu0
        %v4596 = vadd.f32 0.0, %v4595
        %v4597 = vpop.f32.mrf.mxu0
        %v4598 = vadd.f32 0.0, %v4597
        %4599 = vmatmul.bf16.gmra.mxu0 %v4014
        %v4600 = vpop.f32.mrf.mxu0
        %v4601 = vadd.f32 0.0, %v4600
        %v4602 = vpop.f32.mrf.mxu0
        %v4603 = vadd.f32 0.0, %v4602
        %4604 = vmatmul.bf16.gmra.mxu0 %v4017
        %v4605 = vpop.f32.mrf.mxu0
        %v4606 = vadd.f32 0.0, %v4605
        %v4607 = vpop.f32.mrf.mxu0
        %v4608 = vadd.f32 0.0, %v4607
        %4609 = vmatmul.bf16.gmra.mxu0 %v4020
        %v4610 = vpop.f32.mrf.mxu0
        %v4611 = vadd.f32 0.0, %v4610
        %v4612 = vpop.f32.mrf.mxu0
        %v4613 = vadd.f32 0.0, %v4612
        %4614 = vmatmul.bf16.gmra.mxu0 %v4023
        %v4615 = vpop.f32.mrf.mxu0
        %v4616 = vadd.f32 0.0, %v4615
        %v4617 = vpop.f32.mrf.mxu0
        %v4618 = vadd.f32 0.0, %v4617
        %4619 = vmatmul.bf16.gmra.mxu0 %v4566
        %v4620 = vpop.f32.mrf.mxu0
        %v4621 = vadd.f32 0.0, %v4620
        %v4622 = vpop.f32.mrf.mxu0
        %v4623 = vadd.f32 0.0, %v4622
        %4624 = vmatmul.bf16.gmra.mxu0 %v4569
        %v4625 = vpop.f32.mrf.mxu0
        %v4626 = vadd.f32 0.0, %v4625
        %v4627 = vpop.f32.mrf.mxu0
        %v4628 = vadd.f32 0.0, %v4627
        %4629 = vdwg.mxu0
        %v4630 = vadd.f32 %v4524, %v4581
        %v4631 = vadd.f32 %v4525, %v4583
        %v4632 = vadd.f32 %v4526, %v4586
        %v4633 = vadd.f32 %v4527, %v4588
        %v4634 = vadd.f32 %v4528, %v4591
        %v4635 = vadd.f32 %v4529, %v4593
        %v4636 = vadd.f32 %v4530, %v4596
        %v4637 = vadd.f32 %v4531, %v4598
        %v4638 = vadd.f32 %v4532, %v4601
        %v4639 = vadd.f32 %v4533, %v4603
        %v4640 = vadd.f32 %v4534, %v4606
        %v4641 = vadd.f32 %v4535, %v4608
        %v4642 = vadd.f32 %v4536, %v4611
        %v4643 = vadd.f32 %v4537, %v4613
        %v4644 = vadd.f32 %v4538, %v4616
        %v4645 = vadd.f32 %v4539, %v4618
        %v4646 = vadd.f32 %v4540, %v4621
        %v4647 = vadd.f32 %v4541, %v4623
        %v4648 = vadd.f32 %v4542, %v4626
        %v4649 = vadd.f32 %v4543, %v4628
        %s4650 = scalar_lea.vmem %s3, 160
        %v4651 = vld [vmem:[%s4650] sm:$0xf]
        %v4652 = vld [vmem:[%s4650 + $0x4] sm:$0xf]
        %v4653 = vld [vmem:[%s4650 + $0x8] sm:$0xf]
        %v4654 = vld [vmem:[%s4650 + $0xc] sm:$0xf]
        %v4656 = vunpack.c.l.b16 %v3293
        %v4657 = vpack.c.b16 %v4656, %v4215
        %v4662 = vunpack.c.l.b16 %v4651
        %v4663 = vunpack.c.l.b16 %v4652
        %v4664 = vunpack.c.l.b16 %v4653
        %v4665 = vunpack.c.l.b16 %v4654
        %v4666 = vpack.c.b16 %v4663, %v4662
        %v4667 = vpack.c.b16 %v4665, %v4664
        %v4671 = vsel %vm3458, %v4657, 0
        %4673 = vmatpush.bf16.msra.mxu0 0
        %4674 = vmatpush.bf16.msra.mxu0 0
        %4675 = vmatpush.bf16.msra.mxu0 0
        %4676 = vmatpush.bf16.msra.mxu0 0
        %4677 = vmatpush.bf16.msra.mxu0 0
        %4678 = vmatpush.bf16.msra.mxu0 0
        %4679 = vmatpush.bf16.msra.mxu0 %v4667
        %4680 = vmatpush.bf16.msra.mxu0 %v4666
        %4681 = vmatmul.bf16.gmra.mxu0 %v3564
        %v4682 = vpop.f32.mrf.mxu0
        %v4683 = vadd.f32 0.0, %v4682
        %v4684 = vpop.f32.mrf.mxu0
        %v4685 = vadd.f32 0.0, %v4684
        %4686 = vmatmul.bf16.gmra.mxu0 %v3566
        %v4687 = vpop.f32.mrf.mxu0
        %v4688 = vadd.f32 0.0, %v4687
        %v4689 = vpop.f32.mrf.mxu0
        %v4690 = vadd.f32 0.0, %v4689
        %4691 = vmatmul.bf16.gmra.mxu0 %v3568
        %v4692 = vpop.f32.mrf.mxu0
        %v4693 = vadd.f32 0.0, %v4692
        %v4694 = vpop.f32.mrf.mxu0
        %v4695 = vadd.f32 0.0, %v4694
        %4696 = vmatmul.bf16.gmra.mxu0 %v3570
        %v4697 = vpop.f32.mrf.mxu0
        %v4698 = vadd.f32 0.0, %v4697
        %v4699 = vpop.f32.mrf.mxu0
        %v4700 = vadd.f32 0.0, %v4699
        %4701 = vmatmul.bf16.gmra.mxu0 %v3572
        %v4702 = vpop.f32.mrf.mxu0
        %v4703 = vadd.f32 0.0, %v4702
        %v4704 = vpop.f32.mrf.mxu0
        %v4705 = vadd.f32 0.0, %v4704
        %4706 = vmatmul.bf16.gmra.mxu0 %v3574
        %v4707 = vpop.f32.mrf.mxu0
        %v4708 = vadd.f32 0.0, %v4707
        %v4709 = vpop.f32.mrf.mxu0
        %v4710 = vadd.f32 0.0, %v4709
        %4711 = vmatmul.bf16.gmra.mxu0 %v3576
        %v4712 = vpop.f32.mrf.mxu0
        %v4713 = vadd.f32 0.0, %v4712
        %v4714 = vpop.f32.mrf.mxu0
        %v4715 = vadd.f32 0.0, %v4714
        %4716 = vmatmul.bf16.gmra.mxu0 %v3578
        %v4717 = vpop.f32.mrf.mxu0
        %v4718 = vadd.f32 0.0, %v4717
        %v4719 = vpop.f32.mrf.mxu0
        %v4720 = vadd.f32 0.0, %v4719
        %4721 = vmatmul.bf16.gmra.mxu0 %v4128
        %v4722 = vpop.f32.mrf.mxu0
        %v4723 = vadd.f32 0.0, %v4722
        %v4724 = vpop.f32.mrf.mxu0
        %v4725 = vadd.f32 0.0, %v4724
        %4726 = vmatmul.bf16.gmra.mxu0 %v4671
        %v4727 = vpop.f32.mrf.mxu0
        %v4728 = vadd.f32 0.0, %v4727
        %v4729 = vpop.f32.mrf.mxu0
        %v4730 = vadd.f32 0.0, %v4729
        %4731 = vdwg.mxu0
        %v4732 = vadd.f32 %v4630, %v4683
        %v4733 = vadd.f32 %v4631, %v4685
        %v4734 = vadd.f32 %v4632, %v4688
        %v4735 = vadd.f32 %v4633, %v4690
        %v4736 = vadd.f32 %v4634, %v4693
        %v4737 = vadd.f32 %v4635, %v4695
        %v4738 = vadd.f32 %v4636, %v4698
        %v4739 = vadd.f32 %v4637, %v4700
        %v4740 = vadd.f32 %v4638, %v4703
        %v4741 = vadd.f32 %v4639, %v4705
        %v4742 = vadd.f32 %v4640, %v4708
        %v4743 = vadd.f32 %v4641, %v4710
        %v4744 = vadd.f32 %v4642, %v4713
        %v4745 = vadd.f32 %v4643, %v4715
        %v4746 = vadd.f32 %v4644, %v4718
        %v4747 = vadd.f32 %v4645, %v4720
        %v4748 = vadd.f32 %v4646, %v4723
        %v4749 = vadd.f32 %v4647, %v4725
        %v4750 = vadd.f32 %v4648, %v4728
        %v4751 = vadd.f32 %v4649, %v4730
        %s4752 = scalar_lea.vmem %s3, 176
        %v4753 = vld [vmem:[%s4752] sm:$0xf]
        %v4754 = vld [vmem:[%s4752 + $0x4] sm:$0xf]
        %v4755 = vld [vmem:[%s4752 + $0x8] sm:$0xf]
        %v4756 = vld [vmem:[%s4752 + $0xc] sm:$0xf]
        %v4758 = vunpack.c.l.b16 %v3294
        %v4759 = vpack.c.b16 %v4758, %v4758
        %v4760 = vshll.u32 %v4657, 16
        %v4762 = vrot.slane %v4760, 1
        %v4763 = vsel %vm3361, %v4223, %v4762
        %v4764 = vshrl.u32 %v4657, 16
        %v4766 = vor.u32 %v4764, %v4762
        %v4768 = vshll.u32 %v4759, 16
        %v4770 = vrot.slane %v4768, 1
        %v4771 = vsel %vm3361, %v4766, %v4770
        %v4776 = vunpack.c.l.b16 %v4753
        %v4777 = vunpack.c.l.b16 %v4754
        %v4778 = vunpack.c.l.b16 %v4755
        %v4779 = vunpack.c.l.b16 %v4756
        %v4780 = vpack.c.b16 %v4777, %v4776
        %v4781 = vpack.c.b16 %v4779, %v4778
        %v4785 = vsel %vm3458, %v4763, 0
        %v4788 = vsel %vm3458, %v4771, 0
        %4790 = vmatpush.bf16.msra.mxu0 0
        %4791 = vmatpush.bf16.msra.mxu0 0
        %4792 = vmatpush.bf16.msra.mxu0 0
        %4793 = vmatpush.bf16.msra.mxu0 0
        %4794 = vmatpush.bf16.msra.mxu0 0
        %4795 = vmatpush.bf16.msra.mxu0 0
        %4796 = vmatpush.bf16.msra.mxu0 %v4781
        %4797 = vmatpush.bf16.msra.mxu0 %v4780
        %4798 = vmatmul.bf16.gmra.mxu0 %v3466
        %v4799 = vpop.f32.mrf.mxu0
        %v4800 = vadd.f32 0.0, %v4799
        %v4801 = vpop.f32.mrf.mxu0
        %v4802 = vadd.f32 0.0, %v4801
        %4803 = vmatmul.bf16.gmra.mxu0 %v3469
        %v4804 = vpop.f32.mrf.mxu0
        %v4805 = vadd.f32 0.0, %v4804
        %v4806 = vpop.f32.mrf.mxu0
        %v4807 = vadd.f32 0.0, %v4806
        %4808 = vmatmul.bf16.gmra.mxu0 %v3472
        %v4809 = vpop.f32.mrf.mxu0
        %v4810 = vadd.f32 0.0, %v4809
        %v4811 = vpop.f32.mrf.mxu0
        %v4812 = vadd.f32 0.0, %v4811
        %4813 = vmatmul.bf16.gmra.mxu0 %v3475
        %v4814 = vpop.f32.mrf.mxu0
        %v4815 = vadd.f32 0.0, %v4814
        %v4816 = vpop.f32.mrf.mxu0
        %v4817 = vadd.f32 0.0, %v4816
        %4818 = vmatmul.bf16.gmra.mxu0 %v3478
        %v4819 = vpop.f32.mrf.mxu0
        %v4820 = vadd.f32 0.0, %v4819
        %v4821 = vpop.f32.mrf.mxu0
        %v4822 = vadd.f32 0.0, %v4821
        %4823 = vmatmul.bf16.gmra.mxu0 %v3481
        %v4824 = vpop.f32.mrf.mxu0
        %v4825 = vadd.f32 0.0, %v4824
        %v4826 = vpop.f32.mrf.mxu0
        %v4827 = vadd.f32 0.0, %v4826
        %4828 = vmatmul.bf16.gmra.mxu0 %v3484
        %v4829 = vpop.f32.mrf.mxu0
        %v4830 = vadd.f32 0.0, %v4829
        %v4831 = vpop.f32.mrf.mxu0
        %v4832 = vadd.f32 0.0, %v4831
        %4833 = vmatmul.bf16.gmra.mxu0 %v4242
        %v4834 = vpop.f32.mrf.mxu0
        %v4835 = vadd.f32 0.0, %v4834
        %v4836 = vpop.f32.mrf.mxu0
        %v4837 = vadd.f32 0.0, %v4836
        %4838 = vmatmul.bf16.gmra.mxu0 %v4785
        %v4839 = vpop.f32.mrf.mxu0
        %v4840 = vadd.f32 0.0, %v4839
        %v4841 = vpop.f32.mrf.mxu0
        %v4842 = vadd.f32 0.0, %v4841
        %4843 = vmatmul.bf16.gmra.mxu0 %v4788
        %v4844 = vpop.f32.mrf.mxu0
        %v4845 = vadd.f32 0.0, %v4844
        %v4846 = vpop.f32.mrf.mxu0
        %v4847 = vadd.f32 0.0, %v4846
        %4848 = vdwg.mxu0
        %v4849 = vadd.f32 %v4732, %v4800
        %v4850 = vadd.f32 %v4733, %v4802
        %v4851 = vadd.f32 %v4734, %v4805
        %v4852 = vadd.f32 %v4735, %v4807
        %v4853 = vadd.f32 %v4736, %v4810
        %v4854 = vadd.f32 %v4737, %v4812
        %v4855 = vadd.f32 %v4738, %v4815
        %v4856 = vadd.f32 %v4739, %v4817
        %v4857 = vadd.f32 %v4740, %v4820
        %v4858 = vadd.f32 %v4741, %v4822
        %v4859 = vadd.f32 %v4742, %v4825
        %v4860 = vadd.f32 %v4743, %v4827
        %v4861 = vadd.f32 %v4744, %v4830
        %v4862 = vadd.f32 %v4745, %v4832
        %v4863 = vadd.f32 %v4746, %v4835
        %v4864 = vadd.f32 %v4747, %v4837
        %v4865 = vadd.f32 %v4748, %v4840
        %v4866 = vadd.f32 %v4749, %v4842
        %v4867 = vadd.f32 %v4750, %v4845
        %v4868 = vadd.f32 %v4751, %v4847
        %s4869 = scalar_lea.vmem %s3, 192
        %v4870 = vld [vmem:[%s4869] sm:$0xf]
        %v4871 = vld [vmem:[%s4869 + $0x4] sm:$0xf]
        %v4872 = vld [vmem:[%s4869 + $0x8] sm:$0xf]
        %v4873 = vld [vmem:[%s4869 + $0xc] sm:$0xf]
        %v4874 = vrot.slane %v4657, 1
        %v4875 = vsel %vm3644, %v4331, %v4874
        %v4876 = vrot.slane %v4759, 1
        %v4877 = vsel %vm3644, %v4874, %v4876
        %v4882 = vunpack.c.l.b16 %v4870
        %v4883 = vunpack.c.l.b16 %v4871
        %v4884 = vunpack.c.l.b16 %v4872
        %v4885 = vunpack.c.l.b16 %v4873
        %v4886 = vpack.c.b16 %v4883, %v4882
        %v4887 = vpack.c.b16 %v4885, %v4884
        %v4891 = vsel %vm3458, %v4875, 0
        %v4894 = vsel %vm3458, %v4877, 0
        %4896 = vmatpush.bf16.msra.mxu0 0
        %4897 = vmatpush.bf16.msra.mxu0 0
        %4898 = vmatpush.bf16.msra.mxu0 0
        %4899 = vmatpush.bf16.msra.mxu0 0
        %4900 = vmatpush.bf16.msra.mxu0 0
        %4901 = vmatpush.bf16.msra.mxu0 0
        %4902 = vmatpush.bf16.msra.mxu0 %v4887
        %4903 = vmatpush.bf16.msra.mxu0 %v4886
        %4904 = vmatmul.bf16.gmra.mxu0 %v3685
        %v4905 = vpop.f32.mrf.mxu0
        %v4906 = vadd.f32 0.0, %v4905
        %v4907 = vpop.f32.mrf.mxu0
        %v4908 = vadd.f32 0.0, %v4907
        %4909 = vmatmul.bf16.gmra.mxu0 %v3688
        %v4910 = vpop.f32.mrf.mxu0
        %v4911 = vadd.f32 0.0, %v4910
        %v4912 = vpop.f32.mrf.mxu0
        %v4913 = vadd.f32 0.0, %v4912
        %4914 = vmatmul.bf16.gmra.mxu0 %v3691
        %v4915 = vpop.f32.mrf.mxu0
        %v4916 = vadd.f32 0.0, %v4915
        %v4917 = vpop.f32.mrf.mxu0
        %v4918 = vadd.f32 0.0, %v4917
        %4919 = vmatmul.bf16.gmra.mxu0 %v3694
        %v4920 = vpop.f32.mrf.mxu0
        %v4921 = vadd.f32 0.0, %v4920
        %v4922 = vpop.f32.mrf.mxu0
        %v4923 = vadd.f32 0.0, %v4922
        %4924 = vmatmul.bf16.gmra.mxu0 %v3697
        %v4925 = vpop.f32.mrf.mxu0
        %v4926 = vadd.f32 0.0, %v4925
        %v4927 = vpop.f32.mrf.mxu0
        %v4928 = vadd.f32 0.0, %v4927
        %4929 = vmatmul.bf16.gmra.mxu0 %v3700
        %v4930 = vpop.f32.mrf.mxu0
        %v4931 = vadd.f32 0.0, %v4930
        %v4932 = vpop.f32.mrf.mxu0
        %v4933 = vadd.f32 0.0, %v4932
        %4934 = vmatmul.bf16.gmra.mxu0 %v3703
        %v4935 = vpop.f32.mrf.mxu0
        %v4936 = vadd.f32 0.0, %v4935
        %v4937 = vpop.f32.mrf.mxu0
        %v4938 = vadd.f32 0.0, %v4937
        %4939 = vmatmul.bf16.gmra.mxu0 %v4348
        %v4940 = vpop.f32.mrf.mxu0
        %v4941 = vadd.f32 0.0, %v4940
        %v4942 = vpop.f32.mrf.mxu0
        %v4943 = vadd.f32 0.0, %v4942
        %4944 = vmatmul.bf16.gmra.mxu0 %v4891
        %v4945 = vpop.f32.mrf.mxu0
        %v4946 = vadd.f32 0.0, %v4945
        %v4947 = vpop.f32.mrf.mxu0
        %v4948 = vadd.f32 0.0, %v4947
        %4949 = vmatmul.bf16.gmra.mxu0 %v4894
        %v4950 = vpop.f32.mrf.mxu0
        %v4951 = vadd.f32 0.0, %v4950
        %v4952 = vpop.f32.mrf.mxu0
        %v4953 = vadd.f32 0.0, %v4952
        %4954 = vdwg.mxu0
        %v4955 = vadd.f32 %v4849, %v4906
        %v4956 = vadd.f32 %v4850, %v4908
        %v4957 = vadd.f32 %v4851, %v4911
        %v4958 = vadd.f32 %v4852, %v4913
        %v4959 = vadd.f32 %v4853, %v4916
        %v4960 = vadd.f32 %v4854, %v4918
        %v4961 = vadd.f32 %v4855, %v4921
        %v4962 = vadd.f32 %v4856, %v4923
        %v4963 = vadd.f32 %v4857, %v4926
        %v4964 = vadd.f32 %v4858, %v4928
        %v4965 = vadd.f32 %v4859, %v4931
        %v4966 = vadd.f32 %v4860, %v4933
        %v4967 = vadd.f32 %v4861, %v4936
        %v4968 = vadd.f32 %v4862, %v4938
        %v4969 = vadd.f32 %v4863, %v4941
        %v4970 = vadd.f32 %v4864, %v4943
        %v4971 = vadd.f32 %v4865, %v4946
        %v4972 = vadd.f32 %v4866, %v4948
        %v4973 = vadd.f32 %v4867, %v4951
        %v4974 = vadd.f32 %v4868, %v4953
        %s4975 = scalar_lea.vmem %s3, 208
        %v4976 = vld [vmem:[%s4975] sm:$0xf]
        %v4977 = vld [vmem:[%s4975 + $0x4] sm:$0xf]
        %v4978 = vld [vmem:[%s4975 + $0x8] sm:$0xf]
        %v4979 = vld [vmem:[%s4975 + $0xc] sm:$0xf]
        %v4980 = vrot.slane %v4764, 1
        %v4981 = vrot.slane %v4760, 2
        %v4982 = vor.u32 %v4980, %v4981
        %v4983 = vsel %vm3792, %v4439, %v4982
        %v4984 = vshrl.u32 %v4759, 16
        %v4986 = vrot.slane %v4984, 1
        %v4987 = vrot.slane %v4768, 2
        %v4988 = vor.u32 %v4986, %v4987
        %v4989 = vsel %vm3792, %v4982, %v4988
        %v4994 = vunpack.c.l.b16 %v4976
        %v4995 = vunpack.c.l.b16 %v4977
        %v4996 = vunpack.c.l.b16 %v4978
        %v4997 = vunpack.c.l.b16 %v4979
        %v4998 = vpack.c.b16 %v4995, %v4994
        %v4999 = vpack.c.b16 %v4997, %v4996
        %v5003 = vsel %vm3458, %v4983, 0
        %v5006 = vsel %vm3458, %v4989, 0
        %5008 = vmatpush.bf16.msra.mxu0 0
        %5009 = vmatpush.bf16.msra.mxu0 0
        %5010 = vmatpush.bf16.msra.mxu0 0
        %5011 = vmatpush.bf16.msra.mxu0 0
        %5012 = vmatpush.bf16.msra.mxu0 0
        %5013 = vmatpush.bf16.msra.mxu0 0
        %5014 = vmatpush.bf16.msra.mxu0 %v4999
        %5015 = vmatpush.bf16.msra.mxu0 %v4998
        %5016 = vmatmul.bf16.gmra.mxu0 %v3857
        %v5017 = vpop.f32.mrf.mxu0
        %v5018 = vadd.f32 0.0, %v5017
        %v5019 = vpop.f32.mrf.mxu0
        %v5020 = vadd.f32 0.0, %v5019
        %5021 = vmatmul.bf16.gmra.mxu0 %v3860
        %v5022 = vpop.f32.mrf.mxu0
        %v5023 = vadd.f32 0.0, %v5022
        %v5024 = vpop.f32.mrf.mxu0
        %v5025 = vadd.f32 0.0, %v5024
        %5026 = vmatmul.bf16.gmra.mxu0 %v3863
        %v5027 = vpop.f32.mrf.mxu0
        %v5028 = vadd.f32 0.0, %v5027
        %v5029 = vpop.f32.mrf.mxu0
        %v5030 = vadd.f32 0.0, %v5029
        %5031 = vmatmul.bf16.gmra.mxu0 %v3866
        %v5032 = vpop.f32.mrf.mxu0
        %v5033 = vadd.f32 0.0, %v5032
        %v5034 = vpop.f32.mrf.mxu0
        %v5035 = vadd.f32 0.0, %v5034
        %5036 = vmatmul.bf16.gmra.mxu0 %v3869
        %v5037 = vpop.f32.mrf.mxu0
        %v5038 = vadd.f32 0.0, %v5037
        %v5039 = vpop.f32.mrf.mxu0
        %v5040 = vadd.f32 0.0, %v5039
        %5041 = vmatmul.bf16.gmra.mxu0 %v3872
        %v5042 = vpop.f32.mrf.mxu0
        %v5043 = vadd.f32 0.0, %v5042
        %v5044 = vpop.f32.mrf.mxu0
        %v5045 = vadd.f32 0.0, %v5044
        %5046 = vmatmul.bf16.gmra.mxu0 %v3875
        %v5047 = vpop.f32.mrf.mxu0
        %v5048 = vadd.f32 0.0, %v5047
        %v5049 = vpop.f32.mrf.mxu0
        %v5050 = vadd.f32 0.0, %v5049
        %5051 = vmatmul.bf16.gmra.mxu0 %v4460
        %v5052 = vpop.f32.mrf.mxu0
        %v5053 = vadd.f32 0.0, %v5052
        %v5054 = vpop.f32.mrf.mxu0
        %v5055 = vadd.f32 0.0, %v5054
        %5056 = vmatmul.bf16.gmra.mxu0 %v5003
        %v5057 = vpop.f32.mrf.mxu0
        %v5058 = vadd.f32 0.0, %v5057
        %v5059 = vpop.f32.mrf.mxu0
        %v5060 = vadd.f32 0.0, %v5059
        %5061 = vmatmul.bf16.gmra.mxu0 %v5006
        %v5062 = vpop.f32.mrf.mxu0
        %v5063 = vadd.f32 0.0, %v5062
        %v5064 = vpop.f32.mrf.mxu0
        %v5065 = vadd.f32 0.0, %v5064
        %5066 = vdwg.mxu0
        %v5067 = vadd.f32 %v4955, %v5018
        %v5068 = vadd.f32 %v4956, %v5020
        %v5069 = vadd.f32 %v4957, %v5023
        %v5070 = vadd.f32 %v4958, %v5025
        %v5071 = vadd.f32 %v4959, %v5028
        %v5072 = vadd.f32 %v4960, %v5030
        %v5073 = vadd.f32 %v4961, %v5033
        %v5074 = vadd.f32 %v4962, %v5035
        %v5075 = vadd.f32 %v4963, %v5038
        %v5076 = vadd.f32 %v4964, %v5040
        %v5077 = vadd.f32 %v4965, %v5043
        %v5078 = vadd.f32 %v4966, %v5045
        %v5079 = vadd.f32 %v4967, %v5048
        %v5080 = vadd.f32 %v4968, %v5050
        %v5081 = vadd.f32 %v4969, %v5053
        %v5082 = vadd.f32 %v4970, %v5055
        %v5083 = vadd.f32 %v4971, %v5058
        %v5084 = vadd.f32 %v4972, %v5060
        %v5085 = vadd.f32 %v4973, %v5063
        %v5086 = vadd.f32 %v4974, %v5065
        %s5087 = scalar_lea.vmem %s3, 224
        %v5088 = vld [vmem:[%s5087] sm:$0xf]
        %v5089 = vld [vmem:[%s5087 + $0x4] sm:$0xf]
        %v5090 = vld [vmem:[%s5087 + $0x8] sm:$0xf]
        %v5091 = vld [vmem:[%s5087 + $0xc] sm:$0xf]
        %v5092 = vrot.slane %v4657, 2
        %v5093 = vsel %vm3964, %v4549, %v5092
        %v5094 = vrot.slane %v4759, 2
        %v5095 = vsel %vm3964, %v5092, %v5094
        %v5100 = vunpack.c.l.b16 %v5088
        %v5101 = vunpack.c.l.b16 %v5089
        %v5102 = vunpack.c.l.b16 %v5090
        %v5103 = vunpack.c.l.b16 %v5091
        %v5104 = vpack.c.b16 %v5101, %v5100
        %v5105 = vpack.c.b16 %v5103, %v5102
        %v5109 = vsel %vm3458, %v5093, 0
        %v5112 = vsel %vm3458, %v5095, 0
        %5114 = vmatpush.bf16.msra.mxu0 0
        %5115 = vmatpush.bf16.msra.mxu0 0
        %5116 = vmatpush.bf16.msra.mxu0 0
        %5117 = vmatpush.bf16.msra.mxu0 0
        %5118 = vmatpush.bf16.msra.mxu0 0
        %5119 = vmatpush.bf16.msra.mxu0 0
        %5120 = vmatpush.bf16.msra.mxu0 %v5105
        %5121 = vmatpush.bf16.msra.mxu0 %v5104
        %5122 = vmatmul.bf16.gmra.mxu0 %v4005
        %v5123 = vpop.f32.mrf.mxu0
        %v5124 = vadd.f32 0.0, %v5123
        %v5125 = vpop.f32.mrf.mxu0
        %v5126 = vadd.f32 0.0, %v5125
        %5127 = vmatmul.bf16.gmra.mxu0 %v4008
        %v5128 = vpop.f32.mrf.mxu0
        %v5129 = vadd.f32 0.0, %v5128
        %v5130 = vpop.f32.mrf.mxu0
        %v5131 = vadd.f32 0.0, %v5130
        %5132 = vmatmul.bf16.gmra.mxu0 %v4011
        %v5133 = vpop.f32.mrf.mxu0
        %v5134 = vadd.f32 0.0, %v5133
        %v5135 = vpop.f32.mrf.mxu0
        %v5136 = vadd.f32 0.0, %v5135
        %5137 = vmatmul.bf16.gmra.mxu0 %v4014
        %v5138 = vpop.f32.mrf.mxu0
        %v5139 = vadd.f32 0.0, %v5138
        %v5140 = vpop.f32.mrf.mxu0
        %v5141 = vadd.f32 0.0, %v5140
        %5142 = vmatmul.bf16.gmra.mxu0 %v4017
        %v5143 = vpop.f32.mrf.mxu0
        %v5144 = vadd.f32 0.0, %v5143
        %v5145 = vpop.f32.mrf.mxu0
        %v5146 = vadd.f32 0.0, %v5145
        %5147 = vmatmul.bf16.gmra.mxu0 %v4020
        %v5148 = vpop.f32.mrf.mxu0
        %v5149 = vadd.f32 0.0, %v5148
        %v5150 = vpop.f32.mrf.mxu0
        %v5151 = vadd.f32 0.0, %v5150
        %5152 = vmatmul.bf16.gmra.mxu0 %v4023
        %v5153 = vpop.f32.mrf.mxu0
        %v5154 = vadd.f32 0.0, %v5153
        %v5155 = vpop.f32.mrf.mxu0
        %v5156 = vadd.f32 0.0, %v5155
        %5157 = vmatmul.bf16.gmra.mxu0 %v4566
        %v5158 = vpop.f32.mrf.mxu0
        %v5159 = vadd.f32 0.0, %v5158
        %v5160 = vpop.f32.mrf.mxu0
        %v5161 = vadd.f32 0.0, %v5160
        %5162 = vmatmul.bf16.gmra.mxu0 %v5109
        %v5163 = vpop.f32.mrf.mxu0
        %v5164 = vadd.f32 0.0, %v5163
        %v5165 = vpop.f32.mrf.mxu0
        %v5166 = vadd.f32 0.0, %v5165
        %5167 = vmatmul.bf16.gmra.mxu0 %v5112
        %v5168 = vpop.f32.mrf.mxu0
        %v5169 = vadd.f32 0.0, %v5168
        %v5170 = vpop.f32.mrf.mxu0
        %v5171 = vadd.f32 0.0, %v5170
        %5172 = vdwg.mxu0
        %v5173 = vadd.f32 %v5067, %v5124
        %v5174 = vadd.f32 %v5068, %v5126
        %v5175 = vadd.f32 %v5069, %v5129
        %v5176 = vadd.f32 %v5070, %v5131
        %v5177 = vadd.f32 %v5071, %v5134
        %v5178 = vadd.f32 %v5072, %v5136
        %v5179 = vadd.f32 %v5073, %v5139
        %v5180 = vadd.f32 %v5074, %v5141
        %v5181 = vadd.f32 %v5075, %v5144
        %v5182 = vadd.f32 %v5076, %v5146
        %v5183 = vadd.f32 %v5077, %v5149
        %v5184 = vadd.f32 %v5078, %v5151
        %v5185 = vadd.f32 %v5079, %v5154
        %v5186 = vadd.f32 %v5080, %v5156
        %v5187 = vadd.f32 %v5081, %v5159
        %v5188 = vadd.f32 %v5082, %v5161
        %v5189 = vadd.f32 %v5083, %v5164
        %v5190 = vadd.f32 %v5084, %v5166
        %v5191 = vadd.f32 %v5085, %v5169
        %v5192 = vadd.f32 %v5086, %v5171
        %s5193 = scalar_lea.vmem %s3, 240
        %v5194 = vld [vmem:[%s5193] sm:$0xf]
        %v5195 = vld [vmem:[%s5193 + $0x4] sm:$0xf]
        %v5196 = vld [vmem:[%s5193 + $0x8] sm:$0xf]
        %v5197 = vld [vmem:[%s5193 + $0xc] sm:$0xf]
        %v5199 = vunpack.c.l.b16 %v3295
        %v5200 = vpack.c.b16 %v5199, %v4758
        %v5205 = vunpack.c.l.b16 %v5194
        %v5206 = vunpack.c.l.b16 %v5195
        %v5207 = vunpack.c.l.b16 %v5196
        %v5208 = vunpack.c.l.b16 %v5197
        %v5209 = vpack.c.b16 %v5206, %v5205
        %v5210 = vpack.c.b16 %v5208, %v5207
        %v5214 = vsel %vm3458, %v5200, 0
        %5216 = vmatpush.bf16.msra.mxu0 0
        %5217 = vmatpush.bf16.msra.mxu0 0
        %5218 = vmatpush.bf16.msra.mxu0 0
        %5219 = vmatpush.bf16.msra.mxu0 0
        %5220 = vmatpush.bf16.msra.mxu0 0
        %5221 = vmatpush.bf16.msra.mxu0 0
        %5222 = vmatpush.bf16.msra.mxu0 %v5210
        %5223 = vmatpush.bf16.msra.mxu0 %v5209
        %5224 = vmatmul.bf16.gmra.mxu0 %v3566
        %v5225 = vpop.f32.mrf.mxu0
        %v5226 = vadd.f32 0.0, %v5225
        %v5227 = vpop.f32.mrf.mxu0
        %v5228 = vadd.f32 0.0, %v5227
        %5229 = vmatmul.bf16.gmra.mxu0 %v3568
        %v5230 = vpop.f32.mrf.mxu0
        %v5231 = vadd.f32 0.0, %v5230
        %v5232 = vpop.f32.mrf.mxu0
        %v5233 = vadd.f32 0.0, %v5232
        %5234 = vmatmul.bf16.gmra.mxu0 %v3570
        %v5235 = vpop.f32.mrf.mxu0
        %v5236 = vadd.f32 0.0, %v5235
        %v5237 = vpop.f32.mrf.mxu0
        %v5238 = vadd.f32 0.0, %v5237
        %5239 = vmatmul.bf16.gmra.mxu0 %v3572
        %v5240 = vpop.f32.mrf.mxu0
        %v5241 = vadd.f32 0.0, %v5240
        %v5242 = vpop.f32.mrf.mxu0
        %v5243 = vadd.f32 0.0, %v5242
        %5244 = vmatmul.bf16.gmra.mxu0 %v3574
        %v5245 = vpop.f32.mrf.mxu0
        %v5246 = vadd.f32 0.0, %v5245
        %v5247 = vpop.f32.mrf.mxu0
        %v5248 = vadd.f32 0.0, %v5247
        %5249 = vmatmul.bf16.gmra.mxu0 %v3576
        %v5250 = vpop.f32.mrf.mxu0
        %v5251 = vadd.f32 0.0, %v5250
        %v5252 = vpop.f32.mrf.mxu0
        %v5253 = vadd.f32 0.0, %v5252
        %5254 = vmatmul.bf16.gmra.mxu0 %v3578
        %v5255 = vpop.f32.mrf.mxu0
        %v5256 = vadd.f32 0.0, %v5255
        %v5257 = vpop.f32.mrf.mxu0
        %v5258 = vadd.f32 0.0, %v5257
        %5259 = vmatmul.bf16.gmra.mxu0 %v4128
        %v5260 = vpop.f32.mrf.mxu0
        %v5261 = vadd.f32 0.0, %v5260
        %v5262 = vpop.f32.mrf.mxu0
        %v5263 = vadd.f32 0.0, %v5262
        %5264 = vmatmul.bf16.gmra.mxu0 %v4671
        %v5265 = vpop.f32.mrf.mxu0
        %v5266 = vadd.f32 0.0, %v5265
        %v5267 = vpop.f32.mrf.mxu0
        %v5268 = vadd.f32 0.0, %v5267
        %5269 = vmatmul.bf16.gmra.mxu0 %v5214
        %v5270 = vpop.f32.mrf.mxu0
        %v5271 = vadd.f32 0.0, %v5270
        %v5272 = vpop.f32.mrf.mxu0
        %v5273 = vadd.f32 0.0, %v5272
        %5274 = vdwg.mxu0
        %v5275 = vadd.f32 %v5173, %v5226
        %v5276 = vadd.f32 %v5174, %v5228
        %v5277 = vadd.f32 %v5175, %v5231
        %v5278 = vadd.f32 %v5176, %v5233
        %v5279 = vadd.f32 %v5177, %v5236
        %v5280 = vadd.f32 %v5178, %v5238
        %v5281 = vadd.f32 %v5179, %v5241
        %v5282 = vadd.f32 %v5180, %v5243
        %v5283 = vadd.f32 %v5181, %v5246
        %v5284 = vadd.f32 %v5182, %v5248
        %v5285 = vadd.f32 %v5183, %v5251
        %v5286 = vadd.f32 %v5184, %v5253
        %v5287 = vadd.f32 %v5185, %v5256
        %v5288 = vadd.f32 %v5186, %v5258
        %v5289 = vadd.f32 %v5187, %v5261
        %v5290 = vadd.f32 %v5188, %v5263
        %v5291 = vadd.f32 %v5189, %v5266
        %v5292 = vadd.f32 %v5190, %v5268
        %v5293 = vadd.f32 %v5191, %v5271
        %v5294 = vadd.f32 %v5192, %v5273
        %s5295 = scalar_lea.vmem %s3, 256
        %v5296 = vld [vmem:[%s5295] sm:$0xf]
        %v5297 = vld [vmem:[%s5295 + $0x4] sm:$0xf]
        %v5298 = vld [vmem:[%s5295 + $0x8] sm:$0xf]
        %v5299 = vld [vmem:[%s5295 + $0xc] sm:$0xf]
        %v5301 = vunpack.c.l.b16 %v3296
        %v5302 = vpack.c.b16 %v5301, %v5301
        %v5303 = vshll.u32 %v5200, 16
        %v5305 = vrot.slane %v5303, 1
        %v5306 = vsel %vm3361, %v4766, %v5305
        %v5307 = vshrl.u32 %v5200, 16
        %v5309 = vor.u32 %v5307, %v5305
        %v5311 = vshll.u32 %v5302, 16
        %v5313 = vrot.slane %v5311, 1
        %v5314 = vsel %vm3361, %v5309, %v5313
        %v5319 = vunpack.c.l.b16 %v5296
        %v5320 = vunpack.c.l.b16 %v5297
        %v5321 = vunpack.c.l.b16 %v5298
        %v5322 = vunpack.c.l.b16 %v5299
        %v5323 = vpack.c.b16 %v5320, %v5319
        %v5324 = vpack.c.b16 %v5322, %v5321
        %v5328 = vsel %vm3458, %v5306, 0
        %v5331 = vsel %vm3458, %v5314, 0
        %5333 = vmatpush.bf16.msra.mxu0 0
        %5334 = vmatpush.bf16.msra.mxu0 0
        %5335 = vmatpush.bf16.msra.mxu0 0
        %5336 = vmatpush.bf16.msra.mxu0 0
        %5337 = vmatpush.bf16.msra.mxu0 0
        %5338 = vmatpush.bf16.msra.mxu0 0
        %5339 = vmatpush.bf16.msra.mxu0 %v5324
        %5340 = vmatpush.bf16.msra.mxu0 %v5323
        %5341 = vmatmul.bf16.gmra.mxu0 %v3469
        %v5342 = vpop.f32.mrf.mxu0
        %v5343 = vadd.f32 0.0, %v5342
        %v5344 = vpop.f32.mrf.mxu0
        %v5345 = vadd.f32 0.0, %v5344
        %5346 = vmatmul.bf16.gmra.mxu0 %v3472
        %v5347 = vpop.f32.mrf.mxu0
        %v5348 = vadd.f32 0.0, %v5347
        %v5349 = vpop.f32.mrf.mxu0
        %v5350 = vadd.f32 0.0, %v5349
        %5351 = vmatmul.bf16.gmra.mxu0 %v3475
        %v5352 = vpop.f32.mrf.mxu0
        %v5353 = vadd.f32 0.0, %v5352
        %v5354 = vpop.f32.mrf.mxu0
        %v5355 = vadd.f32 0.0, %v5354
        %5356 = vmatmul.bf16.gmra.mxu0 %v3478
        %v5357 = vpop.f32.mrf.mxu0
        %v5358 = vadd.f32 0.0, %v5357
        %v5359 = vpop.f32.mrf.mxu0
        %v5360 = vadd.f32 0.0, %v5359
        %5361 = vmatmul.bf16.gmra.mxu0 %v3481
        %v5362 = vpop.f32.mrf.mxu0
        %v5363 = vadd.f32 0.0, %v5362
        %v5364 = vpop.f32.mrf.mxu0
        %v5365 = vadd.f32 0.0, %v5364
        %5366 = vmatmul.bf16.gmra.mxu0 %v3484
        %v5367 = vpop.f32.mrf.mxu0
        %v5368 = vadd.f32 0.0, %v5367
        %v5369 = vpop.f32.mrf.mxu0
        %v5370 = vadd.f32 0.0, %v5369
        %5371 = vmatmul.bf16.gmra.mxu0 %v4242
        %v5372 = vpop.f32.mrf.mxu0
        %v5373 = vadd.f32 0.0, %v5372
        %v5374 = vpop.f32.mrf.mxu0
        %v5375 = vadd.f32 0.0, %v5374
        %5376 = vmatmul.bf16.gmra.mxu0 %v4785
        %v5377 = vpop.f32.mrf.mxu0
        %v5378 = vadd.f32 0.0, %v5377
        %v5379 = vpop.f32.mrf.mxu0
        %v5380 = vadd.f32 0.0, %v5379
        %5381 = vmatmul.bf16.gmra.mxu0 %v5328
        %v5382 = vpop.f32.mrf.mxu0
        %v5383 = vadd.f32 0.0, %v5382
        %v5384 = vpop.f32.mrf.mxu0
        %v5385 = vadd.f32 0.0, %v5384
        %5386 = vmatmul.bf16.gmra.mxu0 %v5331
        %v5387 = vpop.f32.mrf.mxu0
        %v5388 = vadd.f32 0.0, %v5387
        %v5389 = vpop.f32.mrf.mxu0
        %v5390 = vadd.f32 0.0, %v5389
        %5391 = vdwg.mxu0
        %v5392 = vadd.f32 %v5275, %v5343
        %v5393 = vadd.f32 %v5276, %v5345
        %v5394 = vadd.f32 %v5277, %v5348
        %v5395 = vadd.f32 %v5278, %v5350
        %v5396 = vadd.f32 %v5279, %v5353
        %v5397 = vadd.f32 %v5280, %v5355
        %v5398 = vadd.f32 %v5281, %v5358
        %v5399 = vadd.f32 %v5282, %v5360
        %v5400 = vadd.f32 %v5283, %v5363
        %v5401 = vadd.f32 %v5284, %v5365
        %v5402 = vadd.f32 %v5285, %v5368
        %v5403 = vadd.f32 %v5286, %v5370
        %v5404 = vadd.f32 %v5287, %v5373
        %v5405 = vadd.f32 %v5288, %v5375
        %v5406 = vadd.f32 %v5289, %v5378
        %v5407 = vadd.f32 %v5290, %v5380
        %v5408 = vadd.f32 %v5291, %v5383
        %v5409 = vadd.f32 %v5292, %v5385
        %v5410 = vadd.f32 %v5293, %v5388
        %v5411 = vadd.f32 %v5294, %v5390
        %s5412 = scalar_lea.vmem %s3, 272
        %v5413 = vld [vmem:[%s5412] sm:$0xf]
        %v5414 = vld [vmem:[%s5412 + $0x4] sm:$0xf]
        %v5415 = vld [vmem:[%s5412 + $0x8] sm:$0xf]
        %v5416 = vld [vmem:[%s5412 + $0xc] sm:$0xf]
        %v5417 = vrot.slane %v5200, 1
        %v5418 = vsel %vm3644, %v4874, %v5417
        %v5419 = vrot.slane %v5302, 1
        %v5420 = vsel %vm3644, %v5417, %v5419
        %v5425 = vunpack.c.l.b16 %v5413
        %v5426 = vunpack.c.l.b16 %v5414
        %v5427 = vunpack.c.l.b16 %v5415
        %v5428 = vunpack.c.l.b16 %v5416
        %v5429 = vpack.c.b16 %v5426, %v5425
        %v5430 = vpack.c.b16 %v5428, %v5427
        %v5434 = vsel %vm3458, %v5418, 0
        %v5437 = vsel %vm3458, %v5420, 0
        %5439 = vmatpush.bf16.msra.mxu0 0
        %5440 = vmatpush.bf16.msra.mxu0 0
        %5441 = vmatpush.bf16.msra.mxu0 0
        %5442 = vmatpush.bf16.msra.mxu0 0
        %5443 = vmatpush.bf16.msra.mxu0 0
        %5444 = vmatpush.bf16.msra.mxu0 0
        %5445 = vmatpush.bf16.msra.mxu0 %v5430
        %5446 = vmatpush.bf16.msra.mxu0 %v5429
        %5447 = vmatmul.bf16.gmra.mxu0 %v3688
        %v5448 = vpop.f32.mrf.mxu0
        %v5449 = vadd.f32 0.0, %v5448
        %v5450 = vpop.f32.mrf.mxu0
        %v5451 = vadd.f32 0.0, %v5450
        %5452 = vmatmul.bf16.gmra.mxu0 %v3691
        %v5453 = vpop.f32.mrf.mxu0
        %v5454 = vadd.f32 0.0, %v5453
        %v5455 = vpop.f32.mrf.mxu0
        %v5456 = vadd.f32 0.0, %v5455
        %5457 = vmatmul.bf16.gmra.mxu0 %v3694
        %v5458 = vpop.f32.mrf.mxu0
        %v5459 = vadd.f32 0.0, %v5458
        %v5460 = vpop.f32.mrf.mxu0
        %v5461 = vadd.f32 0.0, %v5460
        %5462 = vmatmul.bf16.gmra.mxu0 %v3697
        %v5463 = vpop.f32.mrf.mxu0
        %v5464 = vadd.f32 0.0, %v5463
        %v5465 = vpop.f32.mrf.mxu0
        %v5466 = vadd.f32 0.0, %v5465
        %5467 = vmatmul.bf16.gmra.mxu0 %v3700
        %v5468 = vpop.f32.mrf.mxu0
        %v5469 = vadd.f32 0.0, %v5468
        %v5470 = vpop.f32.mrf.mxu0
        %v5471 = vadd.f32 0.0, %v5470
        %5472 = vmatmul.bf16.gmra.mxu0 %v3703
        %v5473 = vpop.f32.mrf.mxu0
        %v5474 = vadd.f32 0.0, %v5473
        %v5475 = vpop.f32.mrf.mxu0
        %v5476 = vadd.f32 0.0, %v5475
        %5477 = vmatmul.bf16.gmra.mxu0 %v4348
        %v5478 = vpop.f32.mrf.mxu0
        %v5479 = vadd.f32 0.0, %v5478
        %v5480 = vpop.f32.mrf.mxu0
        %v5481 = vadd.f32 0.0, %v5480
        %5482 = vmatmul.bf16.gmra.mxu0 %v4891
        %v5483 = vpop.f32.mrf.mxu0
        %v5484 = vadd.f32 0.0, %v5483
        %v5485 = vpop.f32.mrf.mxu0
        %v5486 = vadd.f32 0.0, %v5485
        %5487 = vmatmul.bf16.gmra.mxu0 %v5434
        %v5488 = vpop.f32.mrf.mxu0
        %v5489 = vadd.f32 0.0, %v5488
        %v5490 = vpop.f32.mrf.mxu0
        %v5491 = vadd.f32 0.0, %v5490
        %5492 = vmatmul.bf16.gmra.mxu0 %v5437
        %v5493 = vpop.f32.mrf.mxu0
        %v5494 = vadd.f32 0.0, %v5493
        %v5495 = vpop.f32.mrf.mxu0
        %v5496 = vadd.f32 0.0, %v5495
        %5497 = vdwg.mxu0
        %v5498 = vadd.f32 %v5392, %v5449
        %v5499 = vadd.f32 %v5393, %v5451
        %v5500 = vadd.f32 %v5394, %v5454
        %v5501 = vadd.f32 %v5395, %v5456
        %v5502 = vadd.f32 %v5396, %v5459
        %v5503 = vadd.f32 %v5397, %v5461
        %v5504 = vadd.f32 %v5398, %v5464
        %v5505 = vadd.f32 %v5399, %v5466
        %v5506 = vadd.f32 %v5400, %v5469
        %v5507 = vadd.f32 %v5401, %v5471
        %v5508 = vadd.f32 %v5402, %v5474
        %v5509 = vadd.f32 %v5403, %v5476
        %v5510 = vadd.f32 %v5404, %v5479
        %v5511 = vadd.f32 %v5405, %v5481
        %v5512 = vadd.f32 %v5406, %v5484
        %v5513 = vadd.f32 %v5407, %v5486
        %v5514 = vadd.f32 %v5408, %v5489
        %v5515 = vadd.f32 %v5409, %v5491
        %v5516 = vadd.f32 %v5410, %v5494
        %v5517 = vadd.f32 %v5411, %v5496
        %s5518 = scalar_lea.vmem %s3, 288
        %v5519 = vld [vmem:[%s5518] sm:$0xf]
        %v5520 = vld [vmem:[%s5518 + $0x4] sm:$0xf]
        %v5521 = vld [vmem:[%s5518 + $0x8] sm:$0xf]
        %v5522 = vld [vmem:[%s5518 + $0xc] sm:$0xf]
        %v5523 = vrot.slane %v5307, 1
        %v5524 = vrot.slane %v5303, 2
        %v5525 = vor.u32 %v5523, %v5524
        %v5526 = vsel %vm3792, %v4982, %v5525
        %v5527 = vshrl.u32 %v5302, 16
        %v5529 = vrot.slane %v5527, 1
        %v5530 = vrot.slane %v5311, 2
        %v5531 = vor.u32 %v5529, %v5530
        %v5532 = vsel %vm3792, %v5525, %v5531
        %v5537 = vunpack.c.l.b16 %v5519
        %v5538 = vunpack.c.l.b16 %v5520
        %v5539 = vunpack.c.l.b16 %v5521
        %v5540 = vunpack.c.l.b16 %v5522
        %v5541 = vpack.c.b16 %v5538, %v5537
        %v5542 = vpack.c.b16 %v5540, %v5539
        %v5546 = vsel %vm3458, %v5526, 0
        %v5549 = vsel %vm3458, %v5532, 0
        %5551 = vmatpush.bf16.msra.mxu0 0
        %5552 = vmatpush.bf16.msra.mxu0 0
        %5553 = vmatpush.bf16.msra.mxu0 0
        %5554 = vmatpush.bf16.msra.mxu0 0
        %5555 = vmatpush.bf16.msra.mxu0 0
        %5556 = vmatpush.bf16.msra.mxu0 0
        %5557 = vmatpush.bf16.msra.mxu0 %v5542
        %5558 = vmatpush.bf16.msra.mxu0 %v5541
        %5559 = vmatmul.bf16.gmra.mxu0 %v3860
        %v5560 = vpop.f32.mrf.mxu0
        %v5561 = vadd.f32 0.0, %v5560
        %v5562 = vpop.f32.mrf.mxu0
        %v5563 = vadd.f32 0.0, %v5562
        %5564 = vmatmul.bf16.gmra.mxu0 %v3863
        %v5565 = vpop.f32.mrf.mxu0
        %v5566 = vadd.f32 0.0, %v5565
        %v5567 = vpop.f32.mrf.mxu0
        %v5568 = vadd.f32 0.0, %v5567
        %5569 = vmatmul.bf16.gmra.mxu0 %v3866
        %v5570 = vpop.f32.mrf.mxu0
        %v5571 = vadd.f32 0.0, %v5570
        %v5572 = vpop.f32.mrf.mxu0
        %v5573 = vadd.f32 0.0, %v5572
        %5574 = vmatmul.bf16.gmra.mxu0 %v3869
        %v5575 = vpop.f32.mrf.mxu0
        %v5576 = vadd.f32 0.0, %v5575
        %v5577 = vpop.f32.mrf.mxu0
        %v5578 = vadd.f32 0.0, %v5577
        %5579 = vmatmul.bf16.gmra.mxu0 %v3872
        %v5580 = vpop.f32.mrf.mxu0
        %v5581 = vadd.f32 0.0, %v5580
        %v5582 = vpop.f32.mrf.mxu0
        %v5583 = vadd.f32 0.0, %v5582
        %5584 = vmatmul.bf16.gmra.mxu0 %v3875
        %v5585 = vpop.f32.mrf.mxu0
        %v5586 = vadd.f32 0.0, %v5585
        %v5587 = vpop.f32.mrf.mxu0
        %v5588 = vadd.f32 0.0, %v5587
        %5589 = vmatmul.bf16.gmra.mxu0 %v4460
        %v5590 = vpop.f32.mrf.mxu0
        %v5591 = vadd.f32 0.0, %v5590
        %v5592 = vpop.f32.mrf.mxu0
        %v5593 = vadd.f32 0.0, %v5592
        %5594 = vmatmul.bf16.gmra.mxu0 %v5003
        %v5595 = vpop.f32.mrf.mxu0
        %v5596 = vadd.f32 0.0, %v5595
        %v5597 = vpop.f32.mrf.mxu0
        %v5598 = vadd.f32 0.0, %v5597
        %5599 = vmatmul.bf16.gmra.mxu0 %v5546
        %v5600 = vpop.f32.mrf.mxu0
        %v5601 = vadd.f32 0.0, %v5600
        %v5602 = vpop.f32.mrf.mxu0
        %v5603 = vadd.f32 0.0, %v5602
        %5604 = vmatmul.bf16.gmra.mxu0 %v5549
        %v5605 = vpop.f32.mrf.mxu0
        %v5606 = vadd.f32 0.0, %v5605
        %v5607 = vpop.f32.mrf.mxu0
        %v5608 = vadd.f32 0.0, %v5607
        %5609 = vdwg.mxu0
        %v5610 = vadd.f32 %v5498, %v5561
        %v5611 = vadd.f32 %v5499, %v5563
        %v5612 = vadd.f32 %v5500, %v5566
        %v5613 = vadd.f32 %v5501, %v5568
        %v5614 = vadd.f32 %v5502, %v5571
        %v5615 = vadd.f32 %v5503, %v5573
        %v5616 = vadd.f32 %v5504, %v5576
        %v5617 = vadd.f32 %v5505, %v5578
        %v5618 = vadd.f32 %v5506, %v5581
        %v5619 = vadd.f32 %v5507, %v5583
        %v5620 = vadd.f32 %v5508, %v5586
        %v5621 = vadd.f32 %v5509, %v5588
        %v5622 = vadd.f32 %v5510, %v5591
        %v5623 = vadd.f32 %v5511, %v5593
        %v5624 = vadd.f32 %v5512, %v5596
        %v5625 = vadd.f32 %v5513, %v5598
        %v5626 = vadd.f32 %v5514, %v5601
        %v5627 = vadd.f32 %v5515, %v5603
        %v5628 = vadd.f32 %v5516, %v5606
        %v5629 = vadd.f32 %v5517, %v5608
        %s5630 = scalar_lea.vmem %s3, 304
        %v5631 = vld [vmem:[%s5630] sm:$0xf]
        %v5632 = vld [vmem:[%s5630 + $0x4] sm:$0xf]
        %v5633 = vld [vmem:[%s5630 + $0x8] sm:$0xf]
        %v5634 = vld [vmem:[%s5630 + $0xc] sm:$0xf]
        %v5635 = vrot.slane %v5200, 2
        %v5636 = vsel %vm3964, %v5092, %v5635
        %v5637 = vrot.slane %v5302, 2
        %v5638 = vsel %vm3964, %v5635, %v5637
        %v5643 = vunpack.c.l.b16 %v5631
        %v5644 = vunpack.c.l.b16 %v5632
        %v5645 = vunpack.c.l.b16 %v5633
        %v5646 = vunpack.c.l.b16 %v5634
        %v5647 = vpack.c.b16 %v5644, %v5643
        %v5648 = vpack.c.b16 %v5646, %v5645
        %v5652 = vsel %vm3458, %v5636, 0
        %v5655 = vsel %vm3458, %v5638, 0
        %5657 = vmatpush.bf16.msra.mxu0 0
        %5658 = vmatpush.bf16.msra.mxu0 0
        %5659 = vmatpush.bf16.msra.mxu0 0
        %5660 = vmatpush.bf16.msra.mxu0 0
        %5661 = vmatpush.bf16.msra.mxu0 0
        %5662 = vmatpush.bf16.msra.mxu0 0
        %5663 = vmatpush.bf16.msra.mxu0 %v5648
        %5664 = vmatpush.bf16.msra.mxu0 %v5647
        %5665 = vmatmul.bf16.gmra.mxu0 %v4008
        %v5666 = vpop.f32.mrf.mxu0
        %v5667 = vadd.f32 0.0, %v5666
        %v5668 = vpop.f32.mrf.mxu0
        %v5669 = vadd.f32 0.0, %v5668
        %5670 = vmatmul.bf16.gmra.mxu0 %v4011
        %v5671 = vpop.f32.mrf.mxu0
        %v5672 = vadd.f32 0.0, %v5671
        %v5673 = vpop.f32.mrf.mxu0
        %v5674 = vadd.f32 0.0, %v5673
        %5675 = vmatmul.bf16.gmra.mxu0 %v4014
        %v5676 = vpop.f32.mrf.mxu0
        %v5677 = vadd.f32 0.0, %v5676
        %v5678 = vpop.f32.mrf.mxu0
        %v5679 = vadd.f32 0.0, %v5678
        %5680 = vmatmul.bf16.gmra.mxu0 %v4017
        %v5681 = vpop.f32.mrf.mxu0
        %v5682 = vadd.f32 0.0, %v5681
        %v5683 = vpop.f32.mrf.mxu0
        %v5684 = vadd.f32 0.0, %v5683
        %5685 = vmatmul.bf16.gmra.mxu0 %v4020
        %v5686 = vpop.f32.mrf.mxu0
        %v5687 = vadd.f32 0.0, %v5686
        %v5688 = vpop.f32.mrf.mxu0
        %v5689 = vadd.f32 0.0, %v5688
        %5690 = vmatmul.bf16.gmra.mxu0 %v4023
        %v5691 = vpop.f32.mrf.mxu0
        %v5692 = vadd.f32 0.0, %v5691
        %v5693 = vpop.f32.mrf.mxu0
        %v5694 = vadd.f32 0.0, %v5693
        %5695 = vmatmul.bf16.gmra.mxu0 %v4566
        %v5696 = vpop.f32.mrf.mxu0
        %v5697 = vadd.f32 0.0, %v5696
        %v5698 = vpop.f32.mrf.mxu0
        %v5699 = vadd.f32 0.0, %v5698
        %5700 = vmatmul.bf16.gmra.mxu0 %v5109
        %v5701 = vpop.f32.mrf.mxu0
        %v5702 = vadd.f32 0.0, %v5701
        %v5703 = vpop.f32.mrf.mxu0
        %v5704 = vadd.f32 0.0, %v5703
        %5705 = vmatmul.bf16.gmra.mxu0 %v5652
        %v5706 = vpop.f32.mrf.mxu0
        %v5707 = vadd.f32 0.0, %v5706
        %v5708 = vpop.f32.mrf.mxu0
        %v5709 = vadd.f32 0.0, %v5708
        %5710 = vmatmul.bf16.gmra.mxu0 %v5655
        %v5711 = vpop.f32.mrf.mxu0
        %v5712 = vadd.f32 0.0, %v5711
        %v5713 = vpop.f32.mrf.mxu0
        %v5714 = vadd.f32 0.0, %v5713
        %5715 = vdwg.mxu0
        %v5716 = vadd.f32 %v5610, %v5667
        %v5717 = vadd.f32 %v5611, %v5669
        %v5718 = vadd.f32 %v5612, %v5672
        %v5719 = vadd.f32 %v5613, %v5674
        %v5720 = vadd.f32 %v5614, %v5677
        %v5721 = vadd.f32 %v5615, %v5679
        %v5722 = vadd.f32 %v5616, %v5682
        %v5723 = vadd.f32 %v5617, %v5684
        %v5724 = vadd.f32 %v5618, %v5687
        %v5725 = vadd.f32 %v5619, %v5689
        %v5726 = vadd.f32 %v5620, %v5692
        %v5727 = vadd.f32 %v5621, %v5694
        %v5728 = vadd.f32 %v5622, %v5697
        %v5729 = vadd.f32 %v5623, %v5699
        %v5730 = vadd.f32 %v5624, %v5702
        %v5731 = vadd.f32 %v5625, %v5704
        %v5732 = vadd.f32 %v5626, %v5707
        %v5733 = vadd.f32 %v5627, %v5709
        %v5734 = vadd.f32 %v5628, %v5712
        %v5735 = vadd.f32 %v5629, %v5714
        %s5736 = scalar_lea.vmem %s3, 320
        %v5737 = vld [vmem:[%s5736] sm:$0xf]
        %v5738 = vld [vmem:[%s5736 + $0x4] sm:$0xf]
        %v5739 = vld [vmem:[%s5736 + $0x8] sm:$0xf]
        %v5740 = vld [vmem:[%s5736 + $0xc] sm:$0xf]
        %v5742 = vunpack.c.l.b16 %v3297
        %v5743 = vpack.c.b16 %v5742, %v5301
        %v5748 = vunpack.c.l.b16 %v5737
        %v5749 = vunpack.c.l.b16 %v5738
        %v5750 = vunpack.c.l.b16 %v5739
        %v5751 = vunpack.c.l.b16 %v5740
        %v5752 = vpack.c.b16 %v5749, %v5748
        %v5753 = vpack.c.b16 %v5751, %v5750
        %v5757 = vsel %vm3458, %v5743, 0
        %5759 = vmatpush.bf16.msra.mxu0 0
        %5760 = vmatpush.bf16.msra.mxu0 0
        %5761 = vmatpush.bf16.msra.mxu0 0
        %5762 = vmatpush.bf16.msra.mxu0 0
        %5763 = vmatpush.bf16.msra.mxu0 0
        %5764 = vmatpush.bf16.msra.mxu0 0
        %5765 = vmatpush.bf16.msra.mxu0 %v5753
        %5766 = vmatpush.bf16.msra.mxu0 %v5752
        %5767 = vmatmul.bf16.gmra.mxu0 %v3568
        %v5768 = vpop.f32.mrf.mxu0
        %v5769 = vadd.f32 0.0, %v5768
        %v5770 = vpop.f32.mrf.mxu0
        %v5771 = vadd.f32 0.0, %v5770
        %5772 = vmatmul.bf16.gmra.mxu0 %v3570
        %v5773 = vpop.f32.mrf.mxu0
        %v5774 = vadd.f32 0.0, %v5773
        %v5775 = vpop.f32.mrf.mxu0
        %v5776 = vadd.f32 0.0, %v5775
        %5777 = vmatmul.bf16.gmra.mxu0 %v3572
        %v5778 = vpop.f32.mrf.mxu0
        %v5779 = vadd.f32 0.0, %v5778
        %v5780 = vpop.f32.mrf.mxu0
        %v5781 = vadd.f32 0.0, %v5780
        %5782 = vmatmul.bf16.gmra.mxu0 %v3574
        %v5783 = vpop.f32.mrf.mxu0
        %v5784 = vadd.f32 0.0, %v5783
        %v5785 = vpop.f32.mrf.mxu0
        %v5786 = vadd.f32 0.0, %v5785
        %5787 = vmatmul.bf16.gmra.mxu0 %v3576
        %v5788 = vpop.f32.mrf.mxu0
        %v5789 = vadd.f32 0.0, %v5788
        %v5790 = vpop.f32.mrf.mxu0
        %v5791 = vadd.f32 0.0, %v5790
        %5792 = vmatmul.bf16.gmra.mxu0 %v3578
        %v5793 = vpop.f32.mrf.mxu0
        %v5794 = vadd.f32 0.0, %v5793
        %v5795 = vpop.f32.mrf.mxu0
        %v5796 = vadd.f32 0.0, %v5795
        %5797 = vmatmul.bf16.gmra.mxu0 %v4128
        %v5798 = vpop.f32.mrf.mxu0
        %v5799 = vadd.f32 0.0, %v5798
        %v5800 = vpop.f32.mrf.mxu0
        %v5801 = vadd.f32 0.0, %v5800
        %5802 = vmatmul.bf16.gmra.mxu0 %v4671
        %v5803 = vpop.f32.mrf.mxu0
        %v5804 = vadd.f32 0.0, %v5803
        %v5805 = vpop.f32.mrf.mxu0
        %v5806 = vadd.f32 0.0, %v5805
        %5807 = vmatmul.bf16.gmra.mxu0 %v5214
        %v5808 = vpop.f32.mrf.mxu0
        %v5809 = vadd.f32 0.0, %v5808
        %v5810 = vpop.f32.mrf.mxu0
        %v5811 = vadd.f32 0.0, %v5810
        %5812 = vmatmul.bf16.gmra.mxu0 %v5757
        %v5813 = vpop.f32.mrf.mxu0
        %v5814 = vadd.f32 0.0, %v5813
        %v5815 = vpop.f32.mrf.mxu0
        %v5816 = vadd.f32 0.0, %v5815
        %5817 = vdwg.mxu0
        %v5818 = vadd.f32 %v5716, %v5769
        %v5819 = vadd.f32 %v5717, %v5771
        %v5820 = vadd.f32 %v5718, %v5774
        %v5821 = vadd.f32 %v5719, %v5776
        %v5822 = vadd.f32 %v5720, %v5779
        %v5823 = vadd.f32 %v5721, %v5781
        %v5824 = vadd.f32 %v5722, %v5784
        %v5825 = vadd.f32 %v5723, %v5786
        %v5826 = vadd.f32 %v5724, %v5789
        %v5827 = vadd.f32 %v5725, %v5791
        %v5828 = vadd.f32 %v5726, %v5794
        %v5829 = vadd.f32 %v5727, %v5796
        %v5830 = vadd.f32 %v5728, %v5799
        %v5831 = vadd.f32 %v5729, %v5801
        %v5832 = vadd.f32 %v5730, %v5804
        %v5833 = vadd.f32 %v5731, %v5806
        %v5834 = vadd.f32 %v5732, %v5809
        %v5835 = vadd.f32 %v5733, %v5811
        %v5836 = vadd.f32 %v5734, %v5814
        %v5837 = vadd.f32 %v5735, %v5816
        %s5838 = scalar_lea.vmem %s3, 336
        %v5839 = vld [vmem:[%s5838] sm:$0xf]
        %v5840 = vld [vmem:[%s5838 + $0x4] sm:$0xf]
        %v5841 = vld [vmem:[%s5838 + $0x8] sm:$0xf]
        %v5842 = vld [vmem:[%s5838 + $0xc] sm:$0xf]
        %v5844 = vunpack.c.l.b16 %v3298
        %v5845 = vpack.c.b16 %v5844, %v5844
        %v5846 = vshll.u32 %v5743, 16
        %v5848 = vrot.slane %v5846, 1
        %v5849 = vsel %vm3361, %v5309, %v5848
        %v5850 = vshrl.u32 %v5743, 16
        %v5852 = vor.u32 %v5850, %v5848
        %v5854 = vshll.u32 %v5845, 16
        %v5856 = vrot.slane %v5854, 1
        %v5857 = vsel %vm3361, %v5852, %v5856
        %v5862 = vunpack.c.l.b16 %v5839
        %v5863 = vunpack.c.l.b16 %v5840
        %v5864 = vunpack.c.l.b16 %v5841
        %v5865 = vunpack.c.l.b16 %v5842
        %v5866 = vpack.c.b16 %v5863, %v5862
        %v5867 = vpack.c.b16 %v5865, %v5864
        %v5871 = vsel %vm3458, %v5849, 0
        %v5874 = vsel %vm3458, %v5857, 0
        %5876 = vmatpush.bf16.msra.mxu0 0
        %5877 = vmatpush.bf16.msra.mxu0 0
        %5878 = vmatpush.bf16.msra.mxu0 0
        %5879 = vmatpush.bf16.msra.mxu0 0
        %5880 = vmatpush.bf16.msra.mxu0 0
        %5881 = vmatpush.bf16.msra.mxu0 0
        %5882 = vmatpush.bf16.msra.mxu0 %v5867
        %5883 = vmatpush.bf16.msra.mxu0 %v5866
        %5884 = vmatmul.bf16.gmra.mxu0 %v3472
        %v5885 = vpop.f32.mrf.mxu0
        %v5886 = vadd.f32 0.0, %v5885
        %v5887 = vpop.f32.mrf.mxu0
        %v5888 = vadd.f32 0.0, %v5887
        %5889 = vmatmul.bf16.gmra.mxu0 %v3475
        %v5890 = vpop.f32.mrf.mxu0
        %v5891 = vadd.f32 0.0, %v5890
        %v5892 = vpop.f32.mrf.mxu0
        %v5893 = vadd.f32 0.0, %v5892
        %5894 = vmatmul.bf16.gmra.mxu0 %v3478
        %v5895 = vpop.f32.mrf.mxu0
        %v5896 = vadd.f32 0.0, %v5895
        %v5897 = vpop.f32.mrf.mxu0
        %v5898 = vadd.f32 0.0, %v5897
        %5899 = vmatmul.bf16.gmra.mxu0 %v3481
        %v5900 = vpop.f32.mrf.mxu0
        %v5901 = vadd.f32 0.0, %v5900
        %v5902 = vpop.f32.mrf.mxu0
        %v5903 = vadd.f32 0.0, %v5902
        %5904 = vmatmul.bf16.gmra.mxu0 %v3484
        %v5905 = vpop.f32.mrf.mxu0
        %v5906 = vadd.f32 0.0, %v5905
        %v5907 = vpop.f32.mrf.mxu0
        %v5908 = vadd.f32 0.0, %v5907
        %5909 = vmatmul.bf16.gmra.mxu0 %v4242
        %v5910 = vpop.f32.mrf.mxu0
        %v5911 = vadd.f32 0.0, %v5910
        %v5912 = vpop.f32.mrf.mxu0
        %v5913 = vadd.f32 0.0, %v5912
        %5914 = vmatmul.bf16.gmra.mxu0 %v4785
        %v5915 = vpop.f32.mrf.mxu0
        %v5916 = vadd.f32 0.0, %v5915
        %v5917 = vpop.f32.mrf.mxu0
        %v5918 = vadd.f32 0.0, %v5917
        %5919 = vmatmul.bf16.gmra.mxu0 %v5328
        %v5920 = vpop.f32.mrf.mxu0
        %v5921 = vadd.f32 0.0, %v5920
        %v5922 = vpop.f32.mrf.mxu0
        %v5923 = vadd.f32 0.0, %v5922
        %5924 = vmatmul.bf16.gmra.mxu0 %v5871
        %v5925 = vpop.f32.mrf.mxu0
        %v5926 = vadd.f32 0.0, %v5925
        %v5927 = vpop.f32.mrf.mxu0
        %v5928 = vadd.f32 0.0, %v5927
        %5929 = vmatmul.bf16.gmra.mxu0 %v5874
        %v5930 = vpop.f32.mrf.mxu0
        %v5931 = vadd.f32 0.0, %v5930
        %v5932 = vpop.f32.mrf.mxu0
        %v5933 = vadd.f32 0.0, %v5932
        %5934 = vdwg.mxu0
        %v5935 = vadd.f32 %v5818, %v5886
        %v5936 = vadd.f32 %v5819, %v5888
        %v5937 = vadd.f32 %v5820, %v5891
        %v5938 = vadd.f32 %v5821, %v5893
        %v5939 = vadd.f32 %v5822, %v5896
        %v5940 = vadd.f32 %v5823, %v5898
        %v5941 = vadd.f32 %v5824, %v5901
        %v5942 = vadd.f32 %v5825, %v5903
        %v5943 = vadd.f32 %v5826, %v5906
        %v5944 = vadd.f32 %v5827, %v5908
        %v5945 = vadd.f32 %v5828, %v5911
        %v5946 = vadd.f32 %v5829, %v5913
        %v5947 = vadd.f32 %v5830, %v5916
        %v5948 = vadd.f32 %v5831, %v5918
        %v5949 = vadd.f32 %v5832, %v5921
        %v5950 = vadd.f32 %v5833, %v5923
        %v5951 = vadd.f32 %v5834, %v5926
        %v5952 = vadd.f32 %v5835, %v5928
        %v5953 = vadd.f32 %v5836, %v5931
        %v5954 = vadd.f32 %v5837, %v5933
        %s5955 = scalar_lea.vmem %s3, 352
        %v5956 = vld [vmem:[%s5955] sm:$0xf]
        %v5957 = vld [vmem:[%s5955 + $0x4] sm:$0xf]
        %v5958 = vld [vmem:[%s5955 + $0x8] sm:$0xf]
        %v5959 = vld [vmem:[%s5955 + $0xc] sm:$0xf]
        %v5960 = vrot.slane %v5743, 1
        %v5961 = vsel %vm3644, %v5417, %v5960
        %v5962 = vrot.slane %v5845, 1
        %v5963 = vsel %vm3644, %v5960, %v5962
        %v5968 = vunpack.c.l.b16 %v5956
        %v5969 = vunpack.c.l.b16 %v5957
        %v5970 = vunpack.c.l.b16 %v5958
        %v5971 = vunpack.c.l.b16 %v5959
        %v5972 = vpack.c.b16 %v5969, %v5968
        %v5973 = vpack.c.b16 %v5971, %v5970
        %v5977 = vsel %vm3458, %v5961, 0
        %v5980 = vsel %vm3458, %v5963, 0
        %5982 = vmatpush.bf16.msra.mxu0 0
        %5983 = vmatpush.bf16.msra.mxu0 0
        %5984 = vmatpush.bf16.msra.mxu0 0
        %5985 = vmatpush.bf16.msra.mxu0 0
        %5986 = vmatpush.bf16.msra.mxu0 0
        %5987 = vmatpush.bf16.msra.mxu0 0
        %5988 = vmatpush.bf16.msra.mxu0 %v5973
        %5989 = vmatpush.bf16.msra.mxu0 %v5972
        %5990 = vmatmul.bf16.gmra.mxu0 %v3691
        %v5991 = vpop.f32.mrf.mxu0
        %v5992 = vadd.f32 0.0, %v5991
        %v5993 = vpop.f32.mrf.mxu0
        %v5994 = vadd.f32 0.0, %v5993
        %5995 = vmatmul.bf16.gmra.mxu0 %v3694
        %v5996 = vpop.f32.mrf.mxu0
        %v5997 = vadd.f32 0.0, %v5996
        %v5998 = vpop.f32.mrf.mxu0
        %v5999 = vadd.f32 0.0, %v5998
        %6000 = vmatmul.bf16.gmra.mxu0 %v3697
        %v6001 = vpop.f32.mrf.mxu0
        %v6002 = vadd.f32 0.0, %v6001
        %v6003 = vpop.f32.mrf.mxu0
        %v6004 = vadd.f32 0.0, %v6003
        %6005 = vmatmul.bf16.gmra.mxu0 %v3700
        %v6006 = vpop.f32.mrf.mxu0
        %v6007 = vadd.f32 0.0, %v6006
        %v6008 = vpop.f32.mrf.mxu0
        %v6009 = vadd.f32 0.0, %v6008
        %6010 = vmatmul.bf16.gmra.mxu0 %v3703
        %v6011 = vpop.f32.mrf.mxu0
        %v6012 = vadd.f32 0.0, %v6011
        %v6013 = vpop.f32.mrf.mxu0
        %v6014 = vadd.f32 0.0, %v6013
        %6015 = vmatmul.bf16.gmra.mxu0 %v4348
        %v6016 = vpop.f32.mrf.mxu0
        %v6017 = vadd.f32 0.0, %v6016
        %v6018 = vpop.f32.mrf.mxu0
        %v6019 = vadd.f32 0.0, %v6018
        %6020 = vmatmul.bf16.gmra.mxu0 %v4891
        %v6021 = vpop.f32.mrf.mxu0
        %v6022 = vadd.f32 0.0, %v6021
        %v6023 = vpop.f32.mrf.mxu0
        %v6024 = vadd.f32 0.0, %v6023
        %6025 = vmatmul.bf16.gmra.mxu0 %v5434
        %v6026 = vpop.f32.mrf.mxu0
        %v6027 = vadd.f32 0.0, %v6026
        %v6028 = vpop.f32.mrf.mxu0
        %v6029 = vadd.f32 0.0, %v6028
        %6030 = vmatmul.bf16.gmra.mxu0 %v5977
        %v6031 = vpop.f32.mrf.mxu0
        %v6032 = vadd.f32 0.0, %v6031
        %v6033 = vpop.f32.mrf.mxu0
        %v6034 = vadd.f32 0.0, %v6033
        %6035 = vmatmul.bf16.gmra.mxu0 %v5980
        %v6036 = vpop.f32.mrf.mxu0
        %v6037 = vadd.f32 0.0, %v6036
        %v6038 = vpop.f32.mrf.mxu0
        %v6039 = vadd.f32 0.0, %v6038
        %6040 = vdwg.mxu0
        %v6041 = vadd.f32 %v5935, %v5992
        %v6042 = vadd.f32 %v5936, %v5994
        %v6043 = vadd.f32 %v5937, %v5997
        %v6044 = vadd.f32 %v5938, %v5999
        %v6045 = vadd.f32 %v5939, %v6002
        %v6046 = vadd.f32 %v5940, %v6004
        %v6047 = vadd.f32 %v5941, %v6007
        %v6048 = vadd.f32 %v5942, %v6009
        %v6049 = vadd.f32 %v5943, %v6012
        %v6050 = vadd.f32 %v5944, %v6014
        %v6051 = vadd.f32 %v5945, %v6017
        %v6052 = vadd.f32 %v5946, %v6019
        %v6053 = vadd.f32 %v5947, %v6022
        %v6054 = vadd.f32 %v5948, %v6024
        %v6055 = vadd.f32 %v5949, %v6027
        %v6056 = vadd.f32 %v5950, %v6029
        %v6057 = vadd.f32 %v5951, %v6032
        %v6058 = vadd.f32 %v5952, %v6034
        %v6059 = vadd.f32 %v5953, %v6037
        %v6060 = vadd.f32 %v5954, %v6039
        %s6061 = scalar_lea.vmem %s3, 368
        %v6062 = vld [vmem:[%s6061] sm:$0xf]
        %v6063 = vld [vmem:[%s6061 + $0x4] sm:$0xf]
        %v6064 = vld [vmem:[%s6061 + $0x8] sm:$0xf]
        %v6065 = vld [vmem:[%s6061 + $0xc] sm:$0xf]
        %v6066 = vrot.slane %v5850, 1
        %v6067 = vrot.slane %v5846, 2
        %v6068 = vor.u32 %v6066, %v6067
        %v6069 = vsel %vm3792, %v5525, %v6068
        %v6070 = vshrl.u32 %v5845, 16
        %v6072 = vrot.slane %v6070, 1
        %v6073 = vrot.slane %v5854, 2
        %v6074 = vor.u32 %v6072, %v6073
        %v6075 = vsel %vm3792, %v6068, %v6074
        %v6080 = vunpack.c.l.b16 %v6062
        %v6081 = vunpack.c.l.b16 %v6063
        %v6082 = vunpack.c.l.b16 %v6064
        %v6083 = vunpack.c.l.b16 %v6065
        %v6084 = vpack.c.b16 %v6081, %v6080
        %v6085 = vpack.c.b16 %v6083, %v6082
        %v6089 = vsel %vm3458, %v6069, 0
        %v6092 = vsel %vm3458, %v6075, 0
        %6094 = vmatpush.bf16.msra.mxu0 0
        %6095 = vmatpush.bf16.msra.mxu0 0
        %6096 = vmatpush.bf16.msra.mxu0 0
        %6097 = vmatpush.bf16.msra.mxu0 0
        %6098 = vmatpush.bf16.msra.mxu0 0
        %6099 = vmatpush.bf16.msra.mxu0 0
        %6100 = vmatpush.bf16.msra.mxu0 %v6085
        %6101 = vmatpush.bf16.msra.mxu0 %v6084
        %6102 = vmatmul.bf16.gmra.mxu0 %v3863
        %v6103 = vpop.f32.mrf.mxu0
        %v6104 = vadd.f32 0.0, %v6103
        %v6105 = vpop.f32.mrf.mxu0
        %v6106 = vadd.f32 0.0, %v6105
        %6107 = vmatmul.bf16.gmra.mxu0 %v3866
        %v6108 = vpop.f32.mrf.mxu0
        %v6109 = vadd.f32 0.0, %v6108
        %v6110 = vpop.f32.mrf.mxu0
        %v6111 = vadd.f32 0.0, %v6110
        %6112 = vmatmul.bf16.gmra.mxu0 %v3869
        %v6113 = vpop.f32.mrf.mxu0
        %v6114 = vadd.f32 0.0, %v6113
        %v6115 = vpop.f32.mrf.mxu0
        %v6116 = vadd.f32 0.0, %v6115
        %6117 = vmatmul.bf16.gmra.mxu0 %v3872
        %v6118 = vpop.f32.mrf.mxu0
        %v6119 = vadd.f32 0.0, %v6118
        %v6120 = vpop.f32.mrf.mxu0
        %v6121 = vadd.f32 0.0, %v6120
        %6122 = vmatmul.bf16.gmra.mxu0 %v3875
        %v6123 = vpop.f32.mrf.mxu0
        %v6124 = vadd.f32 0.0, %v6123
        %v6125 = vpop.f32.mrf.mxu0
        %v6126 = vadd.f32 0.0, %v6125
        %6127 = vmatmul.bf16.gmra.mxu0 %v4460
        %v6128 = vpop.f32.mrf.mxu0
        %v6129 = vadd.f32 0.0, %v6128
        %v6130 = vpop.f32.mrf.mxu0
        %v6131 = vadd.f32 0.0, %v6130
        %6132 = vmatmul.bf16.gmra.mxu0 %v5003
        %v6133 = vpop.f32.mrf.mxu0
        %v6134 = vadd.f32 0.0, %v6133
        %v6135 = vpop.f32.mrf.mxu0
        %v6136 = vadd.f32 0.0, %v6135
        %6137 = vmatmul.bf16.gmra.mxu0 %v5546
        %v6138 = vpop.f32.mrf.mxu0
        %v6139 = vadd.f32 0.0, %v6138
        %v6140 = vpop.f32.mrf.mxu0
        %v6141 = vadd.f32 0.0, %v6140
        %6142 = vmatmul.bf16.gmra.mxu0 %v6089
        %v6143 = vpop.f32.mrf.mxu0
        %v6144 = vadd.f32 0.0, %v6143
        %v6145 = vpop.f32.mrf.mxu0
        %v6146 = vadd.f32 0.0, %v6145
        %6147 = vmatmul.bf16.gmra.mxu0 %v6092
        %v6148 = vpop.f32.mrf.mxu0
        %v6149 = vadd.f32 0.0, %v6148
        %v6150 = vpop.f32.mrf.mxu0
        %v6151 = vadd.f32 0.0, %v6150
        %6152 = vdwg.mxu0
        %v6153 = vadd.f32 %v6041, %v6104
        %v6154 = vadd.f32 %v6042, %v6106
        %v6155 = vadd.f32 %v6043, %v6109
        %v6156 = vadd.f32 %v6044, %v6111
        %v6157 = vadd.f32 %v6045, %v6114
        %v6158 = vadd.f32 %v6046, %v6116
        %v6159 = vadd.f32 %v6047, %v6119
        %v6160 = vadd.f32 %v6048, %v6121
        %v6161 = vadd.f32 %v6049, %v6124
        %v6162 = vadd.f32 %v6050, %v6126
        %v6163 = vadd.f32 %v6051, %v6129
        %v6164 = vadd.f32 %v6052, %v6131
        %v6165 = vadd.f32 %v6053, %v6134
        %v6166 = vadd.f32 %v6054, %v6136
        %v6167 = vadd.f32 %v6055, %v6139
        %v6168 = vadd.f32 %v6056, %v6141
        %v6169 = vadd.f32 %v6057, %v6144
        %v6170 = vadd.f32 %v6058, %v6146
        %v6171 = vadd.f32 %v6059, %v6149
        %v6172 = vadd.f32 %v6060, %v6151
        %s6173 = scalar_lea.vmem %s3, 384
        %v6174 = vld [vmem:[%s6173] sm:$0xf]
        %v6175 = vld [vmem:[%s6173 + $0x4] sm:$0xf]
        %v6176 = vld [vmem:[%s6173 + $0x8] sm:$0xf]
        %v6177 = vld [vmem:[%s6173 + $0xc] sm:$0xf]
        %v6178 = vrot.slane %v5743, 2
        %v6179 = vsel %vm3964, %v5635, %v6178
        %v6180 = vrot.slane %v5845, 2
        %v6181 = vsel %vm3964, %v6178, %v6180
        %v6186 = vunpack.c.l.b16 %v6174
        %v6187 = vunpack.c.l.b16 %v6175
        %v6188 = vunpack.c.l.b16 %v6176
        %v6189 = vunpack.c.l.b16 %v6177
        %v6190 = vpack.c.b16 %v6187, %v6186
        %v6191 = vpack.c.b16 %v6189, %v6188
        %v6195 = vsel %vm3458, %v6179, 0
        %v6198 = vsel %vm3458, %v6181, 0
        %6200 = vmatpush.bf16.msra.mxu0 0
        %6201 = vmatpush.bf16.msra.mxu0 0
        %6202 = vmatpush.bf16.msra.mxu0 0
        %6203 = vmatpush.bf16.msra.mxu0 0
        %6204 = vmatpush.bf16.msra.mxu0 0
        %6205 = vmatpush.bf16.msra.mxu0 0
        %6206 = vmatpush.bf16.msra.mxu0 %v6191
        %6207 = vmatpush.bf16.msra.mxu0 %v6190
        %6208 = vmatmul.bf16.gmra.mxu0 %v4011
        %v6209 = vpop.f32.mrf.mxu0
        %v6210 = vadd.f32 0.0, %v6209
        %v6211 = vpop.f32.mrf.mxu0
        %v6212 = vadd.f32 0.0, %v6211
        %6213 = vmatmul.bf16.gmra.mxu0 %v4014
        %v6214 = vpop.f32.mrf.mxu0
        %v6215 = vadd.f32 0.0, %v6214
        %v6216 = vpop.f32.mrf.mxu0
        %v6217 = vadd.f32 0.0, %v6216
        %6218 = vmatmul.bf16.gmra.mxu0 %v4017
        %v6219 = vpop.f32.mrf.mxu0
        %v6220 = vadd.f32 0.0, %v6219
        %v6221 = vpop.f32.mrf.mxu0
        %v6222 = vadd.f32 0.0, %v6221
        %6223 = vmatmul.bf16.gmra.mxu0 %v4020
        %v6224 = vpop.f32.mrf.mxu0
        %v6225 = vadd.f32 0.0, %v6224
        %v6226 = vpop.f32.mrf.mxu0
        %v6227 = vadd.f32 0.0, %v6226
        %6228 = vmatmul.bf16.gmra.mxu0 %v4023
        %v6229 = vpop.f32.mrf.mxu0
        %v6230 = vadd.f32 0.0, %v6229
        %v6231 = vpop.f32.mrf.mxu0
        %v6232 = vadd.f32 0.0, %v6231
        %6233 = vmatmul.bf16.gmra.mxu0 %v4566
        %v6234 = vpop.f32.mrf.mxu0
        %v6235 = vadd.f32 0.0, %v6234
        %v6236 = vpop.f32.mrf.mxu0
        %v6237 = vadd.f32 0.0, %v6236
        %6238 = vmatmul.bf16.gmra.mxu0 %v5109
        %v6239 = vpop.f32.mrf.mxu0
        %v6240 = vadd.f32 0.0, %v6239
        %v6241 = vpop.f32.mrf.mxu0
        %v6242 = vadd.f32 0.0, %v6241
        %6243 = vmatmul.bf16.gmra.mxu0 %v5652
        %v6244 = vpop.f32.mrf.mxu0
        %v6245 = vadd.f32 0.0, %v6244
        %v6246 = vpop.f32.mrf.mxu0
        %v6247 = vadd.f32 0.0, %v6246
        %6248 = vmatmul.bf16.gmra.mxu0 %v6195
        %v6249 = vpop.f32.mrf.mxu0
        %v6250 = vadd.f32 0.0, %v6249
        %v6251 = vpop.f32.mrf.mxu0
        %v6252 = vadd.f32 0.0, %v6251
        %6253 = vmatmul.bf16.gmra.mxu0 %v6198
        %v6254 = vpop.f32.mrf.mxu0
        %v6255 = vadd.f32 0.0, %v6254
        %v6256 = vpop.f32.mrf.mxu0
        %v6257 = vadd.f32 0.0, %v6256
        %6258 = vdwg.mxu0
        %v6259 = vadd.f32 %v6153, %v6210
        %v6260 = vadd.f32 %v6154, %v6212
        %v6261 = vadd.f32 %v6155, %v6215
        %v6262 = vadd.f32 %v6156, %v6217
        %v6263 = vadd.f32 %v6157, %v6220
        %v6264 = vadd.f32 %v6158, %v6222
        %v6265 = vadd.f32 %v6159, %v6225
        %v6266 = vadd.f32 %v6160, %v6227
        %v6267 = vadd.f32 %v6161, %v6230
        %v6268 = vadd.f32 %v6162, %v6232
        %v6269 = vadd.f32 %v6163, %v6235
        %v6270 = vadd.f32 %v6164, %v6237
        %v6271 = vadd.f32 %v6165, %v6240
        %v6272 = vadd.f32 %v6166, %v6242
        %v6273 = vadd.f32 %v6167, %v6245
        %v6274 = vadd.f32 %v6168, %v6247
        %v6275 = vadd.f32 %v6169, %v6250
        %v6276 = vadd.f32 %v6170, %v6252
        %v6277 = vadd.f32 %v6171, %v6255
        %v6278 = vadd.f32 %v6172, %v6257
        %v6279 = vld [vmem:[%s4] sm:$0x1]
        %v6281 = vperm.slane %v6279, 0
        %v6283 = vadd.f32 %v6259, %v6281
        %v6284 = vadd.f32 %v6260, %v6281
        %v6285 = vadd.f32 %v6261, %v6281
        %v6286 = vadd.f32 %v6262, %v6281
        %v6287 = vadd.f32 %v6263, %v6281
        %v6288 = vadd.f32 %v6264, %v6281
        %v6289 = vadd.f32 %v6265, %v6281
        %v6290 = vadd.f32 %v6266, %v6281
        %v6291 = vadd.f32 %v6267, %v6281
        %v6292 = vadd.f32 %v6268, %v6281
        %v6293 = vadd.f32 %v6269, %v6281
        %v6294 = vadd.f32 %v6270, %v6281
        %v6295 = vadd.f32 %v6271, %v6281
        %v6296 = vadd.f32 %v6272, %v6281
        %v6297 = vadd.f32 %v6273, %v6281
        %v6298 = vadd.f32 %v6274, %v6281
        %v6299 = vadd.f32 %v6275, %v6281
        %v6300 = vadd.f32 %v6276, %v6281
        %v6301 = vadd.f32 %v6277, %v6281
        %v6302 = vadd.f32 %v6278, %v6281
        %v6303 = vmax.f32 %v6283, 0.0
        %v6304 = vmax.f32 %v6284, 0.0
        %v6305 = vmax.f32 %v6285, 0.0
        %v6306 = vmax.f32 %v6286, 0.0
        %v6307 = vmax.f32 %v6287, 0.0
        %v6308 = vmax.f32 %v6288, 0.0
        %v6309 = vmax.f32 %v6289, 0.0
        %v6310 = vmax.f32 %v6290, 0.0
        %v6311 = vmax.f32 %v6291, 0.0
        %v6312 = vmax.f32 %v6292, 0.0
        %v6313 = vmax.f32 %v6293, 0.0
        %v6314 = vmax.f32 %v6294, 0.0
        %v6315 = vmax.f32 %v6295, 0.0
        %v6316 = vmax.f32 %v6296, 0.0
        %v6317 = vmax.f32 %v6297, 0.0
        %v6318 = vmax.f32 %v6298, 0.0
        %v6319 = vmax.f32 %v6299, 0.0
        %v6320 = vmax.f32 %v6300, 0.0
        %v6321 = vmax.f32 %v6301, 0.0
        %v6322 = vmax.f32 %v6302, 0.0
        %v6323 = vpack.c.bf16 %v6303, %v6303
        %v6324 = vpack.c.bf16 %v6304, %v6304
        %v6325 = vpack.c.bf16 %v6305, %v6305
        %v6326 = vpack.c.bf16 %v6306, %v6306
        %v6327 = vpack.c.bf16 %v6307, %v6307
        %v6328 = vpack.c.bf16 %v6308, %v6308
        %v6329 = vpack.c.bf16 %v6309, %v6309
        %v6330 = vpack.c.bf16 %v6310, %v6310
        %v6331 = vpack.c.bf16 %v6311, %v6311
        %v6332 = vpack.c.bf16 %v6312, %v6312
        %v6333 = vpack.c.bf16 %v6313, %v6313
        %v6334 = vpack.c.bf16 %v6314, %v6314
        %v6335 = vpack.c.bf16 %v6315, %v6315
        %v6336 = vpack.c.bf16 %v6316, %v6316
        %v6337 = vpack.c.bf16 %v6317, %v6317
        %v6338 = vpack.c.bf16 %v6318, %v6318
        %v6339 = vpack.c.bf16 %v6319, %v6319
        %v6340 = vpack.c.bf16 %v6320, %v6320
        %v6341 = vpack.c.bf16 %v6321, %v6321
        %v6342 = vpack.c.bf16 %v6322, %v6322
        %v6343 = vunpack.c.l.bf16 %v6323
        %v6345 = vrot.slane %v6343, 1
        %v6347 = vmax.f32 %v6343, %v6345
        %v6348 = vpack.c.bf16 %v6347, %v6347
        %v6349 = vunpack.c.l.bf16 %v6325
        %v6351 = vrot.slane %v6349, 1
        %v6353 = vmax.f32 %v6349, %v6351
        %v6354 = vpack.c.bf16 %v6353, %v6353
        %v6355 = vunpack.c.l.bf16 %v6348
        %v6356 = vunpack.c.l.bf16 %v6354
        %v6357 = vmax.f32 %v6355, %v6356
        %v6358 = vpack.c.bf16 %v6357, %v6357
        %v6359 = vld [vmem:[%s5] sm:$0xf]
        %v6360 = vld [vmem:[%s5 + $0x4] sm:$0xf]
        %v6361 = vld [vmem:[%s5 + $0x8] sm:$0xf]
        %v6362 = vld [vmem:[%s5 + $0xc] sm:$0xf]
        %v6363 = vld [vmem:[%s5 + $0x10] sm:$0xf]
        %v6364 = vld [vmem:[%s5 + $0x14] sm:$0xf]
        %v6365 = vld [vmem:[%s5 + $0x18] sm:$0xf]
        %v6366 = vld [vmem:[%s5 + $0x1c] sm:$0xf]
        %s6367 = scalar_lea.vmem %s5, 32
        %v6368 = vld [vmem:[%s6367] sm:$0xf]
        %v6369 = vld [vmem:[%s6367 + $0x4] sm:$0xf]
        %v6370 = vld [vmem:[%s6367 + $0x8] sm:$0xf]
        %v6371 = vld [vmem:[%s6367 + $0xc] sm:$0xf]
        %v6372 = vld [vmem:[%s6367 + $0x10] sm:$0xf]
        %v6373 = vld [vmem:[%s6367 + $0x14] sm:$0xf]
        %v6374 = vld [vmem:[%s6367 + $0x18] sm:$0xf]
        %v6375 = vld [vmem:[%s6367 + $0x1c] sm:$0xf]
        %v6377 = vrot.slane %v6358, 1
        %v6386 = vunpack.c.l.b16 %v6368
        %v6387 = vunpack.c.l.b16 %v6369
        %v6388 = vunpack.c.l.b16 %v6370
        %v6389 = vunpack.c.l.b16 %v6371
        %v6390 = vunpack.c.l.b16 %v6372
        %v6391 = vunpack.c.l.b16 %v6373
        %v6392 = vunpack.c.l.b16 %v6374
        %v6393 = vunpack.c.l.b16 %v6375
        %v6394 = vpack.c.b16 %v6387, %v6386
        %v6395 = vpack.c.b16 %v6389, %v6388
        %v6396 = vpack.c.b16 %v6391, %v6390
        %v6397 = vpack.c.b16 %v6393, %v6392
        %vm6402 = vcmask 523264
        %v6404 = vsel %vm6402, %v6377, 0
        %6406 = vmatpush.bf16.msra.mxu0 0
        %6407 = vmatpush.bf16.msra.mxu0 0
        %6408 = vmatpush.bf16.msra.mxu0 0
        %6409 = vmatpush.bf16.msra.mxu0 0
        %6410 = vmatpush.bf16.msra.mxu0 %v6397
        %6411 = vmatpush.bf16.msra.mxu0 %v6396
        %6412 = vmatpush.bf16.msra.mxu0 %v6395
        %6413 = vmatpush.bf16.msra.mxu0 %v6394
        %6414 = vmatmul.bf16.gmra.mxu0 %v6404
        %v6415 = vpop.f32.mrf.mxu0
        %v6416 = vadd.f32 0.0, %v6415
        %v6417 = vpop.f32.mrf.mxu0
        %6418 = vdwg.mxu0
        %v6427 = vunpack.c.l.b16 %v6359
        %v6428 = vunpack.c.l.b16 %v6360
        %v6429 = vunpack.c.l.b16 %v6361
        %v6430 = vunpack.c.l.b16 %v6362
        %v6431 = vunpack.c.l.b16 %v6363
        %v6432 = vunpack.c.l.b16 %v6364
        %v6433 = vunpack.c.l.b16 %v6365
        %v6434 = vunpack.c.l.b16 %v6366
        %v6435 = vpack.c.b16 %v6428, %v6427
        %v6436 = vpack.c.b16 %v6430, %v6429
        %v6437 = vpack.c.b16 %v6432, %v6431
        %v6438 = vpack.c.b16 %v6434, %v6433
        %v6444 = vsel %vm6402, %v6358, 0
        %6446 = vmatpush.bf16.msra.mxu0 0
        %6447 = vmatpush.bf16.msra.mxu0 0
        %6448 = vmatpush.bf16.msra.mxu0 0
        %6449 = vmatpush.bf16.msra.mxu0 0
        %6450 = vmatpush.bf16.msra.mxu0 %v6438
        %6451 = vmatpush.bf16.msra.mxu0 %v6437
        %6452 = vmatpush.bf16.msra.mxu0 %v6436
        %6453 = vmatpush.bf16.msra.mxu0 %v6435
        %6454 = vmatmul.bf16.gmra.mxu0 %v6444
        %v6455 = vpop.f32.mrf.mxu0
        %v6456 = vadd.f32 %v6416, %v6455
        %v6457 = vpop.f32.mrf.mxu0
        %6458 = vdwg.mxu0
        %s6459 = scalar_lea.vmem %s5, 64
        %v6460 = vld [vmem:[%s6459] sm:$0xf]
        %v6461 = vld [vmem:[%s6459 + $0x4] sm:$0xf]
        %v6462 = vld [vmem:[%s6459 + $0x8] sm:$0xf]
        %v6463 = vld [vmem:[%s6459 + $0xc] sm:$0xf]
        %v6464 = vld [vmem:[%s6459 + $0x10] sm:$0xf]
        %v6465 = vld [vmem:[%s6459 + $0x14] sm:$0xf]
        %v6466 = vld [vmem:[%s6459 + $0x18] sm:$0xf]
        %v6467 = vld [vmem:[%s6459 + $0x1c] sm:$0xf]
        %v6468 = vrot.slane %v6358, 2
        %v6477 = vunpack.c.l.b16 %v6460
        %v6478 = vunpack.c.l.b16 %v6461
        %v6479 = vunpack.c.l.b16 %v6462
        %v6480 = vunpack.c.l.b16 %v6463
        %v6481 = vunpack.c.l.b16 %v6464
        %v6482 = vunpack.c.l.b16 %v6465
        %v6483 = vunpack.c.l.b16 %v6466
        %v6484 = vunpack.c.l.b16 %v6467
        %v6485 = vpack.c.b16 %v6478, %v6477
        %v6486 = vpack.c.b16 %v6480, %v6479
        %v6487 = vpack.c.b16 %v6482, %v6481
        %v6488 = vpack.c.b16 %v6484, %v6483
        %v6494 = vsel %vm6402, %v6468, 0
        %6496 = vmatpush.bf16.msra.mxu0 0
        %6497 = vmatpush.bf16.msra.mxu0 0
        %6498 = vmatpush.bf16.msra.mxu0 0
        %6499 = vmatpush.bf16.msra.mxu0 0
        %6500 = vmatpush.bf16.msra.mxu0 %v6488
        %6501 = vmatpush.bf16.msra.mxu0 %v6487
        %6502 = vmatpush.bf16.msra.mxu0 %v6486
        %6503 = vmatpush.bf16.msra.mxu0 %v6485
        %6504 = vmatmul.bf16.gmra.mxu0 %v6494
        %v6505 = vpop.f32.mrf.mxu0
        %v6506 = vadd.f32 0.0, %v6505
        %v6507 = vpop.f32.mrf.mxu0
        %6508 = vdwg.mxu0
        %v6509 = vadd.f32 %v6456, %v6506
        %s6510 = scalar_lea.vmem %s5, 96
        %v6511 = vld [vmem:[%s6510] sm:$0xf]
        %v6512 = vld [vmem:[%s6510 + $0x4] sm:$0xf]
        %v6513 = vld [vmem:[%s6510 + $0x8] sm:$0xf]
        %v6514 = vld [vmem:[%s6510 + $0xc] sm:$0xf]
        %v6515 = vld [vmem:[%s6510 + $0x10] sm:$0xf]
        %v6516 = vld [vmem:[%s6510 + $0x14] sm:$0xf]
        %v6517 = vld [vmem:[%s6510 + $0x18] sm:$0xf]
        %v6518 = vld [vmem:[%s6510 + $0x1c] sm:$0xf]
        %v6519 = vrot.slane %v6358, 3
        %v6528 = vunpack.c.l.b16 %v6511
        %v6529 = vunpack.c.l.b16 %v6512
        %v6530 = vunpack.c.l.b16 %v6513
        %v6531 = vunpack.c.l.b16 %v6514
        %v6532 = vunpack.c.l.b16 %v6515
        %v6533 = vunpack.c.l.b16 %v6516
        %v6534 = vunpack.c.l.b16 %v6517
        %v6535 = vunpack.c.l.b16 %v6518
        %v6536 = vpack.c.b16 %v6529, %v6528
        %v6537 = vpack.c.b16 %v6531, %v6530
        %v6538 = vpack.c.b16 %v6533, %v6532
        %v6539 = vpack.c.b16 %v6535, %v6534
        %v6545 = vsel %vm6402, %v6519, 0
        %6547 = vmatpush.bf16.msra.mxu0 0
        %6548 = vmatpush.bf16.msra.mxu0 0
        %6549 = vmatpush.bf16.msra.mxu0 0
        %6550 = vmatpush.bf16.msra.mxu0 0
        %6551 = vmatpush.bf16.msra.mxu0 %v6539
        %6552 = vmatpush.bf16.msra.mxu0 %v6538
        %6553 = vmatpush.bf16.msra.mxu0 %v6537
        %6554 = vmatpush.bf16.msra.mxu0 %v6536
        %6555 = vmatmul.bf16.gmra.mxu0 %v6545
        %v6556 = vpop.f32.mrf.mxu0
        %v6557 = vadd.f32 0.0, %v6556
        %v6558 = vpop.f32.mrf.mxu0
        %6559 = vdwg.mxu0
        %v6560 = vadd.f32 %v6509, %v6557
        %v6561 = vunpack.c.l.bf16 %v6324
        %v6563 = vrot.slane %v6561, 1
        %v6565 = vmax.f32 %v6561, %v6563
        %v6566 = vpack.c.bf16 %v6565, %v6565
        %v6567 = vunpack.c.l.bf16 %v6326
        %v6569 = vrot.slane %v6567, 1
        %v6571 = vmax.f32 %v6567, %v6569
        %v6572 = vpack.c.bf16 %v6571, %v6571
        %v6573 = vunpack.c.l.bf16 %v6566
        %v6574 = vunpack.c.l.bf16 %v6572
        %v6575 = vmax.f32 %v6573, %v6574
        %v6576 = vpack.c.bf16 %v6575, %v6575
        %s6577 = scalar_lea.vmem %s5, 128
        %v6578 = vld [vmem:[%s6577] sm:$0xf]
        %v6579 = vld [vmem:[%s6577 + $0x4] sm:$0xf]
        %v6580 = vld [vmem:[%s6577 + $0x8] sm:$0xf]
        %v6581 = vld [vmem:[%s6577 + $0xc] sm:$0xf]
        %v6582 = vld [vmem:[%s6577 + $0x10] sm:$0xf]
        %v6583 = vld [vmem:[%s6577 + $0x14] sm:$0xf]
        %v6584 = vld [vmem:[%s6577 + $0x18] sm:$0xf]
        %v6585 = vld [vmem:[%s6577 + $0x1c] sm:$0xf]
        %v6594 = vunpack.c.l.b16 %v6578
        %v6595 = vunpack.c.l.b16 %v6579
        %v6596 = vunpack.c.l.b16 %v6580
        %v6597 = vunpack.c.l.b16 %v6581
        %v6598 = vunpack.c.l.b16 %v6582
        %v6599 = vunpack.c.l.b16 %v6583
        %v6600 = vunpack.c.l.b16 %v6584
        %v6601 = vunpack.c.l.b16 %v6585
        %v6602 = vpack.c.b16 %v6595, %v6594
        %v6603 = vpack.c.b16 %v6597, %v6596
        %v6604 = vpack.c.b16 %v6599, %v6598
        %v6605 = vpack.c.b16 %v6601, %v6600
        %v6611 = vsel %vm6402, %v6576, 0
        %6613 = vmatpush.bf16.msra.mxu0 0
        %6614 = vmatpush.bf16.msra.mxu0 0
        %6615 = vmatpush.bf16.msra.mxu0 0
        %6616 = vmatpush.bf16.msra.mxu0 0
        %6617 = vmatpush.bf16.msra.mxu0 %v6605
        %6618 = vmatpush.bf16.msra.mxu0 %v6604
        %6619 = vmatpush.bf16.msra.mxu0 %v6603
        %6620 = vmatpush.bf16.msra.mxu0 %v6602
        %6621 = vmatmul.bf16.gmra.mxu0 %v6611
        %v6622 = vpop.f32.mrf.mxu0
        %v6623 = vadd.f32 0.0, %v6622
        %v6624 = vpop.f32.mrf.mxu0
        %6625 = vdwg.mxu0
        %v6626 = vadd.f32 %v6560, %v6623
        %v6627 = vunpack.c.l.bf16 %v6327
        %v6629 = vrot.slane %v6627, 1
        %v6631 = vmax.f32 %v6627, %v6629
        %v6632 = vpack.c.bf16 %v6631, %v6631
        %v6633 = vunpack.c.l.bf16 %v6329
        %v6635 = vrot.slane %v6633, 1
        %v6637 = vmax.f32 %v6633, %v6635
        %v6638 = vpack.c.bf16 %v6637, %v6637
        %v6639 = vunpack.c.l.bf16 %v6632
        %v6640 = vunpack.c.l.bf16 %v6638
        %v6641 = vmax.f32 %v6639, %v6640
        %v6642 = vpack.c.bf16 %v6641, %v6641
        %s6643 = scalar_lea.vmem %s5, 160
        %v6644 = vld [vmem:[%s6643] sm:$0xf]
        %v6645 = vld [vmem:[%s6643 + $0x4] sm:$0xf]
        %v6646 = vld [vmem:[%s6643 + $0x8] sm:$0xf]
        %v6647 = vld [vmem:[%s6643 + $0xc] sm:$0xf]
        %v6648 = vld [vmem:[%s6643 + $0x10] sm:$0xf]
        %v6649 = vld [vmem:[%s6643 + $0x14] sm:$0xf]
        %v6650 = vld [vmem:[%s6643 + $0x18] sm:$0xf]
        %v6651 = vld [vmem:[%s6643 + $0x1c] sm:$0xf]
        %v6660 = vunpack.c.l.b16 %v6644
        %v6661 = vunpack.c.l.b16 %v6645
        %v6662 = vunpack.c.l.b16 %v6646
        %v6663 = vunpack.c.l.b16 %v6647
        %v6664 = vunpack.c.l.b16 %v6648
        %v6665 = vunpack.c.l.b16 %v6649
        %v6666 = vunpack.c.l.b16 %v6650
        %v6667 = vunpack.c.l.b16 %v6651
        %v6668 = vpack.c.b16 %v6661, %v6660
        %v6669 = vpack.c.b16 %v6663, %v6662
        %v6670 = vpack.c.b16 %v6665, %v6664
        %v6671 = vpack.c.b16 %v6667, %v6666
        %v6677 = vsel %vm6402, %v6642, 0
        %6679 = vmatpush.bf16.msra.mxu0 0
        %6680 = vmatpush.bf16.msra.mxu0 0
        %6681 = vmatpush.bf16.msra.mxu0 0
        %6682 = vmatpush.bf16.msra.mxu0 0
        %6683 = vmatpush.bf16.msra.mxu0 %v6671
        %6684 = vmatpush.bf16.msra.mxu0 %v6670
        %6685 = vmatpush.bf16.msra.mxu0 %v6669
        %6686 = vmatpush.bf16.msra.mxu0 %v6668
        %6687 = vmatmul.bf16.gmra.mxu0 %v6677
        %v6688 = vpop.f32.mrf.mxu0
        %v6689 = vadd.f32 0.0, %v6688
        %v6690 = vpop.f32.mrf.mxu0
        %6691 = vdwg.mxu0
        %v6692 = vadd.f32 %v6626, %v6689
        %s6693 = scalar_lea.vmem %s5, 192
        %v6694 = vld [vmem:[%s6693] sm:$0xf]
        %v6695 = vld [vmem:[%s6693 + $0x4] sm:$0xf]
        %v6696 = vld [vmem:[%s6693 + $0x8] sm:$0xf]
        %v6697 = vld [vmem:[%s6693 + $0xc] sm:$0xf]
        %v6698 = vld [vmem:[%s6693 + $0x10] sm:$0xf]
        %v6699 = vld [vmem:[%s6693 + $0x14] sm:$0xf]
        %v6700 = vld [vmem:[%s6693 + $0x18] sm:$0xf]
        %v6701 = vld [vmem:[%s6693 + $0x1c] sm:$0xf]
        %v6703 = vrot.slane %v6642, 1
        %v6712 = vunpack.c.l.b16 %v6694
        %v6713 = vunpack.c.l.b16 %v6695
        %v6714 = vunpack.c.l.b16 %v6696
        %v6715 = vunpack.c.l.b16 %v6697
        %v6716 = vunpack.c.l.b16 %v6698
        %v6717 = vunpack.c.l.b16 %v6699
        %v6718 = vunpack.c.l.b16 %v6700
        %v6719 = vunpack.c.l.b16 %v6701
        %v6720 = vpack.c.b16 %v6713, %v6712
        %v6721 = vpack.c.b16 %v6715, %v6714
        %v6722 = vpack.c.b16 %v6717, %v6716
        %v6723 = vpack.c.b16 %v6719, %v6718
        %v6729 = vsel %vm6402, %v6703, 0
        %6731 = vmatpush.bf16.msra.mxu0 0
        %6732 = vmatpush.bf16.msra.mxu0 0
        %6733 = vmatpush.bf16.msra.mxu0 0
        %6734 = vmatpush.bf16.msra.mxu0 0
        %6735 = vmatpush.bf16.msra.mxu0 %v6723
        %6736 = vmatpush.bf16.msra.mxu0 %v6722
        %6737 = vmatpush.bf16.msra.mxu0 %v6721
        %6738 = vmatpush.bf16.msra.mxu0 %v6720
        %6739 = vmatmul.bf16.gmra.mxu0 %v6729
        %v6740 = vpop.f32.mrf.mxu0
        %v6741 = vadd.f32 0.0, %v6740
        %v6742 = vpop.f32.mrf.mxu0
        %6743 = vdwg.mxu0
        %v6744 = vadd.f32 %v6692, %v6741
        %s6745 = scalar_lea.vmem %s5, 224
        %v6746 = vld [vmem:[%s6745] sm:$0xf]
        %v6747 = vld [vmem:[%s6745 + $0x4] sm:$0xf]
        %v6748 = vld [vmem:[%s6745 + $0x8] sm:$0xf]
        %v6749 = vld [vmem:[%s6745 + $0xc] sm:$0xf]
        %v6750 = vld [vmem:[%s6745 + $0x10] sm:$0xf]
        %v6751 = vld [vmem:[%s6745 + $0x14] sm:$0xf]
        %v6752 = vld [vmem:[%s6745 + $0x18] sm:$0xf]
        %v6753 = vld [vmem:[%s6745 + $0x1c] sm:$0xf]
        %v6754 = vrot.slane %v6642, 2
        %v6763 = vunpack.c.l.b16 %v6746
        %v6764 = vunpack.c.l.b16 %v6747
        %v6765 = vunpack.c.l.b16 %v6748
        %v6766 = vunpack.c.l.b16 %v6749
        %v6767 = vunpack.c.l.b16 %v6750
        %v6768 = vunpack.c.l.b16 %v6751
        %v6769 = vunpack.c.l.b16 %v6752
        %v6770 = vunpack.c.l.b16 %v6753
        %v6771 = vpack.c.b16 %v6764, %v6763
        %v6772 = vpack.c.b16 %v6766, %v6765
        %v6773 = vpack.c.b16 %v6768, %v6767
        %v6774 = vpack.c.b16 %v6770, %v6769
        %v6780 = vsel %vm6402, %v6754, 0
        %6782 = vmatpush.bf16.msra.mxu0 0
        %6783 = vmatpush.bf16.msra.mxu0 0
        %6784 = vmatpush.bf16.msra.mxu0 0
        %6785 = vmatpush.bf16.msra.mxu0 0
        %6786 = vmatpush.bf16.msra.mxu0 %v6774
        %6787 = vmatpush.bf16.msra.mxu0 %v6773
        %6788 = vmatpush.bf16.msra.mxu0 %v6772
        %6789 = vmatpush.bf16.msra.mxu0 %v6771
        %6790 = vmatmul.bf16.gmra.mxu0 %v6780
        %v6791 = vpop.f32.mrf.mxu0
        %v6792 = vadd.f32 0.0, %v6791
        %v6793 = vpop.f32.mrf.mxu0
        %6794 = vdwg.mxu0
        %v6795 = vadd.f32 %v6744, %v6792
        %s6796 = scalar_lea.vmem %s5, 256
        %v6797 = vld [vmem:[%s6796] sm:$0xf]
        %v6798 = vld [vmem:[%s6796 + $0x4] sm:$0xf]
        %v6799 = vld [vmem:[%s6796 + $0x8] sm:$0xf]
        %v6800 = vld [vmem:[%s6796 + $0xc] sm:$0xf]
        %v6801 = vld [vmem:[%s6796 + $0x10] sm:$0xf]
        %v6802 = vld [vmem:[%s6796 + $0x14] sm:$0xf]
        %v6803 = vld [vmem:[%s6796 + $0x18] sm:$0xf]
        %v6804 = vld [vmem:[%s6796 + $0x1c] sm:$0xf]
        %v6805 = vrot.slane %v6642, 3
        %v6814 = vunpack.c.l.b16 %v6797
        %v6815 = vunpack.c.l.b16 %v6798
        %v6816 = vunpack.c.l.b16 %v6799
        %v6817 = vunpack.c.l.b16 %v6800
        %v6818 = vunpack.c.l.b16 %v6801
        %v6819 = vunpack.c.l.b16 %v6802
        %v6820 = vunpack.c.l.b16 %v6803
        %v6821 = vunpack.c.l.b16 %v6804
        %v6822 = vpack.c.b16 %v6815, %v6814
        %v6823 = vpack.c.b16 %v6817, %v6816
        %v6824 = vpack.c.b16 %v6819, %v6818
        %v6825 = vpack.c.b16 %v6821, %v6820
        %v6831 = vsel %vm6402, %v6805, 0
        %6833 = vmatpush.bf16.msra.mxu0 0
        %6834 = vmatpush.bf16.msra.mxu0 0
        %6835 = vmatpush.bf16.msra.mxu0 0
        %6836 = vmatpush.bf16.msra.mxu0 0
        %6837 = vmatpush.bf16.msra.mxu0 %v6825
        %6838 = vmatpush.bf16.msra.mxu0 %v6824
        %6839 = vmatpush.bf16.msra.mxu0 %v6823
        %6840 = vmatpush.bf16.msra.mxu0 %v6822
        %6841 = vmatmul.bf16.gmra.mxu0 %v6831
        %v6842 = vpop.f32.mrf.mxu0
        %v6843 = vadd.f32 0.0, %v6842
        %v6844 = vpop.f32.mrf.mxu0
        %6845 = vdwg.mxu0
        %v6846 = vadd.f32 %v6795, %v6843
        %v6847 = vunpack.c.l.bf16 %v6328
        %v6849 = vrot.slane %v6847, 1
        %v6851 = vmax.f32 %v6847, %v6849
        %v6852 = vpack.c.bf16 %v6851, %v6851
        %v6853 = vunpack.c.l.bf16 %v6330
        %v6855 = vrot.slane %v6853, 1
        %v6857 = vmax.f32 %v6853, %v6855
        %v6858 = vpack.c.bf16 %v6857, %v6857
        %v6859 = vunpack.c.l.bf16 %v6852
        %v6860 = vunpack.c.l.bf16 %v6858
        %v6861 = vmax.f32 %v6859, %v6860
        %v6862 = vpack.c.bf16 %v6861, %v6861
        %s6863 = scalar_lea.vmem %s5, 288
        %v6864 = vld [vmem:[%s6863] sm:$0xf]
        %v6865 = vld [vmem:[%s6863 + $0x4] sm:$0xf]
        %v6866 = vld [vmem:[%s6863 + $0x8] sm:$0xf]
        %v6867 = vld [vmem:[%s6863 + $0xc] sm:$0xf]
        %v6868 = vld [vmem:[%s6863 + $0x10] sm:$0xf]
        %v6869 = vld [vmem:[%s6863 + $0x14] sm:$0xf]
        %v6870 = vld [vmem:[%s6863 + $0x18] sm:$0xf]
        %v6871 = vld [vmem:[%s6863 + $0x1c] sm:$0xf]
        %v6880 = vunpack.c.l.b16 %v6864
        %v6881 = vunpack.c.l.b16 %v6865
        %v6882 = vunpack.c.l.b16 %v6866
        %v6883 = vunpack.c.l.b16 %v6867
        %v6884 = vunpack.c.l.b16 %v6868
        %v6885 = vunpack.c.l.b16 %v6869
        %v6886 = vunpack.c.l.b16 %v6870
        %v6887 = vunpack.c.l.b16 %v6871
        %v6888 = vpack.c.b16 %v6881, %v6880
        %v6889 = vpack.c.b16 %v6883, %v6882
        %v6890 = vpack.c.b16 %v6885, %v6884
        %v6891 = vpack.c.b16 %v6887, %v6886
        %v6897 = vsel %vm6402, %v6862, 0
        %6899 = vmatpush.bf16.msra.mxu0 0
        %6900 = vmatpush.bf16.msra.mxu0 0
        %6901 = vmatpush.bf16.msra.mxu0 0
        %6902 = vmatpush.bf16.msra.mxu0 0
        %6903 = vmatpush.bf16.msra.mxu0 %v6891
        %6904 = vmatpush.bf16.msra.mxu0 %v6890
        %6905 = vmatpush.bf16.msra.mxu0 %v6889
        %6906 = vmatpush.bf16.msra.mxu0 %v6888
        %6907 = vmatmul.bf16.gmra.mxu0 %v6897
        %v6908 = vpop.f32.mrf.mxu0
        %v6909 = vadd.f32 0.0, %v6908
        %v6910 = vpop.f32.mrf.mxu0
        %6911 = vdwg.mxu0
        %v6912 = vadd.f32 %v6846, %v6909
        %v6913 = vunpack.c.l.bf16 %v6331
        %v6915 = vrot.slane %v6913, 1
        %v6917 = vmax.f32 %v6913, %v6915
        %v6918 = vpack.c.bf16 %v6917, %v6917
        %v6919 = vunpack.c.l.bf16 %v6333
        %v6921 = vrot.slane %v6919, 1
        %v6923 = vmax.f32 %v6919, %v6921
        %v6924 = vpack.c.bf16 %v6923, %v6923
        %v6925 = vunpack.c.l.bf16 %v6918
        %v6926 = vunpack.c.l.bf16 %v6924
        %v6927 = vmax.f32 %v6925, %v6926
        %v6928 = vpack.c.bf16 %v6927, %v6927
        %s6929 = scalar_lea.vmem %s5, 320
        %v6930 = vld [vmem:[%s6929] sm:$0xf]
        %v6931 = vld [vmem:[%s6929 + $0x4] sm:$0xf]
        %v6932 = vld [vmem:[%s6929 + $0x8] sm:$0xf]
        %v6933 = vld [vmem:[%s6929 + $0xc] sm:$0xf]
        %v6934 = vld [vmem:[%s6929 + $0x10] sm:$0xf]
        %v6935 = vld [vmem:[%s6929 + $0x14] sm:$0xf]
        %v6936 = vld [vmem:[%s6929 + $0x18] sm:$0xf]
        %v6937 = vld [vmem:[%s6929 + $0x1c] sm:$0xf]
        %v6946 = vunpack.c.l.b16 %v6930
        %v6947 = vunpack.c.l.b16 %v6931
        %v6948 = vunpack.c.l.b16 %v6932
        %v6949 = vunpack.c.l.b16 %v6933
        %v6950 = vunpack.c.l.b16 %v6934
        %v6951 = vunpack.c.l.b16 %v6935
        %v6952 = vunpack.c.l.b16 %v6936
        %v6953 = vunpack.c.l.b16 %v6937
        %v6954 = vpack.c.b16 %v6947, %v6946
        %v6955 = vpack.c.b16 %v6949, %v6948
        %v6956 = vpack.c.b16 %v6951, %v6950
        %v6957 = vpack.c.b16 %v6953, %v6952
        %v6963 = vsel %vm6402, %v6928, 0
        %6965 = vmatpush.bf16.msra.mxu0 0
        %6966 = vmatpush.bf16.msra.mxu0 0
        %6967 = vmatpush.bf16.msra.mxu0 0
        %6968 = vmatpush.bf16.msra.mxu0 0
        %6969 = vmatpush.bf16.msra.mxu0 %v6957
        %6970 = vmatpush.bf16.msra.mxu0 %v6956
        %6971 = vmatpush.bf16.msra.mxu0 %v6955
        %6972 = vmatpush.bf16.msra.mxu0 %v6954
        %6973 = vmatmul.bf16.gmra.mxu0 %v6963
        %v6974 = vpop.f32.mrf.mxu0
        %v6975 = vadd.f32 0.0, %v6974
        %v6976 = vpop.f32.mrf.mxu0
        %6977 = vdwg.mxu0
        %v6978 = vadd.f32 %v6912, %v6975
        %s6979 = scalar_lea.vmem %s5, 352
        %v6980 = vld [vmem:[%s6979] sm:$0xf]
        %v6981 = vld [vmem:[%s6979 + $0x4] sm:$0xf]
        %v6982 = vld [vmem:[%s6979 + $0x8] sm:$0xf]
        %v6983 = vld [vmem:[%s6979 + $0xc] sm:$0xf]
        %v6984 = vld [vmem:[%s6979 + $0x10] sm:$0xf]
        %v6985 = vld [vmem:[%s6979 + $0x14] sm:$0xf]
        %v6986 = vld [vmem:[%s6979 + $0x18] sm:$0xf]
        %v6987 = vld [vmem:[%s6979 + $0x1c] sm:$0xf]
        %v6989 = vrot.slane %v6928, 1
        %v6998 = vunpack.c.l.b16 %v6980
        %v6999 = vunpack.c.l.b16 %v6981
        %v7000 = vunpack.c.l.b16 %v6982
        %v7001 = vunpack.c.l.b16 %v6983
        %v7002 = vunpack.c.l.b16 %v6984
        %v7003 = vunpack.c.l.b16 %v6985
        %v7004 = vunpack.c.l.b16 %v6986
        %v7005 = vunpack.c.l.b16 %v6987
        %v7006 = vpack.c.b16 %v6999, %v6998
        %v7007 = vpack.c.b16 %v7001, %v7000
        %v7008 = vpack.c.b16 %v7003, %v7002
        %v7009 = vpack.c.b16 %v7005, %v7004
        %v7015 = vsel %vm6402, %v6989, 0
        %7017 = vmatpush.bf16.msra.mxu0 0
        %7018 = vmatpush.bf16.msra.mxu0 0
        %7019 = vmatpush.bf16.msra.mxu0 0
        %7020 = vmatpush.bf16.msra.mxu0 0
        %7021 = vmatpush.bf16.msra.mxu0 %v7009
        %7022 = vmatpush.bf16.msra.mxu0 %v7008
        %7023 = vmatpush.bf16.msra.mxu0 %v7007
        %7024 = vmatpush.bf16.msra.mxu0 %v7006
        %7025 = vmatmul.bf16.gmra.mxu0 %v7015
        %v7026 = vpop.f32.mrf.mxu0
        %v7027 = vadd.f32 0.0, %v7026
        %v7028 = vpop.f32.mrf.mxu0
        %7029 = vdwg.mxu0
        %v7030 = vadd.f32 %v6978, %v7027
        %s7031 = scalar_lea.vmem %s5, 384
        %v7032 = vld [vmem:[%s7031] sm:$0xf]
        %v7033 = vld [vmem:[%s7031 + $0x4] sm:$0xf]
        %v7034 = vld [vmem:[%s7031 + $0x8] sm:$0xf]
        %v7035 = vld [vmem:[%s7031 + $0xc] sm:$0xf]
        %v7036 = vld [vmem:[%s7031 + $0x10] sm:$0xf]
        %v7037 = vld [vmem:[%s7031 + $0x14] sm:$0xf]
        %v7038 = vld [vmem:[%s7031 + $0x18] sm:$0xf]
        %v7039 = vld [vmem:[%s7031 + $0x1c] sm:$0xf]
        %v7040 = vrot.slane %v6928, 2
        %v7049 = vunpack.c.l.b16 %v7032
        %v7050 = vunpack.c.l.b16 %v7033
        %v7051 = vunpack.c.l.b16 %v7034
        %v7052 = vunpack.c.l.b16 %v7035
        %v7053 = vunpack.c.l.b16 %v7036
        %v7054 = vunpack.c.l.b16 %v7037
        %v7055 = vunpack.c.l.b16 %v7038
        %v7056 = vunpack.c.l.b16 %v7039
        %v7057 = vpack.c.b16 %v7050, %v7049
        %v7058 = vpack.c.b16 %v7052, %v7051
        %v7059 = vpack.c.b16 %v7054, %v7053
        %v7060 = vpack.c.b16 %v7056, %v7055
        %v7066 = vsel %vm6402, %v7040, 0
        %7068 = vmatpush.bf16.msra.mxu0 0
        %7069 = vmatpush.bf16.msra.mxu0 0
        %7070 = vmatpush.bf16.msra.mxu0 0
        %7071 = vmatpush.bf16.msra.mxu0 0
        %7072 = vmatpush.bf16.msra.mxu0 %v7060
        %7073 = vmatpush.bf16.msra.mxu0 %v7059
        %7074 = vmatpush.bf16.msra.mxu0 %v7058
        %7075 = vmatpush.bf16.msra.mxu0 %v7057
        %7076 = vmatmul.bf16.gmra.mxu0 %v7066
        %v7077 = vpop.f32.mrf.mxu0
        %v7078 = vadd.f32 0.0, %v7077
        %v7079 = vpop.f32.mrf.mxu0
        %7080 = vdwg.mxu0
        %v7081 = vadd.f32 %v7030, %v7078
        %s7082 = scalar_lea.vmem %s5, 416
        %v7083 = vld [vmem:[%s7082] sm:$0xf]
        %v7084 = vld [vmem:[%s7082 + $0x4] sm:$0xf]
        %v7085 = vld [vmem:[%s7082 + $0x8] sm:$0xf]
        %v7086 = vld [vmem:[%s7082 + $0xc] sm:$0xf]
        %v7087 = vld [vmem:[%s7082 + $0x10] sm:$0xf]
        %v7088 = vld [vmem:[%s7082 + $0x14] sm:$0xf]
        %v7089 = vld [vmem:[%s7082 + $0x18] sm:$0xf]
        %v7090 = vld [vmem:[%s7082 + $0x1c] sm:$0xf]
        %v7091 = vrot.slane %v6928, 3
        %v7100 = vunpack.c.l.b16 %v7083
        %v7101 = vunpack.c.l.b16 %v7084
        %v7102 = vunpack.c.l.b16 %v7085
        %v7103 = vunpack.c.l.b16 %v7086
        %v7104 = vunpack.c.l.b16 %v7087
        %v7105 = vunpack.c.l.b16 %v7088
        %v7106 = vunpack.c.l.b16 %v7089
        %v7107 = vunpack.c.l.b16 %v7090
        %v7108 = vpack.c.b16 %v7101, %v7100
        %v7109 = vpack.c.b16 %v7103, %v7102
        %v7110 = vpack.c.b16 %v7105, %v7104
        %v7111 = vpack.c.b16 %v7107, %v7106
        %v7117 = vsel %vm6402, %v7091, 0
        %7119 = vmatpush.bf16.msra.mxu0 0
        %7120 = vmatpush.bf16.msra.mxu0 0
        %7121 = vmatpush.bf16.msra.mxu0 0
        %7122 = vmatpush.bf16.msra.mxu0 0
        %7123 = vmatpush.bf16.msra.mxu0 %v7111
        %7124 = vmatpush.bf16.msra.mxu0 %v7110
        %7125 = vmatpush.bf16.msra.mxu0 %v7109
        %7126 = vmatpush.bf16.msra.mxu0 %v7108
        %7127 = vmatmul.bf16.gmra.mxu0 %v7117
        %v7128 = vpop.f32.mrf.mxu0
        %v7129 = vadd.f32 0.0, %v7128
        %v7130 = vpop.f32.mrf.mxu0
        %7131 = vdwg.mxu0
        %v7132 = vadd.f32 %v7081, %v7129
        %v7133 = vunpack.c.l.bf16 %v6332
        %v7135 = vrot.slane %v7133, 1
        %v7137 = vmax.f32 %v7133, %v7135
        %v7138 = vpack.c.bf16 %v7137, %v7137
        %v7139 = vunpack.c.l.bf16 %v6334
        %v7141 = vrot.slane %v7139, 1
        %v7143 = vmax.f32 %v7139, %v7141
        %v7144 = vpack.c.bf16 %v7143, %v7143
        %v7145 = vunpack.c.l.bf16 %v7138
        %v7146 = vunpack.c.l.bf16 %v7144
        %v7147 = vmax.f32 %v7145, %v7146
        %v7148 = vpack.c.bf16 %v7147, %v7147
        %s7149 = scalar_lea.vmem %s5, 448
        %v7150 = vld [vmem:[%s7149] sm:$0xf]
        %v7151 = vld [vmem:[%s7149 + $0x4] sm:$0xf]
        %v7152 = vld [vmem:[%s7149 + $0x8] sm:$0xf]
        %v7153 = vld [vmem:[%s7149 + $0xc] sm:$0xf]
        %v7154 = vld [vmem:[%s7149 + $0x10] sm:$0xf]
        %v7155 = vld [vmem:[%s7149 + $0x14] sm:$0xf]
        %v7156 = vld [vmem:[%s7149 + $0x18] sm:$0xf]
        %v7157 = vld [vmem:[%s7149 + $0x1c] sm:$0xf]
        %v7166 = vunpack.c.l.b16 %v7150
        %v7167 = vunpack.c.l.b16 %v7151
        %v7168 = vunpack.c.l.b16 %v7152
        %v7169 = vunpack.c.l.b16 %v7153
        %v7170 = vunpack.c.l.b16 %v7154
        %v7171 = vunpack.c.l.b16 %v7155
        %v7172 = vunpack.c.l.b16 %v7156
        %v7173 = vunpack.c.l.b16 %v7157
        %v7174 = vpack.c.b16 %v7167, %v7166
        %v7175 = vpack.c.b16 %v7169, %v7168
        %v7176 = vpack.c.b16 %v7171, %v7170
        %v7177 = vpack.c.b16 %v7173, %v7172
        %v7183 = vsel %vm6402, %v7148, 0
        %7185 = vmatpush.bf16.msra.mxu0 0
        %7186 = vmatpush.bf16.msra.mxu0 0
        %7187 = vmatpush.bf16.msra.mxu0 0
        %7188 = vmatpush.bf16.msra.mxu0 0
        %7189 = vmatpush.bf16.msra.mxu0 %v7177
        %7190 = vmatpush.bf16.msra.mxu0 %v7176
        %7191 = vmatpush.bf16.msra.mxu0 %v7175
        %7192 = vmatpush.bf16.msra.mxu0 %v7174
        %7193 = vmatmul.bf16.gmra.mxu0 %v7183
        %v7194 = vpop.f32.mrf.mxu0
        %v7195 = vadd.f32 0.0, %v7194
        %v7196 = vpop.f32.mrf.mxu0
        %7197 = vdwg.mxu0
        %v7198 = vadd.f32 %v7132, %v7195
        %v7199 = vunpack.c.l.bf16 %v6335
        %v7201 = vrot.slane %v7199, 1
        %v7203 = vmax.f32 %v7199, %v7201
        %v7204 = vpack.c.bf16 %v7203, %v7203
        %v7205 = vunpack.c.l.bf16 %v6337
        %v7207 = vrot.slane %v7205, 1
        %v7209 = vmax.f32 %v7205, %v7207
        %v7210 = vpack.c.bf16 %v7209, %v7209
        %v7211 = vunpack.c.l.bf16 %v7204
        %v7212 = vunpack.c.l.bf16 %v7210
        %v7213 = vmax.f32 %v7211, %v7212
        %v7214 = vpack.c.bf16 %v7213, %v7213
        %s7215 = scalar_lea.vmem %s5, 480
        %v7216 = vld [vmem:[%s7215] sm:$0xf]
        %v7217 = vld [vmem:[%s7215 + $0x4] sm:$0xf]
        %v7218 = vld [vmem:[%s7215 + $0x8] sm:$0xf]
        %v7219 = vld [vmem:[%s7215 + $0xc] sm:$0xf]
        %v7220 = vld [vmem:[%s7215 + $0x10] sm:$0xf]
        %v7221 = vld [vmem:[%s7215 + $0x14] sm:$0xf]
        %v7222 = vld [vmem:[%s7215 + $0x18] sm:$0xf]
        %v7223 = vld [vmem:[%s7215 + $0x1c] sm:$0xf]
        %v7232 = vunpack.c.l.b16 %v7216
        %v7233 = vunpack.c.l.b16 %v7217
        %v7234 = vunpack.c.l.b16 %v7218
        %v7235 = vunpack.c.l.b16 %v7219
        %v7236 = vunpack.c.l.b16 %v7220
        %v7237 = vunpack.c.l.b16 %v7221
        %v7238 = vunpack.c.l.b16 %v7222
        %v7239 = vunpack.c.l.b16 %v7223
        %v7240 = vpack.c.b16 %v7233, %v7232
        %v7241 = vpack.c.b16 %v7235, %v7234
        %v7242 = vpack.c.b16 %v7237, %v7236
        %v7243 = vpack.c.b16 %v7239, %v7238
        %v7249 = vsel %vm6402, %v7214, 0
        %7251 = vmatpush.bf16.msra.mxu0 0
        %7252 = vmatpush.bf16.msra.mxu0 0
        %7253 = vmatpush.bf16.msra.mxu0 0
        %7254 = vmatpush.bf16.msra.mxu0 0
        %7255 = vmatpush.bf16.msra.mxu0 %v7243
        %7256 = vmatpush.bf16.msra.mxu0 %v7242
        %7257 = vmatpush.bf16.msra.mxu0 %v7241
        %7258 = vmatpush.bf16.msra.mxu0 %v7240
        %7259 = vmatmul.bf16.gmra.mxu0 %v7249
        %v7260 = vpop.f32.mrf.mxu0
        %v7261 = vadd.f32 0.0, %v7260
        %v7262 = vpop.f32.mrf.mxu0
        %7263 = vdwg.mxu0
        %v7264 = vadd.f32 %v7198, %v7261
        %s7265 = scalar_lea.vmem %s5, 512
        %v7266 = vld [vmem:[%s7265] sm:$0xf]
        %v7267 = vld [vmem:[%s7265 + $0x4] sm:$0xf]
        %v7268 = vld [vmem:[%s7265 + $0x8] sm:$0xf]
        %v7269 = vld [vmem:[%s7265 + $0xc] sm:$0xf]
        %v7270 = vld [vmem:[%s7265 + $0x10] sm:$0xf]
        %v7271 = vld [vmem:[%s7265 + $0x14] sm:$0xf]
        %v7272 = vld [vmem:[%s7265 + $0x18] sm:$0xf]
        %v7273 = vld [vmem:[%s7265 + $0x1c] sm:$0xf]
        %v7275 = vrot.slane %v7214, 1
        %v7284 = vunpack.c.l.b16 %v7266
        %v7285 = vunpack.c.l.b16 %v7267
        %v7286 = vunpack.c.l.b16 %v7268
        %v7287 = vunpack.c.l.b16 %v7269
        %v7288 = vunpack.c.l.b16 %v7270
        %v7289 = vunpack.c.l.b16 %v7271
        %v7290 = vunpack.c.l.b16 %v7272
        %v7291 = vunpack.c.l.b16 %v7273
        %v7292 = vpack.c.b16 %v7285, %v7284
        %v7293 = vpack.c.b16 %v7287, %v7286
        %v7294 = vpack.c.b16 %v7289, %v7288
        %v7295 = vpack.c.b16 %v7291, %v7290
        %v7301 = vsel %vm6402, %v7275, 0
        %7303 = vmatpush.bf16.msra.mxu0 0
        %7304 = vmatpush.bf16.msra.mxu0 0
        %7305 = vmatpush.bf16.msra.mxu0 0
        %7306 = vmatpush.bf16.msra.mxu0 0
        %7307 = vmatpush.bf16.msra.mxu0 %v7295
        %7308 = vmatpush.bf16.msra.mxu0 %v7294
        %7309 = vmatpush.bf16.msra.mxu0 %v7293
        %7310 = vmatpush.bf16.msra.mxu0 %v7292
        %7311 = vmatmul.bf16.gmra.mxu0 %v7301
        %v7312 = vpop.f32.mrf.mxu0
        %v7313 = vadd.f32 0.0, %v7312
        %v7314 = vpop.f32.mrf.mxu0
        %7315 = vdwg.mxu0
        %v7316 = vadd.f32 %v7264, %v7313
        %s7317 = scalar_lea.vmem %s5, 544
        %v7318 = vld [vmem:[%s7317] sm:$0xf]
        %v7319 = vld [vmem:[%s7317 + $0x4] sm:$0xf]
        %v7320 = vld [vmem:[%s7317 + $0x8] sm:$0xf]
        %v7321 = vld [vmem:[%s7317 + $0xc] sm:$0xf]
        %v7322 = vld [vmem:[%s7317 + $0x10] sm:$0xf]
        %v7323 = vld [vmem:[%s7317 + $0x14] sm:$0xf]
        %v7324 = vld [vmem:[%s7317 + $0x18] sm:$0xf]
        %v7325 = vld [vmem:[%s7317 + $0x1c] sm:$0xf]
        %v7326 = vrot.slane %v7214, 2
        %v7335 = vunpack.c.l.b16 %v7318
        %v7336 = vunpack.c.l.b16 %v7319
        %v7337 = vunpack.c.l.b16 %v7320
        %v7338 = vunpack.c.l.b16 %v7321
        %v7339 = vunpack.c.l.b16 %v7322
        %v7340 = vunpack.c.l.b16 %v7323
        %v7341 = vunpack.c.l.b16 %v7324
        %v7342 = vunpack.c.l.b16 %v7325
        %v7343 = vpack.c.b16 %v7336, %v7335
        %v7344 = vpack.c.b16 %v7338, %v7337
        %v7345 = vpack.c.b16 %v7340, %v7339
        %v7346 = vpack.c.b16 %v7342, %v7341
        %v7352 = vsel %vm6402, %v7326, 0
        %7354 = vmatpush.bf16.msra.mxu0 0
        %7355 = vmatpush.bf16.msra.mxu0 0
        %7356 = vmatpush.bf16.msra.mxu0 0
        %7357 = vmatpush.bf16.msra.mxu0 0
        %7358 = vmatpush.bf16.msra.mxu0 %v7346
        %7359 = vmatpush.bf16.msra.mxu0 %v7345
        %7360 = vmatpush.bf16.msra.mxu0 %v7344
        %7361 = vmatpush.bf16.msra.mxu0 %v7343
        %7362 = vmatmul.bf16.gmra.mxu0 %v7352
        %v7363 = vpop.f32.mrf.mxu0
        %v7364 = vadd.f32 0.0, %v7363
        %v7365 = vpop.f32.mrf.mxu0
        %7366 = vdwg.mxu0
        %v7367 = vadd.f32 %v7316, %v7364
        %s7368 = scalar_lea.vmem %s5, 576
        %v7369 = vld [vmem:[%s7368] sm:$0xf]
        %v7370 = vld [vmem:[%s7368 + $0x4] sm:$0xf]
        %v7371 = vld [vmem:[%s7368 + $0x8] sm:$0xf]
        %v7372 = vld [vmem:[%s7368 + $0xc] sm:$0xf]
        %v7373 = vld [vmem:[%s7368 + $0x10] sm:$0xf]
        %v7374 = vld [vmem:[%s7368 + $0x14] sm:$0xf]
        %v7375 = vld [vmem:[%s7368 + $0x18] sm:$0xf]
        %v7376 = vld [vmem:[%s7368 + $0x1c] sm:$0xf]
        %v7377 = vrot.slane %v7214, 3
        %v7386 = vunpack.c.l.b16 %v7369
        %v7387 = vunpack.c.l.b16 %v7370
        %v7388 = vunpack.c.l.b16 %v7371
        %v7389 = vunpack.c.l.b16 %v7372
        %v7390 = vunpack.c.l.b16 %v7373
        %v7391 = vunpack.c.l.b16 %v7374
        %v7392 = vunpack.c.l.b16 %v7375
        %v7393 = vunpack.c.l.b16 %v7376
        %v7394 = vpack.c.b16 %v7387, %v7386
        %v7395 = vpack.c.b16 %v7389, %v7388
        %v7396 = vpack.c.b16 %v7391, %v7390
        %v7397 = vpack.c.b16 %v7393, %v7392
        %v7403 = vsel %vm6402, %v7377, 0
        %7405 = vmatpush.bf16.msra.mxu0 0
        %7406 = vmatpush.bf16.msra.mxu0 0
        %7407 = vmatpush.bf16.msra.mxu0 0
        %7408 = vmatpush.bf16.msra.mxu0 0
        %7409 = vmatpush.bf16.msra.mxu0 %v7397
        %7410 = vmatpush.bf16.msra.mxu0 %v7396
        %7411 = vmatpush.bf16.msra.mxu0 %v7395
        %7412 = vmatpush.bf16.msra.mxu0 %v7394
        %7413 = vmatmul.bf16.gmra.mxu0 %v7403
        %v7414 = vpop.f32.mrf.mxu0
        %v7415 = vadd.f32 0.0, %v7414
        %v7416 = vpop.f32.mrf.mxu0
        %7417 = vdwg.mxu0
        %v7418 = vadd.f32 %v7367, %v7415
        %v7419 = vunpack.c.l.bf16 %v6336
        %v7421 = vrot.slane %v7419, 1
        %v7423 = vmax.f32 %v7419, %v7421
        %v7424 = vpack.c.bf16 %v7423, %v7423
        %v7425 = vunpack.c.l.bf16 %v6338
        %v7427 = vrot.slane %v7425, 1
        %v7429 = vmax.f32 %v7425, %v7427
        %v7430 = vpack.c.bf16 %v7429, %v7429
        %v7431 = vunpack.c.l.bf16 %v7424
        %v7432 = vunpack.c.l.bf16 %v7430
        %v7433 = vmax.f32 %v7431, %v7432
        %v7434 = vpack.c.bf16 %v7433, %v7433
        %s7435 = scalar_lea.vmem %s5, 608
        %v7436 = vld [vmem:[%s7435] sm:$0xf]
        %v7437 = vld [vmem:[%s7435 + $0x4] sm:$0xf]
        %v7438 = vld [vmem:[%s7435 + $0x8] sm:$0xf]
        %v7439 = vld [vmem:[%s7435 + $0xc] sm:$0xf]
        %v7440 = vld [vmem:[%s7435 + $0x10] sm:$0xf]
        %v7441 = vld [vmem:[%s7435 + $0x14] sm:$0xf]
        %v7442 = vld [vmem:[%s7435 + $0x18] sm:$0xf]
        %v7443 = vld [vmem:[%s7435 + $0x1c] sm:$0xf]
        %v7452 = vunpack.c.l.b16 %v7436
        %v7453 = vunpack.c.l.b16 %v7437
        %v7454 = vunpack.c.l.b16 %v7438
        %v7455 = vunpack.c.l.b16 %v7439
        %v7456 = vunpack.c.l.b16 %v7440
        %v7457 = vunpack.c.l.b16 %v7441
        %v7458 = vunpack.c.l.b16 %v7442
        %v7459 = vunpack.c.l.b16 %v7443
        %v7460 = vpack.c.b16 %v7453, %v7452
        %v7461 = vpack.c.b16 %v7455, %v7454
        %v7462 = vpack.c.b16 %v7457, %v7456
        %v7463 = vpack.c.b16 %v7459, %v7458
        %v7469 = vsel %vm6402, %v7434, 0
        %7471 = vmatpush.bf16.msra.mxu0 0
        %7472 = vmatpush.bf16.msra.mxu0 0
        %7473 = vmatpush.bf16.msra.mxu0 0
        %7474 = vmatpush.bf16.msra.mxu0 0
        %7475 = vmatpush.bf16.msra.mxu0 %v7463
        %7476 = vmatpush.bf16.msra.mxu0 %v7462
        %7477 = vmatpush.bf16.msra.mxu0 %v7461
        %7478 = vmatpush.bf16.msra.mxu0 %v7460
        %7479 = vmatmul.bf16.gmra.mxu0 %v7469
        %v7480 = vpop.f32.mrf.mxu0
        %v7481 = vadd.f32 0.0, %v7480
        %v7482 = vpop.f32.mrf.mxu0
        %7483 = vdwg.mxu0
        %v7484 = vadd.f32 %v7418, %v7481
        %v7485 = vunpack.c.l.bf16 %v6339
        %v7487 = vrot.slane %v7485, 1
        %v7489 = vmax.f32 %v7485, %v7487
        %v7490 = vpack.c.bf16 %v7489, %v7489
        %v7491 = vunpack.c.l.bf16 %v6341
        %v7493 = vrot.slane %v7491, 1
        %v7495 = vmax.f32 %v7491, %v7493
        %v7496 = vpack.c.bf16 %v7495, %v7495
        %v7497 = vunpack.c.l.bf16 %v7490
        %v7498 = vunpack.c.l.bf16 %v7496
        %v7499 = vmax.f32 %v7497, %v7498
        %v7500 = vpack.c.bf16 %v7499, %v7499
        %s7501 = scalar_lea.vmem %s5, 640
        %v7502 = vld [vmem:[%s7501] sm:$0xf]
        %v7503 = vld [vmem:[%s7501 + $0x4] sm:$0xf]
        %v7504 = vld [vmem:[%s7501 + $0x8] sm:$0xf]
        %v7505 = vld [vmem:[%s7501 + $0xc] sm:$0xf]
        %v7506 = vld [vmem:[%s7501 + $0x10] sm:$0xf]
        %v7507 = vld [vmem:[%s7501 + $0x14] sm:$0xf]
        %v7508 = vld [vmem:[%s7501 + $0x18] sm:$0xf]
        %v7509 = vld [vmem:[%s7501 + $0x1c] sm:$0xf]
        %v7518 = vunpack.c.l.b16 %v7502
        %v7519 = vunpack.c.l.b16 %v7503
        %v7520 = vunpack.c.l.b16 %v7504
        %v7521 = vunpack.c.l.b16 %v7505
        %v7522 = vunpack.c.l.b16 %v7506
        %v7523 = vunpack.c.l.b16 %v7507
        %v7524 = vunpack.c.l.b16 %v7508
        %v7525 = vunpack.c.l.b16 %v7509
        %v7526 = vpack.c.b16 %v7519, %v7518
        %v7527 = vpack.c.b16 %v7521, %v7520
        %v7528 = vpack.c.b16 %v7523, %v7522
        %v7529 = vpack.c.b16 %v7525, %v7524
        %v7535 = vsel %vm6402, %v7500, 0
        %7537 = vmatpush.bf16.msra.mxu0 0
        %7538 = vmatpush.bf16.msra.mxu0 0
        %7539 = vmatpush.bf16.msra.mxu0 0
        %7540 = vmatpush.bf16.msra.mxu0 0
        %7541 = vmatpush.bf16.msra.mxu0 %v7529
        %7542 = vmatpush.bf16.msra.mxu0 %v7528
        %7543 = vmatpush.bf16.msra.mxu0 %v7527
        %7544 = vmatpush.bf16.msra.mxu0 %v7526
        %7545 = vmatmul.bf16.gmra.mxu0 %v7535
        %v7546 = vpop.f32.mrf.mxu0
        %v7547 = vadd.f32 0.0, %v7546
        %v7548 = vpop.f32.mrf.mxu0
        %7549 = vdwg.mxu0
        %v7550 = vadd.f32 %v7484, %v7547
        %s7551 = scalar_lea.vmem %s5, 672
        %v7552 = vld [vmem:[%s7551] sm:$0xf]
        %v7553 = vld [vmem:[%s7551 + $0x4] sm:$0xf]
        %v7554 = vld [vmem:[%s7551 + $0x8] sm:$0xf]
        %v7555 = vld [vmem:[%s7551 + $0xc] sm:$0xf]
        %v7556 = vld [vmem:[%s7551 + $0x10] sm:$0xf]
        %v7557 = vld [vmem:[%s7551 + $0x14] sm:$0xf]
        %v7558 = vld [vmem:[%s7551 + $0x18] sm:$0xf]
        %v7559 = vld [vmem:[%s7551 + $0x1c] sm:$0xf]
        %v7561 = vrot.slane %v7500, 1
        %v7570 = vunpack.c.l.b16 %v7552
        %v7571 = vunpack.c.l.b16 %v7553
        %v7572 = vunpack.c.l.b16 %v7554
        %v7573 = vunpack.c.l.b16 %v7555
        %v7574 = vunpack.c.l.b16 %v7556
        %v7575 = vunpack.c.l.b16 %v7557
        %v7576 = vunpack.c.l.b16 %v7558
        %v7577 = vunpack.c.l.b16 %v7559
        %v7578 = vpack.c.b16 %v7571, %v7570
        %v7579 = vpack.c.b16 %v7573, %v7572
        %v7580 = vpack.c.b16 %v7575, %v7574
        %v7581 = vpack.c.b16 %v7577, %v7576
        %v7587 = vsel %vm6402, %v7561, 0
        %7589 = vmatpush.bf16.msra.mxu0 0
        %7590 = vmatpush.bf16.msra.mxu0 0
        %7591 = vmatpush.bf16.msra.mxu0 0
        %7592 = vmatpush.bf16.msra.mxu0 0
        %7593 = vmatpush.bf16.msra.mxu0 %v7581
        %7594 = vmatpush.bf16.msra.mxu0 %v7580
        %7595 = vmatpush.bf16.msra.mxu0 %v7579
        %7596 = vmatpush.bf16.msra.mxu0 %v7578
        %7597 = vmatmul.bf16.gmra.mxu0 %v7587
        %v7598 = vpop.f32.mrf.mxu0
        %v7599 = vadd.f32 0.0, %v7598
        %v7600 = vpop.f32.mrf.mxu0
        %7601 = vdwg.mxu0
        %v7602 = vadd.f32 %v7550, %v7599
        %s7603 = scalar_lea.vmem %s5, 704
        %v7604 = vld [vmem:[%s7603] sm:$0xf]
        %v7605 = vld [vmem:[%s7603 + $0x4] sm:$0xf]
        %v7606 = vld [vmem:[%s7603 + $0x8] sm:$0xf]
        %v7607 = vld [vmem:[%s7603 + $0xc] sm:$0xf]
        %v7608 = vld [vmem:[%s7603 + $0x10] sm:$0xf]
        %v7609 = vld [vmem:[%s7603 + $0x14] sm:$0xf]
        %v7610 = vld [vmem:[%s7603 + $0x18] sm:$0xf]
        %v7611 = vld [vmem:[%s7603 + $0x1c] sm:$0xf]
        %v7612 = vrot.slane %v7500, 2
        %v7621 = vunpack.c.l.b16 %v7604
        %v7622 = vunpack.c.l.b16 %v7605
        %v7623 = vunpack.c.l.b16 %v7606
        %v7624 = vunpack.c.l.b16 %v7607
        %v7625 = vunpack.c.l.b16 %v7608
        %v7626 = vunpack.c.l.b16 %v7609
        %v7627 = vunpack.c.l.b16 %v7610
        %v7628 = vunpack.c.l.b16 %v7611
        %v7629 = vpack.c.b16 %v7622, %v7621
        %v7630 = vpack.c.b16 %v7624, %v7623
        %v7631 = vpack.c.b16 %v7626, %v7625
        %v7632 = vpack.c.b16 %v7628, %v7627
        %v7638 = vsel %vm6402, %v7612, 0
        %7640 = vmatpush.bf16.msra.mxu0 0
        %7641 = vmatpush.bf16.msra.mxu0 0
        %7642 = vmatpush.bf16.msra.mxu0 0
        %7643 = vmatpush.bf16.msra.mxu0 0
        %7644 = vmatpush.bf16.msra.mxu0 %v7632
        %7645 = vmatpush.bf16.msra.mxu0 %v7631
        %7646 = vmatpush.bf16.msra.mxu0 %v7630
        %7647 = vmatpush.bf16.msra.mxu0 %v7629
        %7648 = vmatmul.bf16.gmra.mxu0 %v7638
        %v7649 = vpop.f32.mrf.mxu0
        %v7650 = vadd.f32 0.0, %v7649
        %v7651 = vpop.f32.mrf.mxu0
        %7652 = vdwg.mxu0
        %v7653 = vadd.f32 %v7602, %v7650
        %s7654 = scalar_lea.vmem %s5, 736
        %v7655 = vld [vmem:[%s7654] sm:$0xf]
        %v7656 = vld [vmem:[%s7654 + $0x4] sm:$0xf]
        %v7657 = vld [vmem:[%s7654 + $0x8] sm:$0xf]
        %v7658 = vld [vmem:[%s7654 + $0xc] sm:$0xf]
        %v7659 = vld [vmem:[%s7654 + $0x10] sm:$0xf]
        %v7660 = vld [vmem:[%s7654 + $0x14] sm:$0xf]
        %v7661 = vld [vmem:[%s7654 + $0x18] sm:$0xf]
        %v7662 = vld [vmem:[%s7654 + $0x1c] sm:$0xf]
        %v7663 = vrot.slane %v7500, 3
        %v7672 = vunpack.c.l.b16 %v7655
        %v7673 = vunpack.c.l.b16 %v7656
        %v7674 = vunpack.c.l.b16 %v7657
        %v7675 = vunpack.c.l.b16 %v7658
        %v7676 = vunpack.c.l.b16 %v7659
        %v7677 = vunpack.c.l.b16 %v7660
        %v7678 = vunpack.c.l.b16 %v7661
        %v7679 = vunpack.c.l.b16 %v7662
        %v7680 = vpack.c.b16 %v7673, %v7672
        %v7681 = vpack.c.b16 %v7675, %v7674
        %v7682 = vpack.c.b16 %v7677, %v7676
        %v7683 = vpack.c.b16 %v7679, %v7678
        %v7689 = vsel %vm6402, %v7663, 0
        %7691 = vmatpush.bf16.msra.mxu0 0
        %7692 = vmatpush.bf16.msra.mxu0 0
        %7693 = vmatpush.bf16.msra.mxu0 0
        %7694 = vmatpush.bf16.msra.mxu0 0
        %7695 = vmatpush.bf16.msra.mxu0 %v7683
        %7696 = vmatpush.bf16.msra.mxu0 %v7682
        %7697 = vmatpush.bf16.msra.mxu0 %v7681
        %7698 = vmatpush.bf16.msra.mxu0 %v7680
        %7699 = vmatmul.bf16.gmra.mxu0 %v7689
        %v7700 = vpop.f32.mrf.mxu0
        %v7701 = vadd.f32 0.0, %v7700
        %v7702 = vpop.f32.mrf.mxu0
        %7703 = vdwg.mxu0
        %v7704 = vadd.f32 %v7653, %v7701
        %v7705 = vunpack.c.l.bf16 %v6340
        %v7707 = vrot.slane %v7705, 1
        %v7709 = vmax.f32 %v7705, %v7707
        %v7710 = vpack.c.bf16 %v7709, %v7709
        %v7711 = vunpack.c.l.bf16 %v6342
        %v7713 = vrot.slane %v7711, 1
        %v7715 = vmax.f32 %v7711, %v7713
        %v7716 = vpack.c.bf16 %v7715, %v7715
        %v7717 = vunpack.c.l.bf16 %v7710
        %v7718 = vunpack.c.l.bf16 %v7716
        %v7719 = vmax.f32 %v7717, %v7718
        %v7720 = vpack.c.bf16 %v7719, %v7719
        %s7721 = scalar_lea.vmem %s5, 768
        %v7722 = vld [vmem:[%s7721] sm:$0xf]
        %v7723 = vld [vmem:[%s7721 + $0x4] sm:$0xf]
        %v7724 = vld [vmem:[%s7721 + $0x8] sm:$0xf]
        %v7725 = vld [vmem:[%s7721 + $0xc] sm:$0xf]
        %v7726 = vld [vmem:[%s7721 + $0x10] sm:$0xf]
        %v7727 = vld [vmem:[%s7721 + $0x14] sm:$0xf]
        %v7728 = vld [vmem:[%s7721 + $0x18] sm:$0xf]
        %v7729 = vld [vmem:[%s7721 + $0x1c] sm:$0xf]
        %v7738 = vunpack.c.l.b16 %v7722
        %v7739 = vunpack.c.l.b16 %v7723
        %v7740 = vunpack.c.l.b16 %v7724
        %v7741 = vunpack.c.l.b16 %v7725
        %v7742 = vunpack.c.l.b16 %v7726
        %v7743 = vunpack.c.l.b16 %v7727
        %v7744 = vunpack.c.l.b16 %v7728
        %v7745 = vunpack.c.l.b16 %v7729
        %v7746 = vpack.c.b16 %v7739, %v7738
        %v7747 = vpack.c.b16 %v7741, %v7740
        %v7748 = vpack.c.b16 %v7743, %v7742
        %v7749 = vpack.c.b16 %v7745, %v7744
        %v7755 = vsel %vm6402, %v7720, 0
        %7757 = vmatpush.bf16.msra.mxu0 0
        %7758 = vmatpush.bf16.msra.mxu0 0
        %7759 = vmatpush.bf16.msra.mxu0 0
        %7760 = vmatpush.bf16.msra.mxu0 0
        %7761 = vmatpush.bf16.msra.mxu0 %v7749
        %7762 = vmatpush.bf16.msra.mxu0 %v7748
        %7763 = vmatpush.bf16.msra.mxu0 %v7747
        %7764 = vmatpush.bf16.msra.mxu0 %v7746
        %7765 = vmatmul.bf16.gmra.mxu0 %v7755
        %v7766 = vpop.f32.mrf.mxu0
        %v7767 = vadd.f32 0.0, %v7766
        %v7768 = vpop.f32.mrf.mxu0
        %7769 = vdwg.mxu0
        %v7770 = vadd.f32 %v7704, %v7767
        %v7771 = vld [vmem:[%s6] sm:$0x1]
        %v7772 = vadd.f32 %v7770, %v7771
        %v7773 = vmax.f32 %v7772, 0.0
        %v7774 = vpack.c.bf16 %v7773, %v7773
        %v7775 = vld [vmem:[%s7] sm:$0xf]
        %v7776 = vld [vmem:[%s7 + $0x4] sm:$0xf]
        %v7777 = vld [vmem:[%s7 + $0x8] sm:$0xf]
        %v7778 = vld [vmem:[%s7 + $0xc] sm:$0xf]
        %v7779 = vld [vmem:[%s7 + $0x10] sm:$0xf]
        %v7780 = vld [vmem:[%s7 + $0x14] sm:$0xf]
        %v7781 = vld [vmem:[%s7 + $0x18] sm:$0xf]
        %v7782 = vld [vmem:[%s7 + $0x1c] sm:$0xf]
        %v7783 = vld [vmem:[%s7 + $0x20] sm:$0xf]
        %v7784 = vld [vmem:[%s7 + $0x24] sm:$0xf]
        %v7785 = vld [vmem:[%s7 + $0x28] sm:$0xf]
        %v7786 = vld [vmem:[%s7 + $0x2c] sm:$0xf]
        %v7787 = vld [vmem:[%s7 + $0x30] sm:$0xf]
        %v7788 = vld [vmem:[%s7 + $0x34] sm:$0xf]
        %v7789 = vld [vmem:[%s7 + $0x38] sm:$0xf]
        %v7790 = vld [vmem:[%s7 + $0x3c] sm:$0xf]
        %v7791 = vld [vmem:[%s8] sm:$0x1]
        %v7808 = vunpack.c.l.b16 %v7775
        %v7809 = vunpack.c.l.b16 %v7776
        %v7810 = vunpack.c.l.b16 %v7777
        %v7811 = vunpack.c.l.b16 %v7778
        %v7812 = vunpack.c.l.b16 %v7779
        %v7813 = vunpack.c.l.b16 %v7780
        %v7814 = vunpack.c.l.b16 %v7781
        %v7815 = vunpack.c.l.b16 %v7782
        %v7816 = vunpack.c.l.b16 %v7783
        %v7817 = vunpack.c.l.b16 %v7784
        %v7818 = vunpack.c.l.b16 %v7785
        %v7819 = vunpack.c.l.b16 %v7786
        %v7820 = vunpack.c.l.b16 %v7787
        %v7821 = vunpack.c.l.b16 %v7788
        %v7822 = vunpack.c.l.b16 %v7789
        %v7823 = vunpack.c.l.b16 %v7790
        %v7824 = vpack.c.b16 %v7809, %v7808
        %v7825 = vpack.c.b16 %v7811, %v7810
        %v7826 = vpack.c.b16 %v7813, %v7812
        %v7827 = vpack.c.b16 %v7815, %v7814
        %v7828 = vpack.c.b16 %v7817, %v7816
        %v7829 = vpack.c.b16 %v7819, %v7818
        %v7830 = vpack.c.b16 %v7821, %v7820
        %v7831 = vpack.c.b16 %v7823, %v7822
        %7840 = vmatpush.bf16.msra.mxu0 %v7831
        %7841 = vmatpush.bf16.msra.mxu0 %v7830
        %7842 = vmatpush.bf16.msra.mxu0 %v7829
        %7843 = vmatpush.bf16.msra.mxu0 %v7828
        %7844 = vmatpush.bf16.msra.mxu0 %v7827
        %7845 = vmatpush.bf16.msra.mxu0 %v7826
        %7846 = vmatpush.bf16.msra.mxu0 %v7825
        %7847 = vmatpush.bf16.msra.mxu0 %v7824
        %7848 = vmatmul.bf16.gmra.mxu0 %v7774
        %v7849 = vpop.f32.mrf.mxu0
        %v7850 = vadd.f32 %v7791, %v7849
        %v7851 = vpop.f32.mrf.mxu0
        %7852 = vdwg.mxu0
        %v7853 = vmax.f32 %v7850, 0.0
        %v7854 = vpack.c.bf16 %v7853, %v7853
        %v7855 = vld [vmem:[%s9] sm:$0xf]
        %v7856 = vld [vmem:[%s9 + $0x4] sm:$0xf]
        %v7857 = vld [vmem:[%s9 + $0x8] sm:$0xf]
        %v7858 = vld [vmem:[%s9 + $0xc] sm:$0xf]
        %v7859 = vld [vmem:[%s9 + $0x10] sm:$0xf]
        %v7860 = vld [vmem:[%s9 + $0x14] sm:$0xf]
        %v7861 = vld [vmem:[%s9 + $0x18] sm:$0xf]
        %v7862 = vld [vmem:[%s9 + $0x1c] sm:$0xf]
        %v7863 = vld [vmem:[%s10] sm:$0x1]
        %v7872 = vunpack.c.l.b16 %v7855
        %v7873 = vunpack.c.l.b16 %v7856
        %v7874 = vunpack.c.l.b16 %v7857
        %v7875 = vunpack.c.l.b16 %v7858
        %v7876 = vunpack.c.l.b16 %v7859
        %v7877 = vunpack.c.l.b16 %v7860
        %v7878 = vunpack.c.l.b16 %v7861
        %v7879 = vunpack.c.l.b16 %v7862
        %v7880 = vpack.c.b16 %v7873, %v7872
        %v7881 = vpack.c.b16 %v7875, %v7874
        %v7882 = vpack.c.b16 %v7877, %v7876
        %v7883 = vpack.c.b16 %v7879, %v7878
        %v7889 = vsel %vm6402, %v7854, 0
        %7891 = vmatpush.bf16.msra.mxu0 0
        %7892 = vmatpush.bf16.msra.mxu0 0
        %7893 = vmatpush.bf16.msra.mxu0 0
        %7894 = vmatpush.bf16.msra.mxu0 0
        %7895 = vmatpush.bf16.msra.mxu0 %v7883
        %7896 = vmatpush.bf16.msra.mxu0 %v7882
        %7897 = vmatpush.bf16.msra.mxu0 %v7881
        %7898 = vmatpush.bf16.msra.mxu0 %v7880
        %7899 = vmatmul.bf16.gmra.mxu0 %v7889
        %v7900 = vpop.f32.mrf.mxu0
        %v7901 = vadd.f32 %v7863, %v7900
        %v7902 = vpop.f32.mrf.mxu0
        %7903 = vdwg.mxu0
        %vm7904 = vcmask 270336
        %7905 = vst.msk [vmem:[%s378] sm:$0x1] %vm7904, %v7901
        %s7906 = sand.u32 %s269, 1
        %s7907 = scalar_lea.sflag [#allocation3], %s7906
        %s7908 = sand.u32 %s269, 1
        %s7909 = scalar_lea.vmem [#allocation2], %s7908
        // Predicated region
        $region65: #{conv_classifier_forward.1} parent=63 // pred_check
          %p7910 = pneg %p279
        $region66: #{conv_classifier_forward.1} parent=63 // pred_check_branch
          %7912 = sbr.rel (%p7910) target = $region68
        $region67: #{conv_classifier_forward.1} parent=63 // pred_region
          %7914 = vsyncadd %s7907, 0
          %s7915 = scalar_lea.hbm %s11, %s25
          %s7917 = sshll.u32 %s7909, 4
          %s7918 = int_to_ptr.vmem [resolvable:$true] %s7917
          %s7919 = sshll.u32 %s7915, 4
          %s7920 = int_to_ptr.hbm [resolvable:$true] %s7919
          %7922 = dma.vmem_to_hbm [thread:$0]  %s7918, 16, %s7920, %s7907
        $region68: #{conv_classifier_forward.1} parent=63 // pred_fallthru
          _
      $region64: #{conv_classifier_forward.1} parent=5 // pred_fallthru
        _
      %p7923 = scmp.le.s32.totalorder 2, %s20
      // Predicated region
      $region69: #{conv_classifier_forward.1} parent=5 // pred_check
        %p7924 = pneg %p7923
      $region70: #{conv_classifier_forward.1} parent=5 // pred_check_branch
        %7926 = sbr.rel (%p7924) target = $region72
      $region71: #{conv_classifier_forward.1} parent=5 // pred_region
        %s7927 = ssub.s32 %s20, 2
        // Predicated region
        $region73: #{conv_classifier_forward.1} parent=71 // pred_check
          %p7928 = pneg %p285
        $region74: #{conv_classifier_forward.1} parent=71 // pred_check_branch
          %7930 = sbr.rel (%p7928) target = $region76
        $region75: #{conv_classifier_forward.1} parent=71 // pred_region
          %s7931 = sand.u32 %s270, 1
          %s7932 = scalar_lea.sflag [#allocation3], %s7931
          %s7933 = sand.u32 %s270, 1
          %s7934 = scalar_lea.vmem [#allocation2], %s7933
          %7936 = dma.done %s7932, 16
        $region76: #{conv_classifier_forward.1} parent=71 // pred_fallthru
          _
      $region72: #{conv_classifier_forward.1} parent=5 // pred_fallthru
        _
    $region6: #{conv_classifier_forward.1} parent=1 // loop_footer
      %s24 = sadd.s32 1, %s20
    $region7: #{conv_classifier_forward.1} parent=1 // loop_footer_branch
      %19 = sbr.rel target = $region3
    $region8: #{conv_classifier_forward.1} parent=1 // loop_exit
      _
    %7937 = vsyncpa [#allocation3], 1
    %s7938 = scalar_lea.sflag [#allocation3], 1
    %7939 = vsyncpa %s7938, 1

</llo_original>
